<compile_context>
chip_gen: v7x
topology: tpu7x:2x2x1
jax: 0.10.0
libtpu: 0.0.40
codegen_flags: <defaults>
</compile_context>

<pallas_src>
import functools

import jax
import jax.numpy as jnp
from jax import lax
from jax.experimental import pallas as pl
from jax.experimental.pallas import tpu as pltpu

N_EMBED = 384
NUM_HEADS = 6
HEAD_SIZE = N_EMBED // NUM_HEADS        # 64
CHUNK_SIZE = 256                        # max context length (size of tril buffer)


# -------------------- kernel --------------------

def _mha_fused_kernel(x_ref, wqkv_ref, wproj_ref, bproj_ref, o_ref, attn_ref,
                      *, use_bf16_exp):
    """One batch element per grid step: fused QKV GEMM + 6-head causal attention + projection.

    x_ref     : (1, T, C)  f32   VMEM  (cast to bf16 in-kernel)
    wqkv_ref  : (C, 3C)    bf16  VMEM  columns = [Q heads | K heads | V heads], scale folded into Q
    wproj_ref : (C, C)     bf16  VMEM
    bproj_ref : (1, C)     f32   VMEM
    o_ref     : (1, T, C)  bf16  VMEM  (lane-dense output, last dim 384)
    attn_ref  : (T, C)     f32   VMEM scratch — concatenated head outputs
    """
    C = N_EMBED
    Hs = HEAD_SIZE

    x = x_ref[0].astype(jnp.bfloat16)                                    # (T, C) bf16
    T = x.shape[0]

    # Fused QKV matmul for all heads at once (MXU N = 3C = 1152), f32 accumulation.
    qkv = jnp.dot(x, wqkv_ref[...], preferred_element_type=jnp.float32)  # (T, 3C) f32
    qkv_b = qkv.astype(jnp.bfloat16)

    # Causal mask; the diagonal is always unmasked so no row is fully masked.
    row = lax.broadcasted_iota(jnp.int32, (T, T), 0)
    col = lax.broadcasted_iota(jnp.int32, (T, T), 1)
    causal = col <= row

    for h in range(NUM_HEADS):
        q = qkv_b[:, h * Hs:(h + 1) * Hs]                                # (T, Hs), pre-scaled
        k = qkv_b[:, C + h * Hs:C + (h + 1) * Hs]                        # (T, Hs)
        v = qkv_b[:, 2 * C + h * Hs:2 * C + (h + 1) * Hs]                # (T, Hs)

        # q @ k^T via contracting dims (no explicit transpose of k).
        s = lax.dot_general(q, k, (((1,), (1,)), ((), ())),
                            preferred_element_type=jnp.float32)          # (T, T) f32
        s = jnp.where(causal, s, -1e30)                                  # large finite, NaN-safe

        m = jnp.max(s, axis=-1, keepdims=True)
        if use_bf16_exp:
            # bf16 EUP (v6e/v7x): ~2x exp throughput; p is already bf16 for the MXU.
            p = jnp.exp((s - m).astype(jnp.bfloat16))                    # (T, T) bf16
            l = jnp.sum(p.astype(jnp.float32), axis=-1, keepdims=True)   # (T, 1) f32
        else:
            # v5-class chips have no bf16 VPU/EUP path -> keep softmax math in f32.
            p_f32 = jnp.exp(s - m)
            l = jnp.sum(p_f32, axis=-1, keepdims=True)
            p = p_f32.astype(jnp.bfloat16)
        # TODO(synk): attention-weight dropout is identity in eval mode; not applied.

        # Un-normalized p @ v, then normalize the small (T, Hs) result instead of the
        # (T, T) probabilities; row-reciprocal goes to the EUP (separate VLIW slot).
        o_h = jnp.dot(p, v, preferred_element_type=jnp.float32)          # (T, Hs) f32
        attn_ref[:, h * Hs:(h + 1) * Hs] = o_h * pl.reciprocal(l, approx=True)

    # Output projection + bias fused into the same kernel (lane-dense 384-wide output).
    y = jnp.dot(attn_ref[...].astype(jnp.bfloat16), wproj_ref[...],
                preferred_element_type=jnp.float32)                      # (T, C) f32
    # TODO(synk): output dropout is identity in eval mode; not applied.
    o_ref[0] = (y + bproj_ref[...]).astype(o_ref.dtype)


# -------------------- one-time parameter packing (hoisted out of the forward path) ----

def pack_mha_params(wq, wk, wv, w_proj, b_proj):
    """Do once at parameter-load time, NOT per forward call.

    wq/wk/wv: (H, C, Hs) f32 per-head Linear weights (laid out so y = x @ w).
    w_proj  : (C, C) f32 (laid out so y = x @ w_proj). b_proj: (1, C) f32.
    Returns bf16 (C, 3C) fused QKV weight (scale folded into Q), bf16 (C, C) proj, f32 bias.
    """
    C, H, Hs = N_EMBED, NUM_HEADS, HEAD_SIZE
    scale = Hs ** (-0.5)

    def flatten_heads(w):
        # (H, C, Hs) -> (C, H*Hs); column h*Hs+s corresponds to head h, output dim s.
        return jnp.transpose(w, (1, 0, 2)).reshape(C, H * Hs)

    w_qkv = jnp.concatenate(
        [flatten_heads(wq * scale), flatten_heads(wk), flatten_heads(wv)], axis=1)
    return (w_qkv.astype(jnp.bfloat16),
            w_proj.astype(jnp.bfloat16),
            b_proj.astype(jnp.float32))


def _bf16_eup_supported():
    """bf16 transcendental path exists on v6e/v7x; not on v5-class and older."""
    try:
        kind = jax.devices()[0].device_kind.lower()
        return not any(g in kind for g in ("v2", "v3", "v4", "v5"))
    except Exception:
        return True


# -------------------- wrapper --------------------

def multi_head_attention(x, w_qkv_b, w_proj_b, b_proj, *, out_dtype=jnp.bfloat16):
    """x: (B, T, C) f32. Weights prepacked by pack_mha_params()."""
    B, T, C = x.shape
    Hs = HEAD_SIZE
    assert C == N_EMBED and T <= CHUNK_SIZE

    kernel = functools.partial(_mha_fused_kernel, use_bf16_exp=_bf16_eup_supported())

    out_bytes = B * T * C * jnp.dtype(out_dtype).itemsize
    cost = pl.CostEstimate(
        flops=B * (2 * T * C * 3 * C                     # fused QKV GEMM
                   + NUM_HEADS * 4 * T * T * Hs          # scores + p@v per head
                   + 2 * T * C * C),                     # output projection
        transcendentals=B * NUM_HEADS * T * T,
        bytes_accessed=(4 * B * T * C                    # x (f32 in)
                        + 2 * (C * 3 * C + C * C)        # bf16 weights
                        + 4 * C                          # f32 bias
                        + out_bytes))

    # TODO(synk): on v7x with B == 1 (or odd B), add a second "parallel" axis (split T into
    # query tiles or heads 2x3) to feed both TensorCores; on single-TC chips with B >= 2,
    # a (2, T, C) batch block would amortize the ~0.35us per-step overhead.
    return pl.pallas_call(
        kernel,
        out_shape=jax.ShapeDtypeStruct((B, T, C), out_dtype),
        grid_spec=pltpu.PrefetchScalarGridSpec(
            num_scalar_prefetch=0,
            grid=(B,),
            in_specs=[
                pl.BlockSpec((1, T, C), lambda b: (b, 0, 0)),
                pl.BlockSpec((C, 3 * C), lambda b: (0, 0)),   # weights stay VMEM-resident
                pl.BlockSpec((C, C), lambda b: (0, 0)),
                pl.BlockSpec((1, C), lambda b: (0, 0)),
            ],
            out_specs=pl.BlockSpec((1, T, C), lambda b: (b, 0, 0)),
            scratch_shapes=[pltpu.VMEM((T, C), jnp.float32)],
        ),
        compiler_params=pltpu.CompilerParams(
            dimension_semantics=("parallel",)),
        cost_estimate=cost,
    )(x, w_qkv_b, w_proj_b, b_proj)


# -------------------- pure-JAX reference --------------------

def reference(x, wq, wk, wv, w_proj, b_proj):
    B, T, C = x.shape
    outs = []
    scale = HEAD_SIZE ** (-0.5)
    mask = jnp.tril(jnp.ones((T, T), dtype=bool))
    for h in range(NUM_HEADS):
        q = x @ wq[h]
        k = x @ wk[h]
        v = x @ wv[h]
        wei = (q @ jnp.swapaxes(k, -1, -2)) * scale
        wei = jnp.where(mask, wei, -jnp.inf)
        wei = jax.nn.softmax(wei, axis=-1)
        outs.append(wei @ v)
    cat = jnp.concatenate(outs, axis=-1)
    return cat @ w_proj + b_proj[0]


# -------------------- main --------------------

if __name__ == "__main__":
    key = jax.random.PRNGKey(0)
    k_x, k_q, k_k, k_v, k_pw, k_pb = jax.random.split(key, 6)

    B, T = 2, 128  # small seq (<= chunk_size); n_embed fixed by the module at 384

    x = jax.random.normal(k_x, (B, T, N_EMBED), dtype=jnp.float32)

    # nn.Linear default init: U(-1/sqrt(fan_in), 1/sqrt(fan_in)); fan_in = n_embed
    bound = 1.0 / (N_EMBED ** 0.5)
    wq = jax.random.uniform(k_q, (NUM_HEADS, N_EMBED, HEAD_SIZE), jnp.float32, -bound, bound)
    wk = jax.random.uniform(k_k, (NUM_HEADS, N_EMBED, HEAD_SIZE), jnp.float32, -bound, bound)
    wv = jax.random.uniform(k_v, (NUM_HEADS, N_EMBED, HEAD_SIZE), jnp.float32, -bound, bound)
    w_proj = jax.random.uniform(k_pw, (N_EMBED, N_EMBED), jnp.float32, -bound, bound)
    b_proj = jax.random.uniform(k_pb, (1, N_EMBED), jnp.float32, -bound, bound)

    # One-time parameter prepack (load time), then the forward call.
    w_qkv_b, w_proj_b, b_proj_f = pack_mha_params(wq, wk, wv, w_proj, b_proj)
    w_qkv_b, w_proj_b, b_proj_f = jax.block_until_ready((w_qkv_b, w_proj_b, b_proj_f))

    out = multi_head_attention(x, w_qkv_b, w_proj_b, b_proj_f)
    out = jax.block_until_ready(out)

    ref = reference(x, wq, wk, wv, w_proj, b_proj)
    assert out.shape == (B, T, N_EMBED)
    # bf16 MXU inputs / bf16 exp / bf16 output (f32 accumulation) vs pure-f32 reference.
    assert jnp.allclose(out.astype(jnp.float32), ref, rtol=3e-2, atol=3e-2), \
        "mismatch vs JAX reference"

    print("KERNEL_OK")
</pallas_src>

<mosaic_0001>
module attributes {stable_mosaic.version = 11 : i64} {
  func.func @_mha_fused_kernel(%arg0: i32, %arg1: memref<1x128x384xf32, #tpu.memory_space<vmem>>, %arg2: memref<384x1152xbf16, #tpu.memory_space<vmem>>, %arg3: memref<384x384xbf16, #tpu.memory_space<vmem>>, %arg4: memref<1x384xf32, #tpu.memory_space<vmem>>, %arg5: memref<1x128x384xbf16, #tpu.memory_space<vmem>>, %arg6: memref<128x384xf32, #tpu.memory_space<vmem>>) attributes {dimension_semantics = [#tpu.dimension_semantics<parallel>], iteration_bounds = array<i64: 2>, scalar_prefetch = 0 : i64, scratch_operands = 1 : i64, tpu.core_type = #tpu.core_type<tc>, window_params = [{transform_indices = @transform_0, window_bounds = array<i64: 1, 128, 384>}, {pipeline_mode = #tpu.pipeline_mode<synchronous>, transform_indices = @transform_1, window_bounds = array<i64: 384, 1152>}, {pipeline_mode = #tpu.pipeline_mode<synchronous>, transform_indices = @transform_2, window_bounds = array<i64: 384, 384>}, {pipeline_mode = #tpu.pipeline_mode<synchronous>, transform_indices = @transform_3, window_bounds = array<i64: 1, 384>}, {transform_indices = @transform_4, window_bounds = array<i64: 1, 128, 384>}]} {
    %c0 = arith.constant 0 : index
    %c0_0 = arith.constant 0 : index
    %c0_1 = arith.constant 0 : index
    %0 = vector.load %arg1[%c0, %c0_0, %c0_1] : memref<1x128x384xf32, #tpu.memory_space<vmem>>, vector<1x128x384xf32>
    %1 = vector.shape_cast %0 : vector<1x128x384xf32> to vector<128x384xf32>
    %2 = arith.truncf %1 : vector<128x384xf32> to vector<128x384xbf16>
    %c0_2 = arith.constant 0 : index
    %c0_3 = arith.constant 0 : index
    %3 = vector.load %arg2[%c0_2, %c0_3] : memref<384x1152xbf16, #tpu.memory_space<vmem>>, vector<384x1152xbf16>
    %cst = arith.constant dense<0.000000e+00> : vector<128x1152xf32>
    %4 = tpu.matmul %2, %3, %cst {dimension_numbers = #tpu.dot_dimension_numbers<[1], [0], [0], [1], [0, 0, 1, 1], [], []>} : vector<128x384xbf16>, vector<384x1152xbf16>, vector<128x1152xf32> -> vector<128x1152xf32>
    %5 = arith.truncf %4 : vector<128x1152xf32> to vector<128x1152xbf16>
    %6 = tpu.iota {dimensions = array<i32: 0>} : vector<128x128xi32>
    %7 = tpu.iota {dimensions = array<i32: 1>} : vector<128x128xi32>
    %8 = arith.cmpi sle, %7, %6 : vector<128x128xi32>
    %9 = vector.extract_strided_slice %5 {offsets = [0, 0], sizes = [128, 64], strides = [1, 1]} : vector<128x1152xbf16> to vector<128x64xbf16>
    %10 = vector.extract_strided_slice %5 {offsets = [0, 384], sizes = [128, 64], strides = [1, 1]} : vector<128x1152xbf16> to vector<128x64xbf16>
    %11 = vector.extract_strided_slice %5 {offsets = [0, 768], sizes = [128, 64], strides = [1, 1]} : vector<128x1152xbf16> to vector<128x64xbf16>
    %cst_4 = arith.constant dense<0.000000e+00> : vector<128x128xf32>
    %12 = tpu.matmul %9, %10, %cst_4 {dimension_numbers = #tpu.dot_dimension_numbers<[1], [1], [0], [0], [0, 0, 1, 0], [], []>} : vector<128x64xbf16>, vector<128x64xbf16>, vector<128x128xf32> -> vector<128x128xf32>
    %cst_5 = arith.constant -1.000000e+30 : f32
    %13 = vector.broadcast %cst_5 : f32 to vector<128x128xf32>
    %14 = arith.select %8, %12, %13 : vector<128x128xi1>, vector<128x128xf32>
    %cst_6 = arith.constant dense<0xFF800000> : vector<128xf32>
    %15 = vector.multi_reduction <maximumf>, %14, %cst_6 [1] : vector<128x128xf32> to vector<128xf32>
    %16 = vector.shape_cast %15 : vector<128xf32> to vector<128x1xf32>
    %17 = vector.broadcast %16 : vector<128x1xf32> to vector<128x128xf32>
    %18 = arith.subf %14, %17 : vector<128x128xf32>
    %19 = arith.truncf %18 : vector<128x128xf32> to vector<128x128xbf16>
    %20 = math.exp %19 : vector<128x128xbf16>
    %21 = arith.extf %20 : vector<128x128xbf16> to vector<128x128xf32>
    %cst_7 = arith.constant dense<0.000000e+00> : vector<128xf32>
    %22 = vector.multi_reduction <add>, %21, %cst_7 [1] : vector<128x128xf32> to vector<128xf32>
    %23 = vector.shape_cast %22 : vector<128xf32> to vector<128x1xf32>
    %cst_8 = arith.constant dense<0.000000e+00> : vector<128x64xf32>
    %24 = tpu.matmul %20, %11, %cst_8 {dimension_numbers = #tpu.dot_dimension_numbers<[1], [0], [0], [1], [0, 0, 1, 1], [], []>} : vector<128x128xbf16>, vector<128x64xbf16>, vector<128x64xf32> -> vector<128x64xf32>
    %25 = tpu.reciprocal %23 {approx = true} : vector<128x1xf32> -> vector<128x1xf32>
    %26 = vector.broadcast %25 : vector<128x1xf32> to vector<128x64xf32>
    %27 = arith.mulf %24, %26 : vector<128x64xf32>
    %c0_9 = arith.constant 0 : index
    %c0_10 = arith.constant 0 : index
    %28 = vector.load %arg6[%c0_9, %c0_10] : memref<128x384xf32, #tpu.memory_space<vmem>>, vector<128x64xf32>
    tpu.vector_store %arg6[%c0_9, %c0_10], %27 {strides = array<i32>} : memref<128x384xf32, #tpu.memory_space<vmem>>, vector<128x64xf32>,
    %29 = vector.extract_strided_slice %5 {offsets = [0, 64], sizes = [128, 64], strides = [1, 1]} : vector<128x1152xbf16> to vector<128x64xbf16>
    %30 = vector.extract_strided_slice %5 {offsets = [0, 448], sizes = [128, 64], strides = [1, 1]} : vector<128x1152xbf16> to vector<128x64xbf16>
    %31 = vector.extract_strided_slice %5 {offsets = [0, 832], sizes = [128, 64], strides = [1, 1]} : vector<128x1152xbf16> to vector<128x64xbf16>
    %cst_11 = arith.constant dense<0.000000e+00> : vector<128x128xf32>
    %32 = tpu.matmul %29, %30, %cst_11 {dimension_numbers = #tpu.dot_dimension_numbers<[1], [1], [0], [0], [0, 0, 1, 0], [], []>} : vector<128x64xbf16>, vector<128x64xbf16>, vector<128x128xf32> -> vector<128x128xf32>
    %cst_12 = arith.constant -1.000000e+30 : f32
    %33 = vector.broadcast %cst_12 : f32 to vector<128x128xf32>
    %34 = arith.select %8, %32, %33 : vector<128x128xi1>, vector<128x128xf32>
    %cst_13 = arith.constant dense<0xFF800000> : vector<128xf32>
    %35 = vector.multi_reduction <maximumf>, %34, %cst_13 [1] : vector<128x128xf32> to vector<128xf32>
    %36 = vector.shape_cast %35 : vector<128xf32> to vector<128x1xf32>
    %37 = vector.broadcast %36 : vector<128x1xf32> to vector<128x128xf32>
    %38 = arith.subf %34, %37 : vector<128x128xf32>
    %39 = arith.truncf %38 : vector<128x128xf32> to vector<128x128xbf16>
    %40 = math.exp %39 : vector<128x128xbf16>
    %41 = arith.extf %40 : vector<128x128xbf16> to vector<128x128xf32>
    %cst_14 = arith.constant dense<0.000000e+00> : vector<128xf32>
    %42 = vector.multi_reduction <add>, %41, %cst_14 [1] : vector<128x128xf32> to vector<128xf32>
    %43 = vector.shape_cast %42 : vector<128xf32> to vector<128x1xf32>
    %cst_15 = arith.constant dense<0.000000e+00> : vector<128x64xf32>
    %44 = tpu.matmul %40, %31, %cst_15 {dimension_numbers = #tpu.dot_dimension_numbers<[1], [0], [0], [1], [0, 0, 1, 1], [], []>} : vector<128x128xbf16>, vector<128x64xbf16>, vector<128x64xf32> -> vector<128x64xf32>
    %45 = tpu.reciprocal %43 {approx = true} : vector<128x1xf32> -> vector<128x1xf32>
    %46 = vector.broadcast %45 : vector<128x1xf32> to vector<128x64xf32>
    %47 = arith.mulf %44, %46 : vector<128x64xf32>
    %c0_16 = arith.constant 0 : index
    %c64 = arith.constant 64 : index
    %48 = vector.load %arg6[%c0_16, %c64] : memref<128x384xf32, #tpu.memory_space<vmem>>, vector<128x64xf32>
    tpu.vector_store %arg6[%c0_16, %c64], %47 {strides = array<i32>} : memref<128x384xf32, #tpu.memory_space<vmem>>, vector<128x64xf32>,
    %49 = vector.extract_strided_slice %5 {offsets = [0, 128], sizes = [128, 64], strides = [1, 1]} : vector<128x1152xbf16> to vector<128x64xbf16>
    %50 = vector.extract_strided_slice %5 {offsets = [0, 512], sizes = [128, 64], strides = [1, 1]} : vector<128x1152xbf16> to vector<128x64xbf16>
    %51 = vector.extract_strided_slice %5 {offsets = [0, 896], sizes = [128, 64], strides = [1, 1]} : vector<128x1152xbf16> to vector<128x64xbf16>
    %cst_17 = arith.constant dense<0.000000e+00> : vector<128x128xf32>
    %52 = tpu.matmul %49, %50, %cst_17 {dimension_numbers = #tpu.dot_dimension_numbers<[1], [1], [0], [0], [0, 0, 1, 0], [], []>} : vector<128x64xbf16>, vector<128x64xbf16>, vector<128x128xf32> -> vector<128x128xf32>
    %cst_18 = arith.constant -1.000000e+30 : f32
    %53 = vector.broadcast %cst_18 : f32 to vector<128x128xf32>
    %54 = arith.select %8, %52, %53 : vector<128x128xi1>, vector<128x128xf32>
    %cst_19 = arith.constant dense<0xFF800000> : vector<128xf32>
    %55 = vector.multi_reduction <maximumf>, %54, %cst_19 [1] : vector<128x128xf32> to vector<128xf32>
    %56 = vector.shape_cast %55 : vector<128xf32> to vector<128x1xf32>
    %57 = vector.broadcast %56 : vector<128x1xf32> to vector<128x128xf32>
    %58 = arith.subf %54, %57 : vector<128x128xf32>
    %59 = arith.truncf %58 : vector<128x128xf32> to vector<128x128xbf16>
    %60 = math.exp %59 : vector<128x128xbf16>
    %61 = arith.extf %60 : vector<128x128xbf16> to vector<128x128xf32>
    %cst_20 = arith.constant dense<0.000000e+00> : vector<128xf32>
    %62 = vector.multi_reduction <add>, %61, %cst_20 [1] : vector<128x128xf32> to vector<128xf32>
    %63 = vector.shape_cast %62 : vector<128xf32> to vector<128x1xf32>
    %cst_21 = arith.constant dense<0.000000e+00> : vector<128x64xf32>
    %64 = tpu.matmul %60, %51, %cst_21 {dimension_numbers = #tpu.dot_dimension_numbers<[1], [0], [0], [1], [0, 0, 1, 1], [], []>} : vector<128x128xbf16>, vector<128x64xbf16>, vector<128x64xf32> -> vector<128x64xf32>
    %65 = tpu.reciprocal %63 {approx = true} : vector<128x1xf32> -> vector<128x1xf32>
    %66 = vector.broadcast %65 : vector<128x1xf32> to vector<128x64xf32>
    %67 = arith.mulf %64, %66 : vector<128x64xf32>
    %c0_22 = arith.constant 0 : index
    %c128 = arith.constant 128 : index
    %68 = vector.load %arg6[%c0_22, %c128] : memref<128x384xf32, #tpu.memory_space<vmem>>, vector<128x64xf32>
    tpu.vector_store %arg6[%c0_22, %c128], %67 {strides = array<i32>} : memref<128x384xf32, #tpu.memory_space<vmem>>, vector<128x64xf32>,
    %69 = vector.extract_strided_slice %5 {offsets = [0, 192], sizes = [128, 64], strides = [1, 1]} : vector<128x1152xbf16> to vector<128x64xbf16>
    %70 = vector.extract_strided_slice %5 {offsets = [0, 576], sizes = [128, 64], strides = [1, 1]} : vector<128x1152xbf16> to vector<128x64xbf16>
    %71 = vector.extract_strided_slice %5 {offsets = [0, 960], sizes = [128, 64], strides = [1, 1]} : vector<128x1152xbf16> to vector<128x64xbf16>
    %cst_23 = arith.constant dense<0.000000e+00> : vector<128x128xf32>
    %72 = tpu.matmul %69, %70, %cst_23 {dimension_numbers = #tpu.dot_dimension_numbers<[1], [1], [0], [0], [0, 0, 1, 0], [], []>} : vector<128x64xbf16>, vector<128x64xbf16>, vector<128x128xf32> -> vector<128x128xf32>
    %cst_24 = arith.constant -1.000000e+30 : f32
    %73 = vector.broadcast %cst_24 : f32 to vector<128x128xf32>
    %74 = arith.select %8, %72, %73 : vector<128x128xi1>, vector<128x128xf32>
    %cst_25 = arith.constant dense<0xFF800000> : vector<128xf32>
    %75 = vector.multi_reduction <maximumf>, %74, %cst_25 [1] : vector<128x128xf32> to vector<128xf32>
    %76 = vector.shape_cast %75 : vector<128xf32> to vector<128x1xf32>
    %77 = vector.broadcast %76 : vector<128x1xf32> to vector<128x128xf32>
    %78 = arith.subf %74, %77 : vector<128x128xf32>
    %79 = arith.truncf %78 : vector<128x128xf32> to vector<128x128xbf16>
    %80 = math.exp %79 : vector<128x128xbf16>
    %81 = arith.extf %80 : vector<128x128xbf16> to vector<128x128xf32>
    %cst_26 = arith.constant dense<0.000000e+00> : vector<128xf32>
    %82 = vector.multi_reduction <add>, %81, %cst_26 [1] : vector<128x128xf32> to vector<128xf32>
    %83 = vector.shape_cast %82 : vector<128xf32> to vector<128x1xf32>
    %cst_27 = arith.constant dense<0.000000e+00> : vector<128x64xf32>
    %84 = tpu.matmul %80, %71, %cst_27 {dimension_numbers = #tpu.dot_dimension_numbers<[1], [0], [0], [1], [0, 0, 1, 1], [], []>} : vector<128x128xbf16>, vector<128x64xbf16>, vector<128x64xf32> -> vector<128x64xf32>
    %85 = tpu.reciprocal %83 {approx = true} : vector<128x1xf32> -> vector<128x1xf32>
    %86 = vector.broadcast %85 : vector<128x1xf32> to vector<128x64xf32>
    %87 = arith.mulf %84, %86 : vector<128x64xf32>
    %c0_28 = arith.constant 0 : index
    %c192 = arith.constant 192 : index
    %88 = vector.load %arg6[%c0_28, %c192] : memref<128x384xf32, #tpu.memory_space<vmem>>, vector<128x64xf32>
    tpu.vector_store %arg6[%c0_28, %c192], %87 {strides = array<i32>} : memref<128x384xf32, #tpu.memory_space<vmem>>, vector<128x64xf32>,
    %89 = vector.extract_strided_slice %5 {offsets = [0, 256], sizes = [128, 64], strides = [1, 1]} : vector<128x1152xbf16> to vector<128x64xbf16>
    %90 = vector.extract_strided_slice %5 {offsets = [0, 640], sizes = [128, 64], strides = [1, 1]} : vector<128x1152xbf16> to vector<128x64xbf16>
    %91 = vector.extract_strided_slice %5 {offsets = [0, 1024], sizes = [128, 64], strides = [1, 1]} : vector<128x1152xbf16> to vector<128x64xbf16>
    %cst_29 = arith.constant dense<0.000000e+00> : vector<128x128xf32>
    %92 = tpu.matmul %89, %90, %cst_29 {dimension_numbers = #tpu.dot_dimension_numbers<[1], [1], [0], [0], [0, 0, 1, 0], [], []>} : vector<128x64xbf16>, vector<128x64xbf16>, vector<128x128xf32> -> vector<128x128xf32>
    %cst_30 = arith.constant -1.000000e+30 : f32
    %93 = vector.broadcast %cst_30 : f32 to vector<128x128xf32>
    %94 = arith.select %8, %92, %93 : vector<128x128xi1>, vector<128x128xf32>
    %cst_31 = arith.constant dense<0xFF800000> : vector<128xf32>
    %95 = vector.multi_reduction <maximumf>, %94, %cst_31 [1] : vector<128x128xf32> to vector<128xf32>
    %96 = vector.shape_cast %95 : vector<128xf32> to vector<128x1xf32>
    %97 = vector.broadcast %96 : vector<128x1xf32> to vector<128x128xf32>
    %98 = arith.subf %94, %97 : vector<128x128xf32>
    %99 = arith.truncf %98 : vector<128x128xf32> to vector<128x128xbf16>
    %100 = math.exp %99 : vector<128x128xbf16>
    %101 = arith.extf %100 : vector<128x128xbf16> to vector<128x128xf32>
    %cst_32 = arith.constant dense<0.000000e+00> : vector<128xf32>
    %102 = vector.multi_reduction <add>, %101, %cst_32 [1] : vector<128x128xf32> to vector<128xf32>
    %103 = vector.shape_cast %102 : vector<128xf32> to vector<128x1xf32>
    %cst_33 = arith.constant dense<0.000000e+00> : vector<128x64xf32>
    %104 = tpu.matmul %100, %91, %cst_33 {dimension_numbers = #tpu.dot_dimension_numbers<[1], [0], [0], [1], [0, 0, 1, 1], [], []>} : vector<128x128xbf16>, vector<128x64xbf16>, vector<128x64xf32> -> vector<128x64xf32>
    %105 = tpu.reciprocal %103 {approx = true} : vector<128x1xf32> -> vector<128x1xf32>
    %106 = vector.broadcast %105 : vector<128x1xf32> to vector<128x64xf32>
    %107 = arith.mulf %104, %106 : vector<128x64xf32>
    %c0_34 = arith.constant 0 : index
    %c256 = arith.constant 256 : index
    %108 = vector.load %arg6[%c0_34, %c256] : memref<128x384xf32, #tpu.memory_space<vmem>>, vector<128x64xf32>
    tpu.vector_store %arg6[%c0_34, %c256], %107 {strides = array<i32>} : memref<128x384xf32, #tpu.memory_space<vmem>>, vector<128x64xf32>,
    %109 = vector.extract_strided_slice %5 {offsets = [0, 320], sizes = [128, 64], strides = [1, 1]} : vector<128x1152xbf16> to vector<128x64xbf16>
    %110 = vector.extract_strided_slice %5 {offsets = [0, 704], sizes = [128, 64], strides = [1, 1]} : vector<128x1152xbf16> to vector<128x64xbf16>
    %111 = vector.extract_strided_slice %5 {offsets = [0, 1088], sizes = [128, 64], strides = [1, 1]} : vector<128x1152xbf16> to vector<128x64xbf16>
    %cst_35 = arith.constant dense<0.000000e+00> : vector<128x128xf32>
    %112 = tpu.matmul %109, %110, %cst_35 {dimension_numbers = #tpu.dot_dimension_numbers<[1], [1], [0], [0], [0, 0, 1, 0], [], []>} : vector<128x64xbf16>, vector<128x64xbf16>, vector<128x128xf32> -> vector<128x128xf32>
    %cst_36 = arith.constant -1.000000e+30 : f32
    %113 = vector.broadcast %cst_36 : f32 to vector<128x128xf32>
    %114 = arith.select %8, %112, %113 : vector<128x128xi1>, vector<128x128xf32>
    %cst_37 = arith.constant dense<0xFF800000> : vector<128xf32>
    %115 = vector.multi_reduction <maximumf>, %114, %cst_37 [1] : vector<128x128xf32> to vector<128xf32>
    %116 = vector.shape_cast %115 : vector<128xf32> to vector<128x1xf32>
    %117 = vector.broadcast %116 : vector<128x1xf32> to vector<128x128xf32>
    %118 = arith.subf %114, %117 : vector<128x128xf32>
    %119 = arith.truncf %118 : vector<128x128xf32> to vector<128x128xbf16>
    %120 = math.exp %119 : vector<128x128xbf16>
    %121 = arith.extf %120 : vector<128x128xbf16> to vector<128x128xf32>
    %cst_38 = arith.constant dense<0.000000e+00> : vector<128xf32>
    %122 = vector.multi_reduction <add>, %121, %cst_38 [1] : vector<128x128xf32> to vector<128xf32>
    %123 = vector.shape_cast %122 : vector<128xf32> to vector<128x1xf32>
    %cst_39 = arith.constant dense<0.000000e+00> : vector<128x64xf32>
    %124 = tpu.matmul %120, %111, %cst_39 {dimension_numbers = #tpu.dot_dimension_numbers<[1], [0], [0], [1], [0, 0, 1, 1], [], []>} : vector<128x128xbf16>, vector<128x64xbf16>, vector<128x64xf32> -> vector<128x64xf32>
    %125 = tpu.reciprocal %123 {approx = true} : vector<128x1xf32> -> vector<128x1xf32>
    %126 = vector.broadcast %125 : vector<128x1xf32> to vector<128x64xf32>
    %127 = arith.mulf %124, %126 : vector<128x64xf32>
    %c0_40 = arith.constant 0 : index
    %c320 = arith.constant 320 : index
    %128 = vector.load %arg6[%c0_40, %c320] : memref<128x384xf32, #tpu.memory_space<vmem>>, vector<128x64xf32>
    tpu.vector_store %arg6[%c0_40, %c320], %127 {strides = array<i32>} : memref<128x384xf32, #tpu.memory_space<vmem>>, vector<128x64xf32>,
    %c0_41 = arith.constant 0 : index
    %c0_42 = arith.constant 0 : index
    %129 = vector.load %arg6[%c0_41, %c0_42] : memref<128x384xf32, #tpu.memory_space<vmem>>, vector<128x384xf32>
    %130 = arith.truncf %129 : vector<128x384xf32> to vector<128x384xbf16>
    %c0_43 = arith.constant 0 : index
    %c0_44 = arith.constant 0 : index
    %131 = vector.load %arg3[%c0_43, %c0_44] : memref<384x384xbf16, #tpu.memory_space<vmem>>, vector<384x384xbf16>
    %cst_45 = arith.constant dense<0.000000e+00> : vector<128x384xf32>
    %132 = tpu.matmul %130, %131, %cst_45 {dimension_numbers = #tpu.dot_dimension_numbers<[1], [0], [0], [1], [0, 0, 1, 1], [], []>} : vector<128x384xbf16>, vector<384x384xbf16>, vector<128x384xf32> -> vector<128x384xf32>
    %c0_46 = arith.constant 0 : index
    %c0_47 = arith.constant 0 : index
    %133 = vector.load %arg4[%c0_46, %c0_47] : memref<1x384xf32, #tpu.memory_space<vmem>>, vector<1x384xf32>
    %134 = vector.broadcast %133 : vector<1x384xf32> to vector<128x384xf32>
    %135 = arith.addf %132, %134 : vector<128x384xf32>
    %136 = arith.truncf %135 : vector<128x384xf32> to vector<128x384xbf16>
    %c0_48 = arith.constant 0 : index
    %c0_49 = arith.constant 0 : index
    %c0_50 = arith.constant 0 : index
    %137 = vector.load %arg5[%c0_48, %c0_49, %c0_50] : memref<1x128x384xbf16, #tpu.memory_space<vmem>>, vector<1x128x384xbf16>
    %138 = vector.shape_cast %137 : vector<1x128x384xbf16> to vector<128x384xbf16>
    %139 = vector.shape_cast %136 : vector<128x384xbf16> to vector<1x128x384xbf16>
    tpu.vector_store %arg5[%c0_48, %c0_49, %c0_50], %139 {strides = array<i32>} : memref<1x128x384xbf16, #tpu.memory_space<vmem>>, vector<1x128x384xbf16>,
    return
  }
  func.func @transform_0(%arg0: i32) -> (i32, i32, i32) {
    %c0_i32 = arith.constant 0 : i32
    %c0_i32_0 = arith.constant 0 : i32
    %c0_i32_1 = arith.constant 0 : i32
    return %arg0, %c0_i32, %c0_i32_0 : i32, i32, i32
  }
  func.func @transform_1(%arg0: i32) -> (i32, i32) {
    %c0_i32 = arith.constant 0 : i32
    %c0_i32_0 = arith.constant 0 : i32
    %c0_i32_1 = arith.constant 0 : i32
    return %c0_i32, %c0_i32_0 : i32, i32
  }
  func.func @transform_2(%arg0: i32) -> (i32, i32) {
    %c0_i32 = arith.constant 0 : i32
    %c0_i32_0 = arith.constant 0 : i32
    %c0_i32_1 = arith.constant 0 : i32
    return %c0_i32, %c0_i32_0 : i32, i32
  }
  func.func @transform_3(%arg0: i32) -> (i32, i32) {
    %c0_i32 = arith.constant 0 : i32
    %c0_i32_0 = arith.constant 0 : i32
    %c0_i32_1 = arith.constant 0 : i32
    return %c0_i32, %c0_i32_0 : i32, i32
  }
  func.func @transform_4(%arg0: i32) -> (i32, i32, i32) {
    %c0_i32 = arith.constant 0 : i32
    %c0_i32_0 = arith.constant 0 : i32
    %c0_i32_1 = arith.constant 0 : i32
    return %arg0, %c0_i32, %c0_i32_0 : i32, i32, i32
  }
}

</mosaic_0001>

<llo_original>
// kernel: tpu_custom_call.1
$region0: #{tpu_custom_call.1}
  #allocation0 [shape = 'u32[]', space=smem, size = 0x4, offset = 0x4, fixed_abs, tag = 'smem constant byte address 0x4 - core index']
  #allocation1 [shape = 'u32[144,128]{1,0:T(1,128)}', space=vmem, size = 0x12000, scoped, tag = 'internal scratch']
  #allocation2 [shape = 'f32[128,384]{1,0:T(8,128)}', space=vmem, size = 0x30000, scoped, tag = 'scratch operand']
  %s0 = inlined_call_operand.hbm [shape: f32[2,128,384], index: 0, kind: input, shape index: {}]
  %s1 = inlined_call_operand.hbm [shape: bf16[384,1152], index: 1, kind: input, shape index: {}]
  %s2 = inlined_call_operand.hbm [shape: bf16[384,384], index: 2, kind: input, shape index: {}]
  %s3 = inlined_call_operand.vmem [shape: f32[1,384], index: 3, kind: input, shape index: {}]
  %s4 = inlined_call_operand.hbm [shape: bf16[2,128,384], index: 4, kind: output, shape index: {}]
  %s5 = sld [smem:[#allocation0]]
  $region61: #{tpu_custom_call.1} parent=0
    _
  %s7 = ssub.s32 1, %s5
  %s8 = scalar_select 0, %s7, %s5
  $region1: #{tpu_custom_call.1} parent=0
    #allocation3 [shape = 'u8[393216]{0}', space=vmem, size = 0x60000, scoped, tag = 'input window, operand 0']
    #allocation4 [shape = 's32[2]{0}', space=sflag, size = 0x8, scoped, tag = 'scoped memory for tpu_custom_call.1']
    #allocation5 [shape = 's32[2]{0}', space=sflag, size = 0x8, scoped, tag = 'scoped memory for tpu_custom_call.1']
    #allocation6 [shape = 'u8[884736]{0}', space=vmem, size = 0xd8000, scoped, tag = 'input window, operand 1, single buffered']
    #allocation7 [shape = 's32[1]{0}', space=sflag, size = 0x4, scoped, tag = 'scoped memory for tpu_custom_call.1']
    #allocation8 [shape = 'u8[294912]{0}', space=vmem, size = 0x48000, scoped, tag = 'input window, operand 2, single buffered']
    #allocation9 [shape = 'u8[196608]{0}', space=vmem, size = 0x30000, scoped, tag = 'output window, operand 0']
    %9 = vsyncpa [#allocation4], 0
    %s10 = scalar_lea.sflag [#allocation4], 1
    %11 = vsyncpa %s10, 0
    %12 = vsyncpa [#allocation7], 0
    %13 = vsyncpa [#allocation5], 0
    %s14 = scalar_lea.sflag [#allocation5], 1
    %15 = vsyncpa %s14, 0
    loop: start=0, step=1, limit=4
    $region2: #{tpu_custom_call.1} parent=1 // loop_pre_header
      _
    $region3: #{tpu_custom_call.1} parent=1 // loop_header
      %s17 = sphi 0, %s21
      %p18 = scmp.ge.s32.totalorder %s17, 4
      %s27 = sphi 0, %s29
      %s30 = sphi 0, %s27
      %s31 = sphi 0, %s30
      %s47 = sphi 0, %s31
      %s51 = sphi 0, %s51
      %s53 = sphi 0, %s51
      %s54 = sphi 0, %s53
      %s68 = sphi 0, %s54
      %s72 = sphi 0, %s72
      %s74 = sphi 0, %s72
      %s75 = sphi 0, %s74
      %s89 = sphi 0, %s75
      %s93 = sphi 0, %s93
      %s95 = sphi 0, %s93
      %s96 = sphi 0, %s95
      %s110 = sphi 0, %s96
      %s116 = sphi 0, %s118
      %s119 = sphi 0, %s116
      %s120 = sphi 0, %s119
      %s136 = sphi 0, %s120
    $region4: #{tpu_custom_call.1} parent=1 // loop_header_branch
      %20 = sbr.rel (%p18) target = $region8
    $region5: #{tpu_custom_call.1} parent=1 // loop_body
      %s22 = ssub.s32 %s17, 1
      %s23 = ssub.s32 %s17, 2
      %s24 = sadd.s32 %s17, 1
      %s25 = ssub.s32 %s17, %s24
      %p26 = scmp.eq.s32.totalorder %s25, 0
      %s28 = sadd.s32 %s27, 1
      %s29 = scalar_select %p26, %s27, %s28
      %p32 = pneg %p26
      %p33 = scmp.eq.s32.totalorder %s17, 1
      %p34 = por %p32, %p33
      %p35 = scmp.ne.s32.totalorder %s27, %s30
      %p36 = scmp.eq.s32.totalorder %s17, 0
      %p37 = por %p35, %p36
      %p38 = scmp.ne.s32.totalorder %s27, %s30
      %p39 = scmp.eq.s32.totalorder %s22, 1
      %p40 = por %p38, %p39
      %p41 = scmp.ne.s32.totalorder %s30, %s31
      %p42 = scmp.eq.s32.totalorder %s22, 0
      %p43 = por %p41, %p42
      %p44 = scmp.ne.s32.totalorder %s30, %s31
      %p45 = scmp.eq.s32.totalorder %s23, 1
      %p46 = por %p44, %p45
      %p48 = scmp.ne.s32.totalorder %s31, %s47
      %p49 = scmp.eq.s32.totalorder %s23, 0
      %p50 = por %p48, %p49
      %s52 = sadd.s32 %s51, 1
      %p55 = scmp.eq.s32.totalorder %s17, 1
      %p56 = scmp.ne.s32.totalorder %s51, %s53
      %p57 = scmp.eq.s32.totalorder %s17, 0
      %p58 = por %p56, %p57
      %p59 = scmp.ne.s32.totalorder %s51, %s53
      %p60 = scmp.eq.s32.totalorder %s22, 1
      %p61 = por %p59, %p60
      %p62 = scmp.ne.s32.totalorder %s53, %s54
      %p63 = scmp.eq.s32.totalorder %s22, 0
      %p64 = por %p62, %p63
      %p65 = scmp.ne.s32.totalorder %s53, %s54
      %p66 = scmp.eq.s32.totalorder %s23, 1
      %p67 = por %p65, %p66
      %p69 = scmp.ne.s32.totalorder %s54, %s68
      %p70 = scmp.eq.s32.totalorder %s23, 0
      %p71 = por %p69, %p70
      %s73 = sadd.s32 %s72, 1
      %p76 = scmp.eq.s32.totalorder %s17, 1
      %p77 = scmp.ne.s32.totalorder %s72, %s74
      %p78 = scmp.eq.s32.totalorder %s17, 0
      %p79 = por %p77, %p78
      %p80 = scmp.ne.s32.totalorder %s72, %s74
      %p81 = scmp.eq.s32.totalorder %s22, 1
      %p82 = por %p80, %p81
      %p83 = scmp.ne.s32.totalorder %s74, %s75
      %p84 = scmp.eq.s32.totalorder %s22, 0
      %p85 = por %p83, %p84
      %p86 = scmp.ne.s32.totalorder %s74, %s75
      %p87 = scmp.eq.s32.totalorder %s23, 1
      %p88 = por %p86, %p87
      %p90 = scmp.ne.s32.totalorder %s75, %s89
      %p91 = scmp.eq.s32.totalorder %s23, 0
      %p92 = por %p90, %p91
      %s94 = sadd.s32 %s93, 1
      %p97 = scmp.eq.s32.totalorder %s17, 1
      %p98 = scmp.ne.s32.totalorder %s93, %s95
      %p99 = scmp.eq.s32.totalorder %s17, 0
      %p100 = por %p98, %p99
      %p101 = scmp.ne.s32.totalorder %s93, %s95
      %p102 = scmp.eq.s32.totalorder %s22, 1
      %p103 = por %p101, %p102
      %p104 = scmp.ne.s32.totalorder %s95, %s96
      %p105 = scmp.eq.s32.totalorder %s22, 0
      %p106 = por %p104, %p105
      %p107 = scmp.ne.s32.totalorder %s95, %s96
      %p108 = scmp.eq.s32.totalorder %s23, 1
      %p109 = por %p107, %p108
      %p111 = scmp.ne.s32.totalorder %s96, %s110
      %p112 = scmp.eq.s32.totalorder %s23, 0
      %p113 = por %p111, %p112
      %s114 = ssub.s32 %s17, %s24
      %p115 = scmp.eq.s32.totalorder %s114, 0
      %s117 = sadd.s32 %s116, 1
      %s118 = scalar_select %p115, %s116, %s117
      %p121 = pneg %p115
      %p122 = scmp.eq.s32.totalorder %s17, 1
      %p123 = por %p121, %p122
      %p124 = scmp.ne.s32.totalorder %s116, %s119
      %p125 = scmp.eq.s32.totalorder %s17, 0
      %p126 = por %p124, %p125
      %p127 = scmp.ne.s32.totalorder %s116, %s119
      %p128 = scmp.eq.s32.totalorder %s22, 1
      %p129 = por %p127, %p128
      %p130 = scmp.ne.s32.totalorder %s119, %s120
      %p131 = scmp.eq.s32.totalorder %s22, 0
      %p132 = por %p130, %p131
      %p133 = scmp.ne.s32.totalorder %s119, %s120
      %p134 = scmp.eq.s32.totalorder %s23, 1
      %p135 = por %p133, %p134
      %p137 = scmp.ne.s32.totalorder %s120, %s136
      %p138 = scmp.eq.s32.totalorder %s23, 0
      %p139 = por %p137, %p138
      %p140 = scmp.le.s32.totalorder 1, %s17
      %p141 = scmp.lt.s32.totalorder %s17, 3
      %p142 = pnand %p140, %p141
      %p143 = pneg %p142
      // Predicated region
      $region9: #{tpu_custom_call.1} parent=5 // pred_check
        _
      $region10: #{tpu_custom_call.1} parent=5 // pred_check_branch
        %145 = sbr.rel (%p142) target = $region12
      $region11: #{tpu_custom_call.1} parent=5 // pred_region
        %s146 = ssub.s32 %s17, 1
        // Predicated region
        $region13: #{tpu_custom_call.1} parent=11 // pred_check
          %p147 = pneg %p64
        $region14: #{tpu_custom_call.1} parent=11 // pred_check_branch
          %149 = sbr.rel (%p147) target = $region16
        $region15: #{tpu_custom_call.1} parent=11 // pred_region
          %s151 = ssub.s32 27648, 27648
          %152 = vsyncadd [#allocation7], %s151
          %s153 = sshll.u32 [#allocation6], 4
          %s154 = int_to_ptr.vmem [resolvable:$true] %s153
          %159 = dma.hbm_to_vmem [thread:$0]  %s1, 27648, %s154, [#allocation7], 576, 576, 36
        $region16: #{tpu_custom_call.1} parent=11 // pred_fallthru
          _
        // Predicated region
        $region17: #{tpu_custom_call.1} parent=11 // pred_check
          %p160 = pneg %p85
        $region18: #{tpu_custom_call.1} parent=11 // pred_check_branch
          %162 = sbr.rel (%p160) target = $region20
        $region19: #{tpu_custom_call.1} parent=11 // pred_region
          %s164 = ssub.s32 9216, 9216
          %165 = vsyncadd [#allocation7], %s164
          %s166 = sshll.u32 [#allocation8], 4
          %s167 = int_to_ptr.vmem [resolvable:$true] %s166
          %172 = dma.hbm_to_vmem [thread:$0]  %s2, 9216, %s167, [#allocation7], 192, 192, 12
        $region20: #{tpu_custom_call.1} parent=11 // pred_fallthru
          _
        // Predicated region
        $region21: #{tpu_custom_call.1} parent=11 // pred_check
          %p173 = pneg %p106
        $region22: #{tpu_custom_call.1} parent=11 // pred_check_branch
          %175 = sbr.rel (%p173) target = $region24
        $region23: #{tpu_custom_call.1} parent=11 // pred_region
          _
        $region24: #{tpu_custom_call.1} parent=11 // pred_fallthru
          _
      $region12: #{tpu_custom_call.1} parent=5 // pred_fallthru
        _
      %p176 = scmp.lt.s32.totalorder %s17, 2
      // Predicated region
      $region25: #{tpu_custom_call.1} parent=5 // pred_check
        %p177 = pneg %p176
      $region26: #{tpu_custom_call.1} parent=5 // pred_check_branch
        %179 = sbr.rel (%p177) target = $region28
      $region27: #{tpu_custom_call.1} parent=5 // pred_region
        // Predicated region
        $region29: #{tpu_custom_call.1} parent=27 // pred_check
          %p180 = pneg %p37
        $region30: #{tpu_custom_call.1} parent=27 // pred_check_branch
          %182 = sbr.rel (%p180) target = $region32
        $region31: #{tpu_custom_call.1} parent=27 // pred_region
          %s183 = sand.u32 %s27, 1
          %s184 = scalar_lea.sflag [#allocation4], %s183
          %s185 = sand.u32 %s27, 1
          %s186 = smul.addr %s185, 384
          %s187 = scalar_lea.vmem [#allocation3], %s186
          %s189 = ssub.s32 6144, 6144
          %190 = vsyncadd %s184, %s189
          %s191 = smul.addr %s17, 48
          %s192 = smul.addr %s191, 128
          %s193 = scalar_lea.hbm %s0, %s192
          %s194 = sshll.u32 %s187, 4
          %s195 = int_to_ptr.vmem [resolvable:$true] %s194
          %200 = dma.hbm_to_vmem [thread:$0]  %s193, 6144, %s195, %s184, 384, 384, 24
        $region32: #{tpu_custom_call.1} parent=27 // pred_fallthru
          _
      $region28: #{tpu_custom_call.1} parent=5 // pred_fallthru
        _
      %p201 = scmp.le.s32.totalorder 1, %s17
      %p202 = scmp.lt.s32.totalorder %s17, 3
      %p203 = pnand %p201, %p202
      %p204 = pneg %p203
      // Predicated region
      $region33: #{tpu_custom_call.1} parent=5 // pred_check
        _
      $region34: #{tpu_custom_call.1} parent=5 // pred_check_branch
        %206 = sbr.rel (%p203) target = $region36
      $region35: #{tpu_custom_call.1} parent=5 // pred_region
        %s207 = ssub.s32 %s17, 1
        %s208 = sand.u32 %s30, 1
        %s209 = scalar_lea.sflag [#allocation4], %s208
        %s210 = sand.u32 %s30, 1
        %s211 = smul.addr %s210, 384
        %s212 = scalar_lea.vmem [#allocation3], %s211
        // Predicated region
        $region37: #{tpu_custom_call.1} parent=35 // pred_check
          %p213 = pneg %p43
        $region38: #{tpu_custom_call.1} parent=35 // pred_check_branch
          %215 = sbr.rel (%p213) target = $region40
        $region39: #{tpu_custom_call.1} parent=35 // pred_region
          %216 = dma.done %s209, 6144
        $region40: #{tpu_custom_call.1} parent=35 // pred_fallthru
          _
        // Predicated region
        $region41: #{tpu_custom_call.1} parent=35 // pred_check
          %p217 = pneg %p64
        $region42: #{tpu_custom_call.1} parent=35 // pred_check_branch
          %219 = sbr.rel (%p217) target = $region44
        $region43: #{tpu_custom_call.1} parent=35 // pred_region
          %220 = dma.done [#allocation7], 27648
        $region44: #{tpu_custom_call.1} parent=35 // pred_fallthru
          _
        // Predicated region
        $region45: #{tpu_custom_call.1} parent=35 // pred_check
          %p221 = pneg %p85
        $region46: #{tpu_custom_call.1} parent=35 // pred_check_branch
          %223 = sbr.rel (%p221) target = $region48
        $region47: #{tpu_custom_call.1} parent=35 // pred_region
          %224 = dma.done [#allocation7], 9216
        $region48: #{tpu_custom_call.1} parent=35 // pred_fallthru
          _
        %s225 = sand.u32 %s30, 1
        %s226 = scalar_lea.sflag [#allocation4], %s225
        %s227 = sand.u32 %s30, 1
        %s228 = smul.addr %s227, 384
        %s229 = scalar_lea.vmem [#allocation3], %s228
        %p230 = pneg %p43
        %p231 = pneg %p40
        %p232 = pneg %p64
        %p233 = pneg %p61
        %p234 = pneg %p85
        %p235 = pneg %p82
        %p236 = pneg %p106
        %p237 = pneg %p103
        %p238 = pneg %p132
        %p239 = pneg %p129
        %s240 = sand.u32 %s119, 1
        %s241 = scalar_lea.sflag [#allocation5], %s240
        %s242 = sand.u32 %s119, 1
        %s243 = smul.addr %s242, 192
        %s244 = scalar_lea.vmem [#allocation9], %s243
        %v246 = vld [vmem:[%s212] sm:$0xff]
        %v247 = vld [vmem:[%s212 + $0x8] sm:$0xff]
        %v248 = vld [vmem:[%s212 + $0x10] sm:$0xff]
        %v249 = vld [vmem:[%s212 + $0x18] sm:$0xff]
        %v250 = vld [vmem:[%s212 + $0x20] sm:$0xff]
        %v251 = vld [vmem:[%s212 + $0x28] sm:$0xff]
        %v252 = vld [vmem:[%s212 + $0x30] sm:$0xff]
        %v253 = vld [vmem:[%s212 + $0x38] sm:$0xff]
        %v254 = vld [vmem:[%s212 + $0x40] sm:$0xff]
        %v255 = vld [vmem:[%s212 + $0x48] sm:$0xff]
        %v256 = vld [vmem:[%s212 + $0x50] sm:$0xff]
        %v257 = vld [vmem:[%s212 + $0x58] sm:$0xff]
        %v258 = vld [vmem:[%s212 + $0x60] sm:$0xff]
        %v259 = vld [vmem:[%s212 + $0x68] sm:$0xff]
        %v260 = vld [vmem:[%s212 + $0x70] sm:$0xff]
        %v261 = vld [vmem:[%s212 + $0x78] sm:$0xff]
        %v262 = vld [vmem:[%s212 + $0x80] sm:$0xff]
        %v263 = vld [vmem:[%s212 + $0x88] sm:$0xff]
        %v264 = vld [vmem:[%s212 + $0x90] sm:$0xff]
        %v265 = vld [vmem:[%s212 + $0x98] sm:$0xff]
        %v266 = vld [vmem:[%s212 + $0xa0] sm:$0xff]
        %v267 = vld [vmem:[%s212 + $0xa8] sm:$0xff]
        %v268 = vld [vmem:[%s212 + $0xb0] sm:$0xff]
        %v269 = vld [vmem:[%s212 + $0xb8] sm:$0xff]
        %v270 = vld [vmem:[%s212 + $0xc0] sm:$0xff]
        %v271 = vld [vmem:[%s212 + $0xc8] sm:$0xff]
        %v272 = vld [vmem:[%s212 + $0xd0] sm:$0xff]
        %v273 = vld [vmem:[%s212 + $0xd8] sm:$0xff]
        %v274 = vld [vmem:[%s212 + $0xe0] sm:$0xff]
        %v275 = vld [vmem:[%s212 + $0xe8] sm:$0xff]
        %v276 = vld [vmem:[%s212 + $0xf0] sm:$0xff]
        %v277 = vld [vmem:[%s212 + $0xf8] sm:$0xff]
        %v278 = vld [vmem:[%s212 + $0x100] sm:$0xff]
        %v279 = vld [vmem:[%s212 + $0x108] sm:$0xff]
        %v280 = vld [vmem:[%s212 + $0x110] sm:$0xff]
        %v281 = vld [vmem:[%s212 + $0x118] sm:$0xff]
        %v282 = vld [vmem:[%s212 + $0x120] sm:$0xff]
        %v283 = vld [vmem:[%s212 + $0x128] sm:$0xff]
        %v284 = vld [vmem:[%s212 + $0x130] sm:$0xff]
        %v285 = vld [vmem:[%s212 + $0x138] sm:$0xff]
        %v286 = vld [vmem:[%s212 + $0x140] sm:$0xff]
        %v287 = vld [vmem:[%s212 + $0x148] sm:$0xff]
        %v288 = vld [vmem:[%s212 + $0x150] sm:$0xff]
        %v289 = vld [vmem:[%s212 + $0x158] sm:$0xff]
        %v290 = vld [vmem:[%s212 + $0x160] sm:$0xff]
        %v291 = vld [vmem:[%s212 + $0x168] sm:$0xff]
        %v292 = vld [vmem:[%s212 + $0x170] sm:$0xff]
        %v293 = vld [vmem:[%s212 + $0x178] sm:$0xff]
        %v294 = vpack.c.bf16 %v249, %v246
        %v295 = vpack.c.bf16 %v250, %v247
        %v296 = vpack.c.bf16 %v251, %v248
        %v297 = vpack.c.bf16 %v255, %v252
        %v298 = vpack.c.bf16 %v256, %v253
        %v299 = vpack.c.bf16 %v257, %v254
        %v300 = vpack.c.bf16 %v261, %v258
        %v301 = vpack.c.bf16 %v262, %v259
        %v302 = vpack.c.bf16 %v263, %v260
        %v303 = vpack.c.bf16 %v267, %v264
        %v304 = vpack.c.bf16 %v268, %v265
        %v305 = vpack.c.bf16 %v269, %v266
        %v306 = vpack.c.bf16 %v273, %v270
        %v307 = vpack.c.bf16 %v274, %v271
        %v308 = vpack.c.bf16 %v275, %v272
        %v309 = vpack.c.bf16 %v279, %v276
        %v310 = vpack.c.bf16 %v280, %v277
        %v311 = vpack.c.bf16 %v281, %v278
        %v312 = vpack.c.bf16 %v285, %v282
        %v313 = vpack.c.bf16 %v286, %v283
        %v314 = vpack.c.bf16 %v287, %v284
        %v315 = vpack.c.bf16 %v291, %v288
        %v316 = vpack.c.bf16 %v292, %v289
        %v317 = vpack.c.bf16 %v293, %v290
        %v318 = vld [vmem:[#allocation6] sm:$0xff]
        %v319 = vld [vmem:[#allocation6 + $0x8] sm:$0xff]
        %v320 = vld [vmem:[#allocation6 + $0x10] sm:$0xff]
        %v321 = vld [vmem:[#allocation6 + $0x18] sm:$0xff]
        %v322 = vld [vmem:[#allocation6 + $0x20] sm:$0xf]
        %v323 = vld [vmem:[#allocation6 + $0x24] sm:$0xff]
        %v324 = vld [vmem:[#allocation6 + $0x2c] sm:$0xff]
        %v325 = vld [vmem:[#allocation6 + $0x34] sm:$0xff]
        %v326 = vld [vmem:[#allocation6 + $0x3c] sm:$0xff]
        %v327 = vld [vmem:[#allocation6 + $0x44] sm:$0xf]
        %v328 = vld [vmem:[#allocation6 + $0x48] sm:$0xff]
        %v329 = vld [vmem:[#allocation6 + $0x50] sm:$0xff]
        %v330 = vld [vmem:[#allocation6 + $0x58] sm:$0xff]
        %v331 = vld [vmem:[#allocation6 + $0x60] sm:$0xff]
        %v332 = vld [vmem:[#allocation6 + $0x68] sm:$0xf]
        %v333 = vld [vmem:[#allocation6 + $0x6c] sm:$0xff]
        %v334 = vld [vmem:[#allocation6 + $0x74] sm:$0xff]
        %v335 = vld [vmem:[#allocation6 + $0x7c] sm:$0xff]
        %v336 = vld [vmem:[#allocation6 + $0x84] sm:$0xff]
        %v337 = vld [vmem:[#allocation6 + $0x8c] sm:$0xf]
        %v338 = vld [vmem:[#allocation6 + $0x90] sm:$0xff]
        %v339 = vld [vmem:[#allocation6 + $0x98] sm:$0xff]
        %v340 = vld [vmem:[#allocation6 + $0xa0] sm:$0xff]
        %v341 = vld [vmem:[#allocation6 + $0xa8] sm:$0xff]
        %v342 = vld [vmem:[#allocation6 + $0xb0] sm:$0xf]
        %v343 = vld [vmem:[#allocation6 + $0xb4] sm:$0xff]
        %v344 = vld [vmem:[#allocation6 + $0xbc] sm:$0xff]
        %v345 = vld [vmem:[#allocation6 + $0xc4] sm:$0xff]
        %v346 = vld [vmem:[#allocation6 + $0xcc] sm:$0xff]
        %v347 = vld [vmem:[#allocation6 + $0xd4] sm:$0xf]
        %v348 = vld [vmem:[#allocation6 + $0xd8] sm:$0xff]
        %v349 = vld [vmem:[#allocation6 + $0xe0] sm:$0xff]
        %v350 = vld [vmem:[#allocation6 + $0xe8] sm:$0xff]
        %v351 = vld [vmem:[#allocation6 + $0xf0] sm:$0xff]
        %v352 = vld [vmem:[#allocation6 + $0xf8] sm:$0xf]
        %v353 = vld [vmem:[#allocation6 + $0xfc] sm:$0xff]
        %v354 = vld [vmem:[#allocation6 + $0x104] sm:$0xff]
        %v355 = vld [vmem:[#allocation6 + $0x10c] sm:$0xff]
        %v356 = vld [vmem:[#allocation6 + $0x114] sm:$0xff]
        %v357 = vld [vmem:[#allocation6 + $0x11c] sm:$0xf]
        %v358 = vld [vmem:[#allocation6 + $0x120] sm:$0xff]
        %v359 = vld [vmem:[#allocation6 + $0x128] sm:$0xff]
        %v360 = vld [vmem:[#allocation6 + $0x130] sm:$0xff]
        %v361 = vld [vmem:[#allocation6 + $0x138] sm:$0xff]
        %v362 = vld [vmem:[#allocation6 + $0x140] sm:$0xf]
        %v363 = vld [vmem:[#allocation6 + $0x144] sm:$0xff]
        %v364 = vld [vmem:[#allocation6 + $0x14c] sm:$0xff]
        %v365 = vld [vmem:[#allocation6 + $0x154] sm:$0xff]
        %v366 = vld [vmem:[#allocation6 + $0x15c] sm:$0xff]
        %v367 = vld [vmem:[#allocation6 + $0x164] sm:$0xf]
        %v368 = vld [vmem:[#allocation6 + $0x168] sm:$0xff]
        %v369 = vld [vmem:[#allocation6 + $0x170] sm:$0xff]
        %v370 = vld [vmem:[#allocation6 + $0x178] sm:$0xff]
        %v371 = vld [vmem:[#allocation6 + $0x180] sm:$0xff]
        %v372 = vld [vmem:[#allocation6 + $0x188] sm:$0xf]
        %v373 = vld [vmem:[#allocation6 + $0x18c] sm:$0xff]
        %v374 = vld [vmem:[#allocation6 + $0x194] sm:$0xff]
        %v375 = vld [vmem:[#allocation6 + $0x19c] sm:$0xff]
        %v376 = vld [vmem:[#allocation6 + $0x1a4] sm:$0xff]
        %v377 = vld [vmem:[#allocation6 + $0x1ac] sm:$0xf]
        %v378 = vld [vmem:[#allocation6 + $0x1b0] sm:$0xff]
        %v379 = vld [vmem:[#allocation6 + $0x1b8] sm:$0xff]
        %v380 = vld [vmem:[#allocation6 + $0x1c0] sm:$0xff]
        %v381 = vld [vmem:[#allocation6 + $0x1c8] sm:$0xff]
        %v382 = vld [vmem:[#allocation6 + $0x1d0] sm:$0xf]
        %v383 = vld [vmem:[#allocation6 + $0x1d4] sm:$0xff]
        %v384 = vld [vmem:[#allocation6 + $0x1dc] sm:$0xff]
        %v385 = vld [vmem:[#allocation6 + $0x1e4] sm:$0xff]
        %v386 = vld [vmem:[#allocation6 + $0x1ec] sm:$0xff]
        %v387 = vld [vmem:[#allocation6 + $0x1f4] sm:$0xf]
        %v388 = vld [vmem:[#allocation6 + $0x1f8] sm:$0xff]
        %v389 = vld [vmem:[#allocation6 + $0x200] sm:$0xff]
        %v390 = vld [vmem:[#allocation6 + $0x208] sm:$0xff]
        %v391 = vld [vmem:[#allocation6 + $0x210] sm:$0xff]
        %v392 = vld [vmem:[#allocation6 + $0x218] sm:$0xf]
        %v393 = vld [vmem:[#allocation6 + $0x21c] sm:$0xff]
        %v394 = vld [vmem:[#allocation6 + $0x224] sm:$0xff]
        %v395 = vld [vmem:[#allocation6 + $0x22c] sm:$0xff]
        %v396 = vld [vmem:[#allocation6 + $0x234] sm:$0xff]
        %v397 = vld [vmem:[#allocation6 + $0x23c] sm:$0xf]
        %v398 = vld [vmem:[#allocation6 + $0x240] sm:$0xff]
        %v399 = vld [vmem:[#allocation6 + $0x248] sm:$0xff]
        %v400 = vld [vmem:[#allocation6 + $0x250] sm:$0xff]
        %v401 = vld [vmem:[#allocation6 + $0x258] sm:$0xff]
        %v402 = vld [vmem:[#allocation6 + $0x260] sm:$0xf]
        %v403 = vld [vmem:[#allocation6 + $0x264] sm:$0xff]
        %v404 = vld [vmem:[#allocation6 + $0x26c] sm:$0xff]
        %v405 = vld [vmem:[#allocation6 + $0x274] sm:$0xff]
        %v406 = vld [vmem:[#allocation6 + $0x27c] sm:$0xff]
        %v407 = vld [vmem:[#allocation6 + $0x284] sm:$0xf]
        %v408 = vld [vmem:[#allocation6 + $0x288] sm:$0xff]
        %v409 = vld [vmem:[#allocation6 + $0x290] sm:$0xff]
        %v410 = vld [vmem:[#allocation6 + $0x298] sm:$0xff]
        %v411 = vld [vmem:[#allocation6 + $0x2a0] sm:$0xff]
        %v412 = vld [vmem:[#allocation6 + $0x2a8] sm:$0xf]
        %v413 = vld [vmem:[#allocation6 + $0x2ac] sm:$0xff]
        %v414 = vld [vmem:[#allocation6 + $0x2b4] sm:$0xff]
        %v415 = vld [vmem:[#allocation6 + $0x2bc] sm:$0xff]
        %v416 = vld [vmem:[#allocation6 + $0x2c4] sm:$0xff]
        %v417 = vld [vmem:[#allocation6 + $0x2cc] sm:$0xf]
        %v418 = vld [vmem:[#allocation6 + $0x2d0] sm:$0xff]
        %v419 = vld [vmem:[#allocation6 + $0x2d8] sm:$0xff]
        %v420 = vld [vmem:[#allocation6 + $0x2e0] sm:$0xff]
        %v421 = vld [vmem:[#allocation6 + $0x2e8] sm:$0xff]
        %v422 = vld [vmem:[#allocation6 + $0x2f0] sm:$0xf]
        %v423 = vld [vmem:[#allocation6 + $0x2f4] sm:$0xff]
        %v424 = vld [vmem:[#allocation6 + $0x2fc] sm:$0xff]
        %v425 = vld [vmem:[#allocation6 + $0x304] sm:$0xff]
        %v426 = vld [vmem:[#allocation6 + $0x30c] sm:$0xff]
        %v427 = vld [vmem:[#allocation6 + $0x314] sm:$0xf]
        %v428 = vld [vmem:[#allocation6 + $0x318] sm:$0xff]
        %v429 = vld [vmem:[#allocation6 + $0x320] sm:$0xff]
        %v430 = vld [vmem:[#allocation6 + $0x328] sm:$0xff]
        %v431 = vld [vmem:[#allocation6 + $0x330] sm:$0xff]
        %v432 = vld [vmem:[#allocation6 + $0x338] sm:$0xf]
        %v433 = vld [vmem:[#allocation6 + $0x33c] sm:$0xff]
        %v434 = vld [vmem:[#allocation6 + $0x344] sm:$0xff]
        %v435 = vld [vmem:[#allocation6 + $0x34c] sm:$0xff]
        %v436 = vld [vmem:[#allocation6 + $0x354] sm:$0xff]
        %v437 = vld [vmem:[#allocation6 + $0x35c] sm:$0xf]
        %v438 = vld [vmem:[#allocation6 + $0x360] sm:$0xff]
        %v439 = vld [vmem:[#allocation6 + $0x368] sm:$0xff]
        %v440 = vld [vmem:[#allocation6 + $0x370] sm:$0xff]
        %v441 = vld [vmem:[#allocation6 + $0x378] sm:$0xff]
        %v442 = vld [vmem:[#allocation6 + $0x380] sm:$0xf]
        %v443 = vld [vmem:[#allocation6 + $0x384] sm:$0xff]
        %v444 = vld [vmem:[#allocation6 + $0x38c] sm:$0xff]
        %v445 = vld [vmem:[#allocation6 + $0x394] sm:$0xff]
        %v446 = vld [vmem:[#allocation6 + $0x39c] sm:$0xff]
        %v447 = vld [vmem:[#allocation6 + $0x3a4] sm:$0xf]
        %v448 = vld [vmem:[#allocation6 + $0x3a8] sm:$0xff]
        %v449 = vld [vmem:[#allocation6 + $0x3b0] sm:$0xff]
        %v450 = vld [vmem:[#allocation6 + $0x3b8] sm:$0xff]
        %v451 = vld [vmem:[#allocation6 + $0x3c0] sm:$0xff]
        %v452 = vld [vmem:[#allocation6 + $0x3c8] sm:$0xf]
        %v453 = vld [vmem:[#allocation6 + $0x3cc] sm:$0xff]
        %v454 = vld [vmem:[#allocation6 + $0x3d4] sm:$0xff]
        %v455 = vld [vmem:[#allocation6 + $0x3dc] sm:$0xff]
        %v456 = vld [vmem:[#allocation6 + $0x3e4] sm:$0xff]
        %v457 = vld [vmem:[#allocation6 + $0x3ec] sm:$0xf]
        %v458 = vld [vmem:[#allocation6 + $0x3f0] sm:$0xff]
        %v459 = vld [vmem:[#allocation6 + $0x3f8] sm:$0xff]
        %v460 = vld [vmem:[#allocation6 + $0x400] sm:$0xff]
        %v461 = vld [vmem:[#allocation6 + $0x408] sm:$0xff]
        %v462 = vld [vmem:[#allocation6 + $0x410] sm:$0xf]
        %v463 = vld [vmem:[#allocation6 + $0x414] sm:$0xff]
        %v464 = vld [vmem:[#allocation6 + $0x41c] sm:$0xff]
        %v465 = vld [vmem:[#allocation6 + $0x424] sm:$0xff]
        %v466 = vld [vmem:[#allocation6 + $0x42c] sm:$0xff]
        %v467 = vld [vmem:[#allocation6 + $0x434] sm:$0xf]
        %v468 = vld [vmem:[#allocation6 + $0x438] sm:$0xff]
        %v469 = vld [vmem:[#allocation6 + $0x440] sm:$0xff]
        %v470 = vld [vmem:[#allocation6 + $0x448] sm:$0xff]
        %v471 = vld [vmem:[#allocation6 + $0x450] sm:$0xff]
        %v472 = vld [vmem:[#allocation6 + $0x458] sm:$0xf]
        %v473 = vld [vmem:[#allocation6 + $0x45c] sm:$0xff]
        %v474 = vld [vmem:[#allocation6 + $0x464] sm:$0xff]
        %v475 = vld [vmem:[#allocation6 + $0x46c] sm:$0xff]
        %v476 = vld [vmem:[#allocation6 + $0x474] sm:$0xff]
        %v477 = vld [vmem:[#allocation6 + $0x47c] sm:$0xf]
        %v478 = vld [vmem:[#allocation6 + $0x480] sm:$0xff]
        %v479 = vld [vmem:[#allocation6 + $0x488] sm:$0xff]
        %v480 = vld [vmem:[#allocation6 + $0x490] sm:$0xff]
        %v481 = vld [vmem:[#allocation6 + $0x498] sm:$0xff]
        %v482 = vld [vmem:[#allocation6 + $0x4a0] sm:$0xf]
        %v483 = vld [vmem:[#allocation6 + $0x4a4] sm:$0xff]
        %v484 = vld [vmem:[#allocation6 + $0x4ac] sm:$0xff]
        %v485 = vld [vmem:[#allocation6 + $0x4b4] sm:$0xff]
        %v486 = vld [vmem:[#allocation6 + $0x4bc] sm:$0xff]
        %v487 = vld [vmem:[#allocation6 + $0x4c4] sm:$0xf]
        %v488 = vld [vmem:[#allocation6 + $0x4c8] sm:$0xff]
        %v489 = vld [vmem:[#allocation6 + $0x4d0] sm:$0xff]
        %v490 = vld [vmem:[#allocation6 + $0x4d8] sm:$0xff]
        %v491 = vld [vmem:[#allocation6 + $0x4e0] sm:$0xff]
        %v492 = vld [vmem:[#allocation6 + $0x4e8] sm:$0xf]
        %v493 = vld [vmem:[#allocation6 + $0x4ec] sm:$0xff]
        %v494 = vld [vmem:[#allocation6 + $0x4f4] sm:$0xff]
        %v495 = vld [vmem:[#allocation6 + $0x4fc] sm:$0xff]
        %v496 = vld [vmem:[#allocation6 + $0x504] sm:$0xff]
        %v497 = vld [vmem:[#allocation6 + $0x50c] sm:$0xf]
        %v498 = vld [vmem:[#allocation6 + $0x510] sm:$0xff]
        %v499 = vld [vmem:[#allocation6 + $0x518] sm:$0xff]
        %v500 = vld [vmem:[#allocation6 + $0x520] sm:$0xff]
        %v501 = vld [vmem:[#allocation6 + $0x528] sm:$0xff]
        %v502 = vld [vmem:[#allocation6 + $0x530] sm:$0xf]
        %v503 = vld [vmem:[#allocation6 + $0x534] sm:$0xff]
        %v504 = vld [vmem:[#allocation6 + $0x53c] sm:$0xff]
        %v505 = vld [vmem:[#allocation6 + $0x544] sm:$0xff]
        %v506 = vld [vmem:[#allocation6 + $0x54c] sm:$0xff]
        %v507 = vld [vmem:[#allocation6 + $0x554] sm:$0xf]
        %v508 = vld [vmem:[#allocation6 + $0x558] sm:$0xff]
        %v509 = vld [vmem:[#allocation6 + $0x560] sm:$0xff]
        %v510 = vld [vmem:[#allocation6 + $0x568] sm:$0xff]
        %v511 = vld [vmem:[#allocation6 + $0x570] sm:$0xff]
        %v512 = vld [vmem:[#allocation6 + $0x578] sm:$0xf]
        %v513 = vld [vmem:[#allocation6 + $0x57c] sm:$0xff]
        %v514 = vld [vmem:[#allocation6 + $0x584] sm:$0xff]
        %v515 = vld [vmem:[#allocation6 + $0x58c] sm:$0xff]
        %v516 = vld [vmem:[#allocation6 + $0x594] sm:$0xff]
        %v517 = vld [vmem:[#allocation6 + $0x59c] sm:$0xf]
        %v518 = vld [vmem:[#allocation6 + $0x5a0] sm:$0xff]
        %v519 = vld [vmem:[#allocation6 + $0x5a8] sm:$0xff]
        %v520 = vld [vmem:[#allocation6 + $0x5b0] sm:$0xff]
        %v521 = vld [vmem:[#allocation6 + $0x5b8] sm:$0xff]
        %v522 = vld [vmem:[#allocation6 + $0x5c0] sm:$0xf]
        %v523 = vld [vmem:[#allocation6 + $0x5c4] sm:$0xff]
        %v524 = vld [vmem:[#allocation6 + $0x5cc] sm:$0xff]
        %v525 = vld [vmem:[#allocation6 + $0x5d4] sm:$0xff]
        %v526 = vld [vmem:[#allocation6 + $0x5dc] sm:$0xff]
        %v527 = vld [vmem:[#allocation6 + $0x5e4] sm:$0xf]
        %v528 = vld [vmem:[#allocation6 + $0x5e8] sm:$0xff]
        %v529 = vld [vmem:[#allocation6 + $0x5f0] sm:$0xff]
        %v530 = vld [vmem:[#allocation6 + $0x5f8] sm:$0xff]
        %v531 = vld [vmem:[#allocation6 + $0x600] sm:$0xff]
        %v532 = vld [vmem:[#allocation6 + $0x608] sm:$0xf]
        %v533 = vld [vmem:[#allocation6 + $0x60c] sm:$0xff]
        %v534 = vld [vmem:[#allocation6 + $0x614] sm:$0xff]
        %v535 = vld [vmem:[#allocation6 + $0x61c] sm:$0xff]
        %v536 = vld [vmem:[#allocation6 + $0x624] sm:$0xff]
        %v537 = vld [vmem:[#allocation6 + $0x62c] sm:$0xf]
        %v538 = vld [vmem:[#allocation6 + $0x630] sm:$0xff]
        %v539 = vld [vmem:[#allocation6 + $0x638] sm:$0xff]
        %v540 = vld [vmem:[#allocation6 + $0x640] sm:$0xff]
        %v541 = vld [vmem:[#allocation6 + $0x648] sm:$0xff]
        %v542 = vld [vmem:[#allocation6 + $0x650] sm:$0xf]
        %v543 = vld [vmem:[#allocation6 + $0x654] sm:$0xff]
        %v544 = vld [vmem:[#allocation6 + $0x65c] sm:$0xff]
        %v545 = vld [vmem:[#allocation6 + $0x664] sm:$0xff]
        %v546 = vld [vmem:[#allocation6 + $0x66c] sm:$0xff]
        %v547 = vld [vmem:[#allocation6 + $0x674] sm:$0xf]
        %v548 = vld [vmem:[#allocation6 + $0x678] sm:$0xff]
        %v549 = vld [vmem:[#allocation6 + $0x680] sm:$0xff]
        %v550 = vld [vmem:[#allocation6 + $0x688] sm:$0xff]
        %v551 = vld [vmem:[#allocation6 + $0x690] sm:$0xff]
        %v552 = vld [vmem:[#allocation6 + $0x698] sm:$0xf]
        %v553 = vld [vmem:[#allocation6 + $0x69c] sm:$0xff]
        %v554 = vld [vmem:[#allocation6 + $0x6a4] sm:$0xff]
        %v555 = vld [vmem:[#allocation6 + $0x6ac] sm:$0xff]
        %v556 = vld [vmem:[#allocation6 + $0x6b4] sm:$0xff]
        %v557 = vld [vmem:[#allocation6 + $0x6bc] sm:$0xf]
        %v798 = vunpack.c.l.b16 %v318
        %v799 = vunpack.c.h.b16 %v318
        %v800 = vunpack.c.l.b16 %v319
        %v801 = vunpack.c.h.b16 %v319
        %v802 = vunpack.c.l.b16 %v320
        %v803 = vunpack.c.h.b16 %v320
        %v804 = vunpack.c.l.b16 %v321
        %v805 = vunpack.c.h.b16 %v321
        %v806 = vunpack.c.l.b16 %v322
        %v807 = vunpack.c.l.b16 %v323
        %v808 = vunpack.c.h.b16 %v323
        %v809 = vunpack.c.l.b16 %v324
        %v810 = vunpack.c.h.b16 %v324
        %v811 = vunpack.c.l.b16 %v325
        %v812 = vunpack.c.h.b16 %v325
        %v813 = vunpack.c.l.b16 %v326
        %v814 = vunpack.c.h.b16 %v326
        %v815 = vunpack.c.l.b16 %v327
        %v816 = vunpack.c.l.b16 %v328
        %v817 = vunpack.c.h.b16 %v328
        %v818 = vunpack.c.l.b16 %v329
        %v819 = vunpack.c.h.b16 %v329
        %v820 = vunpack.c.l.b16 %v330
        %v821 = vunpack.c.h.b16 %v330
        %v822 = vunpack.c.l.b16 %v331
        %v823 = vunpack.c.h.b16 %v331
        %v824 = vunpack.c.l.b16 %v332
        %v825 = vunpack.c.l.b16 %v333
        %v826 = vunpack.c.h.b16 %v333
        %v827 = vunpack.c.l.b16 %v334
        %v828 = vunpack.c.h.b16 %v334
        %v829 = vunpack.c.l.b16 %v335
        %v830 = vunpack.c.h.b16 %v335
        %v831 = vunpack.c.l.b16 %v336
        %v832 = vunpack.c.h.b16 %v336
        %v833 = vunpack.c.l.b16 %v337
        %v834 = vunpack.c.l.b16 %v338
        %v835 = vunpack.c.h.b16 %v338
        %v836 = vunpack.c.l.b16 %v339
        %v837 = vunpack.c.h.b16 %v339
        %v838 = vunpack.c.l.b16 %v340
        %v839 = vunpack.c.h.b16 %v340
        %v840 = vunpack.c.l.b16 %v341
        %v841 = vunpack.c.h.b16 %v341
        %v842 = vunpack.c.l.b16 %v342
        %v843 = vunpack.c.l.b16 %v343
        %v844 = vunpack.c.h.b16 %v343
        %v845 = vunpack.c.l.b16 %v344
        %v846 = vunpack.c.h.b16 %v344
        %v847 = vunpack.c.l.b16 %v345
        %v848 = vunpack.c.h.b16 %v345
        %v849 = vunpack.c.l.b16 %v346
        %v850 = vunpack.c.h.b16 %v346
        %v851 = vunpack.c.l.b16 %v347
        %v852 = vunpack.c.l.b16 %v348
        %v853 = vunpack.c.h.b16 %v348
        %v854 = vunpack.c.l.b16 %v349
        %v855 = vunpack.c.h.b16 %v349
        %v856 = vunpack.c.l.b16 %v350
        %v857 = vunpack.c.h.b16 %v350
        %v858 = vunpack.c.l.b16 %v351
        %v859 = vunpack.c.h.b16 %v351
        %v860 = vunpack.c.l.b16 %v352
        %v861 = vunpack.c.l.b16 %v353
        %v862 = vunpack.c.h.b16 %v353
        %v863 = vunpack.c.l.b16 %v354
        %v864 = vunpack.c.h.b16 %v354
        %v865 = vunpack.c.l.b16 %v355
        %v866 = vunpack.c.h.b16 %v355
        %v867 = vunpack.c.l.b16 %v356
        %v868 = vunpack.c.h.b16 %v356
        %v869 = vunpack.c.l.b16 %v357
        %v870 = vunpack.c.l.b16 %v358
        %v871 = vunpack.c.h.b16 %v358
        %v872 = vunpack.c.l.b16 %v359
        %v873 = vunpack.c.h.b16 %v359
        %v874 = vunpack.c.l.b16 %v360
        %v875 = vunpack.c.h.b16 %v360
        %v876 = vunpack.c.l.b16 %v361
        %v877 = vunpack.c.h.b16 %v361
        %v878 = vunpack.c.l.b16 %v362
        %v879 = vunpack.c.l.b16 %v363
        %v880 = vunpack.c.h.b16 %v363
        %v881 = vunpack.c.l.b16 %v364
        %v882 = vunpack.c.h.b16 %v364
        %v883 = vunpack.c.l.b16 %v365
        %v884 = vunpack.c.h.b16 %v365
        %v885 = vunpack.c.l.b16 %v366
        %v886 = vunpack.c.h.b16 %v366
        %v887 = vunpack.c.l.b16 %v367
        %v888 = vunpack.c.l.b16 %v368
        %v889 = vunpack.c.h.b16 %v368
        %v890 = vunpack.c.l.b16 %v369
        %v891 = vunpack.c.h.b16 %v369
        %v892 = vunpack.c.l.b16 %v370
        %v893 = vunpack.c.h.b16 %v370
        %v894 = vunpack.c.l.b16 %v371
        %v895 = vunpack.c.h.b16 %v371
        %v896 = vunpack.c.l.b16 %v372
        %v897 = vunpack.c.l.b16 %v373
        %v898 = vunpack.c.h.b16 %v373
        %v899 = vunpack.c.l.b16 %v374
        %v900 = vunpack.c.h.b16 %v374
        %v901 = vunpack.c.l.b16 %v375
        %v902 = vunpack.c.h.b16 %v375
        %v903 = vunpack.c.l.b16 %v376
        %v904 = vunpack.c.h.b16 %v376
        %v905 = vunpack.c.l.b16 %v377
        %v906 = vunpack.c.l.b16 %v378
        %v907 = vunpack.c.h.b16 %v378
        %v908 = vunpack.c.l.b16 %v379
        %v909 = vunpack.c.h.b16 %v379
        %v910 = vunpack.c.l.b16 %v380
        %v911 = vunpack.c.h.b16 %v380
        %v912 = vunpack.c.l.b16 %v381
        %v913 = vunpack.c.h.b16 %v381
        %v914 = vunpack.c.l.b16 %v382
        %v915 = vunpack.c.l.b16 %v383
        %v916 = vunpack.c.h.b16 %v383
        %v917 = vunpack.c.l.b16 %v384
        %v918 = vunpack.c.h.b16 %v384
        %v919 = vunpack.c.l.b16 %v385
        %v920 = vunpack.c.h.b16 %v385
        %v921 = vunpack.c.l.b16 %v386
        %v922 = vunpack.c.h.b16 %v386
        %v923 = vunpack.c.l.b16 %v387
        %v924 = vunpack.c.l.b16 %v388
        %v925 = vunpack.c.h.b16 %v388
        %v926 = vunpack.c.l.b16 %v389
        %v927 = vunpack.c.h.b16 %v389
        %v928 = vunpack.c.l.b16 %v390
        %v929 = vunpack.c.h.b16 %v390
        %v930 = vunpack.c.l.b16 %v391
        %v931 = vunpack.c.h.b16 %v391
        %v932 = vunpack.c.l.b16 %v392
        %v933 = vunpack.c.l.b16 %v393
        %v934 = vunpack.c.h.b16 %v393
        %v935 = vunpack.c.l.b16 %v394
        %v936 = vunpack.c.h.b16 %v394
        %v937 = vunpack.c.l.b16 %v395
        %v938 = vunpack.c.h.b16 %v395
        %v939 = vunpack.c.l.b16 %v396
        %v940 = vunpack.c.h.b16 %v396
        %v941 = vunpack.c.l.b16 %v397
        %v942 = vunpack.c.l.b16 %v398
        %v943 = vunpack.c.h.b16 %v398
        %v944 = vunpack.c.l.b16 %v399
        %v945 = vunpack.c.h.b16 %v399
        %v946 = vunpack.c.l.b16 %v400
        %v947 = vunpack.c.h.b16 %v400
        %v948 = vunpack.c.l.b16 %v401
        %v949 = vunpack.c.h.b16 %v401
        %v950 = vunpack.c.l.b16 %v402
        %v951 = vunpack.c.l.b16 %v403
        %v952 = vunpack.c.h.b16 %v403
        %v953 = vunpack.c.l.b16 %v404
        %v954 = vunpack.c.h.b16 %v404
        %v955 = vunpack.c.l.b16 %v405
        %v956 = vunpack.c.h.b16 %v405
        %v957 = vunpack.c.l.b16 %v406
        %v958 = vunpack.c.h.b16 %v406
        %v959 = vunpack.c.l.b16 %v407
        %v960 = vunpack.c.l.b16 %v408
        %v961 = vunpack.c.h.b16 %v408
        %v962 = vunpack.c.l.b16 %v409
        %v963 = vunpack.c.h.b16 %v409
        %v964 = vunpack.c.l.b16 %v410
        %v965 = vunpack.c.h.b16 %v410
        %v966 = vunpack.c.l.b16 %v411
        %v967 = vunpack.c.h.b16 %v411
        %v968 = vunpack.c.l.b16 %v412
        %v969 = vunpack.c.l.b16 %v413
        %v970 = vunpack.c.h.b16 %v413
        %v971 = vunpack.c.l.b16 %v414
        %v972 = vunpack.c.h.b16 %v414
        %v973 = vunpack.c.l.b16 %v415
        %v974 = vunpack.c.h.b16 %v415
        %v975 = vunpack.c.l.b16 %v416
        %v976 = vunpack.c.h.b16 %v416
        %v977 = vunpack.c.l.b16 %v417
        %v978 = vunpack.c.l.b16 %v418
        %v979 = vunpack.c.h.b16 %v418
        %v980 = vunpack.c.l.b16 %v419
        %v981 = vunpack.c.h.b16 %v419
        %v982 = vunpack.c.l.b16 %v420
        %v983 = vunpack.c.h.b16 %v420
        %v984 = vunpack.c.l.b16 %v421
        %v985 = vunpack.c.h.b16 %v421
        %v986 = vunpack.c.l.b16 %v422
        %v987 = vunpack.c.l.b16 %v423
        %v988 = vunpack.c.h.b16 %v423
        %v989 = vunpack.c.l.b16 %v424
        %v990 = vunpack.c.h.b16 %v424
        %v991 = vunpack.c.l.b16 %v425
        %v992 = vunpack.c.h.b16 %v425
        %v993 = vunpack.c.l.b16 %v426
        %v994 = vunpack.c.h.b16 %v426
        %v995 = vunpack.c.l.b16 %v427
        %v996 = vunpack.c.l.b16 %v428
        %v997 = vunpack.c.h.b16 %v428
        %v998 = vunpack.c.l.b16 %v429
        %v999 = vunpack.c.h.b16 %v429
        %v1000 = vunpack.c.l.b16 %v430
        %v1001 = vunpack.c.h.b16 %v430
        %v1002 = vunpack.c.l.b16 %v431
        %v1003 = vunpack.c.h.b16 %v431
        %v1004 = vunpack.c.l.b16 %v432
        %v1005 = vunpack.c.l.b16 %v433
        %v1006 = vunpack.c.h.b16 %v433
        %v1007 = vunpack.c.l.b16 %v434
        %v1008 = vunpack.c.h.b16 %v434
        %v1009 = vunpack.c.l.b16 %v435
        %v1010 = vunpack.c.h.b16 %v435
        %v1011 = vunpack.c.l.b16 %v436
        %v1012 = vunpack.c.h.b16 %v436
        %v1013 = vunpack.c.l.b16 %v437
        %v1014 = vunpack.c.l.b16 %v438
        %v1015 = vunpack.c.h.b16 %v438
        %v1016 = vunpack.c.l.b16 %v439
        %v1017 = vunpack.c.h.b16 %v439
        %v1018 = vunpack.c.l.b16 %v440
        %v1019 = vunpack.c.h.b16 %v440
        %v1020 = vunpack.c.l.b16 %v441
        %v1021 = vunpack.c.h.b16 %v441
        %v1022 = vunpack.c.l.b16 %v442
        %v1023 = vunpack.c.l.b16 %v443
        %v1024 = vunpack.c.h.b16 %v443
        %v1025 = vunpack.c.l.b16 %v444
        %v1026 = vunpack.c.h.b16 %v444
        %v1027 = vunpack.c.l.b16 %v445
        %v1028 = vunpack.c.h.b16 %v445
        %v1029 = vunpack.c.l.b16 %v446
        %v1030 = vunpack.c.h.b16 %v446
        %v1031 = vunpack.c.l.b16 %v447
        %v1032 = vunpack.c.l.b16 %v448
        %v1033 = vunpack.c.h.b16 %v448
        %v1034 = vunpack.c.l.b16 %v449
        %v1035 = vunpack.c.h.b16 %v449
        %v1036 = vunpack.c.l.b16 %v450
        %v1037 = vunpack.c.h.b16 %v450
        %v1038 = vunpack.c.l.b16 %v451
        %v1039 = vunpack.c.h.b16 %v451
        %v1040 = vunpack.c.l.b16 %v452
        %v1041 = vunpack.c.l.b16 %v453
        %v1042 = vunpack.c.h.b16 %v453
        %v1043 = vunpack.c.l.b16 %v454
        %v1044 = vunpack.c.h.b16 %v454
        %v1045 = vunpack.c.l.b16 %v455
        %v1046 = vunpack.c.h.b16 %v455
        %v1047 = vunpack.c.l.b16 %v456
        %v1048 = vunpack.c.h.b16 %v456
        %v1049 = vunpack.c.l.b16 %v457
        %v1050 = vunpack.c.l.b16 %v458
        %v1051 = vunpack.c.h.b16 %v458
        %v1052 = vunpack.c.l.b16 %v459
        %v1053 = vunpack.c.h.b16 %v459
        %v1054 = vunpack.c.l.b16 %v460
        %v1055 = vunpack.c.h.b16 %v460
        %v1056 = vunpack.c.l.b16 %v461
        %v1057 = vunpack.c.h.b16 %v461
        %v1058 = vunpack.c.l.b16 %v462
        %v1059 = vunpack.c.l.b16 %v463
        %v1060 = vunpack.c.h.b16 %v463
        %v1061 = vunpack.c.l.b16 %v464
        %v1062 = vunpack.c.h.b16 %v464
        %v1063 = vunpack.c.l.b16 %v465
        %v1064 = vunpack.c.h.b16 %v465
        %v1065 = vunpack.c.l.b16 %v466
        %v1066 = vunpack.c.h.b16 %v466
        %v1067 = vunpack.c.l.b16 %v467
        %v1068 = vunpack.c.l.b16 %v468
        %v1069 = vunpack.c.h.b16 %v468
        %v1070 = vunpack.c.l.b16 %v469
        %v1071 = vunpack.c.h.b16 %v469
        %v1072 = vunpack.c.l.b16 %v470
        %v1073 = vunpack.c.h.b16 %v470
        %v1074 = vunpack.c.l.b16 %v471
        %v1075 = vunpack.c.h.b16 %v471
        %v1076 = vunpack.c.l.b16 %v472
        %v1077 = vunpack.c.l.b16 %v473
        %v1078 = vunpack.c.h.b16 %v473
        %v1079 = vunpack.c.l.b16 %v474
        %v1080 = vunpack.c.h.b16 %v474
        %v1081 = vunpack.c.l.b16 %v475
        %v1082 = vunpack.c.h.b16 %v475
        %v1083 = vunpack.c.l.b16 %v476
        %v1084 = vunpack.c.h.b16 %v476
        %v1085 = vunpack.c.l.b16 %v477
        %v1086 = vunpack.c.l.b16 %v478
        %v1087 = vunpack.c.h.b16 %v478
        %v1088 = vunpack.c.l.b16 %v479
        %v1089 = vunpack.c.h.b16 %v479
        %v1090 = vunpack.c.l.b16 %v480
        %v1091 = vunpack.c.h.b16 %v480
        %v1092 = vunpack.c.l.b16 %v481
        %v1093 = vunpack.c.h.b16 %v481
        %v1094 = vunpack.c.l.b16 %v482
        %v1095 = vunpack.c.l.b16 %v483
        %v1096 = vunpack.c.h.b16 %v483
        %v1097 = vunpack.c.l.b16 %v484
        %v1098 = vunpack.c.h.b16 %v484
        %v1099 = vunpack.c.l.b16 %v485
        %v1100 = vunpack.c.h.b16 %v485
        %v1101 = vunpack.c.l.b16 %v486
        %v1102 = vunpack.c.h.b16 %v486
        %v1103 = vunpack.c.l.b16 %v487
        %v1104 = vunpack.c.l.b16 %v488
        %v1105 = vunpack.c.h.b16 %v488
        %v1106 = vunpack.c.l.b16 %v489
        %v1107 = vunpack.c.h.b16 %v489
        %v1108 = vunpack.c.l.b16 %v490
        %v1109 = vunpack.c.h.b16 %v490
        %v1110 = vunpack.c.l.b16 %v491
        %v1111 = vunpack.c.h.b16 %v491
        %v1112 = vunpack.c.l.b16 %v492
        %v1113 = vunpack.c.l.b16 %v493
        %v1114 = vunpack.c.h.b16 %v493
        %v1115 = vunpack.c.l.b16 %v494
        %v1116 = vunpack.c.h.b16 %v494
        %v1117 = vunpack.c.l.b16 %v495
        %v1118 = vunpack.c.h.b16 %v495
        %v1119 = vunpack.c.l.b16 %v496
        %v1120 = vunpack.c.h.b16 %v496
        %v1121 = vunpack.c.l.b16 %v497
        %v1122 = vunpack.c.l.b16 %v498
        %v1123 = vunpack.c.h.b16 %v498
        %v1124 = vunpack.c.l.b16 %v499
        %v1125 = vunpack.c.h.b16 %v499
        %v1126 = vunpack.c.l.b16 %v500
        %v1127 = vunpack.c.h.b16 %v500
        %v1128 = vunpack.c.l.b16 %v501
        %v1129 = vunpack.c.h.b16 %v501
        %v1130 = vunpack.c.l.b16 %v502
        %v1131 = vunpack.c.l.b16 %v503
        %v1132 = vunpack.c.h.b16 %v503
        %v1133 = vunpack.c.l.b16 %v504
        %v1134 = vunpack.c.h.b16 %v504
        %v1135 = vunpack.c.l.b16 %v505
        %v1136 = vunpack.c.h.b16 %v505
        %v1137 = vunpack.c.l.b16 %v506
        %v1138 = vunpack.c.h.b16 %v506
        %v1139 = vunpack.c.l.b16 %v507
        %v1140 = vunpack.c.l.b16 %v508
        %v1141 = vunpack.c.h.b16 %v508
        %v1142 = vunpack.c.l.b16 %v509
        %v1143 = vunpack.c.h.b16 %v509
        %v1144 = vunpack.c.l.b16 %v510
        %v1145 = vunpack.c.h.b16 %v510
        %v1146 = vunpack.c.l.b16 %v511
        %v1147 = vunpack.c.h.b16 %v511
        %v1148 = vunpack.c.l.b16 %v512
        %v1149 = vunpack.c.l.b16 %v513
        %v1150 = vunpack.c.h.b16 %v513
        %v1151 = vunpack.c.l.b16 %v514
        %v1152 = vunpack.c.h.b16 %v514
        %v1153 = vunpack.c.l.b16 %v515
        %v1154 = vunpack.c.h.b16 %v515
        %v1155 = vunpack.c.l.b16 %v516
        %v1156 = vunpack.c.h.b16 %v516
        %v1157 = vunpack.c.l.b16 %v517
        %v1158 = vunpack.c.l.b16 %v518
        %v1159 = vunpack.c.h.b16 %v518
        %v1160 = vunpack.c.l.b16 %v519
        %v1161 = vunpack.c.h.b16 %v519
        %v1162 = vunpack.c.l.b16 %v520
        %v1163 = vunpack.c.h.b16 %v520
        %v1164 = vunpack.c.l.b16 %v521
        %v1165 = vunpack.c.h.b16 %v521
        %v1166 = vunpack.c.l.b16 %v522
        %v1167 = vunpack.c.l.b16 %v523
        %v1168 = vunpack.c.h.b16 %v523
        %v1169 = vunpack.c.l.b16 %v524
        %v1170 = vunpack.c.h.b16 %v524
        %v1171 = vunpack.c.l.b16 %v525
        %v1172 = vunpack.c.h.b16 %v525
        %v1173 = vunpack.c.l.b16 %v526
        %v1174 = vunpack.c.h.b16 %v526
        %v1175 = vunpack.c.l.b16 %v527
        %v1176 = vunpack.c.l.b16 %v528
        %v1177 = vunpack.c.h.b16 %v528
        %v1178 = vunpack.c.l.b16 %v529
        %v1179 = vunpack.c.h.b16 %v529
        %v1180 = vunpack.c.l.b16 %v530
        %v1181 = vunpack.c.h.b16 %v530
        %v1182 = vunpack.c.l.b16 %v531
        %v1183 = vunpack.c.h.b16 %v531
        %v1184 = vunpack.c.l.b16 %v532
        %v1185 = vunpack.c.l.b16 %v533
        %v1186 = vunpack.c.h.b16 %v533
        %v1187 = vunpack.c.l.b16 %v534
        %v1188 = vunpack.c.h.b16 %v534
        %v1189 = vunpack.c.l.b16 %v535
        %v1190 = vunpack.c.h.b16 %v535
        %v1191 = vunpack.c.l.b16 %v536
        %v1192 = vunpack.c.h.b16 %v536
        %v1193 = vunpack.c.l.b16 %v537
        %v1194 = vunpack.c.l.b16 %v538
        %v1195 = vunpack.c.h.b16 %v538
        %v1196 = vunpack.c.l.b16 %v539
        %v1197 = vunpack.c.h.b16 %v539
        %v1198 = vunpack.c.l.b16 %v540
        %v1199 = vunpack.c.h.b16 %v540
        %v1200 = vunpack.c.l.b16 %v541
        %v1201 = vunpack.c.h.b16 %v541
        %v1202 = vunpack.c.l.b16 %v542
        %v1203 = vunpack.c.l.b16 %v543
        %v1204 = vunpack.c.h.b16 %v543
        %v1205 = vunpack.c.l.b16 %v544
        %v1206 = vunpack.c.h.b16 %v544
        %v1207 = vunpack.c.l.b16 %v545
        %v1208 = vunpack.c.h.b16 %v545
        %v1209 = vunpack.c.l.b16 %v546
        %v1210 = vunpack.c.h.b16 %v546
        %v1211 = vunpack.c.l.b16 %v547
        %v1212 = vunpack.c.l.b16 %v548
        %v1213 = vunpack.c.h.b16 %v548
        %v1214 = vunpack.c.l.b16 %v549
        %v1215 = vunpack.c.h.b16 %v549
        %v1216 = vunpack.c.l.b16 %v550
        %v1217 = vunpack.c.h.b16 %v550
        %v1218 = vunpack.c.l.b16 %v551
        %v1219 = vunpack.c.h.b16 %v551
        %v1220 = vunpack.c.l.b16 %v552
        %v1221 = vunpack.c.l.b16 %v553
        %v1222 = vunpack.c.h.b16 %v553
        %v1223 = vunpack.c.l.b16 %v554
        %v1224 = vunpack.c.h.b16 %v554
        %v1225 = vunpack.c.l.b16 %v555
        %v1226 = vunpack.c.h.b16 %v555
        %v1227 = vunpack.c.l.b16 %v556
        %v1228 = vunpack.c.h.b16 %v556
        %v1229 = vunpack.c.l.b16 %v557
        %v1230 = vpack.c.b16 %v807, %v798
        %v1231 = vpack.c.b16 %v808, %v799
        %v1232 = vpack.c.b16 %v809, %v800
        %v1233 = vpack.c.b16 %v810, %v801
        %v1234 = vpack.c.b16 %v811, %v802
        %v1235 = vpack.c.b16 %v812, %v803
        %v1236 = vpack.c.b16 %v813, %v804
        %v1237 = vpack.c.b16 %v814, %v805
        %v1238 = vpack.c.b16 %v815, %v806
        %v1239 = vpack.c.b16 %v825, %v816
        %v1240 = vpack.c.b16 %v826, %v817
        %v1241 = vpack.c.b16 %v827, %v818
        %v1242 = vpack.c.b16 %v828, %v819
        %v1243 = vpack.c.b16 %v829, %v820
        %v1244 = vpack.c.b16 %v830, %v821
        %v1245 = vpack.c.b16 %v831, %v822
        %v1246 = vpack.c.b16 %v832, %v823
        %v1247 = vpack.c.b16 %v833, %v824
        %v1248 = vpack.c.b16 %v843, %v834
        %v1249 = vpack.c.b16 %v844, %v835
        %v1250 = vpack.c.b16 %v845, %v836
        %v1251 = vpack.c.b16 %v846, %v837
        %v1252 = vpack.c.b16 %v847, %v838
        %v1253 = vpack.c.b16 %v848, %v839
        %v1254 = vpack.c.b16 %v849, %v840
        %v1255 = vpack.c.b16 %v850, %v841
        %v1256 = vpack.c.b16 %v851, %v842
        %v1257 = vpack.c.b16 %v861, %v852
        %v1258 = vpack.c.b16 %v862, %v853
        %v1259 = vpack.c.b16 %v863, %v854
        %v1260 = vpack.c.b16 %v864, %v855
        %v1261 = vpack.c.b16 %v865, %v856
        %v1262 = vpack.c.b16 %v866, %v857
        %v1263 = vpack.c.b16 %v867, %v858
        %v1264 = vpack.c.b16 %v868, %v859
        %v1265 = vpack.c.b16 %v869, %v860
        %v1266 = vpack.c.b16 %v879, %v870
        %v1267 = vpack.c.b16 %v880, %v871
        %v1268 = vpack.c.b16 %v881, %v872
        %v1269 = vpack.c.b16 %v882, %v873
        %v1270 = vpack.c.b16 %v883, %v874
        %v1271 = vpack.c.b16 %v884, %v875
        %v1272 = vpack.c.b16 %v885, %v876
        %v1273 = vpack.c.b16 %v886, %v877
        %v1274 = vpack.c.b16 %v887, %v878
        %v1275 = vpack.c.b16 %v897, %v888
        %v1276 = vpack.c.b16 %v898, %v889
        %v1277 = vpack.c.b16 %v899, %v890
        %v1278 = vpack.c.b16 %v900, %v891
        %v1279 = vpack.c.b16 %v901, %v892
        %v1280 = vpack.c.b16 %v902, %v893
        %v1281 = vpack.c.b16 %v903, %v894
        %v1282 = vpack.c.b16 %v904, %v895
        %v1283 = vpack.c.b16 %v905, %v896
        %v1284 = vpack.c.b16 %v915, %v906
        %v1285 = vpack.c.b16 %v916, %v907
        %v1286 = vpack.c.b16 %v917, %v908
        %v1287 = vpack.c.b16 %v918, %v909
        %v1288 = vpack.c.b16 %v919, %v910
        %v1289 = vpack.c.b16 %v920, %v911
        %v1290 = vpack.c.b16 %v921, %v912
        %v1291 = vpack.c.b16 %v922, %v913
        %v1292 = vpack.c.b16 %v923, %v914
        %v1293 = vpack.c.b16 %v933, %v924
        %v1294 = vpack.c.b16 %v934, %v925
        %v1295 = vpack.c.b16 %v935, %v926
        %v1296 = vpack.c.b16 %v936, %v927
        %v1297 = vpack.c.b16 %v937, %v928
        %v1298 = vpack.c.b16 %v938, %v929
        %v1299 = vpack.c.b16 %v939, %v930
        %v1300 = vpack.c.b16 %v940, %v931
        %v1301 = vpack.c.b16 %v941, %v932
        %v1302 = vpack.c.b16 %v951, %v942
        %v1303 = vpack.c.b16 %v952, %v943
        %v1304 = vpack.c.b16 %v953, %v944
        %v1305 = vpack.c.b16 %v954, %v945
        %v1306 = vpack.c.b16 %v955, %v946
        %v1307 = vpack.c.b16 %v956, %v947
        %v1308 = vpack.c.b16 %v957, %v948
        %v1309 = vpack.c.b16 %v958, %v949
        %v1310 = vpack.c.b16 %v959, %v950
        %v1311 = vpack.c.b16 %v969, %v960
        %v1312 = vpack.c.b16 %v970, %v961
        %v1313 = vpack.c.b16 %v971, %v962
        %v1314 = vpack.c.b16 %v972, %v963
        %v1315 = vpack.c.b16 %v973, %v964
        %v1316 = vpack.c.b16 %v974, %v965
        %v1317 = vpack.c.b16 %v975, %v966
        %v1318 = vpack.c.b16 %v976, %v967
        %v1319 = vpack.c.b16 %v977, %v968
        %v1320 = vpack.c.b16 %v987, %v978
        %v1321 = vpack.c.b16 %v988, %v979
        %v1322 = vpack.c.b16 %v989, %v980
        %v1323 = vpack.c.b16 %v990, %v981
        %v1324 = vpack.c.b16 %v991, %v982
        %v1325 = vpack.c.b16 %v992, %v983
        %v1326 = vpack.c.b16 %v993, %v984
        %v1327 = vpack.c.b16 %v994, %v985
        %v1328 = vpack.c.b16 %v995, %v986
        %v1329 = vpack.c.b16 %v1005, %v996
        %v1330 = vpack.c.b16 %v1006, %v997
        %v1331 = vpack.c.b16 %v1007, %v998
        %v1332 = vpack.c.b16 %v1008, %v999
        %v1333 = vpack.c.b16 %v1009, %v1000
        %v1334 = vpack.c.b16 %v1010, %v1001
        %v1335 = vpack.c.b16 %v1011, %v1002
        %v1336 = vpack.c.b16 %v1012, %v1003
        %v1337 = vpack.c.b16 %v1013, %v1004
        %v1338 = vpack.c.b16 %v1023, %v1014
        %v1339 = vpack.c.b16 %v1024, %v1015
        %v1340 = vpack.c.b16 %v1025, %v1016
        %v1341 = vpack.c.b16 %v1026, %v1017
        %v1342 = vpack.c.b16 %v1027, %v1018
        %v1343 = vpack.c.b16 %v1028, %v1019
        %v1344 = vpack.c.b16 %v1029, %v1020
        %v1345 = vpack.c.b16 %v1030, %v1021
        %v1346 = vpack.c.b16 %v1031, %v1022
        %v1347 = vpack.c.b16 %v1041, %v1032
        %v1348 = vpack.c.b16 %v1042, %v1033
        %v1349 = vpack.c.b16 %v1043, %v1034
        %v1350 = vpack.c.b16 %v1044, %v1035
        %v1351 = vpack.c.b16 %v1045, %v1036
        %v1352 = vpack.c.b16 %v1046, %v1037
        %v1353 = vpack.c.b16 %v1047, %v1038
        %v1354 = vpack.c.b16 %v1048, %v1039
        %v1355 = vpack.c.b16 %v1049, %v1040
        %v1356 = vpack.c.b16 %v1059, %v1050
        %v1357 = vpack.c.b16 %v1060, %v1051
        %v1358 = vpack.c.b16 %v1061, %v1052
        %v1359 = vpack.c.b16 %v1062, %v1053
        %v1360 = vpack.c.b16 %v1063, %v1054
        %v1361 = vpack.c.b16 %v1064, %v1055
        %v1362 = vpack.c.b16 %v1065, %v1056
        %v1363 = vpack.c.b16 %v1066, %v1057
        %v1364 = vpack.c.b16 %v1067, %v1058
        %v1365 = vpack.c.b16 %v1077, %v1068
        %v1366 = vpack.c.b16 %v1078, %v1069
        %v1367 = vpack.c.b16 %v1079, %v1070
        %v1368 = vpack.c.b16 %v1080, %v1071
        %v1369 = vpack.c.b16 %v1081, %v1072
        %v1370 = vpack.c.b16 %v1082, %v1073
        %v1371 = vpack.c.b16 %v1083, %v1074
        %v1372 = vpack.c.b16 %v1084, %v1075
        %v1373 = vpack.c.b16 %v1085, %v1076
        %v1374 = vpack.c.b16 %v1095, %v1086
        %v1375 = vpack.c.b16 %v1096, %v1087
        %v1376 = vpack.c.b16 %v1097, %v1088
        %v1377 = vpack.c.b16 %v1098, %v1089
        %v1378 = vpack.c.b16 %v1099, %v1090
        %v1379 = vpack.c.b16 %v1100, %v1091
        %v1380 = vpack.c.b16 %v1101, %v1092
        %v1381 = vpack.c.b16 %v1102, %v1093
        %v1382 = vpack.c.b16 %v1103, %v1094
        %v1383 = vpack.c.b16 %v1113, %v1104
        %v1384 = vpack.c.b16 %v1114, %v1105
        %v1385 = vpack.c.b16 %v1115, %v1106
        %v1386 = vpack.c.b16 %v1116, %v1107
        %v1387 = vpack.c.b16 %v1117, %v1108
        %v1388 = vpack.c.b16 %v1118, %v1109
        %v1389 = vpack.c.b16 %v1119, %v1110
        %v1390 = vpack.c.b16 %v1120, %v1111
        %v1391 = vpack.c.b16 %v1121, %v1112
        %v1392 = vpack.c.b16 %v1131, %v1122
        %v1393 = vpack.c.b16 %v1132, %v1123
        %v1394 = vpack.c.b16 %v1133, %v1124
        %v1395 = vpack.c.b16 %v1134, %v1125
        %v1396 = vpack.c.b16 %v1135, %v1126
        %v1397 = vpack.c.b16 %v1136, %v1127
        %v1398 = vpack.c.b16 %v1137, %v1128
        %v1399 = vpack.c.b16 %v1138, %v1129
        %v1400 = vpack.c.b16 %v1139, %v1130
        %v1401 = vpack.c.b16 %v1149, %v1140
        %v1402 = vpack.c.b16 %v1150, %v1141
        %v1403 = vpack.c.b16 %v1151, %v1142
        %v1404 = vpack.c.b16 %v1152, %v1143
        %v1405 = vpack.c.b16 %v1153, %v1144
        %v1406 = vpack.c.b16 %v1154, %v1145
        %v1407 = vpack.c.b16 %v1155, %v1146
        %v1408 = vpack.c.b16 %v1156, %v1147
        %v1409 = vpack.c.b16 %v1157, %v1148
        %v1410 = vpack.c.b16 %v1167, %v1158
        %v1411 = vpack.c.b16 %v1168, %v1159
        %v1412 = vpack.c.b16 %v1169, %v1160
        %v1413 = vpack.c.b16 %v1170, %v1161
        %v1414 = vpack.c.b16 %v1171, %v1162
        %v1415 = vpack.c.b16 %v1172, %v1163
        %v1416 = vpack.c.b16 %v1173, %v1164
        %v1417 = vpack.c.b16 %v1174, %v1165
        %v1418 = vpack.c.b16 %v1175, %v1166
        %v1419 = vpack.c.b16 %v1185, %v1176
        %v1420 = vpack.c.b16 %v1186, %v1177
        %v1421 = vpack.c.b16 %v1187, %v1178
        %v1422 = vpack.c.b16 %v1188, %v1179
        %v1423 = vpack.c.b16 %v1189, %v1180
        %v1424 = vpack.c.b16 %v1190, %v1181
        %v1425 = vpack.c.b16 %v1191, %v1182
        %v1426 = vpack.c.b16 %v1192, %v1183
        %v1427 = vpack.c.b16 %v1193, %v1184
        %v1428 = vpack.c.b16 %v1203, %v1194
        %v1429 = vpack.c.b16 %v1204, %v1195
        %v1430 = vpack.c.b16 %v1205, %v1196
        %v1431 = vpack.c.b16 %v1206, %v1197
        %v1432 = vpack.c.b16 %v1207, %v1198
        %v1433 = vpack.c.b16 %v1208, %v1199
        %v1434 = vpack.c.b16 %v1209, %v1200
        %v1435 = vpack.c.b16 %v1210, %v1201
        %v1436 = vpack.c.b16 %v1211, %v1202
        %v1437 = vpack.c.b16 %v1221, %v1212
        %v1438 = vpack.c.b16 %v1222, %v1213
        %v1439 = vpack.c.b16 %v1223, %v1214
        %v1440 = vpack.c.b16 %v1224, %v1215
        %v1441 = vpack.c.b16 %v1225, %v1216
        %v1442 = vpack.c.b16 %v1226, %v1217
        %v1443 = vpack.c.b16 %v1227, %v1218
        %v1444 = vpack.c.b16 %v1228, %v1219
        %v1445 = vpack.c.b16 %v1229, %v1220
        %1662 = vmatprep.subr.bf16.mxu0 %v1231
        %1663 = vmatpush1.bf16.msra.mxu0 %v1230
        %1664 = vmatprep.subr.bf16.mxu0 %v1240
        %1665 = vmatpush1.bf16.msra.mxu0 %v1239
        %1666 = vmatprep.subr.bf16.mxu0 %v1249
        %1667 = vmatpush1.bf16.msra.mxu0 %v1248
        %1668 = vmatprep.subr.bf16.mxu0 %v1258
        %1669 = vmatpush1.bf16.msra.mxu0 %v1257
        %1670 = vmatprep.subr.bf16.mxu0 %v1267
        %1671 = vmatpush1.bf16.msra.mxu0 %v1266
        %1672 = vmatprep.subr.bf16.mxu0 %v1276
        %1673 = vmatpush1.bf16.msra.mxu0 %v1275
        %1674 = vmatprep.subr.bf16.mxu0 %v1285
        %1675 = vmatpush1.bf16.msra.mxu0 %v1284
        %1676 = vmatprep.subr.bf16.mxu0 %v1294
        %1677 = vmatpush1.bf16.msra.mxu0 %v1293
        %1678 = vmatprep.subr.bf16.mxu0 %v1303
        %1679 = vmatpush1.bf16.msra.mxu0 %v1302
        %1680 = vmatprep.subr.bf16.mxu0 %v1312
        %1681 = vmatpush1.bf16.msra.mxu0 %v1311
        %1682 = vmatprep.subr.bf16.mxu0 %v1321
        %1683 = vmatpush1.bf16.msra.mxu0 %v1320
        %1684 = vmatprep.subr.bf16.mxu0 %v1330
        %1685 = vmatpush1.bf16.msra.mxu0 %v1329
        %1686 = vmatprep.subr.bf16.mxu0 %v1339
        %1687 = vmatpush1.bf16.msra.mxu0 %v1338
        %1688 = vmatprep.subr.bf16.mxu0 %v1348
        %1689 = vmatpush1.bf16.msra.mxu0 %v1347
        %1690 = vmatprep.subr.bf16.mxu0 %v1357
        %1691 = vmatpush1.bf16.msra.mxu0 %v1356
        %1692 = vmatprep.subr.bf16.mxu0 %v1366
        %1693 = vmatpush1.bf16.msra.mxu0 %v1365
        %1694 = vmatprep.mubr.bf16.mxu0 %v295
        %1695 = vmatmul.mubr.bf16.gmra.mrb[0].mxu0 %v294
        %v1696 = vpop.f32.mrb[0].mxu0
        %v1697 = vadd.f32 0.0, %v1696
        %v1698 = vpop.f32.mrb[0].mxu0
        %v1699 = vadd.f32 0.0, %v1698
        %v1700 = vpop.f32.mrb[0].mxu0
        %v1701 = vadd.f32 0.0, %v1700
        %v1702 = vpop.f32.mrb[0].mxu0
        %v1703 = vadd.f32 0.0, %v1702
        %1704 = vmatprep.mubr.bf16.mxu0 %v298
        %1705 = vmatmul.mubr.bf16.gmra.mrb[0].mxu0 %v297
        %v1706 = vpop.f32.mrb[0].mxu0
        %v1707 = vadd.f32 0.0, %v1706
        %v1708 = vpop.f32.mrb[0].mxu0
        %v1709 = vadd.f32 0.0, %v1708
        %v1710 = vpop.f32.mrb[0].mxu0
        %v1711 = vadd.f32 0.0, %v1710
        %v1712 = vpop.f32.mrb[0].mxu0
        %v1713 = vadd.f32 0.0, %v1712
        %1714 = vmatprep.mubr.bf16.mxu0 %v301
        %1715 = vmatmul.mubr.bf16.gmra.mrb[0].mxu0 %v300
        %v1716 = vpop.f32.mrb[0].mxu0
        %v1717 = vadd.f32 0.0, %v1716
        %v1718 = vpop.f32.mrb[0].mxu0
        %v1719 = vadd.f32 0.0, %v1718
        %v1720 = vpop.f32.mrb[0].mxu0
        %v1721 = vadd.f32 0.0, %v1720
        %v1722 = vpop.f32.mrb[0].mxu0
        %v1723 = vadd.f32 0.0, %v1722
        %1724 = vmatprep.mubr.bf16.mxu0 %v304
        %1725 = vmatmul.mubr.bf16.gmra.mrb[0].mxu0 %v303
        %v1726 = vpop.f32.mrb[0].mxu0
        %v1727 = vadd.f32 0.0, %v1726
        %v1728 = vpop.f32.mrb[0].mxu0
        %v1729 = vadd.f32 0.0, %v1728
        %v1730 = vpop.f32.mrb[0].mxu0
        %v1731 = vadd.f32 0.0, %v1730
        %v1732 = vpop.f32.mrb[0].mxu0
        %v1733 = vadd.f32 0.0, %v1732
        %1734 = vmatprep.mubr.bf16.mxu0 %v307
        %1735 = vmatmul.mubr.bf16.gmra.mrb[0].mxu0 %v306
        %v1736 = vpop.f32.mrb[0].mxu0
        %v1737 = vadd.f32 0.0, %v1736
        %v1738 = vpop.f32.mrb[0].mxu0
        %v1739 = vadd.f32 0.0, %v1738
        %v1740 = vpop.f32.mrb[0].mxu0
        %v1741 = vadd.f32 0.0, %v1740
        %v1742 = vpop.f32.mrb[0].mxu0
        %v1743 = vadd.f32 0.0, %v1742
        %1744 = vmatprep.mubr.bf16.mxu0 %v310
        %1745 = vmatmul.mubr.bf16.gmra.mrb[0].mxu0 %v309
        %v1746 = vpop.f32.mrb[0].mxu0
        %v1747 = vadd.f32 0.0, %v1746
        %v1748 = vpop.f32.mrb[0].mxu0
        %v1749 = vadd.f32 0.0, %v1748
        %v1750 = vpop.f32.mrb[0].mxu0
        %v1751 = vadd.f32 0.0, %v1750
        %v1752 = vpop.f32.mrb[0].mxu0
        %v1753 = vadd.f32 0.0, %v1752
        %1754 = vmatprep.mubr.bf16.mxu0 %v313
        %1755 = vmatmul.mubr.bf16.gmra.mrb[0].mxu0 %v312
        %v1756 = vpop.f32.mrb[0].mxu0
        %v1757 = vadd.f32 0.0, %v1756
        %v1758 = vpop.f32.mrb[0].mxu0
        %v1759 = vadd.f32 0.0, %v1758
        %v1760 = vpop.f32.mrb[0].mxu0
        %v1761 = vadd.f32 0.0, %v1760
        %v1762 = vpop.f32.mrb[0].mxu0
        %v1763 = vadd.f32 0.0, %v1762
        %1764 = vmatprep.mubr.bf16.mxu0 %v316
        %1765 = vmatmul.mubr.bf16.gmra.mrb[0].mxu0 %v315
        %v1766 = vpop.f32.mrb[0].mxu0
        %v1767 = vadd.f32 0.0, %v1766
        %v1768 = vpop.f32.mrb[0].mxu0
        %v1769 = vadd.f32 0.0, %v1768
        %v1770 = vpop.f32.mrb[0].mxu0
        %v1771 = vadd.f32 0.0, %v1770
        %v1772 = vpop.f32.mrb[0].mxu0
        %v1773 = vadd.f32 0.0, %v1772
        %1774 = vdwg.mxu0
        %1775 = vmatprep.subr.bf16.mxu0 %v1375
        %1776 = vmatpush1.bf16.msra.mxu0 %v1374
        %1777 = vmatprep.subr.bf16.mxu0 %v1384
        %1778 = vmatpush1.bf16.msra.mxu0 %v1383
        %1779 = vmatprep.subr.bf16.mxu0 %v1393
        %1780 = vmatpush1.bf16.msra.mxu0 %v1392
        %1781 = vmatprep.subr.bf16.mxu0 %v1402
        %1782 = vmatpush1.bf16.msra.mxu0 %v1401
        %1783 = vmatprep.subr.bf16.mxu0 %v1411
        %1784 = vmatpush1.bf16.msra.mxu0 %v1410
        %1785 = vmatprep.subr.bf16.mxu0 %v1420
        %1786 = vmatpush1.bf16.msra.mxu0 %v1419
        %1787 = vmatprep.subr.bf16.mxu0 %v1429
        %1788 = vmatpush1.bf16.msra.mxu0 %v1428
        %1789 = vmatprep.subr.bf16.mxu0 %v1438
        %1790 = vmatpush1.bf16.msra.mxu0 %v1437
        %1791 = vmatprep.subr.bf16.mxu0 0
        %1792 = vmatpush1.bf16.msra.mxu0 0
        %1793 = vmatprep.subr.bf16.mxu0 0
        %1794 = vmatpush1.bf16.msra.mxu0 0
        %1795 = vmatprep.subr.bf16.mxu0 0
        %1796 = vmatpush1.bf16.msra.mxu0 0
        %1797 = vmatprep.subr.bf16.mxu0 0
        %1798 = vmatpush1.bf16.msra.mxu0 0
        %1799 = vmatprep.subr.bf16.mxu0 0
        %1800 = vmatpush1.bf16.msra.mxu0 0
        %1801 = vmatprep.subr.bf16.mxu0 0
        %1802 = vmatpush1.bf16.msra.mxu0 0
        %1803 = vmatprep.subr.bf16.mxu0 0
        %1804 = vmatpush1.bf16.msra.mxu0 0
        %1805 = vmatprep.subr.bf16.mxu0 0
        %1806 = vmatpush1.bf16.msra.mxu0 0
        %1807 = vmatprep.mubr.bf16.mxu0 0
        %1808 = vmatmul.mubr.bf16.gmra.mrb[0].mxu0 %v296
        %v1809 = vpop.f32.mrb[0].mxu0
        %v1810 = vadd.f32 %v1697, %v1809
        %v1811 = vpop.f32.mrb[0].mxu0
        %v1812 = vadd.f32 %v1699, %v1811
        %v1813 = vpop.f32.mrb[0].mxu0
        %v1814 = vadd.f32 %v1701, %v1813
        %v1815 = vpop.f32.mrb[0].mxu0
        %v1816 = vadd.f32 %v1703, %v1815
        %1817 = vmatprep.mubr.bf16.mxu0 0
        %1818 = vmatmul.mubr.bf16.gmra.mrb[0].mxu0 %v299
        %v1819 = vpop.f32.mrb[0].mxu0
        %v1820 = vadd.f32 %v1707, %v1819
        %v1821 = vpop.f32.mrb[0].mxu0
        %v1822 = vadd.f32 %v1709, %v1821
        %v1823 = vpop.f32.mrb[0].mxu0
        %v1824 = vadd.f32 %v1711, %v1823
        %v1825 = vpop.f32.mrb[0].mxu0
        %v1826 = vadd.f32 %v1713, %v1825
        %1827 = vmatprep.mubr.bf16.mxu0 0
        %1828 = vmatmul.mubr.bf16.gmra.mrb[0].mxu0 %v302
        %v1829 = vpop.f32.mrb[0].mxu0
        %v1830 = vadd.f32 %v1717, %v1829
        %v1831 = vpop.f32.mrb[0].mxu0
        %v1832 = vadd.f32 %v1719, %v1831
        %v1833 = vpop.f32.mrb[0].mxu0
        %v1834 = vadd.f32 %v1721, %v1833
        %v1835 = vpop.f32.mrb[0].mxu0
        %v1836 = vadd.f32 %v1723, %v1835
        %1837 = vmatprep.mubr.bf16.mxu0 0
        %1838 = vmatmul.mubr.bf16.gmra.mrb[0].mxu0 %v305
        %v1839 = vpop.f32.mrb[0].mxu0
        %v1840 = vadd.f32 %v1727, %v1839
        %v1841 = vpop.f32.mrb[0].mxu0
        %v1842 = vadd.f32 %v1729, %v1841
        %v1843 = vpop.f32.mrb[0].mxu0
        %v1844 = vadd.f32 %v1731, %v1843
        %v1845 = vpop.f32.mrb[0].mxu0
        %v1846 = vadd.f32 %v1733, %v1845
        %1847 = vmatprep.mubr.bf16.mxu0 0
        %1848 = vmatmul.mubr.bf16.gmra.mrb[0].mxu0 %v308
        %v1849 = vpop.f32.mrb[0].mxu0
        %v1850 = vadd.f32 %v1737, %v1849
        %v1851 = vpop.f32.mrb[0].mxu0
        %v1852 = vadd.f32 %v1739, %v1851
        %v1853 = vpop.f32.mrb[0].mxu0
        %v1854 = vadd.f32 %v1741, %v1853
        %v1855 = vpop.f32.mrb[0].mxu0
        %v1856 = vadd.f32 %v1743, %v1855
        %1857 = vmatprep.mubr.bf16.mxu0 0
        %1858 = vmatmul.mubr.bf16.gmra.mrb[0].mxu0 %v311
        %v1859 = vpop.f32.mrb[0].mxu0
        %v1860 = vadd.f32 %v1747, %v1859
        %v1861 = vpop.f32.mrb[0].mxu0
        %v1862 = vadd.f32 %v1749, %v1861
        %v1863 = vpop.f32.mrb[0].mxu0
        %v1864 = vadd.f32 %v1751, %v1863
        %v1865 = vpop.f32.mrb[0].mxu0
        %v1866 = vadd.f32 %v1753, %v1865
        %1867 = vmatprep.mubr.bf16.mxu0 0
        %1868 = vmatmul.mubr.bf16.gmra.mrb[0].mxu0 %v314
        %v1869 = vpop.f32.mrb[0].mxu0
        %v1870 = vadd.f32 %v1757, %v1869
        %v1871 = vpop.f32.mrb[0].mxu0
        %v1872 = vadd.f32 %v1759, %v1871
        %v1873 = vpop.f32.mrb[0].mxu0
        %v1874 = vadd.f32 %v1761, %v1873
        %v1875 = vpop.f32.mrb[0].mxu0
        %v1876 = vadd.f32 %v1763, %v1875
        %1877 = vmatprep.mubr.bf16.mxu0 0
        %1878 = vmatmul.mubr.bf16.gmra.mrb[0].mxu0 %v317
        %v1879 = vpop.f32.mrb[0].mxu0
        %v1880 = vadd.f32 %v1767, %v1879
        %v1881 = vpop.f32.mrb[0].mxu0
        %v1882 = vadd.f32 %v1769, %v1881
        %v1883 = vpop.f32.mrb[0].mxu0
        %v1884 = vadd.f32 %v1771, %v1883
        %v1885 = vpop.f32.mrb[0].mxu0
        %v1886 = vadd.f32 %v1773, %v1885
        %1887 = vdwg.mxu0
        %1888 = vmatprep.subr.bf16.mxu0 %v1233
        %1889 = vmatpush1.bf16.msra.mxu0 %v1232
        %1890 = vmatprep.subr.bf16.mxu0 %v1242
        %1891 = vmatpush1.bf16.msra.mxu0 %v1241
        %1892 = vmatprep.subr.bf16.mxu0 %v1251
        %1893 = vmatpush1.bf16.msra.mxu0 %v1250
        %1894 = vmatprep.subr.bf16.mxu0 %v1260
        %1895 = vmatpush1.bf16.msra.mxu0 %v1259
        %1896 = vmatprep.subr.bf16.mxu0 %v1269
        %1897 = vmatpush1.bf16.msra.mxu0 %v1268
        %1898 = vmatprep.subr.bf16.mxu0 %v1278
        %1899 = vmatpush1.bf16.msra.mxu0 %v1277
        %1900 = vmatprep.subr.bf16.mxu0 %v1287
        %1901 = vmatpush1.bf16.msra.mxu0 %v1286
        %1902 = vmatprep.subr.bf16.mxu0 %v1296
        %1903 = vmatpush1.bf16.msra.mxu0 %v1295
        %1904 = vmatprep.subr.bf16.mxu0 %v1305
        %1905 = vmatpush1.bf16.msra.mxu0 %v1304
        %1906 = vmatprep.subr.bf16.mxu0 %v1314
        %1907 = vmatpush1.bf16.msra.mxu0 %v1313
        %1908 = vmatprep.subr.bf16.mxu0 %v1323
        %1909 = vmatpush1.bf16.msra.mxu0 %v1322
        %1910 = vmatprep.subr.bf16.mxu0 %v1332
        %1911 = vmatpush1.bf16.msra.mxu0 %v1331
        %1912 = vmatprep.subr.bf16.mxu0 %v1341
        %1913 = vmatpush1.bf16.msra.mxu0 %v1340
        %1914 = vmatprep.subr.bf16.mxu0 %v1350
        %1915 = vmatpush1.bf16.msra.mxu0 %v1349
        %1916 = vmatprep.subr.bf16.mxu0 %v1359
        %1917 = vmatpush1.bf16.msra.mxu0 %v1358
        %1918 = vmatprep.subr.bf16.mxu0 %v1368
        %1919 = vmatpush1.bf16.msra.mxu0 %v1367
        %1920 = vmatprep.mubr.bf16.mxu0 %v295
        %1921 = vmatmul.mubr.bf16.gmra.mrb[0].mxu0 %v294
        %v1922 = vpop.f32.mrb[0].mxu0
        %v1923 = vadd.f32 0.0, %v1922
        %v1924 = vpop.f32.mrb[0].mxu0
        %v1925 = vadd.f32 0.0, %v1924
        %v1926 = vpop.f32.mrb[0].mxu0
        %v1927 = vadd.f32 0.0, %v1926
        %v1928 = vpop.f32.mrb[0].mxu0
        %v1929 = vadd.f32 0.0, %v1928
        %1930 = vmatprep.mubr.bf16.mxu0 %v298
        %1931 = vmatmul.mubr.bf16.gmra.mrb[0].mxu0 %v297
        %v1932 = vpop.f32.mrb[0].mxu0
        %v1933 = vadd.f32 0.0, %v1932
        %v1934 = vpop.f32.mrb[0].mxu0
        %v1935 = vadd.f32 0.0, %v1934
        %v1936 = vpop.f32.mrb[0].mxu0
        %v1937 = vadd.f32 0.0, %v1936
        %v1938 = vpop.f32.mrb[0].mxu0
        %v1939 = vadd.f32 0.0, %v1938
        %1940 = vmatprep.mubr.bf16.mxu0 %v301
        %1941 = vmatmul.mubr.bf16.gmra.mrb[0].mxu0 %v300
        %v1942 = vpop.f32.mrb[0].mxu0
        %v1943 = vadd.f32 0.0, %v1942
        %v1944 = vpop.f32.mrb[0].mxu0
        %v1945 = vadd.f32 0.0, %v1944
        %v1946 = vpop.f32.mrb[0].mxu0
        %v1947 = vadd.f32 0.0, %v1946
        %v1948 = vpop.f32.mrb[0].mxu0
        %v1949 = vadd.f32 0.0, %v1948
        %1950 = vmatprep.mubr.bf16.mxu0 %v304
        %1951 = vmatmul.mubr.bf16.gmra.mrb[0].mxu0 %v303
        %v1952 = vpop.f32.mrb[0].mxu0
        %v1953 = vadd.f32 0.0, %v1952
        %v1954 = vpop.f32.mrb[0].mxu0
        %v1955 = vadd.f32 0.0, %v1954
        %v1956 = vpop.f32.mrb[0].mxu0
        %v1957 = vadd.f32 0.0, %v1956
        %v1958 = vpop.f32.mrb[0].mxu0
        %v1959 = vadd.f32 0.0, %v1958
        %1960 = vmatprep.mubr.bf16.mxu0 %v307
        %1961 = vmatmul.mubr.bf16.gmra.mrb[0].mxu0 %v306
        %v1962 = vpop.f32.mrb[0].mxu0
        %v1963 = vadd.f32 0.0, %v1962
        %v1964 = vpop.f32.mrb[0].mxu0
        %v1965 = vadd.f32 0.0, %v1964
        %v1966 = vpop.f32.mrb[0].mxu0
        %v1967 = vadd.f32 0.0, %v1966
        %v1968 = vpop.f32.mrb[0].mxu0
        %v1969 = vadd.f32 0.0, %v1968
        %1970 = vmatprep.mubr.bf16.mxu0 %v310
        %1971 = vmatmul.mubr.bf16.gmra.mrb[0].mxu0 %v309
        %v1972 = vpop.f32.mrb[0].mxu0
        %v1973 = vadd.f32 0.0, %v1972
        %v1974 = vpop.f32.mrb[0].mxu0
        %v1975 = vadd.f32 0.0, %v1974
        %v1976 = vpop.f32.mrb[0].mxu0
        %v1977 = vadd.f32 0.0, %v1976
        %v1978 = vpop.f32.mrb[0].mxu0
        %v1979 = vadd.f32 0.0, %v1978
        %1980 = vmatprep.mubr.bf16.mxu0 %v313
        %1981 = vmatmul.mubr.bf16.gmra.mrb[0].mxu0 %v312
        %v1982 = vpop.f32.mrb[0].mxu0
        %v1983 = vadd.f32 0.0, %v1982
        %v1984 = vpop.f32.mrb[0].mxu0
        %v1985 = vadd.f32 0.0, %v1984
        %v1986 = vpop.f32.mrb[0].mxu0
        %v1987 = vadd.f32 0.0, %v1986
        %v1988 = vpop.f32.mrb[0].mxu0
        %v1989 = vadd.f32 0.0, %v1988
        %1990 = vmatprep.mubr.bf16.mxu0 %v316
        %1991 = vmatmul.mubr.bf16.gmra.mrb[0].mxu0 %v315
        %v1992 = vpop.f32.mrb[0].mxu0
        %v1993 = vadd.f32 0.0, %v1992
        %v1994 = vpop.f32.mrb[0].mxu0
        %v1995 = vadd.f32 0.0, %v1994
        %v1996 = vpop.f32.mrb[0].mxu0
        %v1997 = vadd.f32 0.0, %v1996
        %v1998 = vpop.f32.mrb[0].mxu0
        %v1999 = vadd.f32 0.0, %v1998
        %2000 = vdwg.mxu0
        %2001 = vmatprep.subr.bf16.mxu0 %v1377
        %2002 = vmatpush1.bf16.msra.mxu0 %v1376
        %2003 = vmatprep.subr.bf16.mxu0 %v1386
        %2004 = vmatpush1.bf16.msra.mxu0 %v1385
        %2005 = vmatprep.subr.bf16.mxu0 %v1395
        %2006 = vmatpush1.bf16.msra.mxu0 %v1394
        %2007 = vmatprep.subr.bf16.mxu0 %v1404
        %2008 = vmatpush1.bf16.msra.mxu0 %v1403
        %2009 = vmatprep.subr.bf16.mxu0 %v1413
        %2010 = vmatpush1.bf16.msra.mxu0 %v1412
        %2011 = vmatprep.subr.bf16.mxu0 %v1422
        %2012 = vmatpush1.bf16.msra.mxu0 %v1421
        %2013 = vmatprep.subr.bf16.mxu0 %v1431
        %2014 = vmatpush1.bf16.msra.mxu0 %v1430
        %2015 = vmatprep.subr.bf16.mxu0 %v1440
        %2016 = vmatpush1.bf16.msra.mxu0 %v1439
        %2017 = vmatprep.subr.bf16.mxu0 0
        %2018 = vmatpush1.bf16.msra.mxu0 0
        %2019 = vmatprep.subr.bf16.mxu0 0
        %2020 = vmatpush1.bf16.msra.mxu0 0
        %2021 = vmatprep.subr.bf16.mxu0 0
        %2022 = vmatpush1.bf16.msra.mxu0 0
        %2023 = vmatprep.subr.bf16.mxu0 0
        %2024 = vmatpush1.bf16.msra.mxu0 0
        %2025 = vmatprep.subr.bf16.mxu0 0
        %2026 = vmatpush1.bf16.msra.mxu0 0
        %2027 = vmatprep.subr.bf16.mxu0 0
        %2028 = vmatpush1.bf16.msra.mxu0 0
        %2029 = vmatprep.subr.bf16.mxu0 0
        %2030 = vmatpush1.bf16.msra.mxu0 0
        %2031 = vmatprep.subr.bf16.mxu0 0
        %2032 = vmatpush1.bf16.msra.mxu0 0
        %2033 = vmatprep.mubr.bf16.mxu0 0
        %2034 = vmatmul.mubr.bf16.gmra.mrb[0].mxu0 %v296
        %v2035 = vpop.f32.mrb[0].mxu0
        %v2036 = vadd.f32 %v1923, %v2035
        %v2037 = vpop.f32.mrb[0].mxu0
        %v2038 = vadd.f32 %v1925, %v2037
        %v2039 = vpop.f32.mrb[0].mxu0
        %v2040 = vadd.f32 %v1927, %v2039
        %v2041 = vpop.f32.mrb[0].mxu0
        %v2042 = vadd.f32 %v1929, %v2041
        %2043 = vmatprep.mubr.bf16.mxu0 0
        %2044 = vmatmul.mubr.bf16.gmra.mrb[0].mxu0 %v299
        %v2045 = vpop.f32.mrb[0].mxu0
        %v2046 = vadd.f32 %v1933, %v2045
        %v2047 = vpop.f32.mrb[0].mxu0
        %v2048 = vadd.f32 %v1935, %v2047
        %v2049 = vpop.f32.mrb[0].mxu0
        %v2050 = vadd.f32 %v1937, %v2049
        %v2051 = vpop.f32.mrb[0].mxu0
        %v2052 = vadd.f32 %v1939, %v2051
        %2053 = vmatprep.mubr.bf16.mxu0 0
        %2054 = vmatmul.mubr.bf16.gmra.mrb[0].mxu0 %v302
        %v2055 = vpop.f32.mrb[0].mxu0
        %v2056 = vadd.f32 %v1943, %v2055
        %v2057 = vpop.f32.mrb[0].mxu0
        %v2058 = vadd.f32 %v1945, %v2057
        %v2059 = vpop.f32.mrb[0].mxu0
        %v2060 = vadd.f32 %v1947, %v2059
        %v2061 = vpop.f32.mrb[0].mxu0
        %v2062 = vadd.f32 %v1949, %v2061
        %2063 = vmatprep.mubr.bf16.mxu0 0
        %2064 = vmatmul.mubr.bf16.gmra.mrb[0].mxu0 %v305
        %v2065 = vpop.f32.mrb[0].mxu0
        %v2066 = vadd.f32 %v1953, %v2065
        %v2067 = vpop.f32.mrb[0].mxu0
        %v2068 = vadd.f32 %v1955, %v2067
        %v2069 = vpop.f32.mrb[0].mxu0
        %v2070 = vadd.f32 %v1957, %v2069
        %v2071 = vpop.f32.mrb[0].mxu0
        %v2072 = vadd.f32 %v1959, %v2071
        %2073 = vmatprep.mubr.bf16.mxu0 0
        %2074 = vmatmul.mubr.bf16.gmra.mrb[0].mxu0 %v308
        %v2075 = vpop.f32.mrb[0].mxu0
        %v2076 = vadd.f32 %v1963, %v2075
        %v2077 = vpop.f32.mrb[0].mxu0
        %v2078 = vadd.f32 %v1965, %v2077
        %v2079 = vpop.f32.mrb[0].mxu0
        %v2080 = vadd.f32 %v1967, %v2079
        %v2081 = vpop.f32.mrb[0].mxu0
        %v2082 = vadd.f32 %v1969, %v2081
        %2083 = vmatprep.mubr.bf16.mxu0 0
        %2084 = vmatmul.mubr.bf16.gmra.mrb[0].mxu0 %v311
        %v2085 = vpop.f32.mrb[0].mxu0
        %v2086 = vadd.f32 %v1973, %v2085
        %v2087 = vpop.f32.mrb[0].mxu0
        %v2088 = vadd.f32 %v1975, %v2087
        %v2089 = vpop.f32.mrb[0].mxu0
        %v2090 = vadd.f32 %v1977, %v2089
        %v2091 = vpop.f32.mrb[0].mxu0
        %v2092 = vadd.f32 %v1979, %v2091
        %2093 = vmatprep.mubr.bf16.mxu0 0
        %2094 = vmatmul.mubr.bf16.gmra.mrb[0].mxu0 %v314
        %v2095 = vpop.f32.mrb[0].mxu0
        %v2096 = vadd.f32 %v1983, %v2095
        %v2097 = vpop.f32.mrb[0].mxu0
        %v2098 = vadd.f32 %v1985, %v2097
        %v2099 = vpop.f32.mrb[0].mxu0
        %v2100 = vadd.f32 %v1987, %v2099
        %v2101 = vpop.f32.mrb[0].mxu0
        %v2102 = vadd.f32 %v1989, %v2101
        %2103 = vmatprep.mubr.bf16.mxu0 0
        %2104 = vmatmul.mubr.bf16.gmra.mrb[0].mxu0 %v317
        %v2105 = vpop.f32.mrb[0].mxu0
        %v2106 = vadd.f32 %v1993, %v2105
        %v2107 = vpop.f32.mrb[0].mxu0
        %v2108 = vadd.f32 %v1995, %v2107
        %v2109 = vpop.f32.mrb[0].mxu0
        %v2110 = vadd.f32 %v1997, %v2109
        %v2111 = vpop.f32.mrb[0].mxu0
        %v2112 = vadd.f32 %v1999, %v2111
        %2113 = vdwg.mxu0
        %2114 = vmatprep.subr.bf16.mxu0 %v1235
        %2115 = vmatpush1.bf16.msra.mxu0 %v1234
        %2116 = vmatprep.subr.bf16.mxu0 %v1244
        %2117 = vmatpush1.bf16.msra.mxu0 %v1243
        %2118 = vmatprep.subr.bf16.mxu0 %v1253
        %2119 = vmatpush1.bf16.msra.mxu0 %v1252
        %2120 = vmatprep.subr.bf16.mxu0 %v1262
        %2121 = vmatpush1.bf16.msra.mxu0 %v1261
        %2122 = vmatprep.subr.bf16.mxu0 %v1271
        %2123 = vmatpush1.bf16.msra.mxu0 %v1270
        %2124 = vmatprep.subr.bf16.mxu0 %v1280
        %2125 = vmatpush1.bf16.msra.mxu0 %v1279
        %2126 = vmatprep.subr.bf16.mxu0 %v1289
        %2127 = vmatpush1.bf16.msra.mxu0 %v1288
        %2128 = vmatprep.subr.bf16.mxu0 %v1298
        %2129 = vmatpush1.bf16.msra.mxu0 %v1297
        %2130 = vmatprep.subr.bf16.mxu0 %v1307
        %2131 = vmatpush1.bf16.msra.mxu0 %v1306
        %2132 = vmatprep.subr.bf16.mxu0 %v1316
        %2133 = vmatpush1.bf16.msra.mxu0 %v1315
        %2134 = vmatprep.subr.bf16.mxu0 %v1325
        %2135 = vmatpush1.bf16.msra.mxu0 %v1324
        %2136 = vmatprep.subr.bf16.mxu0 %v1334
        %2137 = vmatpush1.bf16.msra.mxu0 %v1333
        %2138 = vmatprep.subr.bf16.mxu0 %v1343
        %2139 = vmatpush1.bf16.msra.mxu0 %v1342
        %2140 = vmatprep.subr.bf16.mxu0 %v1352
        %2141 = vmatpush1.bf16.msra.mxu0 %v1351
        %2142 = vmatprep.subr.bf16.mxu0 %v1361
        %2143 = vmatpush1.bf16.msra.mxu0 %v1360
        %2144 = vmatprep.subr.bf16.mxu0 %v1370
        %2145 = vmatpush1.bf16.msra.mxu0 %v1369
        %2146 = vmatprep.mubr.bf16.mxu0 %v295
        %2147 = vmatmul.mubr.bf16.gmra.mrb[0].mxu0 %v294
        %v2148 = vpop.f32.mrb[0].mxu0
        %v2149 = vadd.f32 0.0, %v2148
        %v2150 = vpop.f32.mrb[0].mxu0
        %v2151 = vadd.f32 0.0, %v2150
        %v2152 = vpop.f32.mrb[0].mxu0
        %v2153 = vadd.f32 0.0, %v2152
        %v2154 = vpop.f32.mrb[0].mxu0
        %v2155 = vadd.f32 0.0, %v2154
        %2156 = vmatprep.mubr.bf16.mxu0 %v298
        %2157 = vmatmul.mubr.bf16.gmra.mrb[0].mxu0 %v297
        %v2158 = vpop.f32.mrb[0].mxu0
        %v2159 = vadd.f32 0.0, %v2158
        %v2160 = vpop.f32.mrb[0].mxu0
        %v2161 = vadd.f32 0.0, %v2160
        %v2162 = vpop.f32.mrb[0].mxu0
        %v2163 = vadd.f32 0.0, %v2162
        %v2164 = vpop.f32.mrb[0].mxu0
        %v2165 = vadd.f32 0.0, %v2164
        %2166 = vmatprep.mubr.bf16.mxu0 %v301
        %2167 = vmatmul.mubr.bf16.gmra.mrb[0].mxu0 %v300
        %v2168 = vpop.f32.mrb[0].mxu0
        %v2169 = vadd.f32 0.0, %v2168
        %v2170 = vpop.f32.mrb[0].mxu0
        %v2171 = vadd.f32 0.0, %v2170
        %v2172 = vpop.f32.mrb[0].mxu0
        %v2173 = vadd.f32 0.0, %v2172
        %v2174 = vpop.f32.mrb[0].mxu0
        %v2175 = vadd.f32 0.0, %v2174
        %2176 = vmatprep.mubr.bf16.mxu0 %v304
        %2177 = vmatmul.mubr.bf16.gmra.mrb[0].mxu0 %v303
        %v2178 = vpop.f32.mrb[0].mxu0
        %v2179 = vadd.f32 0.0, %v2178
        %v2180 = vpop.f32.mrb[0].mxu0
        %v2181 = vadd.f32 0.0, %v2180
        %v2182 = vpop.f32.mrb[0].mxu0
        %v2183 = vadd.f32 0.0, %v2182
        %v2184 = vpop.f32.mrb[0].mxu0
        %v2185 = vadd.f32 0.0, %v2184
        %2186 = vmatprep.mubr.bf16.mxu0 %v307
        %2187 = vmatmul.mubr.bf16.gmra.mrb[0].mxu0 %v306
        %v2188 = vpop.f32.mrb[0].mxu0
        %v2189 = vadd.f32 0.0, %v2188
        %v2190 = vpop.f32.mrb[0].mxu0
        %v2191 = vadd.f32 0.0, %v2190
        %v2192 = vpop.f32.mrb[0].mxu0
        %v2193 = vadd.f32 0.0, %v2192
        %v2194 = vpop.f32.mrb[0].mxu0
        %v2195 = vadd.f32 0.0, %v2194
        %2196 = vmatprep.mubr.bf16.mxu0 %v310
        %2197 = vmatmul.mubr.bf16.gmra.mrb[0].mxu0 %v309
        %v2198 = vpop.f32.mrb[0].mxu0
        %v2199 = vadd.f32 0.0, %v2198
        %v2200 = vpop.f32.mrb[0].mxu0
        %v2201 = vadd.f32 0.0, %v2200
        %v2202 = vpop.f32.mrb[0].mxu0
        %v2203 = vadd.f32 0.0, %v2202
        %v2204 = vpop.f32.mrb[0].mxu0
        %v2205 = vadd.f32 0.0, %v2204
        %2206 = vmatprep.mubr.bf16.mxu0 %v313
        %2207 = vmatmul.mubr.bf16.gmra.mrb[0].mxu0 %v312
        %v2208 = vpop.f32.mrb[0].mxu0
        %v2209 = vadd.f32 0.0, %v2208
        %v2210 = vpop.f32.mrb[0].mxu0
        %v2211 = vadd.f32 0.0, %v2210
        %v2212 = vpop.f32.mrb[0].mxu0
        %v2213 = vadd.f32 0.0, %v2212
        %v2214 = vpop.f32.mrb[0].mxu0
        %v2215 = vadd.f32 0.0, %v2214
        %2216 = vmatprep.mubr.bf16.mxu0 %v316
        %2217 = vmatmul.mubr.bf16.gmra.mrb[0].mxu0 %v315
        %v2218 = vpop.f32.mrb[0].mxu0
        %v2219 = vadd.f32 0.0, %v2218
        %v2220 = vpop.f32.mrb[0].mxu0
        %v2221 = vadd.f32 0.0, %v2220
        %v2222 = vpop.f32.mrb[0].mxu0
        %v2223 = vadd.f32 0.0, %v2222
        %v2224 = vpop.f32.mrb[0].mxu0
        %v2225 = vadd.f32 0.0, %v2224
        %2226 = vdwg.mxu0
        %2227 = vmatprep.subr.bf16.mxu0 %v1379
        %2228 = vmatpush1.bf16.msra.mxu0 %v1378
        %2229 = vmatprep.subr.bf16.mxu0 %v1388
        %2230 = vmatpush1.bf16.msra.mxu0 %v1387
        %2231 = vmatprep.subr.bf16.mxu0 %v1397
        %2232 = vmatpush1.bf16.msra.mxu0 %v1396
        %2233 = vmatprep.subr.bf16.mxu0 %v1406
        %2234 = vmatpush1.bf16.msra.mxu0 %v1405
        %2235 = vmatprep.subr.bf16.mxu0 %v1415
        %2236 = vmatpush1.bf16.msra.mxu0 %v1414
        %2237 = vmatprep.subr.bf16.mxu0 %v1424
        %2238 = vmatpush1.bf16.msra.mxu0 %v1423
        %2239 = vmatprep.subr.bf16.mxu0 %v1433
        %2240 = vmatpush1.bf16.msra.mxu0 %v1432
        %2241 = vmatprep.subr.bf16.mxu0 %v1442
        %2242 = vmatpush1.bf16.msra.mxu0 %v1441
        %2243 = vmatprep.subr.bf16.mxu0 0
        %2244 = vmatpush1.bf16.msra.mxu0 0
        %2245 = vmatprep.subr.bf16.mxu0 0
        %2246 = vmatpush1.bf16.msra.mxu0 0
        %2247 = vmatprep.subr.bf16.mxu0 0
        %2248 = vmatpush1.bf16.msra.mxu0 0
        %2249 = vmatprep.subr.bf16.mxu0 0
        %2250 = vmatpush1.bf16.msra.mxu0 0
        %2251 = vmatprep.subr.bf16.mxu0 0
        %2252 = vmatpush1.bf16.msra.mxu0 0
        %2253 = vmatprep.subr.bf16.mxu0 0
        %2254 = vmatpush1.bf16.msra.mxu0 0
        %2255 = vmatprep.subr.bf16.mxu0 0
        %2256 = vmatpush1.bf16.msra.mxu0 0
        %2257 = vmatprep.subr.bf16.mxu0 0
        %2258 = vmatpush1.bf16.msra.mxu0 0
        %2259 = vmatprep.mubr.bf16.mxu0 0
        %2260 = vmatmul.mubr.bf16.gmra.mrb[0].mxu0 %v296
        %v2261 = vpop.f32.mrb[0].mxu0
        %v2262 = vadd.f32 %v2149, %v2261
        %v2263 = vpop.f32.mrb[0].mxu0
        %v2264 = vadd.f32 %v2151, %v2263
        %v2265 = vpop.f32.mrb[0].mxu0
        %v2266 = vadd.f32 %v2153, %v2265
        %v2267 = vpop.f32.mrb[0].mxu0
        %v2268 = vadd.f32 %v2155, %v2267
        %2269 = vmatprep.mubr.bf16.mxu0 0
        %2270 = vmatmul.mubr.bf16.gmra.mrb[0].mxu0 %v299
        %v2271 = vpop.f32.mrb[0].mxu0
        %v2272 = vadd.f32 %v2159, %v2271
        %v2273 = vpop.f32.mrb[0].mxu0
        %v2274 = vadd.f32 %v2161, %v2273
        %v2275 = vpop.f32.mrb[0].mxu0
        %v2276 = vadd.f32 %v2163, %v2275
        %v2277 = vpop.f32.mrb[0].mxu0
        %v2278 = vadd.f32 %v2165, %v2277
        %2279 = vmatprep.mubr.bf16.mxu0 0
        %2280 = vmatmul.mubr.bf16.gmra.mrb[0].mxu0 %v302
        %v2281 = vpop.f32.mrb[0].mxu0
        %v2282 = vadd.f32 %v2169, %v2281
        %v2283 = vpop.f32.mrb[0].mxu0
        %v2284 = vadd.f32 %v2171, %v2283
        %v2285 = vpop.f32.mrb[0].mxu0
        %v2286 = vadd.f32 %v2173, %v2285
        %v2287 = vpop.f32.mrb[0].mxu0
        %v2288 = vadd.f32 %v2175, %v2287
        %2289 = vmatprep.mubr.bf16.mxu0 0
        %2290 = vmatmul.mubr.bf16.gmra.mrb[0].mxu0 %v305
        %v2291 = vpop.f32.mrb[0].mxu0
        %v2292 = vadd.f32 %v2179, %v2291
        %v2293 = vpop.f32.mrb[0].mxu0
        %v2294 = vadd.f32 %v2181, %v2293
        %v2295 = vpop.f32.mrb[0].mxu0
        %v2296 = vadd.f32 %v2183, %v2295
        %v2297 = vpop.f32.mrb[0].mxu0
        %v2298 = vadd.f32 %v2185, %v2297
        %2299 = vmatprep.mubr.bf16.mxu0 0
        %2300 = vmatmul.mubr.bf16.gmra.mrb[0].mxu0 %v308
        %v2301 = vpop.f32.mrb[0].mxu0
        %v2302 = vadd.f32 %v2189, %v2301
        %v2303 = vpop.f32.mrb[0].mxu0
        %v2304 = vadd.f32 %v2191, %v2303
        %v2305 = vpop.f32.mrb[0].mxu0
        %v2306 = vadd.f32 %v2193, %v2305
        %v2307 = vpop.f32.mrb[0].mxu0
        %v2308 = vadd.f32 %v2195, %v2307
        %2309 = vmatprep.mubr.bf16.mxu0 0
        %2310 = vmatmul.mubr.bf16.gmra.mrb[0].mxu0 %v311
        %v2311 = vpop.f32.mrb[0].mxu0
        %v2312 = vadd.f32 %v2199, %v2311
        %v2313 = vpop.f32.mrb[0].mxu0
        %v2314 = vadd.f32 %v2201, %v2313
        %v2315 = vpop.f32.mrb[0].mxu0
        %v2316 = vadd.f32 %v2203, %v2315
        %v2317 = vpop.f32.mrb[0].mxu0
        %v2318 = vadd.f32 %v2205, %v2317
        %2319 = vmatprep.mubr.bf16.mxu0 0
        %2320 = vmatmul.mubr.bf16.gmra.mrb[0].mxu0 %v314
        %v2321 = vpop.f32.mrb[0].mxu0
        %v2322 = vadd.f32 %v2209, %v2321
        %v2323 = vpop.f32.mrb[0].mxu0
        %v2324 = vadd.f32 %v2211, %v2323
        %v2325 = vpop.f32.mrb[0].mxu0
        %v2326 = vadd.f32 %v2213, %v2325
        %v2327 = vpop.f32.mrb[0].mxu0
        %v2328 = vadd.f32 %v2215, %v2327
        %2329 = vmatprep.mubr.bf16.mxu0 0
        %2330 = vmatmul.mubr.bf16.gmra.mrb[0].mxu0 %v317
        %v2331 = vpop.f32.mrb[0].mxu0
        %v2332 = vadd.f32 %v2219, %v2331
        %v2333 = vpop.f32.mrb[0].mxu0
        %v2334 = vadd.f32 %v2221, %v2333
        %v2335 = vpop.f32.mrb[0].mxu0
        %v2336 = vadd.f32 %v2223, %v2335
        %v2337 = vpop.f32.mrb[0].mxu0
        %v2338 = vadd.f32 %v2225, %v2337
        %2339 = vdwg.mxu0
        %2340 = vmatprep.subr.bf16.mxu0 %v1237
        %2341 = vmatpush1.bf16.msra.mxu0 %v1236
        %2342 = vmatprep.subr.bf16.mxu0 %v1246
        %2343 = vmatpush1.bf16.msra.mxu0 %v1245
        %2344 = vmatprep.subr.bf16.mxu0 %v1255
        %2345 = vmatpush1.bf16.msra.mxu0 %v1254
        %2346 = vmatprep.subr.bf16.mxu0 %v1264
        %2347 = vmatpush1.bf16.msra.mxu0 %v1263
        %2348 = vmatprep.subr.bf16.mxu0 %v1273
        %2349 = vmatpush1.bf16.msra.mxu0 %v1272
        %2350 = vmatprep.subr.bf16.mxu0 %v1282
        %2351 = vmatpush1.bf16.msra.mxu0 %v1281
        %2352 = vmatprep.subr.bf16.mxu0 %v1291
        %2353 = vmatpush1.bf16.msra.mxu0 %v1290
        %2354 = vmatprep.subr.bf16.mxu0 %v1300
        %2355 = vmatpush1.bf16.msra.mxu0 %v1299
        %2356 = vmatprep.subr.bf16.mxu0 %v1309
        %2357 = vmatpush1.bf16.msra.mxu0 %v1308
        %2358 = vmatprep.subr.bf16.mxu0 %v1318
        %2359 = vmatpush1.bf16.msra.mxu0 %v1317
        %2360 = vmatprep.subr.bf16.mxu0 %v1327
        %2361 = vmatpush1.bf16.msra.mxu0 %v1326
        %2362 = vmatprep.subr.bf16.mxu0 %v1336
        %2363 = vmatpush1.bf16.msra.mxu0 %v1335
        %2364 = vmatprep.subr.bf16.mxu0 %v1345
        %2365 = vmatpush1.bf16.msra.mxu0 %v1344
        %2366 = vmatprep.subr.bf16.mxu0 %v1354
        %2367 = vmatpush1.bf16.msra.mxu0 %v1353
        %2368 = vmatprep.subr.bf16.mxu0 %v1363
        %2369 = vmatpush1.bf16.msra.mxu0 %v1362
        %2370 = vmatprep.subr.bf16.mxu0 %v1372
        %2371 = vmatpush1.bf16.msra.mxu0 %v1371
        %2372 = vmatprep.mubr.bf16.mxu0 %v295
        %2373 = vmatmul.mubr.bf16.gmra.mrb[0].mxu0 %v294
        %v2374 = vpop.f32.mrb[0].mxu0
        %v2375 = vadd.f32 0.0, %v2374
        %v2376 = vpop.f32.mrb[0].mxu0
        %v2377 = vadd.f32 0.0, %v2376
        %v2378 = vpop.f32.mrb[0].mxu0
        %v2379 = vadd.f32 0.0, %v2378
        %v2380 = vpop.f32.mrb[0].mxu0
        %v2381 = vadd.f32 0.0, %v2380
        %2382 = vmatprep.mubr.bf16.mxu0 %v298
        %2383 = vmatmul.mubr.bf16.gmra.mrb[0].mxu0 %v297
        %v2384 = vpop.f32.mrb[0].mxu0
        %v2385 = vadd.f32 0.0, %v2384
        %v2386 = vpop.f32.mrb[0].mxu0
        %v2387 = vadd.f32 0.0, %v2386
        %v2388 = vpop.f32.mrb[0].mxu0
        %v2389 = vadd.f32 0.0, %v2388
        %v2390 = vpop.f32.mrb[0].mxu0
        %v2391 = vadd.f32 0.0, %v2390
        %2392 = vmatprep.mubr.bf16.mxu0 %v301
        %2393 = vmatmul.mubr.bf16.gmra.mrb[0].mxu0 %v300
        %v2394 = vpop.f32.mrb[0].mxu0
        %v2395 = vadd.f32 0.0, %v2394
        %v2396 = vpop.f32.mrb[0].mxu0
        %v2397 = vadd.f32 0.0, %v2396
        %v2398 = vpop.f32.mrb[0].mxu0
        %v2399 = vadd.f32 0.0, %v2398
        %v2400 = vpop.f32.mrb[0].mxu0
        %v2401 = vadd.f32 0.0, %v2400
        %2402 = vmatprep.mubr.bf16.mxu0 %v304
        %2403 = vmatmul.mubr.bf16.gmra.mrb[0].mxu0 %v303
        %v2404 = vpop.f32.mrb[0].mxu0
        %v2405 = vadd.f32 0.0, %v2404
        %v2406 = vpop.f32.mrb[0].mxu0
        %v2407 = vadd.f32 0.0, %v2406
        %v2408 = vpop.f32.mrb[0].mxu0
        %v2409 = vadd.f32 0.0, %v2408
        %v2410 = vpop.f32.mrb[0].mxu0
        %v2411 = vadd.f32 0.0, %v2410
        %2412 = vmatprep.mubr.bf16.mxu0 %v307
        %2413 = vmatmul.mubr.bf16.gmra.mrb[0].mxu0 %v306
        %v2414 = vpop.f32.mrb[0].mxu0
        %v2415 = vadd.f32 0.0, %v2414
        %v2416 = vpop.f32.mrb[0].mxu0
        %v2417 = vadd.f32 0.0, %v2416
        %v2418 = vpop.f32.mrb[0].mxu0
        %v2419 = vadd.f32 0.0, %v2418
        %v2420 = vpop.f32.mrb[0].mxu0
        %v2421 = vadd.f32 0.0, %v2420
        %2422 = vmatprep.mubr.bf16.mxu0 %v310
        %2423 = vmatmul.mubr.bf16.gmra.mrb[0].mxu0 %v309
        %v2424 = vpop.f32.mrb[0].mxu0
        %v2425 = vadd.f32 0.0, %v2424
        %v2426 = vpop.f32.mrb[0].mxu0
        %v2427 = vadd.f32 0.0, %v2426
        %v2428 = vpop.f32.mrb[0].mxu0
        %v2429 = vadd.f32 0.0, %v2428
        %v2430 = vpop.f32.mrb[0].mxu0
        %v2431 = vadd.f32 0.0, %v2430
        %2432 = vmatprep.mubr.bf16.mxu0 %v313
        %2433 = vmatmul.mubr.bf16.gmra.mrb[0].mxu0 %v312
        %v2434 = vpop.f32.mrb[0].mxu0
        %v2435 = vadd.f32 0.0, %v2434
        %v2436 = vpop.f32.mrb[0].mxu0
        %v2437 = vadd.f32 0.0, %v2436
        %v2438 = vpop.f32.mrb[0].mxu0
        %v2439 = vadd.f32 0.0, %v2438
        %v2440 = vpop.f32.mrb[0].mxu0
        %v2441 = vadd.f32 0.0, %v2440
        %2442 = vmatprep.mubr.bf16.mxu0 %v316
        %2443 = vmatmul.mubr.bf16.gmra.mrb[0].mxu0 %v315
        %v2444 = vpop.f32.mrb[0].mxu0
        %v2445 = vadd.f32 0.0, %v2444
        %v2446 = vpop.f32.mrb[0].mxu0
        %v2447 = vadd.f32 0.0, %v2446
        %v2448 = vpop.f32.mrb[0].mxu0
        %v2449 = vadd.f32 0.0, %v2448
        %v2450 = vpop.f32.mrb[0].mxu0
        %v2451 = vadd.f32 0.0, %v2450
        %2452 = vdwg.mxu0
        %2453 = vmatprep.subr.bf16.mxu0 %v1381
        %2454 = vmatpush1.bf16.msra.mxu0 %v1380
        %2455 = vmatprep.subr.bf16.mxu0 %v1390
        %2456 = vmatpush1.bf16.msra.mxu0 %v1389
        %2457 = vmatprep.subr.bf16.mxu0 %v1399
        %2458 = vmatpush1.bf16.msra.mxu0 %v1398
        %2459 = vmatprep.subr.bf16.mxu0 %v1408
        %2460 = vmatpush1.bf16.msra.mxu0 %v1407
        %2461 = vmatprep.subr.bf16.mxu0 %v1417
        %2462 = vmatpush1.bf16.msra.mxu0 %v1416
        %2463 = vmatprep.subr.bf16.mxu0 %v1426
        %2464 = vmatpush1.bf16.msra.mxu0 %v1425
        %2465 = vmatprep.subr.bf16.mxu0 %v1435
        %2466 = vmatpush1.bf16.msra.mxu0 %v1434
        %2467 = vmatprep.subr.bf16.mxu0 %v1444
        %2468 = vmatpush1.bf16.msra.mxu0 %v1443
        %2469 = vmatprep.subr.bf16.mxu0 0
        %2470 = vmatpush1.bf16.msra.mxu0 0
        %2471 = vmatprep.subr.bf16.mxu0 0
        %2472 = vmatpush1.bf16.msra.mxu0 0
        %2473 = vmatprep.subr.bf16.mxu0 0
        %2474 = vmatpush1.bf16.msra.mxu0 0
        %2475 = vmatprep.subr.bf16.mxu0 0
        %2476 = vmatpush1.bf16.msra.mxu0 0
        %2477 = vmatprep.subr.bf16.mxu0 0
        %2478 = vmatpush1.bf16.msra.mxu0 0
        %2479 = vmatprep.subr.bf16.mxu0 0
        %2480 = vmatpush1.bf16.msra.mxu0 0
        %2481 = vmatprep.subr.bf16.mxu0 0
        %2482 = vmatpush1.bf16.msra.mxu0 0
        %2483 = vmatprep.subr.bf16.mxu0 0
        %2484 = vmatpush1.bf16.msra.mxu0 0
        %2485 = vmatprep.mubr.bf16.mxu0 0
        %2486 = vmatmul.mubr.bf16.gmra.mrb[0].mxu0 %v296
        %v2487 = vpop.f32.mrb[0].mxu0
        %v2488 = vadd.f32 %v2375, %v2487
        %v2489 = vpop.f32.mrb[0].mxu0
        %v2490 = vadd.f32 %v2377, %v2489
        %v2491 = vpop.f32.mrb[0].mxu0
        %v2492 = vadd.f32 %v2379, %v2491
        %v2493 = vpop.f32.mrb[0].mxu0
        %v2494 = vadd.f32 %v2381, %v2493
        %2495 = vmatprep.mubr.bf16.mxu0 0
        %2496 = vmatmul.mubr.bf16.gmra.mrb[0].mxu0 %v299
        %v2497 = vpop.f32.mrb[0].mxu0
        %v2498 = vadd.f32 %v2385, %v2497
        %v2499 = vpop.f32.mrb[0].mxu0
        %v2500 = vadd.f32 %v2387, %v2499
        %v2501 = vpop.f32.mrb[0].mxu0
        %v2502 = vadd.f32 %v2389, %v2501
        %v2503 = vpop.f32.mrb[0].mxu0
        %v2504 = vadd.f32 %v2391, %v2503
        %2505 = vmatprep.mubr.bf16.mxu0 0
        %2506 = vmatmul.mubr.bf16.gmra.mrb[0].mxu0 %v302
        %v2507 = vpop.f32.mrb[0].mxu0
        %v2508 = vadd.f32 %v2395, %v2507
        %v2509 = vpop.f32.mrb[0].mxu0
        %v2510 = vadd.f32 %v2397, %v2509
        %v2511 = vpop.f32.mrb[0].mxu0
        %v2512 = vadd.f32 %v2399, %v2511
        %v2513 = vpop.f32.mrb[0].mxu0
        %v2514 = vadd.f32 %v2401, %v2513
        %2515 = vmatprep.mubr.bf16.mxu0 0
        %2516 = vmatmul.mubr.bf16.gmra.mrb[0].mxu0 %v305
        %v2517 = vpop.f32.mrb[0].mxu0
        %v2518 = vadd.f32 %v2405, %v2517
        %v2519 = vpop.f32.mrb[0].mxu0
        %v2520 = vadd.f32 %v2407, %v2519
        %v2521 = vpop.f32.mrb[0].mxu0
        %v2522 = vadd.f32 %v2409, %v2521
        %v2523 = vpop.f32.mrb[0].mxu0
        %v2524 = vadd.f32 %v2411, %v2523
        %2525 = vmatprep.mubr.bf16.mxu0 0
        %2526 = vmatmul.mubr.bf16.gmra.mrb[0].mxu0 %v308
        %v2527 = vpop.f32.mrb[0].mxu0
        %v2528 = vadd.f32 %v2415, %v2527
        %v2529 = vpop.f32.mrb[0].mxu0
        %v2530 = vadd.f32 %v2417, %v2529
        %v2531 = vpop.f32.mrb[0].mxu0
        %v2532 = vadd.f32 %v2419, %v2531
        %v2533 = vpop.f32.mrb[0].mxu0
        %v2534 = vadd.f32 %v2421, %v2533
        %2535 = vmatprep.mubr.bf16.mxu0 0
        %2536 = vmatmul.mubr.bf16.gmra.mrb[0].mxu0 %v311
        %v2537 = vpop.f32.mrb[0].mxu0
        %v2538 = vadd.f32 %v2425, %v2537
        %v2539 = vpop.f32.mrb[0].mxu0
        %v2540 = vadd.f32 %v2427, %v2539
        %v2541 = vpop.f32.mrb[0].mxu0
        %v2542 = vadd.f32 %v2429, %v2541
        %v2543 = vpop.f32.mrb[0].mxu0
        %v2544 = vadd.f32 %v2431, %v2543
        %2545 = vmatprep.mubr.bf16.mxu0 0
        %2546 = vmatmul.mubr.bf16.gmra.mrb[0].mxu0 %v314
        %v2547 = vpop.f32.mrb[0].mxu0
        %v2548 = vadd.f32 %v2435, %v2547
        %v2549 = vpop.f32.mrb[0].mxu0
        %v2550 = vadd.f32 %v2437, %v2549
        %v2551 = vpop.f32.mrb[0].mxu0
        %v2552 = vadd.f32 %v2439, %v2551
        %v2553 = vpop.f32.mrb[0].mxu0
        %v2554 = vadd.f32 %v2441, %v2553
        %2555 = vmatprep.mubr.bf16.mxu0 0
        %2556 = vmatmul.mubr.bf16.gmra.mrb[0].mxu0 %v317
        %v2557 = vpop.f32.mrb[0].mxu0
        %v2558 = vadd.f32 %v2445, %v2557
        %v2559 = vpop.f32.mrb[0].mxu0
        %v2560 = vadd.f32 %v2447, %v2559
        %v2561 = vpop.f32.mrb[0].mxu0
        %v2562 = vadd.f32 %v2449, %v2561
        %v2563 = vpop.f32.mrb[0].mxu0
        %v2564 = vadd.f32 %v2451, %v2563
        %2565 = vdwg.mxu0
        %2566 = vmatprep.subr.bf16.mxu0 0
        %2567 = vmatpush1.bf16.msra.mxu0 %v1238
        %2568 = vmatprep.subr.bf16.mxu0 0
        %2569 = vmatpush1.bf16.msra.mxu0 %v1247
        %2570 = vmatprep.subr.bf16.mxu0 0
        %2571 = vmatpush1.bf16.msra.mxu0 %v1256
        %2572 = vmatprep.subr.bf16.mxu0 0
        %2573 = vmatpush1.bf16.msra.mxu0 %v1265
        %2574 = vmatprep.subr.bf16.mxu0 0
        %2575 = vmatpush1.bf16.msra.mxu0 %v1274
        %2576 = vmatprep.subr.bf16.mxu0 0
        %2577 = vmatpush1.bf16.msra.mxu0 %v1283
        %2578 = vmatprep.subr.bf16.mxu0 0
        %2579 = vmatpush1.bf16.msra.mxu0 %v1292
        %2580 = vmatprep.subr.bf16.mxu0 0
        %2581 = vmatpush1.bf16.msra.mxu0 %v1301
        %2582 = vmatprep.subr.bf16.mxu0 0
        %2583 = vmatpush1.bf16.msra.mxu0 %v1310
        %2584 = vmatprep.subr.bf16.mxu0 0
        %2585 = vmatpush1.bf16.msra.mxu0 %v1319
        %2586 = vmatprep.subr.bf16.mxu0 0
        %2587 = vmatpush1.bf16.msra.mxu0 %v1328
        %2588 = vmatprep.subr.bf16.mxu0 0
        %2589 = vmatpush1.bf16.msra.mxu0 %v1337
        %2590 = vmatprep.subr.bf16.mxu0 0
        %2591 = vmatpush1.bf16.msra.mxu0 %v1346
        %2592 = vmatprep.subr.bf16.mxu0 0
        %2593 = vmatpush1.bf16.msra.mxu0 %v1355
        %2594 = vmatprep.subr.bf16.mxu0 0
        %2595 = vmatpush1.bf16.msra.mxu0 %v1364
        %2596 = vmatprep.subr.bf16.mxu0 0
        %2597 = vmatpush1.bf16.msra.mxu0 %v1373
        %2598 = vmatprep.mubr.bf16.mxu0 %v295
        %2599 = vmatmul.mubr.bf16.gmra.mrb[0].mxu0 %v294
        %v2600 = vpop.f32.mrb[0].mxu0
        %v2601 = vadd.f32 0.0, %v2600
        %v2602 = vpop.f32.mrb[0].mxu0
        %v2603 = vpop.f32.mrb[0].mxu0
        %v2604 = vadd.f32 0.0, %v2603
        %v2605 = vpop.f32.mrb[0].mxu0
        %2606 = vmatprep.mubr.bf16.mxu0 %v298
        %2607 = vmatmul.mubr.bf16.gmra.mrb[0].mxu0 %v297
        %v2608 = vpop.f32.mrb[0].mxu0
        %v2609 = vadd.f32 0.0, %v2608
        %v2610 = vpop.f32.mrb[0].mxu0
        %v2611 = vpop.f32.mrb[0].mxu0
        %v2612 = vadd.f32 0.0, %v2611
        %v2613 = vpop.f32.mrb[0].mxu0
        %2614 = vmatprep.mubr.bf16.mxu0 %v301
        %2615 = vmatmul.mubr.bf16.gmra.mrb[0].mxu0 %v300
        %v2616 = vpop.f32.mrb[0].mxu0
        %v2617 = vadd.f32 0.0, %v2616
        %v2618 = vpop.f32.mrb[0].mxu0
        %v2619 = vpop.f32.mrb[0].mxu0
        %v2620 = vadd.f32 0.0, %v2619
        %v2621 = vpop.f32.mrb[0].mxu0
        %2622 = vmatprep.mubr.bf16.mxu0 %v304
        %2623 = vmatmul.mubr.bf16.gmra.mrb[0].mxu0 %v303
        %v2624 = vpop.f32.mrb[0].mxu0
        %v2625 = vadd.f32 0.0, %v2624
        %v2626 = vpop.f32.mrb[0].mxu0
        %v2627 = vpop.f32.mrb[0].mxu0
        %v2628 = vadd.f32 0.0, %v2627
        %v2629 = vpop.f32.mrb[0].mxu0
        %2630 = vmatprep.mubr.bf16.mxu0 %v307
        %2631 = vmatmul.mubr.bf16.gmra.mrb[0].mxu0 %v306
        %v2632 = vpop.f32.mrb[0].mxu0
        %v2633 = vadd.f32 0.0, %v2632
        %v2634 = vpop.f32.mrb[0].mxu0
        %v2635 = vpop.f32.mrb[0].mxu0
        %v2636 = vadd.f32 0.0, %v2635
        %v2637 = vpop.f32.mrb[0].mxu0
        %2638 = vmatprep.mubr.bf16.mxu0 %v310
        %2639 = vmatmul.mubr.bf16.gmra.mrb[0].mxu0 %v309
        %v2640 = vpop.f32.mrb[0].mxu0
        %v2641 = vadd.f32 0.0, %v2640
        %v2642 = vpop.f32.mrb[0].mxu0
        %v2643 = vpop.f32.mrb[0].mxu0
        %v2644 = vadd.f32 0.0, %v2643
        %v2645 = vpop.f32.mrb[0].mxu0
        %2646 = vmatprep.mubr.bf16.mxu0 %v313
        %2647 = vmatmul.mubr.bf16.gmra.mrb[0].mxu0 %v312
        %v2648 = vpop.f32.mrb[0].mxu0
        %v2649 = vadd.f32 0.0, %v2648
        %v2650 = vpop.f32.mrb[0].mxu0
        %v2651 = vpop.f32.mrb[0].mxu0
        %v2652 = vadd.f32 0.0, %v2651
        %v2653 = vpop.f32.mrb[0].mxu0
        %2654 = vmatprep.mubr.bf16.mxu0 %v316
        %2655 = vmatmul.mubr.bf16.gmra.mrb[0].mxu0 %v315
        %v2656 = vpop.f32.mrb[0].mxu0
        %v2657 = vadd.f32 0.0, %v2656
        %v2658 = vpop.f32.mrb[0].mxu0
        %v2659 = vpop.f32.mrb[0].mxu0
        %v2660 = vadd.f32 0.0, %v2659
        %v2661 = vpop.f32.mrb[0].mxu0
        %2662 = vdwg.mxu0
        %2663 = vmatprep.subr.bf16.mxu0 0
        %2664 = vmatpush1.bf16.msra.mxu0 %v1382
        %2665 = vmatprep.subr.bf16.mxu0 0
        %2666 = vmatpush1.bf16.msra.mxu0 %v1391
        %2667 = vmatprep.subr.bf16.mxu0 0
        %2668 = vmatpush1.bf16.msra.mxu0 %v1400
        %2669 = vmatprep.subr.bf16.mxu0 0
        %2670 = vmatpush1.bf16.msra.mxu0 %v1409
        %2671 = vmatprep.subr.bf16.mxu0 0
        %2672 = vmatpush1.bf16.msra.mxu0 %v1418
        %2673 = vmatprep.subr.bf16.mxu0 0
        %2674 = vmatpush1.bf16.msra.mxu0 %v1427
        %2675 = vmatprep.subr.bf16.mxu0 0
        %2676 = vmatpush1.bf16.msra.mxu0 %v1436
        %2677 = vmatprep.subr.bf16.mxu0 0
        %2678 = vmatpush1.bf16.msra.mxu0 %v1445
        %2679 = vmatprep.subr.bf16.mxu0 0
        %2680 = vmatpush1.bf16.msra.mxu0 0
        %2681 = vmatprep.subr.bf16.mxu0 0
        %2682 = vmatpush1.bf16.msra.mxu0 0
        %2683 = vmatprep.subr.bf16.mxu0 0
        %2684 = vmatpush1.bf16.msra.mxu0 0
        %2685 = vmatprep.subr.bf16.mxu0 0
        %2686 = vmatpush1.bf16.msra.mxu0 0
        %2687 = vmatprep.subr.bf16.mxu0 0
        %2688 = vmatpush1.bf16.msra.mxu0 0
        %2689 = vmatprep.subr.bf16.mxu0 0
        %2690 = vmatpush1.bf16.msra.mxu0 0
        %2691 = vmatprep.subr.bf16.mxu0 0
        %2692 = vmatpush1.bf16.msra.mxu0 0
        %2693 = vmatprep.subr.bf16.mxu0 0
        %2694 = vmatpush1.bf16.msra.mxu0 0
        %2695 = vmatprep.mubr.bf16.mxu0 0
        %2696 = vmatmul.mubr.bf16.gmra.mrb[0].mxu0 %v296
        %v2697 = vpop.f32.mrb[0].mxu0
        %v2698 = vadd.f32 %v2601, %v2697
        %v2699 = vpop.f32.mrb[0].mxu0
        %v2700 = vpop.f32.mrb[0].mxu0
        %v2701 = vadd.f32 %v2604, %v2700
        %v2702 = vpop.f32.mrb[0].mxu0
        %2703 = vmatprep.mubr.bf16.mxu0 0
        %2704 = vmatmul.mubr.bf16.gmra.mrb[0].mxu0 %v299
        %v2705 = vpop.f32.mrb[0].mxu0
        %v2706 = vadd.f32 %v2609, %v2705
        %v2707 = vpop.f32.mrb[0].mxu0
        %v2708 = vpop.f32.mrb[0].mxu0
        %v2709 = vadd.f32 %v2612, %v2708
        %v2710 = vpop.f32.mrb[0].mxu0
        %2711 = vmatprep.mubr.bf16.mxu0 0
        %2712 = vmatmul.mubr.bf16.gmra.mrb[0].mxu0 %v302
        %v2713 = vpop.f32.mrb[0].mxu0
        %v2714 = vadd.f32 %v2617, %v2713
        %v2715 = vpop.f32.mrb[0].mxu0
        %v2716 = vpop.f32.mrb[0].mxu0
        %v2717 = vadd.f32 %v2620, %v2716
        %v2718 = vpop.f32.mrb[0].mxu0
        %2719 = vmatprep.mubr.bf16.mxu0 0
        %2720 = vmatmul.mubr.bf16.gmra.mrb[0].mxu0 %v305
        %v2721 = vpop.f32.mrb[0].mxu0
        %v2722 = vadd.f32 %v2625, %v2721
        %v2723 = vpop.f32.mrb[0].mxu0
        %v2724 = vpop.f32.mrb[0].mxu0
        %v2725 = vadd.f32 %v2628, %v2724
        %v2726 = vpop.f32.mrb[0].mxu0
        %2727 = vmatprep.mubr.bf16.mxu0 0
        %2728 = vmatmul.mubr.bf16.gmra.mrb[0].mxu0 %v308
        %v2729 = vpop.f32.mrb[0].mxu0
        %v2730 = vadd.f32 %v2633, %v2729
        %v2731 = vpop.f32.mrb[0].mxu0
        %v2732 = vpop.f32.mrb[0].mxu0
        %v2733 = vadd.f32 %v2636, %v2732
        %v2734 = vpop.f32.mrb[0].mxu0
        %2735 = vmatprep.mubr.bf16.mxu0 0
        %2736 = vmatmul.mubr.bf16.gmra.mrb[0].mxu0 %v311
        %v2737 = vpop.f32.mrb[0].mxu0
        %v2738 = vadd.f32 %v2641, %v2737
        %v2739 = vpop.f32.mrb[0].mxu0
        %v2740 = vpop.f32.mrb[0].mxu0
        %v2741 = vadd.f32 %v2644, %v2740
        %v2742 = vpop.f32.mrb[0].mxu0
        %2743 = vmatprep.mubr.bf16.mxu0 0
        %2744 = vmatmul.mubr.bf16.gmra.mrb[0].mxu0 %v314
        %v2745 = vpop.f32.mrb[0].mxu0
        %v2746 = vadd.f32 %v2649, %v2745
        %v2747 = vpop.f32.mrb[0].mxu0
        %v2748 = vpop.f32.mrb[0].mxu0
        %v2749 = vadd.f32 %v2652, %v2748
        %v2750 = vpop.f32.mrb[0].mxu0
        %2751 = vmatprep.mubr.bf16.mxu0 0
        %2752 = vmatmul.mubr.bf16.gmra.mrb[0].mxu0 %v317
        %v2753 = vpop.f32.mrb[0].mxu0
        %v2754 = vadd.f32 %v2657, %v2753
        %v2755 = vpop.f32.mrb[0].mxu0
        %v2756 = vpop.f32.mrb[0].mxu0
        %v2757 = vadd.f32 %v2660, %v2756
        %v2758 = vpop.f32.mrb[0].mxu0
        %2759 = vdwg.mxu0
        %v2760 = vpack.c.bf16 %v1814, %v1810
        %v2761 = vpack.c.bf16 %v1816, %v1812
        %v2762 = vpack.c.bf16 %v2040, %v2036
        %v2763 = vpack.c.bf16 %v2042, %v2038
        %v2764 = vpack.c.bf16 %v2266, %v2262
        %v2765 = vpack.c.bf16 %v2268, %v2264
        %v2766 = vpack.c.bf16 %v2492, %v2488
        %v2767 = vpack.c.bf16 %v2494, %v2490
        %v2768 = vpack.c.bf16 %v2701, %v2698
        %v2769 = vpack.c.bf16 %v1824, %v1820
        %v2770 = vpack.c.bf16 %v1826, %v1822
        %v2771 = vpack.c.bf16 %v2050, %v2046
        %v2772 = vpack.c.bf16 %v2052, %v2048
        %v2773 = vpack.c.bf16 %v2276, %v2272
        %v2774 = vpack.c.bf16 %v2278, %v2274
        %v2775 = vpack.c.bf16 %v2502, %v2498
        %v2776 = vpack.c.bf16 %v2504, %v2500
        %v2777 = vpack.c.bf16 %v2709, %v2706
        %v2778 = vpack.c.bf16 %v1834, %v1830
        %v2779 = vpack.c.bf16 %v1836, %v1832
        %v2780 = vpack.c.bf16 %v2060, %v2056
        %v2781 = vpack.c.bf16 %v2062, %v2058
        %v2782 = vpack.c.bf16 %v2286, %v2282
        %v2783 = vpack.c.bf16 %v2288, %v2284
        %v2784 = vpack.c.bf16 %v2512, %v2508
        %v2785 = vpack.c.bf16 %v2514, %v2510
        %v2786 = vpack.c.bf16 %v2717, %v2714
        %v2787 = vpack.c.bf16 %v1844, %v1840
        %v2788 = vpack.c.bf16 %v1846, %v1842
        %v2789 = vpack.c.bf16 %v2070, %v2066
        %v2790 = vpack.c.bf16 %v2072, %v2068
        %v2791 = vpack.c.bf16 %v2296, %v2292
        %v2792 = vpack.c.bf16 %v2298, %v2294
        %v2793 = vpack.c.bf16 %v2522, %v2518
        %v2794 = vpack.c.bf16 %v2524, %v2520
        %v2795 = vpack.c.bf16 %v2725, %v2722
        %v2796 = vpack.c.bf16 %v1854, %v1850
        %v2797 = vpack.c.bf16 %v1856, %v1852
        %v2798 = vpack.c.bf16 %v2080, %v2076
        %v2799 = vpack.c.bf16 %v2082, %v2078
        %v2800 = vpack.c.bf16 %v2306, %v2302
        %v2801 = vpack.c.bf16 %v2308, %v2304
        %v2802 = vpack.c.bf16 %v2532, %v2528
        %v2803 = vpack.c.bf16 %v2534, %v2530
        %v2804 = vpack.c.bf16 %v2733, %v2730
        %v2805 = vpack.c.bf16 %v1864, %v1860
        %v2806 = vpack.c.bf16 %v1866, %v1862
        %v2807 = vpack.c.bf16 %v2090, %v2086
        %v2808 = vpack.c.bf16 %v2092, %v2088
        %v2809 = vpack.c.bf16 %v2316, %v2312
        %v2810 = vpack.c.bf16 %v2318, %v2314
        %v2811 = vpack.c.bf16 %v2542, %v2538
        %v2812 = vpack.c.bf16 %v2544, %v2540
        %v2813 = vpack.c.bf16 %v2741, %v2738
        %v2814 = vpack.c.bf16 %v1874, %v1870
        %v2815 = vpack.c.bf16 %v1876, %v1872
        %v2816 = vpack.c.bf16 %v2100, %v2096
        %v2817 = vpack.c.bf16 %v2102, %v2098
        %v2818 = vpack.c.bf16 %v2326, %v2322
        %v2819 = vpack.c.bf16 %v2328, %v2324
        %v2820 = vpack.c.bf16 %v2552, %v2548
        %v2821 = vpack.c.bf16 %v2554, %v2550
        %v2822 = vpack.c.bf16 %v2749, %v2746
        %v2823 = vpack.c.bf16 %v1884, %v1880
        %v2824 = vpack.c.bf16 %v1886, %v1882
        %v2825 = vpack.c.bf16 %v2110, %v2106
        %v2826 = vpack.c.bf16 %v2112, %v2108
        %v2827 = vpack.c.bf16 %v2336, %v2332
        %v2828 = vpack.c.bf16 %v2338, %v2334
        %v2829 = vpack.c.bf16 %v2562, %v2558
        %v2830 = vpack.c.bf16 %v2564, %v2560
        %v2831 = vpack.c.bf16 %v2757, %v2754
        %v2832 = vlaneseq
        %v2833 = vshrl.u32 %v2832, 7
        %v2834 = vadd.s32 %v2833, 8
        %v2835 = vadd.s32 %v2833, 16
        %v2836 = vadd.s32 %v2833, 24
        %v2837 = vadd.s32 %v2833, 32
        %v2838 = vadd.s32 %v2833, 40
        %v2839 = vadd.s32 %v2833, 48
        %v2840 = vadd.s32 %v2833, 56
        %v2841 = vadd.s32 %v2833, 64
        %v2842 = vadd.s32 %v2833, 72
        %v2843 = vadd.s32 %v2833, 80
        %v2844 = vadd.s32 %v2833, 88
        %v2845 = vadd.s32 %v2833, 96
        %v2846 = vadd.s32 %v2833, 104
        %v2847 = vadd.s32 %v2833, 112
        %v2848 = vadd.s32 %v2833, 120
        %v2849 = vlaneseq
        %v2850 = vand.u32 %v2849, 127
        %vm2851 = vcmp.le.s32.totalorder %v2850, %v2833
        %vm2852 = vcmp.le.s32.totalorder %v2850, %v2834
        %vm2853 = vcmp.le.s32.totalorder %v2850, %v2835
        %vm2854 = vcmp.le.s32.totalorder %v2850, %v2836
        %vm2855 = vcmp.le.s32.totalorder %v2850, %v2837
        %vm2856 = vcmp.le.s32.totalorder %v2850, %v2838
        %vm2857 = vcmp.le.s32.totalorder %v2850, %v2839
        %vm2858 = vcmp.le.s32.totalorder %v2850, %v2840
        %vm2859 = vcmp.le.s32.totalorder %v2850, %v2841
        %vm2860 = vcmp.le.s32.totalorder %v2850, %v2842
        %vm2861 = vcmp.le.s32.totalorder %v2850, %v2843
        %vm2862 = vcmp.le.s32.totalorder %v2850, %v2844
        %vm2863 = vcmp.le.s32.totalorder %v2850, %v2845
        %vm2864 = vcmp.le.s32.totalorder %v2850, %v2846
        %vm2865 = vcmp.le.s32.totalorder %v2850, %v2847
        %vm2866 = vcmp.le.s32.totalorder %v2850, %v2848
        %vm2867 = vcmask 523264
        %v2869 = vsel %vm2867, %v2760, 0
        %v2872 = vsel %vm2867, %v2769, 0
        %v2875 = vsel %vm2867, %v2778, 0
        %v2878 = vsel %vm2867, %v2787, 0
        %v2881 = vsel %vm2867, %v2796, 0
        %v2884 = vsel %vm2867, %v2805, 0
        %v2887 = vsel %vm2867, %v2814, 0
        %v2890 = vsel %vm2867, %v2823, 0
        %v2893 = vsel %vm2867, %v2763, 0
        %v2896 = vsel %vm2867, %v2772, 0
        %v2899 = vsel %vm2867, %v2781, 0
        %v2902 = vsel %vm2867, %v2790, 0
        %v2905 = vsel %vm2867, %v2799, 0
        %v2908 = vsel %vm2867, %v2808, 0
        %v2911 = vsel %vm2867, %v2817, 0
        %v2914 = vsel %vm2867, %v2826, 0
        %2916 = vmatprep.subr.bf16.mxu0 0
        %2917 = vmatpush1.bf16.xpose.msra.mxu0 %v2893
        %2918 = vmatprep.subr.bf16.mxu0 0
        %2919 = vmatpush1.bf16.xpose.msra.mxu0 %v2896
        %2920 = vmatprep.subr.bf16.mxu0 0
        %2921 = vmatpush1.bf16.xpose.msra.mxu0 %v2899
        %2922 = vmatprep.subr.bf16.mxu0 0
        %2923 = vmatpush1.bf16.xpose.msra.mxu0 %v2902
        %2924 = vmatprep.subr.bf16.mxu0 0
        %2925 = vmatpush1.bf16.xpose.msra.mxu0 %v2905
        %2926 = vmatprep.subr.bf16.mxu0 0
        %2927 = vmatpush1.bf16.xpose.msra.mxu0 %v2908
        %2928 = vmatprep.subr.bf16.mxu0 0
        %2929 = vmatpush1.bf16.xpose.msra.mxu0 %v2911
        %2930 = vmatprep.subr.bf16.mxu0 0
        %2931 = vmatpush1.bf16.xpose.msra.mxu0 %v2914
        %2932 = vmatprep.subr.bf16.mxu0 0
        %2933 = vmatpush1.bf16.xpose.msra.mxu0 0
        %2934 = vmatprep.subr.bf16.mxu0 0
        %2935 = vmatpush1.bf16.xpose.msra.mxu0 0
        %2936 = vmatprep.subr.bf16.mxu0 0
        %2937 = vmatpush1.bf16.xpose.msra.mxu0 0
        %2938 = vmatprep.subr.bf16.mxu0 0
        %2939 = vmatpush1.bf16.xpose.msra.mxu0 0
        %2940 = vmatprep.subr.bf16.mxu0 0
        %2941 = vmatpush1.bf16.xpose.msra.mxu0 0
        %2942 = vmatprep.subr.bf16.mxu0 0
        %2943 = vmatpush1.bf16.xpose.msra.mxu0 0
        %2944 = vmatprep.subr.bf16.mxu0 0
        %2945 = vmatpush1.bf16.xpose.msra.mxu0 0
        %2946 = vmatprep.subr.bf16.mxu0 0
        %2947 = vmatpush1.bf16.xpose.msra.mxu0 0
        %2948 = vmatprep.mubr.bf16.mxu0 0
        %2949 = vmatmul.mubr.bf16.gmra.mrb[0].mxu0 %v2869
        %v2950 = vpop.f32.mrb[0].mxu0
        %v2951 = vadd.f32 0.0, %v2950
        %v2952 = vpop.f32.mrb[0].mxu0
        %v2953 = vpop.f32.mrb[0].mxu0
        %v2954 = vadd.f32 0.0, %v2953
        %v2955 = vpop.f32.mrb[0].mxu0
        %2956 = vmatprep.mubr.bf16.mxu0 0
        %2957 = vmatmul.mubr.bf16.gmra.mrb[0].mxu0 %v2872
        %v2958 = vpop.f32.mrb[0].mxu0
        %v2959 = vadd.f32 0.0, %v2958
        %v2960 = vpop.f32.mrb[0].mxu0
        %v2961 = vpop.f32.mrb[0].mxu0
        %v2962 = vadd.f32 0.0, %v2961
        %v2963 = vpop.f32.mrb[0].mxu0
        %2964 = vmatprep.mubr.bf16.mxu0 0
        %2965 = vmatmul.mubr.bf16.gmra.mrb[0].mxu0 %v2875
        %v2966 = vpop.f32.mrb[0].mxu0
        %v2967 = vadd.f32 0.0, %v2966
        %v2968 = vpop.f32.mrb[0].mxu0
        %v2969 = vpop.f32.mrb[0].mxu0
        %v2970 = vadd.f32 0.0, %v2969
        %v2971 = vpop.f32.mrb[0].mxu0
        %2972 = vmatprep.mubr.bf16.mxu0 0
        %2973 = vmatmul.mubr.bf16.gmra.mrb[0].mxu0 %v2878
        %v2974 = vpop.f32.mrb[0].mxu0
        %v2975 = vadd.f32 0.0, %v2974
        %v2976 = vpop.f32.mrb[0].mxu0
        %v2977 = vpop.f32.mrb[0].mxu0
        %v2978 = vadd.f32 0.0, %v2977
        %v2979 = vpop.f32.mrb[0].mxu0
        %2980 = vmatprep.mubr.bf16.mxu0 0
        %2981 = vmatmul.mubr.bf16.gmra.mrb[0].mxu0 %v2881
        %v2982 = vpop.f32.mrb[0].mxu0
        %v2983 = vadd.f32 0.0, %v2982
        %v2984 = vpop.f32.mrb[0].mxu0
        %v2985 = vpop.f32.mrb[0].mxu0
        %v2986 = vadd.f32 0.0, %v2985
        %v2987 = vpop.f32.mrb[0].mxu0
        %2988 = vmatprep.mubr.bf16.mxu0 0
        %2989 = vmatmul.mubr.bf16.gmra.mrb[0].mxu0 %v2884
        %v2990 = vpop.f32.mrb[0].mxu0
        %v2991 = vadd.f32 0.0, %v2990
        %v2992 = vpop.f32.mrb[0].mxu0
        %v2993 = vpop.f32.mrb[0].mxu0
        %v2994 = vadd.f32 0.0, %v2993
        %v2995 = vpop.f32.mrb[0].mxu0
        %2996 = vmatprep.mubr.bf16.mxu0 0
        %2997 = vmatmul.mubr.bf16.gmra.mrb[0].mxu0 %v2887
        %v2998 = vpop.f32.mrb[0].mxu0
        %v2999 = vadd.f32 0.0, %v2998
        %v3000 = vpop.f32.mrb[0].mxu0
        %v3001 = vpop.f32.mrb[0].mxu0
        %v3002 = vadd.f32 0.0, %v3001
        %v3003 = vpop.f32.mrb[0].mxu0
        %3004 = vmatprep.mubr.bf16.mxu0 0
        %3005 = vmatmul.mubr.bf16.gmra.mrb[0].mxu0 %v2890
        %v3006 = vpop.f32.mrb[0].mxu0
        %v3007 = vadd.f32 0.0, %v3006
        %v3008 = vpop.f32.mrb[0].mxu0
        %v3009 = vpop.f32.mrb[0].mxu0
        %v3010 = vadd.f32 0.0, %v3009
        %v3011 = vpop.f32.mrb[0].mxu0
        %3012 = vdwg.mxu0
        %v3013 = vsel %vm2851, %v2951, -1e+30
        %v3014 = vsel %vm2852, %v2954, -1e+30
        %v3015 = vsel %vm2853, %v2959, -1e+30
        %v3016 = vsel %vm2854, %v2962, -1e+30
        %v3017 = vsel %vm2855, %v2967, -1e+30
        %v3018 = vsel %vm2856, %v2970, -1e+30
        %v3019 = vsel %vm2857, %v2975, -1e+30
        %v3020 = vsel %vm2858, %v2978, -1e+30
        %v3021 = vsel %vm2859, %v2983, -1e+30
        %v3022 = vsel %vm2860, %v2986, -1e+30
        %v3023 = vsel %vm2861, %v2991, -1e+30
        %v3024 = vsel %vm2862, %v2994, -1e+30
        %v3025 = vsel %vm2863, %v2999, -1e+30
        %v3026 = vsel %vm2864, %v3002, -1e+30
        %v3027 = vsel %vm2865, %v3007, -1e+30
        %v3028 = vsel %vm2866, %v3010, -1e+30
        %3029 = vmax.xlane.f32.xlu0 %v3013
        %v3030 = vpop.xlane.xlu0 %3029
        %3031 = vmax.xlane.f32.xlu0 %v3014
        %v3032 = vpop.xlane.xlu0 %3031
        %3033 = vmax.xlane.f32.xlu0 %v3015
        %v3034 = vpop.xlane.xlu0 %3033
        %3035 = vmax.xlane.f32.xlu0 %v3016
        %v3036 = vpop.xlane.xlu0 %3035
        %3037 = vmax.xlane.f32.xlu0 %v3017
        %v3038 = vpop.xlane.xlu0 %3037
        %3039 = vmax.xlane.f32.xlu0 %v3018
        %v3040 = vpop.xlane.xlu0 %3039
        %3041 = vmax.xlane.f32.xlu0 %v3019
        %v3042 = vpop.xlane.xlu0 %3041
        %3043 = vmax.xlane.f32.xlu0 %v3020
        %v3044 = vpop.xlane.xlu0 %3043
        %3045 = vmax.xlane.f32.xlu0 %v3021
        %v3046 = vpop.xlane.xlu0 %3045
        %3047 = vmax.xlane.f32.xlu0 %v3022
        %v3048 = vpop.xlane.xlu0 %3047
        %3049 = vmax.xlane.f32.xlu0 %v3023
        %v3050 = vpop.xlane.xlu0 %3049
        %3051 = vmax.xlane.f32.xlu0 %v3024
        %v3052 = vpop.xlane.xlu0 %3051
        %3053 = vmax.xlane.f32.xlu0 %v3025
        %v3054 = vpop.xlane.xlu0 %3053
        %3055 = vmax.xlane.f32.xlu0 %v3026
        %v3056 = vpop.xlane.xlu0 %3055
        %3057 = vmax.xlane.f32.xlu0 %v3027
        %v3058 = vpop.xlane.xlu0 %3057
        %3059 = vmax.xlane.f32.xlu0 %v3028
        %v3060 = vpop.xlane.xlu0 %3059
        %v3061 = vsub.f32 %v3013, %v3030
        %v3062 = vsub.f32 %v3014, %v3032
        %v3063 = vsub.f32 %v3015, %v3034
        %v3064 = vsub.f32 %v3016, %v3036
        %v3065 = vsub.f32 %v3017, %v3038
        %v3066 = vsub.f32 %v3018, %v3040
        %v3067 = vsub.f32 %v3019, %v3042
        %v3068 = vsub.f32 %v3020, %v3044
        %v3069 = vsub.f32 %v3021, %v3046
        %v3070 = vsub.f32 %v3022, %v3048
        %v3071 = vsub.f32 %v3023, %v3050
        %v3072 = vsub.f32 %v3024, %v3052
        %v3073 = vsub.f32 %v3025, %v3054
        %v3074 = vsub.f32 %v3026, %v3056
        %v3075 = vsub.f32 %v3027, %v3058
        %v3076 = vsub.f32 %v3028, %v3060
        %v3077 = vpack.c.bf16 %v3062, %v3061
        %v3078 = vpack.c.bf16 %v3064, %v3063
        %v3079 = vpack.c.bf16 %v3066, %v3065
        %v3080 = vpack.c.bf16 %v3068, %v3067
        %v3081 = vpack.c.bf16 %v3070, %v3069
        %v3082 = vpack.c.bf16 %v3072, %v3071
        %v3083 = vpack.c.bf16 %v3074, %v3073
        %v3084 = vpack.c.bf16 %v3076, %v3075
        %v3086 = vmul.bf16 %v3077, 1069105081
        %v3087 = vpow.bf16.pop %v3086
        %v3089 = vmul.bf16 %v3078, 1069105081
        %v3090 = vpow.bf16.pop %v3089
        %v3092 = vmul.bf16 %v3079, 1069105081
        %v3093 = vpow.bf16.pop %v3092
        %v3095 = vmul.bf16 %v3080, 1069105081
        %v3096 = vpow.bf16.pop %v3095
        %v3098 = vmul.bf16 %v3081, 1069105081
        %v3099 = vpow.bf16.pop %v3098
        %v3101 = vmul.bf16 %v3082, 1069105081
        %v3102 = vpow.bf16.pop %v3101
        %v3104 = vmul.bf16 %v3083, 1069105081
        %v3105 = vpow.bf16.pop %v3104
        %v3107 = vmul.bf16 %v3084, 1069105081
        %v3108 = vpow.bf16.pop %v3107
        %v3109 = vunpack.c.l.bf16 %v3087
        %v3110 = vunpack.c.h.bf16 %v3087
        %v3111 = vunpack.c.l.bf16 %v3090
        %v3112 = vunpack.c.h.bf16 %v3090
        %v3113 = vunpack.c.l.bf16 %v3093
        %v3114 = vunpack.c.h.bf16 %v3093
        %v3115 = vunpack.c.l.bf16 %v3096
        %v3116 = vunpack.c.h.bf16 %v3096
        %v3117 = vunpack.c.l.bf16 %v3099
        %v3118 = vunpack.c.h.bf16 %v3099
        %v3119 = vunpack.c.l.bf16 %v3102
        %v3120 = vunpack.c.h.bf16 %v3102
        %v3121 = vunpack.c.l.bf16 %v3105
        %v3122 = vunpack.c.h.bf16 %v3105
        %v3123 = vunpack.c.l.bf16 %v3108
        %v3124 = vunpack.c.h.bf16 %v3108
        %3125 = vadd.xlane.f32.xlu0 %v3109
        %v3126 = vpop.xlane.xlu0 %3125
        %3127 = vadd.xlane.f32.xlu0 %v3110
        %v3128 = vpop.xlane.xlu0 %3127
        %3129 = vadd.xlane.f32.xlu0 %v3111
        %v3130 = vpop.xlane.xlu0 %3129
        %3131 = vadd.xlane.f32.xlu0 %v3112
        %v3132 = vpop.xlane.xlu0 %3131
        %3133 = vadd.xlane.f32.xlu0 %v3113
        %v3134 = vpop.xlane.xlu0 %3133
        %3135 = vadd.xlane.f32.xlu0 %v3114
        %v3136 = vpop.xlane.xlu0 %3135
        %3137 = vadd.xlane.f32.xlu0 %v3115
        %v3138 = vpop.xlane.xlu0 %3137
        %3139 = vadd.xlane.f32.xlu0 %v3116
        %v3140 = vpop.xlane.xlu0 %3139
        %3141 = vadd.xlane.f32.xlu0 %v3117
        %v3142 = vpop.xlane.xlu0 %3141
        %3143 = vadd.xlane.f32.xlu0 %v3118
        %v3144 = vpop.xlane.xlu0 %3143
        %3145 = vadd.xlane.f32.xlu0 %v3119
        %v3146 = vpop.xlane.xlu0 %3145
        %3147 = vadd.xlane.f32.xlu0 %v3120
        %v3148 = vpop.xlane.xlu0 %3147
        %3149 = vadd.xlane.f32.xlu0 %v3121
        %v3150 = vpop.xlane.xlu0 %3149
        %3151 = vadd.xlane.f32.xlu0 %v3122
        %v3152 = vpop.xlane.xlu0 %3151
        %3153 = vadd.xlane.f32.xlu0 %v3123
        %v3154 = vpop.xlane.xlu0 %3153
        %3155 = vadd.xlane.f32.xlu0 %v3124
        %v3156 = vpop.xlane.xlu0 %3155
        %3157 = vmatprep.subr.bf16.mxu0 0
        %3158 = vmatpush1.bf16.msra.mxu0 %v2766
        %3159 = vmatprep.subr.bf16.mxu0 0
        %3160 = vmatpush1.bf16.msra.mxu0 %v2775
        %3161 = vmatprep.subr.bf16.mxu0 0
        %3162 = vmatpush1.bf16.msra.mxu0 %v2784
        %3163 = vmatprep.subr.bf16.mxu0 0
        %3164 = vmatpush1.bf16.msra.mxu0 %v2793
        %3165 = vmatprep.subr.bf16.mxu0 0
        %3166 = vmatpush1.bf16.msra.mxu0 %v2802
        %3167 = vmatprep.subr.bf16.mxu0 0
        %3168 = vmatpush1.bf16.msra.mxu0 %v2811
        %3169 = vmatprep.subr.bf16.mxu0 0
        %3170 = vmatpush1.bf16.msra.mxu0 %v2820
        %3171 = vmatprep.subr.bf16.mxu0 0
        %3172 = vmatpush1.bf16.msra.mxu0 %v2829
        %3173 = vmatprep.subr.bf16.mxu0 0
        %3174 = vmatpush1.bf16.msra.mxu0 0
        %3175 = vmatprep.subr.bf16.mxu0 0
        %3176 = vmatpush1.bf16.msra.mxu0 0
        %3177 = vmatprep.subr.bf16.mxu0 0
        %3178 = vmatpush1.bf16.msra.mxu0 0
        %3179 = vmatprep.subr.bf16.mxu0 0
        %3180 = vmatpush1.bf16.msra.mxu0 0
        %3181 = vmatprep.subr.bf16.mxu0 0
        %3182 = vmatpush1.bf16.msra.mxu0 0
        %3183 = vmatprep.subr.bf16.mxu0 0
        %3184 = vmatpush1.bf16.msra.mxu0 0
        %3185 = vmatprep.subr.bf16.mxu0 0
        %3186 = vmatpush1.bf16.msra.mxu0 0
        %3187 = vmatprep.subr.bf16.mxu0 0
        %3188 = vmatpush1.bf16.msra.mxu0 0
        %3189 = vmatprep.mubr.bf16.mxu0 0
        %3190 = vmatmul.mubr.bf16.gmra.mrb[0].mxu0 %v3087
        %v3191 = vpop.f32.mrb[0].mxu0
        %v3192 = vadd.f32 0.0, %v3191
        %v3193 = vpop.f32.mrb[0].mxu0
        %v3194 = vpop.f32.mrb[0].mxu0
        %v3195 = vadd.f32 0.0, %v3194
        %v3196 = vpop.f32.mrb[0].mxu0
        %3197 = vmatprep.mubr.bf16.mxu0 0
        %3198 = vmatmul.mubr.bf16.gmra.mrb[0].mxu0 %v3090
        %v3199 = vpop.f32.mrb[0].mxu0
        %v3200 = vadd.f32 0.0, %v3199
        %v3201 = vpop.f32.mrb[0].mxu0
        %v3202 = vpop.f32.mrb[0].mxu0
        %v3203 = vadd.f32 0.0, %v3202
        %v3204 = vpop.f32.mrb[0].mxu0
        %3205 = vmatprep.mubr.bf16.mxu0 0
        %3206 = vmatmul.mubr.bf16.gmra.mrb[0].mxu0 %v3093
        %v3207 = vpop.f32.mrb[0].mxu0
        %v3208 = vadd.f32 0.0, %v3207
        %v3209 = vpop.f32.mrb[0].mxu0
        %v3210 = vpop.f32.mrb[0].mxu0
        %v3211 = vadd.f32 0.0, %v3210
        %v3212 = vpop.f32.mrb[0].mxu0
        %3213 = vmatprep.mubr.bf16.mxu0 0
        %3214 = vmatmul.mubr.bf16.gmra.mrb[0].mxu0 %v3096
        %v3215 = vpop.f32.mrb[0].mxu0
        %v3216 = vadd.f32 0.0, %v3215
        %v3217 = vpop.f32.mrb[0].mxu0
        %v3218 = vpop.f32.mrb[0].mxu0
        %v3219 = vadd.f32 0.0, %v3218
        %v3220 = vpop.f32.mrb[0].mxu0
        %3221 = vmatprep.mubr.bf16.mxu0 0
        %3222 = vmatmul.mubr.bf16.gmra.mrb[0].mxu0 %v3099
        %v3223 = vpop.f32.mrb[0].mxu0
        %v3224 = vadd.f32 0.0, %v3223
        %v3225 = vpop.f32.mrb[0].mxu0
        %v3226 = vpop.f32.mrb[0].mxu0
        %v3227 = vadd.f32 0.0, %v3226
        %v3228 = vpop.f32.mrb[0].mxu0
        %3229 = vmatprep.mubr.bf16.mxu0 0
        %3230 = vmatmul.mubr.bf16.gmra.mrb[0].mxu0 %v3102
        %v3231 = vpop.f32.mrb[0].mxu0
        %v3232 = vadd.f32 0.0, %v3231
        %v3233 = vpop.f32.mrb[0].mxu0
        %v3234 = vpop.f32.mrb[0].mxu0
        %v3235 = vadd.f32 0.0, %v3234
        %v3236 = vpop.f32.mrb[0].mxu0
        %3237 = vmatprep.mubr.bf16.mxu0 0
        %3238 = vmatmul.mubr.bf16.gmra.mrb[0].mxu0 %v3105
        %v3239 = vpop.f32.mrb[0].mxu0
        %v3240 = vadd.f32 0.0, %v3239
        %v3241 = vpop.f32.mrb[0].mxu0
        %v3242 = vpop.f32.mrb[0].mxu0
        %v3243 = vadd.f32 0.0, %v3242
        %v3244 = vpop.f32.mrb[0].mxu0
        %3245 = vmatprep.mubr.bf16.mxu0 0
        %3246 = vmatmul.mubr.bf16.gmra.mrb[0].mxu0 %v3108
        %v3247 = vpop.f32.mrb[0].mxu0
        %v3248 = vadd.f32 0.0, %v3247
        %v3249 = vpop.f32.mrb[0].mxu0
        %v3250 = vpop.f32.mrb[0].mxu0
        %v3251 = vadd.f32 0.0, %v3250
        %v3252 = vpop.f32.mrb[0].mxu0
        %3253 = vdwg.mxu0
        %v3254 = vrcp.pop %v3126
        %v3255 = vrcp.pop %v3128
        %v3256 = vrcp.pop %v3130
        %v3257 = vrcp.pop %v3132
        %v3258 = vrcp.pop %v3134
        %v3259 = vrcp.pop %v3136
        %v3260 = vrcp.pop %v3138
        %v3261 = vrcp.pop %v3140
        %v3262 = vrcp.pop %v3142
        %v3263 = vrcp.pop %v3144
        %v3264 = vrcp.pop %v3146
        %v3265 = vrcp.pop %v3148
        %v3266 = vrcp.pop %v3150
        %v3267 = vrcp.pop %v3152
        %v3268 = vrcp.pop %v3154
        %v3269 = vrcp.pop %v3156
        %v3270 = vmul.f32 %v3192, %v3254
        %v3271 = vmul.f32 %v3195, %v3255
        %v3272 = vmul.f32 %v3200, %v3256
        %v3273 = vmul.f32 %v3203, %v3257
        %v3274 = vmul.f32 %v3208, %v3258
        %v3275 = vmul.f32 %v3211, %v3259
        %v3276 = vmul.f32 %v3216, %v3260
        %v3277 = vmul.f32 %v3219, %v3261
        %v3278 = vmul.f32 %v3224, %v3262
        %v3279 = vmul.f32 %v3227, %v3263
        %v3280 = vmul.f32 %v3232, %v3264
        %v3281 = vmul.f32 %v3235, %v3265
        %v3282 = vmul.f32 %v3240, %v3266
        %v3283 = vmul.f32 %v3243, %v3267
        %v3284 = vmul.f32 %v3248, %v3268
        %v3285 = vmul.f32 %v3251, %v3269
        %3286 = vst.msk [vmem:[#allocation2] sm:$0xff] %vm2867, %v3270
        %3287 = vst.msk [vmem:[#allocation2 + $0x18] sm:$0xff] %vm2867, %v3271
        %3288 = vst.msk [vmem:[#allocation2 + $0x30] sm:$0xff] %vm2867, %v3272
        %3289 = vst.msk [vmem:[#allocation2 + $0x48] sm:$0xff] %vm2867, %v3273
        %3290 = vst.msk [vmem:[#allocation2 + $0x60] sm:$0xff] %vm2867, %v3274
        %3291 = vst.msk [vmem:[#allocation2 + $0x78] sm:$0xff] %vm2867, %v3275
        %3292 = vst.msk [vmem:[#allocation2 + $0x90] sm:$0xff] %vm2867, %v3276
        %3293 = vst.msk [vmem:[#allocation2 + $0xa8] sm:$0xff] %vm2867, %v3277
        %3294 = vst.msk [vmem:[#allocation2 + $0xc0] sm:$0xff] %vm2867, %v3278
        %3295 = vst.msk [vmem:[#allocation2 + $0xd8] sm:$0xff] %vm2867, %v3279
        %3296 = vst.msk [vmem:[#allocation2 + $0xf0] sm:$0xff] %vm2867, %v3280
        %3297 = vst.msk [vmem:[#allocation2 + $0x108] sm:$0xff] %vm2867, %v3281
        %3298 = vst.msk [vmem:[#allocation2 + $0x120] sm:$0xff] %vm2867, %v3282
        %3299 = vst.msk [vmem:[#allocation2 + $0x138] sm:$0xff] %vm2867, %v3283
        %3300 = vst.msk [vmem:[#allocation2 + $0x150] sm:$0xff] %vm2867, %v3284
        %3301 = vst.msk [vmem:[#allocation2 + $0x168] sm:$0xff] %vm2867, %v3285
        %3310 = vrot.lane.b32.xlu0 %v2760, 64
        %v3311 = vpop.permute.xlu0 %3310
        %3312 = vrot.lane.b32.xlu0 %v2769, 64
        %v3313 = vpop.permute.xlu0 %3312
        %3314 = vrot.lane.b32.xlu0 %v2778, 64
        %v3315 = vpop.permute.xlu0 %3314
        %3316 = vrot.lane.b32.xlu0 %v2787, 64
        %v3317 = vpop.permute.xlu0 %3316
        %3318 = vrot.lane.b32.xlu0 %v2796, 64
        %v3319 = vpop.permute.xlu0 %3318
        %3320 = vrot.lane.b32.xlu0 %v2805, 64
        %v3321 = vpop.permute.xlu0 %3320
        %3322 = vrot.lane.b32.xlu0 %v2814, 64
        %v3323 = vpop.permute.xlu0 %3322
        %3324 = vrot.lane.b32.xlu0 %v2823, 64
        %v3325 = vpop.permute.xlu0 %3324
        %3334 = vrot.lane.b32.xlu0 %v2763, 64
        %v3335 = vpop.permute.xlu0 %3334
        %3336 = vrot.lane.b32.xlu0 %v2772, 64
        %v3337 = vpop.permute.xlu0 %3336
        %3338 = vrot.lane.b32.xlu0 %v2781, 64
        %v3339 = vpop.permute.xlu0 %3338
        %3340 = vrot.lane.b32.xlu0 %v2790, 64
        %v3341 = vpop.permute.xlu0 %3340
        %3342 = vrot.lane.b32.xlu0 %v2799, 64
        %v3343 = vpop.permute.xlu0 %3342
        %3344 = vrot.lane.b32.xlu0 %v2808, 64
        %v3345 = vpop.permute.xlu0 %3344
        %3346 = vrot.lane.b32.xlu0 %v2817, 64
        %v3347 = vpop.permute.xlu0 %3346
        %3348 = vrot.lane.b32.xlu0 %v2826, 64
        %v3349 = vpop.permute.xlu0 %3348
        %v3351 = vsel %vm2867, %v3311, 0
        %v3354 = vsel %vm2867, %v3313, 0
        %v3357 = vsel %vm2867, %v3315, 0
        %v3360 = vsel %vm2867, %v3317, 0
        %v3363 = vsel %vm2867, %v3319, 0
        %v3366 = vsel %vm2867, %v3321, 0
        %v3369 = vsel %vm2867, %v3323, 0
        %v3372 = vsel %vm2867, %v3325, 0
        %v3375 = vsel %vm2867, %v3335, 0
        %v3378 = vsel %vm2867, %v3337, 0
        %v3381 = vsel %vm2867, %v3339, 0
        %v3384 = vsel %vm2867, %v3341, 0
        %v3387 = vsel %vm2867, %v3343, 0
        %v3390 = vsel %vm2867, %v3345, 0
        %v3393 = vsel %vm2867, %v3347, 0
        %v3396 = vsel %vm2867, %v3349, 0
        %3398 = vmatprep.subr.bf16.mxu0 0
        %3399 = vmatpush1.bf16.xpose.msra.mxu0 %v3375
        %3400 = vmatprep.subr.bf16.mxu0 0
        %3401 = vmatpush1.bf16.xpose.msra.mxu0 %v3378
        %3402 = vmatprep.subr.bf16.mxu0 0
        %3403 = vmatpush1.bf16.xpose.msra.mxu0 %v3381
        %3404 = vmatprep.subr.bf16.mxu0 0
        %3405 = vmatpush1.bf16.xpose.msra.mxu0 %v3384
        %3406 = vmatprep.subr.bf16.mxu0 0
        %3407 = vmatpush1.bf16.xpose.msra.mxu0 %v3387
        %3408 = vmatprep.subr.bf16.mxu0 0
        %3409 = vmatpush1.bf16.xpose.msra.mxu0 %v3390
        %3410 = vmatprep.subr.bf16.mxu0 0
        %3411 = vmatpush1.bf16.xpose.msra.mxu0 %v3393
        %3412 = vmatprep.subr.bf16.mxu0 0
        %3413 = vmatpush1.bf16.xpose.msra.mxu0 %v3396
        %3414 = vmatprep.subr.bf16.mxu0 0
        %3415 = vmatpush1.bf16.xpose.msra.mxu0 0
        %3416 = vmatprep.subr.bf16.mxu0 0
        %3417 = vmatpush1.bf16.xpose.msra.mxu0 0
        %3418 = vmatprep.subr.bf16.mxu0 0
        %3419 = vmatpush1.bf16.xpose.msra.mxu0 0
        %3420 = vmatprep.subr.bf16.mxu0 0
        %3421 = vmatpush1.bf16.xpose.msra.mxu0 0
        %3422 = vmatprep.subr.bf16.mxu0 0
        %3423 = vmatpush1.bf16.xpose.msra.mxu0 0
        %3424 = vmatprep.subr.bf16.mxu0 0
        %3425 = vmatpush1.bf16.xpose.msra.mxu0 0
        %3426 = vmatprep.subr.bf16.mxu0 0
        %3427 = vmatpush1.bf16.xpose.msra.mxu0 0
        %3428 = vmatprep.subr.bf16.mxu0 0
        %3429 = vmatpush1.bf16.xpose.msra.mxu0 0
        %3430 = vmatprep.mubr.bf16.mxu0 0
        %3431 = vmatmul.mubr.bf16.gmra.mrb[0].mxu0 %v3351
        %v3432 = vpop.f32.mrb[0].mxu0
        %v3433 = vadd.f32 0.0, %v3432
        %v3434 = vpop.f32.mrb[0].mxu0
        %v3435 = vpop.f32.mrb[0].mxu0
        %v3436 = vadd.f32 0.0, %v3435
        %v3437 = vpop.f32.mrb[0].mxu0
        %3438 = vmatprep.mubr.bf16.mxu0 0
        %3439 = vmatmul.mubr.bf16.gmra.mrb[0].mxu0 %v3354
        %v3440 = vpop.f32.mrb[0].mxu0
        %v3441 = vadd.f32 0.0, %v3440
        %v3442 = vpop.f32.mrb[0].mxu0
        %v3443 = vpop.f32.mrb[0].mxu0
        %v3444 = vadd.f32 0.0, %v3443
        %v3445 = vpop.f32.mrb[0].mxu0
        %3446 = vmatprep.mubr.bf16.mxu0 0
        %3447 = vmatmul.mubr.bf16.gmra.mrb[0].mxu0 %v3357
        %v3448 = vpop.f32.mrb[0].mxu0
        %v3449 = vadd.f32 0.0, %v3448
        %v3450 = vpop.f32.mrb[0].mxu0
        %v3451 = vpop.f32.mrb[0].mxu0
        %v3452 = vadd.f32 0.0, %v3451
        %v3453 = vpop.f32.mrb[0].mxu0
        %3454 = vmatprep.mubr.bf16.mxu0 0
        %3455 = vmatmul.mubr.bf16.gmra.mrb[0].mxu0 %v3360
        %v3456 = vpop.f32.mrb[0].mxu0
        %v3457 = vadd.f32 0.0, %v3456
        %v3458 = vpop.f32.mrb[0].mxu0
        %v3459 = vpop.f32.mrb[0].mxu0
        %v3460 = vadd.f32 0.0, %v3459
        %v3461 = vpop.f32.mrb[0].mxu0
        %3462 = vmatprep.mubr.bf16.mxu0 0
        %3463 = vmatmul.mubr.bf16.gmra.mrb[0].mxu0 %v3363
        %v3464 = vpop.f32.mrb[0].mxu0
        %v3465 = vadd.f32 0.0, %v3464
        %v3466 = vpop.f32.mrb[0].mxu0
        %v3467 = vpop.f32.mrb[0].mxu0
        %v3468 = vadd.f32 0.0, %v3467
        %v3469 = vpop.f32.mrb[0].mxu0
        %3470 = vmatprep.mubr.bf16.mxu0 0
        %3471 = vmatmul.mubr.bf16.gmra.mrb[0].mxu0 %v3366
        %v3472 = vpop.f32.mrb[0].mxu0
        %v3473 = vadd.f32 0.0, %v3472
        %v3474 = vpop.f32.mrb[0].mxu0
        %v3475 = vpop.f32.mrb[0].mxu0
        %v3476 = vadd.f32 0.0, %v3475
        %v3477 = vpop.f32.mrb[0].mxu0
        %3478 = vmatprep.mubr.bf16.mxu0 0
        %3479 = vmatmul.mubr.bf16.gmra.mrb[0].mxu0 %v3369
        %v3480 = vpop.f32.mrb[0].mxu0
        %v3481 = vadd.f32 0.0, %v3480
        %v3482 = vpop.f32.mrb[0].mxu0
        %v3483 = vpop.f32.mrb[0].mxu0
        %v3484 = vadd.f32 0.0, %v3483
        %v3485 = vpop.f32.mrb[0].mxu0
        %3486 = vmatprep.mubr.bf16.mxu0 0
        %3487 = vmatmul.mubr.bf16.gmra.mrb[0].mxu0 %v3372
        %v3488 = vpop.f32.mrb[0].mxu0
        %v3489 = vadd.f32 0.0, %v3488
        %v3490 = vpop.f32.mrb[0].mxu0
        %v3491 = vpop.f32.mrb[0].mxu0
        %v3492 = vadd.f32 0.0, %v3491
        %v3493 = vpop.f32.mrb[0].mxu0
        %3494 = vdwg.mxu0
        %v3495 = vsel %vm2851, %v3433, -1e+30
        %v3496 = vsel %vm2852, %v3436, -1e+30
        %v3497 = vsel %vm2853, %v3441, -1e+30
        %v3498 = vsel %vm2854, %v3444, -1e+30
        %v3499 = vsel %vm2855, %v3449, -1e+30
        %v3500 = vsel %vm2856, %v3452, -1e+30
        %v3501 = vsel %vm2857, %v3457, -1e+30
        %v3502 = vsel %vm2858, %v3460, -1e+30
        %v3503 = vsel %vm2859, %v3465, -1e+30
        %v3504 = vsel %vm2860, %v3468, -1e+30
        %v3505 = vsel %vm2861, %v3473, -1e+30
        %v3506 = vsel %vm2862, %v3476, -1e+30
        %v3507 = vsel %vm2863, %v3481, -1e+30
        %v3508 = vsel %vm2864, %v3484, -1e+30
        %v3509 = vsel %vm2865, %v3489, -1e+30
        %v3510 = vsel %vm2866, %v3492, -1e+30
        %3511 = vmax.xlane.f32.xlu0 %v3495
        %v3512 = vpop.xlane.xlu0 %3511
        %3513 = vmax.xlane.f32.xlu0 %v3496
        %v3514 = vpop.xlane.xlu0 %3513
        %3515 = vmax.xlane.f32.xlu0 %v3497
        %v3516 = vpop.xlane.xlu0 %3515
        %3517 = vmax.xlane.f32.xlu0 %v3498
        %v3518 = vpop.xlane.xlu0 %3517
        %3519 = vmax.xlane.f32.xlu0 %v3499
        %v3520 = vpop.xlane.xlu0 %3519
        %3521 = vmax.xlane.f32.xlu0 %v3500
        %v3522 = vpop.xlane.xlu0 %3521
        %3523 = vmax.xlane.f32.xlu0 %v3501
        %v3524 = vpop.xlane.xlu0 %3523
        %3525 = vmax.xlane.f32.xlu0 %v3502
        %v3526 = vpop.xlane.xlu0 %3525
        %3527 = vmax.xlane.f32.xlu0 %v3503
        %v3528 = vpop.xlane.xlu0 %3527
        %3529 = vmax.xlane.f32.xlu0 %v3504
        %v3530 = vpop.xlane.xlu0 %3529
        %3531 = vmax.xlane.f32.xlu0 %v3505
        %v3532 = vpop.xlane.xlu0 %3531
        %3533 = vmax.xlane.f32.xlu0 %v3506
        %v3534 = vpop.xlane.xlu0 %3533
        %3535 = vmax.xlane.f32.xlu0 %v3507
        %v3536 = vpop.xlane.xlu0 %3535
        %3537 = vmax.xlane.f32.xlu0 %v3508
        %v3538 = vpop.xlane.xlu0 %3537
        %3539 = vmax.xlane.f32.xlu0 %v3509
        %v3540 = vpop.xlane.xlu0 %3539
        %3541 = vmax.xlane.f32.xlu0 %v3510
        %v3542 = vpop.xlane.xlu0 %3541
        %v3543 = vsub.f32 %v3495, %v3512
        %v3544 = vsub.f32 %v3496, %v3514
        %v3545 = vsub.f32 %v3497, %v3516
        %v3546 = vsub.f32 %v3498, %v3518
        %v3547 = vsub.f32 %v3499, %v3520
        %v3548 = vsub.f32 %v3500, %v3522
        %v3549 = vsub.f32 %v3501, %v3524
        %v3550 = vsub.f32 %v3502, %v3526
        %v3551 = vsub.f32 %v3503, %v3528
        %v3552 = vsub.f32 %v3504, %v3530
        %v3553 = vsub.f32 %v3505, %v3532
        %v3554 = vsub.f32 %v3506, %v3534
        %v3555 = vsub.f32 %v3507, %v3536
        %v3556 = vsub.f32 %v3508, %v3538
        %v3557 = vsub.f32 %v3509, %v3540
        %v3558 = vsub.f32 %v3510, %v3542
        %v3559 = vpack.c.bf16 %v3544, %v3543
        %v3560 = vpack.c.bf16 %v3546, %v3545
        %v3561 = vpack.c.bf16 %v3548, %v3547
        %v3562 = vpack.c.bf16 %v3550, %v3549
        %v3563 = vpack.c.bf16 %v3552, %v3551
        %v3564 = vpack.c.bf16 %v3554, %v3553
        %v3565 = vpack.c.bf16 %v3556, %v3555
        %v3566 = vpack.c.bf16 %v3558, %v3557
        %v3568 = vmul.bf16 %v3559, 1069105081
        %v3569 = vpow.bf16.pop %v3568
        %v3571 = vmul.bf16 %v3560, 1069105081
        %v3572 = vpow.bf16.pop %v3571
        %v3574 = vmul.bf16 %v3561, 1069105081
        %v3575 = vpow.bf16.pop %v3574
        %v3577 = vmul.bf16 %v3562, 1069105081
        %v3578 = vpow.bf16.pop %v3577
        %v3580 = vmul.bf16 %v3563, 1069105081
        %v3581 = vpow.bf16.pop %v3580
        %v3583 = vmul.bf16 %v3564, 1069105081
        %v3584 = vpow.bf16.pop %v3583
        %v3586 = vmul.bf16 %v3565, 1069105081
        %v3587 = vpow.bf16.pop %v3586
        %v3589 = vmul.bf16 %v3566, 1069105081
        %v3590 = vpow.bf16.pop %v3589
        %v3591 = vunpack.c.l.bf16 %v3569
        %v3592 = vunpack.c.h.bf16 %v3569
        %v3593 = vunpack.c.l.bf16 %v3572
        %v3594 = vunpack.c.h.bf16 %v3572
        %v3595 = vunpack.c.l.bf16 %v3575
        %v3596 = vunpack.c.h.bf16 %v3575
        %v3597 = vunpack.c.l.bf16 %v3578
        %v3598 = vunpack.c.h.bf16 %v3578
        %v3599 = vunpack.c.l.bf16 %v3581
        %v3600 = vunpack.c.h.bf16 %v3581
        %v3601 = vunpack.c.l.bf16 %v3584
        %v3602 = vunpack.c.h.bf16 %v3584
        %v3603 = vunpack.c.l.bf16 %v3587
        %v3604 = vunpack.c.h.bf16 %v3587
        %v3605 = vunpack.c.l.bf16 %v3590
        %v3606 = vunpack.c.h.bf16 %v3590
        %3607 = vadd.xlane.f32.xlu0 %v3591
        %v3608 = vpop.xlane.xlu0 %3607
        %3609 = vadd.xlane.f32.xlu0 %v3592
        %v3610 = vpop.xlane.xlu0 %3609
        %3611 = vadd.xlane.f32.xlu0 %v3593
        %v3612 = vpop.xlane.xlu0 %3611
        %3613 = vadd.xlane.f32.xlu0 %v3594
        %v3614 = vpop.xlane.xlu0 %3613
        %3615 = vadd.xlane.f32.xlu0 %v3595
        %v3616 = vpop.xlane.xlu0 %3615
        %3617 = vadd.xlane.f32.xlu0 %v3596
        %v3618 = vpop.xlane.xlu0 %3617
        %3619 = vadd.xlane.f32.xlu0 %v3597
        %v3620 = vpop.xlane.xlu0 %3619
        %3621 = vadd.xlane.f32.xlu0 %v3598
        %v3622 = vpop.xlane.xlu0 %3621
        %3623 = vadd.xlane.f32.xlu0 %v3599
        %v3624 = vpop.xlane.xlu0 %3623
        %3625 = vadd.xlane.f32.xlu0 %v3600
        %v3626 = vpop.xlane.xlu0 %3625
        %3627 = vadd.xlane.f32.xlu0 %v3601
        %v3628 = vpop.xlane.xlu0 %3627
        %3629 = vadd.xlane.f32.xlu0 %v3602
        %v3630 = vpop.xlane.xlu0 %3629
        %3631 = vadd.xlane.f32.xlu0 %v3603
        %v3632 = vpop.xlane.xlu0 %3631
        %3633 = vadd.xlane.f32.xlu0 %v3604
        %v3634 = vpop.xlane.xlu0 %3633
        %3635 = vadd.xlane.f32.xlu0 %v3605
        %v3636 = vpop.xlane.xlu0 %3635
        %3637 = vadd.xlane.f32.xlu0 %v3606
        %v3638 = vpop.xlane.xlu0 %3637
        %3647 = vrot.lane.b32.xlu0 %v2766, 64
        %v3648 = vpop.permute.xlu0 %3647
        %3649 = vrot.lane.b32.xlu0 %v2775, 64
        %v3650 = vpop.permute.xlu0 %3649
        %3651 = vrot.lane.b32.xlu0 %v2784, 64
        %v3652 = vpop.permute.xlu0 %3651
        %3653 = vrot.lane.b32.xlu0 %v2793, 64
        %v3654 = vpop.permute.xlu0 %3653
        %3655 = vrot.lane.b32.xlu0 %v2802, 64
        %v3656 = vpop.permute.xlu0 %3655
        %3657 = vrot.lane.b32.xlu0 %v2811, 64
        %v3658 = vpop.permute.xlu0 %3657
        %3659 = vrot.lane.b32.xlu0 %v2820, 64
        %v3660 = vpop.permute.xlu0 %3659
        %3661 = vrot.lane.b32.xlu0 %v2829, 64
        %v3662 = vpop.permute.xlu0 %3661
        %3671 = vmatprep.subr.bf16.mxu0 0
        %3672 = vmatpush1.bf16.msra.mxu0 %v3648
        %3673 = vmatprep.subr.bf16.mxu0 0
        %3674 = vmatpush1.bf16.msra.mxu0 %v3650
        %3675 = vmatprep.subr.bf16.mxu0 0
        %3676 = vmatpush1.bf16.msra.mxu0 %v3652
        %3677 = vmatprep.subr.bf16.mxu0 0
        %3678 = vmatpush1.bf16.msra.mxu0 %v3654
        %3679 = vmatprep.subr.bf16.mxu0 0
        %3680 = vmatpush1.bf16.msra.mxu0 %v3656
        %3681 = vmatprep.subr.bf16.mxu0 0
        %3682 = vmatpush1.bf16.msra.mxu0 %v3658
        %3683 = vmatprep.subr.bf16.mxu0 0
        %3684 = vmatpush1.bf16.msra.mxu0 %v3660
        %3685 = vmatprep.subr.bf16.mxu0 0
        %3686 = vmatpush1.bf16.msra.mxu0 %v3662
        %3687 = vmatprep.subr.bf16.mxu0 0
        %3688 = vmatpush1.bf16.msra.mxu0 0
        %3689 = vmatprep.subr.bf16.mxu0 0
        %3690 = vmatpush1.bf16.msra.mxu0 0
        %3691 = vmatprep.subr.bf16.mxu0 0
        %3692 = vmatpush1.bf16.msra.mxu0 0
        %3693 = vmatprep.subr.bf16.mxu0 0
        %3694 = vmatpush1.bf16.msra.mxu0 0
        %3695 = vmatprep.subr.bf16.mxu0 0
        %3696 = vmatpush1.bf16.msra.mxu0 0
        %3697 = vmatprep.subr.bf16.mxu0 0
        %3698 = vmatpush1.bf16.msra.mxu0 0
        %3699 = vmatprep.subr.bf16.mxu0 0
        %3700 = vmatpush1.bf16.msra.mxu0 0
        %3701 = vmatprep.subr.bf16.mxu0 0
        %3702 = vmatpush1.bf16.msra.mxu0 0
        %3703 = vmatprep.mubr.bf16.mxu0 0
        %3704 = vmatmul.mubr.bf16.gmra.mrb[0].mxu0 %v3569
        %v3705 = vpop.f32.mrb[0].mxu0
        %v3706 = vadd.f32 0.0, %v3705
        %v3707 = vpop.f32.mrb[0].mxu0
        %v3708 = vpop.f32.mrb[0].mxu0
        %v3709 = vadd.f32 0.0, %v3708
        %v3710 = vpop.f32.mrb[0].mxu0
        %3711 = vmatprep.mubr.bf16.mxu0 0
        %3712 = vmatmul.mubr.bf16.gmra.mrb[0].mxu0 %v3572
        %v3713 = vpop.f32.mrb[0].mxu0
        %v3714 = vadd.f32 0.0, %v3713
        %v3715 = vpop.f32.mrb[0].mxu0
        %v3716 = vpop.f32.mrb[0].mxu0
        %v3717 = vadd.f32 0.0, %v3716
        %v3718 = vpop.f32.mrb[0].mxu0
        %3719 = vmatprep.mubr.bf16.mxu0 0
        %3720 = vmatmul.mubr.bf16.gmra.mrb[0].mxu0 %v3575
        %v3721 = vpop.f32.mrb[0].mxu0
        %v3722 = vadd.f32 0.0, %v3721
        %v3723 = vpop.f32.mrb[0].mxu0
        %v3724 = vpop.f32.mrb[0].mxu0
        %v3725 = vadd.f32 0.0, %v3724
        %v3726 = vpop.f32.mrb[0].mxu0
        %3727 = vmatprep.mubr.bf16.mxu0 0
        %3728 = vmatmul.mubr.bf16.gmra.mrb[0].mxu0 %v3578
        %v3729 = vpop.f32.mrb[0].mxu0
        %v3730 = vadd.f32 0.0, %v3729
        %v3731 = vpop.f32.mrb[0].mxu0
        %v3732 = vpop.f32.mrb[0].mxu0
        %v3733 = vadd.f32 0.0, %v3732
        %v3734 = vpop.f32.mrb[0].mxu0
        %3735 = vmatprep.mubr.bf16.mxu0 0
        %3736 = vmatmul.mubr.bf16.gmra.mrb[0].mxu0 %v3581
        %v3737 = vpop.f32.mrb[0].mxu0
        %v3738 = vadd.f32 0.0, %v3737
        %v3739 = vpop.f32.mrb[0].mxu0
        %v3740 = vpop.f32.mrb[0].mxu0
        %v3741 = vadd.f32 0.0, %v3740
        %v3742 = vpop.f32.mrb[0].mxu0
        %3743 = vmatprep.mubr.bf16.mxu0 0
        %3744 = vmatmul.mubr.bf16.gmra.mrb[0].mxu0 %v3584
        %v3745 = vpop.f32.mrb[0].mxu0
        %v3746 = vadd.f32 0.0, %v3745
        %v3747 = vpop.f32.mrb[0].mxu0
        %v3748 = vpop.f32.mrb[0].mxu0
        %v3749 = vadd.f32 0.0, %v3748
        %v3750 = vpop.f32.mrb[0].mxu0
        %3751 = vmatprep.mubr.bf16.mxu0 0
        %3752 = vmatmul.mubr.bf16.gmra.mrb[0].mxu0 %v3587
        %v3753 = vpop.f32.mrb[0].mxu0
        %v3754 = vadd.f32 0.0, %v3753
        %v3755 = vpop.f32.mrb[0].mxu0
        %v3756 = vpop.f32.mrb[0].mxu0
        %v3757 = vadd.f32 0.0, %v3756
        %v3758 = vpop.f32.mrb[0].mxu0
        %3759 = vmatprep.mubr.bf16.mxu0 0
        %3760 = vmatmul.mubr.bf16.gmra.mrb[0].mxu0 %v3590
        %v3761 = vpop.f32.mrb[0].mxu0
        %v3762 = vadd.f32 0.0, %v3761
        %v3763 = vpop.f32.mrb[0].mxu0
        %v3764 = vpop.f32.mrb[0].mxu0
        %v3765 = vadd.f32 0.0, %v3764
        %v3766 = vpop.f32.mrb[0].mxu0
        %3767 = vdwg.mxu0
        %v3768 = vrcp.pop %v3608
        %v3769 = vrcp.pop %v3610
        %v3770 = vrcp.pop %v3612
        %v3771 = vrcp.pop %v3614
        %v3772 = vrcp.pop %v3616
        %v3773 = vrcp.pop %v3618
        %v3774 = vrcp.pop %v3620
        %v3775 = vrcp.pop %v3622
        %v3776 = vrcp.pop %v3624
        %v3777 = vrcp.pop %v3626
        %v3778 = vrcp.pop %v3628
        %v3779 = vrcp.pop %v3630
        %v3780 = vrcp.pop %v3632
        %v3781 = vrcp.pop %v3634
        %v3782 = vrcp.pop %v3636
        %v3783 = vrcp.pop %v3638
        %v3784 = vmul.f32 %v3706, %v3768
        %v3785 = vmul.f32 %v3709, %v3769
        %v3786 = vmul.f32 %v3714, %v3770
        %v3787 = vmul.f32 %v3717, %v3771
        %v3788 = vmul.f32 %v3722, %v3772
        %v3789 = vmul.f32 %v3725, %v3773
        %v3790 = vmul.f32 %v3730, %v3774
        %v3791 = vmul.f32 %v3733, %v3775
        %v3792 = vmul.f32 %v3738, %v3776
        %v3793 = vmul.f32 %v3741, %v3777
        %v3794 = vmul.f32 %v3746, %v3778
        %v3795 = vmul.f32 %v3749, %v3779
        %v3796 = vmul.f32 %v3754, %v3780
        %v3797 = vmul.f32 %v3757, %v3781
        %v3798 = vmul.f32 %v3762, %v3782
        %v3799 = vmul.f32 %v3765, %v3783
        %3816 = vrot.lane.b32.xlu0 %v3784, 64
        %v3817 = vpop.permute.xlu0 %3816
        %3818 = vrot.lane.b32.xlu0 %v3785, 64
        %v3819 = vpop.permute.xlu0 %3818
        %3820 = vrot.lane.b32.xlu0 %v3786, 64
        %v3821 = vpop.permute.xlu0 %3820
        %3822 = vrot.lane.b32.xlu0 %v3787, 64
        %v3823 = vpop.permute.xlu0 %3822
        %3824 = vrot.lane.b32.xlu0 %v3788, 64
        %v3825 = vpop.permute.xlu0 %3824
        %3826 = vrot.lane.b32.xlu0 %v3789, 64
        %v3827 = vpop.permute.xlu0 %3826
        %3828 = vrot.lane.b32.xlu0 %v3790, 64
        %v3829 = vpop.permute.xlu0 %3828
        %3830 = vrot.lane.b32.xlu0 %v3791, 64
        %v3831 = vpop.permute.xlu0 %3830
        %3832 = vrot.lane.b32.xlu0 %v3792, 64
        %v3833 = vpop.permute.xlu0 %3832
        %3834 = vrot.lane.b32.xlu0 %v3793, 64
        %v3835 = vpop.permute.xlu0 %3834
        %3836 = vrot.lane.b32.xlu0 %v3794, 64
        %v3837 = vpop.permute.xlu0 %3836
        %3838 = vrot.lane.b32.xlu0 %v3795, 64
        %v3839 = vpop.permute.xlu0 %3838
        %3840 = vrot.lane.b32.xlu0 %v3796, 64
        %v3841 = vpop.permute.xlu0 %3840
        %3842 = vrot.lane.b32.xlu0 %v3797, 64
        %v3843 = vpop.permute.xlu0 %3842
        %3844 = vrot.lane.b32.xlu0 %v3798, 64
        %v3845 = vpop.permute.xlu0 %3844
        %3846 = vrot.lane.b32.xlu0 %v3799, 64
        %v3847 = vpop.permute.xlu0 %3846
        %vm3864 = vcmask 1048064
        %3865 = vst.msk [vmem:[#allocation2] sm:$0xff] %vm3864, %v3817
        %3866 = vst.msk [vmem:[#allocation2 + $0x18] sm:$0xff] %vm3864, %v3819
        %3867 = vst.msk [vmem:[#allocation2 + $0x30] sm:$0xff] %vm3864, %v3821
        %3868 = vst.msk [vmem:[#allocation2 + $0x48] sm:$0xff] %vm3864, %v3823
        %3869 = vst.msk [vmem:[#allocation2 + $0x60] sm:$0xff] %vm3864, %v3825
        %3870 = vst.msk [vmem:[#allocation2 + $0x78] sm:$0xff] %vm3864, %v3827
        %3871 = vst.msk [vmem:[#allocation2 + $0x90] sm:$0xff] %vm3864, %v3829
        %3872 = vst.msk [vmem:[#allocation2 + $0xa8] sm:$0xff] %vm3864, %v3831
        %3873 = vst.msk [vmem:[#allocation2 + $0xc0] sm:$0xff] %vm3864, %v3833
        %3874 = vst.msk [vmem:[#allocation2 + $0xd8] sm:$0xff] %vm3864, %v3835
        %3875 = vst.msk [vmem:[#allocation2 + $0xf0] sm:$0xff] %vm3864, %v3837
        %3876 = vst.msk [vmem:[#allocation2 + $0x108] sm:$0xff] %vm3864, %v3839
        %3877 = vst.msk [vmem:[#allocation2 + $0x120] sm:$0xff] %vm3864, %v3841
        %3878 = vst.msk [vmem:[#allocation2 + $0x138] sm:$0xff] %vm3864, %v3843
        %3879 = vst.msk [vmem:[#allocation2 + $0x150] sm:$0xff] %vm3864, %v3845
        %3880 = vst.msk [vmem:[#allocation2 + $0x168] sm:$0xff] %vm3864, %v3847
        %v3882 = vsel %vm2867, %v2761, 0
        %v3885 = vsel %vm2867, %v2770, 0
        %v3888 = vsel %vm2867, %v2779, 0
        %v3891 = vsel %vm2867, %v2788, 0
        %v3894 = vsel %vm2867, %v2797, 0
        %v3897 = vsel %vm2867, %v2806, 0
        %v3900 = vsel %vm2867, %v2815, 0
        %v3903 = vsel %vm2867, %v2824, 0
        %v3906 = vsel %vm2867, %v2764, 0
        %v3909 = vsel %vm2867, %v2773, 0
        %v3912 = vsel %vm2867, %v2782, 0
        %v3915 = vsel %vm2867, %v2791, 0
        %v3918 = vsel %vm2867, %v2800, 0
        %v3921 = vsel %vm2867, %v2809, 0
        %v3924 = vsel %vm2867, %v2818, 0
        %v3927 = vsel %vm2867, %v2827, 0
        %3929 = vmatprep.subr.bf16.mxu0 0
        %3930 = vmatpush1.bf16.xpose.msra.mxu0 %v3906
        %3931 = vmatprep.subr.bf16.mxu0 0
        %3932 = vmatpush1.bf16.xpose.msra.mxu0 %v3909
        %3933 = vmatprep.subr.bf16.mxu0 0
        %3934 = vmatpush1.bf16.xpose.msra.mxu0 %v3912
        %3935 = vmatprep.subr.bf16.mxu0 0
        %3936 = vmatpush1.bf16.xpose.msra.mxu0 %v3915
        %3937 = vmatprep.subr.bf16.mxu0 0
        %3938 = vmatpush1.bf16.xpose.msra.mxu0 %v3918
        %3939 = vmatprep.subr.bf16.mxu0 0
        %3940 = vmatpush1.bf16.xpose.msra.mxu0 %v3921
        %3941 = vmatprep.subr.bf16.mxu0 0
        %3942 = vmatpush1.bf16.xpose.msra.mxu0 %v3924
        %3943 = vmatprep.subr.bf16.mxu0 0
        %3944 = vmatpush1.bf16.xpose.msra.mxu0 %v3927
        %3945 = vmatprep.subr.bf16.mxu0 0
        %3946 = vmatpush1.bf16.xpose.msra.mxu0 0
        %3947 = vmatprep.subr.bf16.mxu0 0
        %3948 = vmatpush1.bf16.xpose.msra.mxu0 0
        %3949 = vmatprep.subr.bf16.mxu0 0
        %3950 = vmatpush1.bf16.xpose.msra.mxu0 0
        %3951 = vmatprep.subr.bf16.mxu0 0
        %3952 = vmatpush1.bf16.xpose.msra.mxu0 0
        %3953 = vmatprep.subr.bf16.mxu0 0
        %3954 = vmatpush1.bf16.xpose.msra.mxu0 0
        %3955 = vmatprep.subr.bf16.mxu0 0
        %3956 = vmatpush1.bf16.xpose.msra.mxu0 0
        %3957 = vmatprep.subr.bf16.mxu0 0
        %3958 = vmatpush1.bf16.xpose.msra.mxu0 0
        %3959 = vmatprep.subr.bf16.mxu0 0
        %3960 = vmatpush1.bf16.xpose.msra.mxu0 0
        %3961 = vmatprep.mubr.bf16.mxu0 0
        %3962 = vmatmul.mubr.bf16.gmra.mrb[0].mxu0 %v3882
        %v3963 = vpop.f32.mrb[0].mxu0
        %v3964 = vadd.f32 0.0, %v3963
        %v3965 = vpop.f32.mrb[0].mxu0
        %v3966 = vpop.f32.mrb[0].mxu0
        %v3967 = vadd.f32 0.0, %v3966
        %v3968 = vpop.f32.mrb[0].mxu0
        %3969 = vmatprep.mubr.bf16.mxu0 0
        %3970 = vmatmul.mubr.bf16.gmra.mrb[0].mxu0 %v3885
        %v3971 = vpop.f32.mrb[0].mxu0
        %v3972 = vadd.f32 0.0, %v3971
        %v3973 = vpop.f32.mrb[0].mxu0
        %v3974 = vpop.f32.mrb[0].mxu0
        %v3975 = vadd.f32 0.0, %v3974
        %v3976 = vpop.f32.mrb[0].mxu0
        %3977 = vmatprep.mubr.bf16.mxu0 0
        %3978 = vmatmul.mubr.bf16.gmra.mrb[0].mxu0 %v3888
        %v3979 = vpop.f32.mrb[0].mxu0
        %v3980 = vadd.f32 0.0, %v3979
        %v3981 = vpop.f32.mrb[0].mxu0
        %v3982 = vpop.f32.mrb[0].mxu0
        %v3983 = vadd.f32 0.0, %v3982
        %v3984 = vpop.f32.mrb[0].mxu0
        %3985 = vmatprep.mubr.bf16.mxu0 0
        %3986 = vmatmul.mubr.bf16.gmra.mrb[0].mxu0 %v3891
        %v3987 = vpop.f32.mrb[0].mxu0
        %v3988 = vadd.f32 0.0, %v3987
        %v3989 = vpop.f32.mrb[0].mxu0
        %v3990 = vpop.f32.mrb[0].mxu0
        %v3991 = vadd.f32 0.0, %v3990
        %v3992 = vpop.f32.mrb[0].mxu0
        %3993 = vmatprep.mubr.bf16.mxu0 0
        %3994 = vmatmul.mubr.bf16.gmra.mrb[0].mxu0 %v3894
        %v3995 = vpop.f32.mrb[0].mxu0
        %v3996 = vadd.f32 0.0, %v3995
        %v3997 = vpop.f32.mrb[0].mxu0
        %v3998 = vpop.f32.mrb[0].mxu0
        %v3999 = vadd.f32 0.0, %v3998
        %v4000 = vpop.f32.mrb[0].mxu0
        %4001 = vmatprep.mubr.bf16.mxu0 0
        %4002 = vmatmul.mubr.bf16.gmra.mrb[0].mxu0 %v3897
        %v4003 = vpop.f32.mrb[0].mxu0
        %v4004 = vadd.f32 0.0, %v4003
        %v4005 = vpop.f32.mrb[0].mxu0
        %v4006 = vpop.f32.mrb[0].mxu0
        %v4007 = vadd.f32 0.0, %v4006
        %v4008 = vpop.f32.mrb[0].mxu0
        %4009 = vmatprep.mubr.bf16.mxu0 0
        %4010 = vmatmul.mubr.bf16.gmra.mrb[0].mxu0 %v3900
        %v4011 = vpop.f32.mrb[0].mxu0
        %v4012 = vadd.f32 0.0, %v4011
        %v4013 = vpop.f32.mrb[0].mxu0
        %v4014 = vpop.f32.mrb[0].mxu0
        %v4015 = vadd.f32 0.0, %v4014
        %v4016 = vpop.f32.mrb[0].mxu0
        %4017 = vmatprep.mubr.bf16.mxu0 0
        %4018 = vmatmul.mubr.bf16.gmra.mrb[0].mxu0 %v3903
        %v4019 = vpop.f32.mrb[0].mxu0
        %v4020 = vadd.f32 0.0, %v4019
        %v4021 = vpop.f32.mrb[0].mxu0
        %v4022 = vpop.f32.mrb[0].mxu0
        %v4023 = vadd.f32 0.0, %v4022
        %v4024 = vpop.f32.mrb[0].mxu0
        %4025 = vdwg.mxu0
        %v4026 = vsel %vm2851, %v3964, -1e+30
        %v4027 = vsel %vm2852, %v3967, -1e+30
        %v4028 = vsel %vm2853, %v3972, -1e+30
        %v4029 = vsel %vm2854, %v3975, -1e+30
        %v4030 = vsel %vm2855, %v3980, -1e+30
        %v4031 = vsel %vm2856, %v3983, -1e+30
        %v4032 = vsel %vm2857, %v3988, -1e+30
        %v4033 = vsel %vm2858, %v3991, -1e+30
        %v4034 = vsel %vm2859, %v3996, -1e+30
        %v4035 = vsel %vm2860, %v3999, -1e+30
        %v4036 = vsel %vm2861, %v4004, -1e+30
        %v4037 = vsel %vm2862, %v4007, -1e+30
        %v4038 = vsel %vm2863, %v4012, -1e+30
        %v4039 = vsel %vm2864, %v4015, -1e+30
        %v4040 = vsel %vm2865, %v4020, -1e+30
        %v4041 = vsel %vm2866, %v4023, -1e+30
        %4042 = vmax.xlane.f32.xlu0 %v4026
        %v4043 = vpop.xlane.xlu0 %4042
        %4044 = vmax.xlane.f32.xlu0 %v4027
        %v4045 = vpop.xlane.xlu0 %4044
        %4046 = vmax.xlane.f32.xlu0 %v4028
        %v4047 = vpop.xlane.xlu0 %4046
        %4048 = vmax.xlane.f32.xlu0 %v4029
        %v4049 = vpop.xlane.xlu0 %4048
        %4050 = vmax.xlane.f32.xlu0 %v4030
        %v4051 = vpop.xlane.xlu0 %4050
        %4052 = vmax.xlane.f32.xlu0 %v4031
        %v4053 = vpop.xlane.xlu0 %4052
        %4054 = vmax.xlane.f32.xlu0 %v4032
        %v4055 = vpop.xlane.xlu0 %4054
        %4056 = vmax.xlane.f32.xlu0 %v4033
        %v4057 = vpop.xlane.xlu0 %4056
        %4058 = vmax.xlane.f32.xlu0 %v4034
        %v4059 = vpop.xlane.xlu0 %4058
        %4060 = vmax.xlane.f32.xlu0 %v4035
        %v4061 = vpop.xlane.xlu0 %4060
        %4062 = vmax.xlane.f32.xlu0 %v4036
        %v4063 = vpop.xlane.xlu0 %4062
        %4064 = vmax.xlane.f32.xlu0 %v4037
        %v4065 = vpop.xlane.xlu0 %4064
        %4066 = vmax.xlane.f32.xlu0 %v4038
        %v4067 = vpop.xlane.xlu0 %4066
        %4068 = vmax.xlane.f32.xlu0 %v4039
        %v4069 = vpop.xlane.xlu0 %4068
        %4070 = vmax.xlane.f32.xlu0 %v4040
        %v4071 = vpop.xlane.xlu0 %4070
        %4072 = vmax.xlane.f32.xlu0 %v4041
        %v4073 = vpop.xlane.xlu0 %4072
        %v4074 = vsub.f32 %v4026, %v4043
        %v4075 = vsub.f32 %v4027, %v4045
        %v4076 = vsub.f32 %v4028, %v4047
        %v4077 = vsub.f32 %v4029, %v4049
        %v4078 = vsub.f32 %v4030, %v4051
        %v4079 = vsub.f32 %v4031, %v4053
        %v4080 = vsub.f32 %v4032, %v4055
        %v4081 = vsub.f32 %v4033, %v4057
        %v4082 = vsub.f32 %v4034, %v4059
        %v4083 = vsub.f32 %v4035, %v4061
        %v4084 = vsub.f32 %v4036, %v4063
        %v4085 = vsub.f32 %v4037, %v4065
        %v4086 = vsub.f32 %v4038, %v4067
        %v4087 = vsub.f32 %v4039, %v4069
        %v4088 = vsub.f32 %v4040, %v4071
        %v4089 = vsub.f32 %v4041, %v4073
        %v4090 = vpack.c.bf16 %v4075, %v4074
        %v4091 = vpack.c.bf16 %v4077, %v4076
        %v4092 = vpack.c.bf16 %v4079, %v4078
        %v4093 = vpack.c.bf16 %v4081, %v4080
        %v4094 = vpack.c.bf16 %v4083, %v4082
        %v4095 = vpack.c.bf16 %v4085, %v4084
        %v4096 = vpack.c.bf16 %v4087, %v4086
        %v4097 = vpack.c.bf16 %v4089, %v4088
        %v4099 = vmul.bf16 %v4090, 1069105081
        %v4100 = vpow.bf16.pop %v4099
        %v4102 = vmul.bf16 %v4091, 1069105081
        %v4103 = vpow.bf16.pop %v4102
        %v4105 = vmul.bf16 %v4092, 1069105081
        %v4106 = vpow.bf16.pop %v4105
        %v4108 = vmul.bf16 %v4093, 1069105081
        %v4109 = vpow.bf16.pop %v4108
        %v4111 = vmul.bf16 %v4094, 1069105081
        %v4112 = vpow.bf16.pop %v4111
        %v4114 = vmul.bf16 %v4095, 1069105081
        %v4115 = vpow.bf16.pop %v4114
        %v4117 = vmul.bf16 %v4096, 1069105081
        %v4118 = vpow.bf16.pop %v4117
        %v4120 = vmul.bf16 %v4097, 1069105081
        %v4121 = vpow.bf16.pop %v4120
        %v4122 = vunpack.c.l.bf16 %v4100
        %v4123 = vunpack.c.h.bf16 %v4100
        %v4124 = vunpack.c.l.bf16 %v4103
        %v4125 = vunpack.c.h.bf16 %v4103
        %v4126 = vunpack.c.l.bf16 %v4106
        %v4127 = vunpack.c.h.bf16 %v4106
        %v4128 = vunpack.c.l.bf16 %v4109
        %v4129 = vunpack.c.h.bf16 %v4109
        %v4130 = vunpack.c.l.bf16 %v4112
        %v4131 = vunpack.c.h.bf16 %v4112
        %v4132 = vunpack.c.l.bf16 %v4115
        %v4133 = vunpack.c.h.bf16 %v4115
        %v4134 = vunpack.c.l.bf16 %v4118
        %v4135 = vunpack.c.h.bf16 %v4118
        %v4136 = vunpack.c.l.bf16 %v4121
        %v4137 = vunpack.c.h.bf16 %v4121
        %4138 = vadd.xlane.f32.xlu0 %v4122
        %v4139 = vpop.xlane.xlu0 %4138
        %4140 = vadd.xlane.f32.xlu0 %v4123
        %v4141 = vpop.xlane.xlu0 %4140
        %4142 = vadd.xlane.f32.xlu0 %v4124
        %v4143 = vpop.xlane.xlu0 %4142
        %4144 = vadd.xlane.f32.xlu0 %v4125
        %v4145 = vpop.xlane.xlu0 %4144
        %4146 = vadd.xlane.f32.xlu0 %v4126
        %v4147 = vpop.xlane.xlu0 %4146
        %4148 = vadd.xlane.f32.xlu0 %v4127
        %v4149 = vpop.xlane.xlu0 %4148
        %4150 = vadd.xlane.f32.xlu0 %v4128
        %v4151 = vpop.xlane.xlu0 %4150
        %4152 = vadd.xlane.f32.xlu0 %v4129
        %v4153 = vpop.xlane.xlu0 %4152
        %4154 = vadd.xlane.f32.xlu0 %v4130
        %v4155 = vpop.xlane.xlu0 %4154
        %4156 = vadd.xlane.f32.xlu0 %v4131
        %v4157 = vpop.xlane.xlu0 %4156
        %4158 = vadd.xlane.f32.xlu0 %v4132
        %v4159 = vpop.xlane.xlu0 %4158
        %4160 = vadd.xlane.f32.xlu0 %v4133
        %v4161 = vpop.xlane.xlu0 %4160
        %4162 = vadd.xlane.f32.xlu0 %v4134
        %v4163 = vpop.xlane.xlu0 %4162
        %4164 = vadd.xlane.f32.xlu0 %v4135
        %v4165 = vpop.xlane.xlu0 %4164
        %4166 = vadd.xlane.f32.xlu0 %v4136
        %v4167 = vpop.xlane.xlu0 %4166
        %4168 = vadd.xlane.f32.xlu0 %v4137
        %v4169 = vpop.xlane.xlu0 %4168
        %4170 = vmatprep.subr.bf16.mxu0 0
        %4171 = vmatpush1.bf16.msra.mxu0 %v2767
        %4172 = vmatprep.subr.bf16.mxu0 0
        %4173 = vmatpush1.bf16.msra.mxu0 %v2776
        %4174 = vmatprep.subr.bf16.mxu0 0
        %4175 = vmatpush1.bf16.msra.mxu0 %v2785
        %4176 = vmatprep.subr.bf16.mxu0 0
        %4177 = vmatpush1.bf16.msra.mxu0 %v2794
        %4178 = vmatprep.subr.bf16.mxu0 0
        %4179 = vmatpush1.bf16.msra.mxu0 %v2803
        %4180 = vmatprep.subr.bf16.mxu0 0
        %4181 = vmatpush1.bf16.msra.mxu0 %v2812
        %4182 = vmatprep.subr.bf16.mxu0 0
        %4183 = vmatpush1.bf16.msra.mxu0 %v2821
        %4184 = vmatprep.subr.bf16.mxu0 0
        %4185 = vmatpush1.bf16.msra.mxu0 %v2830
        %4186 = vmatprep.subr.bf16.mxu0 0
        %4187 = vmatpush1.bf16.msra.mxu0 0
        %4188 = vmatprep.subr.bf16.mxu0 0
        %4189 = vmatpush1.bf16.msra.mxu0 0
        %4190 = vmatprep.subr.bf16.mxu0 0
        %4191 = vmatpush1.bf16.msra.mxu0 0
        %4192 = vmatprep.subr.bf16.mxu0 0
        %4193 = vmatpush1.bf16.msra.mxu0 0
        %4194 = vmatprep.subr.bf16.mxu0 0
        %4195 = vmatpush1.bf16.msra.mxu0 0
        %4196 = vmatprep.subr.bf16.mxu0 0
        %4197 = vmatpush1.bf16.msra.mxu0 0
        %4198 = vmatprep.subr.bf16.mxu0 0
        %4199 = vmatpush1.bf16.msra.mxu0 0
        %4200 = vmatprep.subr.bf16.mxu0 0
        %4201 = vmatpush1.bf16.msra.mxu0 0
        %4202 = vmatprep.mubr.bf16.mxu0 0
        %4203 = vmatmul.mubr.bf16.gmra.mrb[0].mxu0 %v4100
        %v4204 = vpop.f32.mrb[0].mxu0
        %v4205 = vadd.f32 0.0, %v4204
        %v4206 = vpop.f32.mrb[0].mxu0
        %v4207 = vpop.f32.mrb[0].mxu0
        %v4208 = vadd.f32 0.0, %v4207
        %v4209 = vpop.f32.mrb[0].mxu0
        %4210 = vmatprep.mubr.bf16.mxu0 0
        %4211 = vmatmul.mubr.bf16.gmra.mrb[0].mxu0 %v4103
        %v4212 = vpop.f32.mrb[0].mxu0
        %v4213 = vadd.f32 0.0, %v4212
        %v4214 = vpop.f32.mrb[0].mxu0
        %v4215 = vpop.f32.mrb[0].mxu0
        %v4216 = vadd.f32 0.0, %v4215
        %v4217 = vpop.f32.mrb[0].mxu0
        %4218 = vmatprep.mubr.bf16.mxu0 0
        %4219 = vmatmul.mubr.bf16.gmra.mrb[0].mxu0 %v4106
        %v4220 = vpop.f32.mrb[0].mxu0
        %v4221 = vadd.f32 0.0, %v4220
        %v4222 = vpop.f32.mrb[0].mxu0
        %v4223 = vpop.f32.mrb[0].mxu0
        %v4224 = vadd.f32 0.0, %v4223
        %v4225 = vpop.f32.mrb[0].mxu0
        %4226 = vmatprep.mubr.bf16.mxu0 0
        %4227 = vmatmul.mubr.bf16.gmra.mrb[0].mxu0 %v4109
        %v4228 = vpop.f32.mrb[0].mxu0
        %v4229 = vadd.f32 0.0, %v4228
        %v4230 = vpop.f32.mrb[0].mxu0
        %v4231 = vpop.f32.mrb[0].mxu0
        %v4232 = vadd.f32 0.0, %v4231
        %v4233 = vpop.f32.mrb[0].mxu0
        %4234 = vmatprep.mubr.bf16.mxu0 0
        %4235 = vmatmul.mubr.bf16.gmra.mrb[0].mxu0 %v4112
        %v4236 = vpop.f32.mrb[0].mxu0
        %v4237 = vadd.f32 0.0, %v4236
        %v4238 = vpop.f32.mrb[0].mxu0
        %v4239 = vpop.f32.mrb[0].mxu0
        %v4240 = vadd.f32 0.0, %v4239
        %v4241 = vpop.f32.mrb[0].mxu0
        %4242 = vmatprep.mubr.bf16.mxu0 0
        %4243 = vmatmul.mubr.bf16.gmra.mrb[0].mxu0 %v4115
        %v4244 = vpop.f32.mrb[0].mxu0
        %v4245 = vadd.f32 0.0, %v4244
        %v4246 = vpop.f32.mrb[0].mxu0
        %v4247 = vpop.f32.mrb[0].mxu0
        %v4248 = vadd.f32 0.0, %v4247
        %v4249 = vpop.f32.mrb[0].mxu0
        %4250 = vmatprep.mubr.bf16.mxu0 0
        %4251 = vmatmul.mubr.bf16.gmra.mrb[0].mxu0 %v4118
        %v4252 = vpop.f32.mrb[0].mxu0
        %v4253 = vadd.f32 0.0, %v4252
        %v4254 = vpop.f32.mrb[0].mxu0
        %v4255 = vpop.f32.mrb[0].mxu0
        %v4256 = vadd.f32 0.0, %v4255
        %v4257 = vpop.f32.mrb[0].mxu0
        %4258 = vmatprep.mubr.bf16.mxu0 0
        %4259 = vmatmul.mubr.bf16.gmra.mrb[0].mxu0 %v4121
        %v4260 = vpop.f32.mrb[0].mxu0
        %v4261 = vadd.f32 0.0, %v4260
        %v4262 = vpop.f32.mrb[0].mxu0
        %v4263 = vpop.f32.mrb[0].mxu0
        %v4264 = vadd.f32 0.0, %v4263
        %v4265 = vpop.f32.mrb[0].mxu0
        %4266 = vdwg.mxu0
        %v4267 = vrcp.pop %v4139
        %v4268 = vrcp.pop %v4141
        %v4269 = vrcp.pop %v4143
        %v4270 = vrcp.pop %v4145
        %v4271 = vrcp.pop %v4147
        %v4272 = vrcp.pop %v4149
        %v4273 = vrcp.pop %v4151
        %v4274 = vrcp.pop %v4153
        %v4275 = vrcp.pop %v4155
        %v4276 = vrcp.pop %v4157
        %v4277 = vrcp.pop %v4159
        %v4278 = vrcp.pop %v4161
        %v4279 = vrcp.pop %v4163
        %v4280 = vrcp.pop %v4165
        %v4281 = vrcp.pop %v4167
        %v4282 = vrcp.pop %v4169
        %v4283 = vmul.f32 %v4205, %v4267
        %v4284 = vmul.f32 %v4208, %v4268
        %v4285 = vmul.f32 %v4213, %v4269
        %v4286 = vmul.f32 %v4216, %v4270
        %v4287 = vmul.f32 %v4221, %v4271
        %v4288 = vmul.f32 %v4224, %v4272
        %v4289 = vmul.f32 %v4229, %v4273
        %v4290 = vmul.f32 %v4232, %v4274
        %v4291 = vmul.f32 %v4237, %v4275
        %v4292 = vmul.f32 %v4240, %v4276
        %v4293 = vmul.f32 %v4245, %v4277
        %v4294 = vmul.f32 %v4248, %v4278
        %v4295 = vmul.f32 %v4253, %v4279
        %v4296 = vmul.f32 %v4256, %v4280
        %v4297 = vmul.f32 %v4261, %v4281
        %v4298 = vmul.f32 %v4264, %v4282
        %4299 = vst.msk [vmem:[#allocation2 + $0x8] sm:$0xff] %vm2867, %v4283
        %4300 = vst.msk [vmem:[#allocation2 + $0x20] sm:$0xff] %vm2867, %v4284
        %4301 = vst.msk [vmem:[#allocation2 + $0x38] sm:$0xff] %vm2867, %v4285
        %4302 = vst.msk [vmem:[#allocation2 + $0x50] sm:$0xff] %vm2867, %v4286
        %4303 = vst.msk [vmem:[#allocation2 + $0x68] sm:$0xff] %vm2867, %v4287
        %4304 = vst.msk [vmem:[#allocation2 + $0x80] sm:$0xff] %vm2867, %v4288
        %4305 = vst.msk [vmem:[#allocation2 + $0x98] sm:$0xff] %vm2867, %v4289
        %4306 = vst.msk [vmem:[#allocation2 + $0xb0] sm:$0xff] %vm2867, %v4290
        %4307 = vst.msk [vmem:[#allocation2 + $0xc8] sm:$0xff] %vm2867, %v4291
        %4308 = vst.msk [vmem:[#allocation2 + $0xe0] sm:$0xff] %vm2867, %v4292
        %4309 = vst.msk [vmem:[#allocation2 + $0xf8] sm:$0xff] %vm2867, %v4293
        %4310 = vst.msk [vmem:[#allocation2 + $0x110] sm:$0xff] %vm2867, %v4294
        %4311 = vst.msk [vmem:[#allocation2 + $0x128] sm:$0xff] %vm2867, %v4295
        %4312 = vst.msk [vmem:[#allocation2 + $0x140] sm:$0xff] %vm2867, %v4296
        %4313 = vst.msk [vmem:[#allocation2 + $0x158] sm:$0xff] %vm2867, %v4297
        %4314 = vst.msk [vmem:[#allocation2 + $0x170] sm:$0xff] %vm2867, %v4298
        %4323 = vrot.lane.b32.xlu0 %v2761, 64
        %v4324 = vpop.permute.xlu0 %4323
        %4325 = vrot.lane.b32.xlu0 %v2770, 64
        %v4326 = vpop.permute.xlu0 %4325
        %4327 = vrot.lane.b32.xlu0 %v2779, 64
        %v4328 = vpop.permute.xlu0 %4327
        %4329 = vrot.lane.b32.xlu0 %v2788, 64
        %v4330 = vpop.permute.xlu0 %4329
        %4331 = vrot.lane.b32.xlu0 %v2797, 64
        %v4332 = vpop.permute.xlu0 %4331
        %4333 = vrot.lane.b32.xlu0 %v2806, 64
        %v4334 = vpop.permute.xlu0 %4333
        %4335 = vrot.lane.b32.xlu0 %v2815, 64
        %v4336 = vpop.permute.xlu0 %4335
        %4337 = vrot.lane.b32.xlu0 %v2824, 64
        %v4338 = vpop.permute.xlu0 %4337
        %4347 = vrot.lane.b32.xlu0 %v2764, 64
        %v4348 = vpop.permute.xlu0 %4347
        %4349 = vrot.lane.b32.xlu0 %v2773, 64
        %v4350 = vpop.permute.xlu0 %4349
        %4351 = vrot.lane.b32.xlu0 %v2782, 64
        %v4352 = vpop.permute.xlu0 %4351
        %4353 = vrot.lane.b32.xlu0 %v2791, 64
        %v4354 = vpop.permute.xlu0 %4353
        %4355 = vrot.lane.b32.xlu0 %v2800, 64
        %v4356 = vpop.permute.xlu0 %4355
        %4357 = vrot.lane.b32.xlu0 %v2809, 64
        %v4358 = vpop.permute.xlu0 %4357
        %4359 = vrot.lane.b32.xlu0 %v2818, 64
        %v4360 = vpop.permute.xlu0 %4359
        %4361 = vrot.lane.b32.xlu0 %v2827, 64
        %v4362 = vpop.permute.xlu0 %4361
        %v4364 = vsel %vm2867, %v4324, 0
        %v4367 = vsel %vm2867, %v4326, 0
        %v4370 = vsel %vm2867, %v4328, 0
        %v4373 = vsel %vm2867, %v4330, 0
        %v4376 = vsel %vm2867, %v4332, 0
        %v4379 = vsel %vm2867, %v4334, 0
        %v4382 = vsel %vm2867, %v4336, 0
        %v4385 = vsel %vm2867, %v4338, 0
        %v4388 = vsel %vm2867, %v4348, 0
        %v4391 = vsel %vm2867, %v4350, 0
        %v4394 = vsel %vm2867, %v4352, 0
        %v4397 = vsel %vm2867, %v4354, 0
        %v4400 = vsel %vm2867, %v4356, 0
        %v4403 = vsel %vm2867, %v4358, 0
        %v4406 = vsel %vm2867, %v4360, 0
        %v4409 = vsel %vm2867, %v4362, 0
        %4411 = vmatprep.subr.bf16.mxu0 0
        %4412 = vmatpush1.bf16.xpose.msra.mxu0 %v4388
        %4413 = vmatprep.subr.bf16.mxu0 0
        %4414 = vmatpush1.bf16.xpose.msra.mxu0 %v4391
        %4415 = vmatprep.subr.bf16.mxu0 0
        %4416 = vmatpush1.bf16.xpose.msra.mxu0 %v4394
        %4417 = vmatprep.subr.bf16.mxu0 0
        %4418 = vmatpush1.bf16.xpose.msra.mxu0 %v4397
        %4419 = vmatprep.subr.bf16.mxu0 0
        %4420 = vmatpush1.bf16.xpose.msra.mxu0 %v4400
        %4421 = vmatprep.subr.bf16.mxu0 0
        %4422 = vmatpush1.bf16.xpose.msra.mxu0 %v4403
        %4423 = vmatprep.subr.bf16.mxu0 0
        %4424 = vmatpush1.bf16.xpose.msra.mxu0 %v4406
        %4425 = vmatprep.subr.bf16.mxu0 0
        %4426 = vmatpush1.bf16.xpose.msra.mxu0 %v4409
        %4427 = vmatprep.subr.bf16.mxu0 0
        %4428 = vmatpush1.bf16.xpose.msra.mxu0 0
        %4429 = vmatprep.subr.bf16.mxu0 0
        %4430 = vmatpush1.bf16.xpose.msra.mxu0 0
        %4431 = vmatprep.subr.bf16.mxu0 0
        %4432 = vmatpush1.bf16.xpose.msra.mxu0 0
        %4433 = vmatprep.subr.bf16.mxu0 0
        %4434 = vmatpush1.bf16.xpose.msra.mxu0 0
        %4435 = vmatprep.subr.bf16.mxu0 0
        %4436 = vmatpush1.bf16.xpose.msra.mxu0 0
        %4437 = vmatprep.subr.bf16.mxu0 0
        %4438 = vmatpush1.bf16.xpose.msra.mxu0 0
        %4439 = vmatprep.subr.bf16.mxu0 0
        %4440 = vmatpush1.bf16.xpose.msra.mxu0 0
        %4441 = vmatprep.subr.bf16.mxu0 0
        %4442 = vmatpush1.bf16.xpose.msra.mxu0 0
        %4443 = vmatprep.mubr.bf16.mxu0 0
        %4444 = vmatmul.mubr.bf16.gmra.mrb[0].mxu0 %v4364
        %v4445 = vpop.f32.mrb[0].mxu0
        %v4446 = vadd.f32 0.0, %v4445
        %v4447 = vpop.f32.mrb[0].mxu0
        %v4448 = vpop.f32.mrb[0].mxu0
        %v4449 = vadd.f32 0.0, %v4448
        %v4450 = vpop.f32.mrb[0].mxu0
        %4451 = vmatprep.mubr.bf16.mxu0 0
        %4452 = vmatmul.mubr.bf16.gmra.mrb[0].mxu0 %v4367
        %v4453 = vpop.f32.mrb[0].mxu0
        %v4454 = vadd.f32 0.0, %v4453
        %v4455 = vpop.f32.mrb[0].mxu0
        %v4456 = vpop.f32.mrb[0].mxu0
        %v4457 = vadd.f32 0.0, %v4456
        %v4458 = vpop.f32.mrb[0].mxu0
        %4459 = vmatprep.mubr.bf16.mxu0 0
        %4460 = vmatmul.mubr.bf16.gmra.mrb[0].mxu0 %v4370
        %v4461 = vpop.f32.mrb[0].mxu0
        %v4462 = vadd.f32 0.0, %v4461
        %v4463 = vpop.f32.mrb[0].mxu0
        %v4464 = vpop.f32.mrb[0].mxu0
        %v4465 = vadd.f32 0.0, %v4464
        %v4466 = vpop.f32.mrb[0].mxu0
        %4467 = vmatprep.mubr.bf16.mxu0 0
        %4468 = vmatmul.mubr.bf16.gmra.mrb[0].mxu0 %v4373
        %v4469 = vpop.f32.mrb[0].mxu0
        %v4470 = vadd.f32 0.0, %v4469
        %v4471 = vpop.f32.mrb[0].mxu0
        %v4472 = vpop.f32.mrb[0].mxu0
        %v4473 = vadd.f32 0.0, %v4472
        %v4474 = vpop.f32.mrb[0].mxu0
        %4475 = vmatprep.mubr.bf16.mxu0 0
        %4476 = vmatmul.mubr.bf16.gmra.mrb[0].mxu0 %v4376
        %v4477 = vpop.f32.mrb[0].mxu0
        %v4478 = vadd.f32 0.0, %v4477
        %v4479 = vpop.f32.mrb[0].mxu0
        %v4480 = vpop.f32.mrb[0].mxu0
        %v4481 = vadd.f32 0.0, %v4480
        %v4482 = vpop.f32.mrb[0].mxu0
        %4483 = vmatprep.mubr.bf16.mxu0 0
        %4484 = vmatmul.mubr.bf16.gmra.mrb[0].mxu0 %v4379
        %v4485 = vpop.f32.mrb[0].mxu0
        %v4486 = vadd.f32 0.0, %v4485
        %v4487 = vpop.f32.mrb[0].mxu0
        %v4488 = vpop.f32.mrb[0].mxu0
        %v4489 = vadd.f32 0.0, %v4488
        %v4490 = vpop.f32.mrb[0].mxu0
        %4491 = vmatprep.mubr.bf16.mxu0 0
        %4492 = vmatmul.mubr.bf16.gmra.mrb[0].mxu0 %v4382
        %v4493 = vpop.f32.mrb[0].mxu0
        %v4494 = vadd.f32 0.0, %v4493
        %v4495 = vpop.f32.mrb[0].mxu0
        %v4496 = vpop.f32.mrb[0].mxu0
        %v4497 = vadd.f32 0.0, %v4496
        %v4498 = vpop.f32.mrb[0].mxu0
        %4499 = vmatprep.mubr.bf16.mxu0 0
        %4500 = vmatmul.mubr.bf16.gmra.mrb[0].mxu0 %v4385
        %v4501 = vpop.f32.mrb[0].mxu0
        %v4502 = vadd.f32 0.0, %v4501
        %v4503 = vpop.f32.mrb[0].mxu0
        %v4504 = vpop.f32.mrb[0].mxu0
        %v4505 = vadd.f32 0.0, %v4504
        %v4506 = vpop.f32.mrb[0].mxu0
        %4507 = vdwg.mxu0
        %v4508 = vsel %vm2851, %v4446, -1e+30
        %v4509 = vsel %vm2852, %v4449, -1e+30
        %v4510 = vsel %vm2853, %v4454, -1e+30
        %v4511 = vsel %vm2854, %v4457, -1e+30
        %v4512 = vsel %vm2855, %v4462, -1e+30
        %v4513 = vsel %vm2856, %v4465, -1e+30
        %v4514 = vsel %vm2857, %v4470, -1e+30
        %v4515 = vsel %vm2858, %v4473, -1e+30
        %v4516 = vsel %vm2859, %v4478, -1e+30
        %v4517 = vsel %vm2860, %v4481, -1e+30
        %v4518 = vsel %vm2861, %v4486, -1e+30
        %v4519 = vsel %vm2862, %v4489, -1e+30
        %v4520 = vsel %vm2863, %v4494, -1e+30
        %v4521 = vsel %vm2864, %v4497, -1e+30
        %v4522 = vsel %vm2865, %v4502, -1e+30
        %v4523 = vsel %vm2866, %v4505, -1e+30
        %4524 = vmax.xlane.f32.xlu0 %v4508
        %v4525 = vpop.xlane.xlu0 %4524
        %4526 = vmax.xlane.f32.xlu0 %v4509
        %v4527 = vpop.xlane.xlu0 %4526
        %4528 = vmax.xlane.f32.xlu0 %v4510
        %v4529 = vpop.xlane.xlu0 %4528
        %4530 = vmax.xlane.f32.xlu0 %v4511
        %v4531 = vpop.xlane.xlu0 %4530
        %4532 = vmax.xlane.f32.xlu0 %v4512
        %v4533 = vpop.xlane.xlu0 %4532
        %4534 = vmax.xlane.f32.xlu0 %v4513
        %v4535 = vpop.xlane.xlu0 %4534
        %4536 = vmax.xlane.f32.xlu0 %v4514
        %v4537 = vpop.xlane.xlu0 %4536
        %4538 = vmax.xlane.f32.xlu0 %v4515
        %v4539 = vpop.xlane.xlu0 %4538
        %4540 = vmax.xlane.f32.xlu0 %v4516
        %v4541 = vpop.xlane.xlu0 %4540
        %4542 = vmax.xlane.f32.xlu0 %v4517
        %v4543 = vpop.xlane.xlu0 %4542
        %4544 = vmax.xlane.f32.xlu0 %v4518
        %v4545 = vpop.xlane.xlu0 %4544
        %4546 = vmax.xlane.f32.xlu0 %v4519
        %v4547 = vpop.xlane.xlu0 %4546
        %4548 = vmax.xlane.f32.xlu0 %v4520
        %v4549 = vpop.xlane.xlu0 %4548
        %4550 = vmax.xlane.f32.xlu0 %v4521
        %v4551 = vpop.xlane.xlu0 %4550
        %4552 = vmax.xlane.f32.xlu0 %v4522
        %v4553 = vpop.xlane.xlu0 %4552
        %4554 = vmax.xlane.f32.xlu0 %v4523
        %v4555 = vpop.xlane.xlu0 %4554
        %v4556 = vsub.f32 %v4508, %v4525
        %v4557 = vsub.f32 %v4509, %v4527
        %v4558 = vsub.f32 %v4510, %v4529
        %v4559 = vsub.f32 %v4511, %v4531
        %v4560 = vsub.f32 %v4512, %v4533
        %v4561 = vsub.f32 %v4513, %v4535
        %v4562 = vsub.f32 %v4514, %v4537
        %v4563 = vsub.f32 %v4515, %v4539
        %v4564 = vsub.f32 %v4516, %v4541
        %v4565 = vsub.f32 %v4517, %v4543
        %v4566 = vsub.f32 %v4518, %v4545
        %v4567 = vsub.f32 %v4519, %v4547
        %v4568 = vsub.f32 %v4520, %v4549
        %v4569 = vsub.f32 %v4521, %v4551
        %v4570 = vsub.f32 %v4522, %v4553
        %v4571 = vsub.f32 %v4523, %v4555
        %v4572 = vpack.c.bf16 %v4557, %v4556
        %v4573 = vpack.c.bf16 %v4559, %v4558
        %v4574 = vpack.c.bf16 %v4561, %v4560
        %v4575 = vpack.c.bf16 %v4563, %v4562
        %v4576 = vpack.c.bf16 %v4565, %v4564
        %v4577 = vpack.c.bf16 %v4567, %v4566
        %v4578 = vpack.c.bf16 %v4569, %v4568
        %v4579 = vpack.c.bf16 %v4571, %v4570
        %v4581 = vmul.bf16 %v4572, 1069105081
        %v4582 = vpow.bf16.pop %v4581
        %v4584 = vmul.bf16 %v4573, 1069105081
        %v4585 = vpow.bf16.pop %v4584
        %v4587 = vmul.bf16 %v4574, 1069105081
        %v4588 = vpow.bf16.pop %v4587
        %v4590 = vmul.bf16 %v4575, 1069105081
        %v4591 = vpow.bf16.pop %v4590
        %v4593 = vmul.bf16 %v4576, 1069105081
        %v4594 = vpow.bf16.pop %v4593
        %v4596 = vmul.bf16 %v4577, 1069105081
        %v4597 = vpow.bf16.pop %v4596
        %v4599 = vmul.bf16 %v4578, 1069105081
        %v4600 = vpow.bf16.pop %v4599
        %v4602 = vmul.bf16 %v4579, 1069105081
        %v4603 = vpow.bf16.pop %v4602
        %v4604 = vunpack.c.l.bf16 %v4582
        %v4605 = vunpack.c.h.bf16 %v4582
        %v4606 = vunpack.c.l.bf16 %v4585
        %v4607 = vunpack.c.h.bf16 %v4585
        %v4608 = vunpack.c.l.bf16 %v4588
        %v4609 = vunpack.c.h.bf16 %v4588
        %v4610 = vunpack.c.l.bf16 %v4591
        %v4611 = vunpack.c.h.bf16 %v4591
        %v4612 = vunpack.c.l.bf16 %v4594
        %v4613 = vunpack.c.h.bf16 %v4594
        %v4614 = vunpack.c.l.bf16 %v4597
        %v4615 = vunpack.c.h.bf16 %v4597
        %v4616 = vunpack.c.l.bf16 %v4600
        %v4617 = vunpack.c.h.bf16 %v4600
        %v4618 = vunpack.c.l.bf16 %v4603
        %v4619 = vunpack.c.h.bf16 %v4603
        %4620 = vadd.xlane.f32.xlu0 %v4604
        %v4621 = vpop.xlane.xlu0 %4620
        %4622 = vadd.xlane.f32.xlu0 %v4605
        %v4623 = vpop.xlane.xlu0 %4622
        %4624 = vadd.xlane.f32.xlu0 %v4606
        %v4625 = vpop.xlane.xlu0 %4624
        %4626 = vadd.xlane.f32.xlu0 %v4607
        %v4627 = vpop.xlane.xlu0 %4626
        %4628 = vadd.xlane.f32.xlu0 %v4608
        %v4629 = vpop.xlane.xlu0 %4628
        %4630 = vadd.xlane.f32.xlu0 %v4609
        %v4631 = vpop.xlane.xlu0 %4630
        %4632 = vadd.xlane.f32.xlu0 %v4610
        %v4633 = vpop.xlane.xlu0 %4632
        %4634 = vadd.xlane.f32.xlu0 %v4611
        %v4635 = vpop.xlane.xlu0 %4634
        %4636 = vadd.xlane.f32.xlu0 %v4612
        %v4637 = vpop.xlane.xlu0 %4636
        %4638 = vadd.xlane.f32.xlu0 %v4613
        %v4639 = vpop.xlane.xlu0 %4638
        %4640 = vadd.xlane.f32.xlu0 %v4614
        %v4641 = vpop.xlane.xlu0 %4640
        %4642 = vadd.xlane.f32.xlu0 %v4615
        %v4643 = vpop.xlane.xlu0 %4642
        %4644 = vadd.xlane.f32.xlu0 %v4616
        %v4645 = vpop.xlane.xlu0 %4644
        %4646 = vadd.xlane.f32.xlu0 %v4617
        %v4647 = vpop.xlane.xlu0 %4646
        %4648 = vadd.xlane.f32.xlu0 %v4618
        %v4649 = vpop.xlane.xlu0 %4648
        %4650 = vadd.xlane.f32.xlu0 %v4619
        %v4651 = vpop.xlane.xlu0 %4650
        %4660 = vrot.lane.b32.xlu0 %v2767, 64
        %v4661 = vpop.permute.xlu0 %4660
        %4662 = vrot.lane.b32.xlu0 %v2776, 64
        %v4663 = vpop.permute.xlu0 %4662
        %4664 = vrot.lane.b32.xlu0 %v2785, 64
        %v4665 = vpop.permute.xlu0 %4664
        %4666 = vrot.lane.b32.xlu0 %v2794, 64
        %v4667 = vpop.permute.xlu0 %4666
        %4668 = vrot.lane.b32.xlu0 %v2803, 64
        %v4669 = vpop.permute.xlu0 %4668
        %4670 = vrot.lane.b32.xlu0 %v2812, 64
        %v4671 = vpop.permute.xlu0 %4670
        %4672 = vrot.lane.b32.xlu0 %v2821, 64
        %v4673 = vpop.permute.xlu0 %4672
        %4674 = vrot.lane.b32.xlu0 %v2830, 64
        %v4675 = vpop.permute.xlu0 %4674
        %4684 = vmatprep.subr.bf16.mxu0 0
        %4685 = vmatpush1.bf16.msra.mxu0 %v4661
        %4686 = vmatprep.subr.bf16.mxu0 0
        %4687 = vmatpush1.bf16.msra.mxu0 %v4663
        %4688 = vmatprep.subr.bf16.mxu0 0
        %4689 = vmatpush1.bf16.msra.mxu0 %v4665
        %4690 = vmatprep.subr.bf16.mxu0 0
        %4691 = vmatpush1.bf16.msra.mxu0 %v4667
        %4692 = vmatprep.subr.bf16.mxu0 0
        %4693 = vmatpush1.bf16.msra.mxu0 %v4669
        %4694 = vmatprep.subr.bf16.mxu0 0
        %4695 = vmatpush1.bf16.msra.mxu0 %v4671
        %4696 = vmatprep.subr.bf16.mxu0 0
        %4697 = vmatpush1.bf16.msra.mxu0 %v4673
        %4698 = vmatprep.subr.bf16.mxu0 0
        %4699 = vmatpush1.bf16.msra.mxu0 %v4675
        %4700 = vmatprep.subr.bf16.mxu0 0
        %4701 = vmatpush1.bf16.msra.mxu0 0
        %4702 = vmatprep.subr.bf16.mxu0 0
        %4703 = vmatpush1.bf16.msra.mxu0 0
        %4704 = vmatprep.subr.bf16.mxu0 0
        %4705 = vmatpush1.bf16.msra.mxu0 0
        %4706 = vmatprep.subr.bf16.mxu0 0
        %4707 = vmatpush1.bf16.msra.mxu0 0
        %4708 = vmatprep.subr.bf16.mxu0 0
        %4709 = vmatpush1.bf16.msra.mxu0 0
        %4710 = vmatprep.subr.bf16.mxu0 0
        %4711 = vmatpush1.bf16.msra.mxu0 0
        %4712 = vmatprep.subr.bf16.mxu0 0
        %4713 = vmatpush1.bf16.msra.mxu0 0
        %4714 = vmatprep.subr.bf16.mxu0 0
        %4715 = vmatpush1.bf16.msra.mxu0 0
        %4716 = vmatprep.mubr.bf16.mxu0 0
        %4717 = vmatmul.mubr.bf16.gmra.mrb[0].mxu0 %v4582
        %v4718 = vpop.f32.mrb[0].mxu0
        %v4719 = vadd.f32 0.0, %v4718
        %v4720 = vpop.f32.mrb[0].mxu0
        %v4721 = vpop.f32.mrb[0].mxu0
        %v4722 = vadd.f32 0.0, %v4721
        %v4723 = vpop.f32.mrb[0].mxu0
        %4724 = vmatprep.mubr.bf16.mxu0 0
        %4725 = vmatmul.mubr.bf16.gmra.mrb[0].mxu0 %v4585
        %v4726 = vpop.f32.mrb[0].mxu0
        %v4727 = vadd.f32 0.0, %v4726
        %v4728 = vpop.f32.mrb[0].mxu0
        %v4729 = vpop.f32.mrb[0].mxu0
        %v4730 = vadd.f32 0.0, %v4729
        %v4731 = vpop.f32.mrb[0].mxu0
        %4732 = vmatprep.mubr.bf16.mxu0 0
        %4733 = vmatmul.mubr.bf16.gmra.mrb[0].mxu0 %v4588
        %v4734 = vpop.f32.mrb[0].mxu0
        %v4735 = vadd.f32 0.0, %v4734
        %v4736 = vpop.f32.mrb[0].mxu0
        %v4737 = vpop.f32.mrb[0].mxu0
        %v4738 = vadd.f32 0.0, %v4737
        %v4739 = vpop.f32.mrb[0].mxu0
        %4740 = vmatprep.mubr.bf16.mxu0 0
        %4741 = vmatmul.mubr.bf16.gmra.mrb[0].mxu0 %v4591
        %v4742 = vpop.f32.mrb[0].mxu0
        %v4743 = vadd.f32 0.0, %v4742
        %v4744 = vpop.f32.mrb[0].mxu0
        %v4745 = vpop.f32.mrb[0].mxu0
        %v4746 = vadd.f32 0.0, %v4745
        %v4747 = vpop.f32.mrb[0].mxu0
        %4748 = vmatprep.mubr.bf16.mxu0 0
        %4749 = vmatmul.mubr.bf16.gmra.mrb[0].mxu0 %v4594
        %v4750 = vpop.f32.mrb[0].mxu0
        %v4751 = vadd.f32 0.0, %v4750
        %v4752 = vpop.f32.mrb[0].mxu0
        %v4753 = vpop.f32.mrb[0].mxu0
        %v4754 = vadd.f32 0.0, %v4753
        %v4755 = vpop.f32.mrb[0].mxu0
        %4756 = vmatprep.mubr.bf16.mxu0 0
        %4757 = vmatmul.mubr.bf16.gmra.mrb[0].mxu0 %v4597
        %v4758 = vpop.f32.mrb[0].mxu0
        %v4759 = vadd.f32 0.0, %v4758
        %v4760 = vpop.f32.mrb[0].mxu0
        %v4761 = vpop.f32.mrb[0].mxu0
        %v4762 = vadd.f32 0.0, %v4761
        %v4763 = vpop.f32.mrb[0].mxu0
        %4764 = vmatprep.mubr.bf16.mxu0 0
        %4765 = vmatmul.mubr.bf16.gmra.mrb[0].mxu0 %v4600
        %v4766 = vpop.f32.mrb[0].mxu0
        %v4767 = vadd.f32 0.0, %v4766
        %v4768 = vpop.f32.mrb[0].mxu0
        %v4769 = vpop.f32.mrb[0].mxu0
        %v4770 = vadd.f32 0.0, %v4769
        %v4771 = vpop.f32.mrb[0].mxu0
        %4772 = vmatprep.mubr.bf16.mxu0 0
        %4773 = vmatmul.mubr.bf16.gmra.mrb[0].mxu0 %v4603
        %v4774 = vpop.f32.mrb[0].mxu0
        %v4775 = vadd.f32 0.0, %v4774
        %v4776 = vpop.f32.mrb[0].mxu0
        %v4777 = vpop.f32.mrb[0].mxu0
        %v4778 = vadd.f32 0.0, %v4777
        %v4779 = vpop.f32.mrb[0].mxu0
        %4780 = vdwg.mxu0
        %v4781 = vrcp.pop %v4621
        %v4782 = vrcp.pop %v4623
        %v4783 = vrcp.pop %v4625
        %v4784 = vrcp.pop %v4627
        %v4785 = vrcp.pop %v4629
        %v4786 = vrcp.pop %v4631
        %v4787 = vrcp.pop %v4633
        %v4788 = vrcp.pop %v4635
        %v4789 = vrcp.pop %v4637
        %v4790 = vrcp.pop %v4639
        %v4791 = vrcp.pop %v4641
        %v4792 = vrcp.pop %v4643
        %v4793 = vrcp.pop %v4645
        %v4794 = vrcp.pop %v4647
        %v4795 = vrcp.pop %v4649
        %v4796 = vrcp.pop %v4651
        %v4797 = vmul.f32 %v4719, %v4781
        %v4798 = vmul.f32 %v4722, %v4782
        %v4799 = vmul.f32 %v4727, %v4783
        %v4800 = vmul.f32 %v4730, %v4784
        %v4801 = vmul.f32 %v4735, %v4785
        %v4802 = vmul.f32 %v4738, %v4786
        %v4803 = vmul.f32 %v4743, %v4787
        %v4804 = vmul.f32 %v4746, %v4788
        %v4805 = vmul.f32 %v4751, %v4789
        %v4806 = vmul.f32 %v4754, %v4790
        %v4807 = vmul.f32 %v4759, %v4791
        %v4808 = vmul.f32 %v4762, %v4792
        %v4809 = vmul.f32 %v4767, %v4793
        %v4810 = vmul.f32 %v4770, %v4794
        %v4811 = vmul.f32 %v4775, %v4795
        %v4812 = vmul.f32 %v4778, %v4796
        %4829 = vrot.lane.b32.xlu0 %v4797, 64
        %v4830 = vpop.permute.xlu0 %4829
        %4831 = vrot.lane.b32.xlu0 %v4798, 64
        %v4832 = vpop.permute.xlu0 %4831
        %4833 = vrot.lane.b32.xlu0 %v4799, 64
        %v4834 = vpop.permute.xlu0 %4833
        %4835 = vrot.lane.b32.xlu0 %v4800, 64
        %v4836 = vpop.permute.xlu0 %4835
        %4837 = vrot.lane.b32.xlu0 %v4801, 64
        %v4838 = vpop.permute.xlu0 %4837
        %4839 = vrot.lane.b32.xlu0 %v4802, 64
        %v4840 = vpop.permute.xlu0 %4839
        %4841 = vrot.lane.b32.xlu0 %v4803, 64
        %v4842 = vpop.permute.xlu0 %4841
        %4843 = vrot.lane.b32.xlu0 %v4804, 64
        %v4844 = vpop.permute.xlu0 %4843
        %4845 = vrot.lane.b32.xlu0 %v4805, 64
        %v4846 = vpop.permute.xlu0 %4845
        %4847 = vrot.lane.b32.xlu0 %v4806, 64
        %v4848 = vpop.permute.xlu0 %4847
        %4849 = vrot.lane.b32.xlu0 %v4807, 64
        %v4850 = vpop.permute.xlu0 %4849
        %4851 = vrot.lane.b32.xlu0 %v4808, 64
        %v4852 = vpop.permute.xlu0 %4851
        %4853 = vrot.lane.b32.xlu0 %v4809, 64
        %v4854 = vpop.permute.xlu0 %4853
        %4855 = vrot.lane.b32.xlu0 %v4810, 64
        %v4856 = vpop.permute.xlu0 %4855
        %4857 = vrot.lane.b32.xlu0 %v4811, 64
        %v4858 = vpop.permute.xlu0 %4857
        %4859 = vrot.lane.b32.xlu0 %v4812, 64
        %v4860 = vpop.permute.xlu0 %4859
        %4877 = vst.msk [vmem:[#allocation2 + $0x8] sm:$0xff] %vm3864, %v4830
        %4878 = vst.msk [vmem:[#allocation2 + $0x20] sm:$0xff] %vm3864, %v4832
        %4879 = vst.msk [vmem:[#allocation2 + $0x38] sm:$0xff] %vm3864, %v4834
        %4880 = vst.msk [vmem:[#allocation2 + $0x50] sm:$0xff] %vm3864, %v4836
        %4881 = vst.msk [vmem:[#allocation2 + $0x68] sm:$0xff] %vm3864, %v4838
        %4882 = vst.msk [vmem:[#allocation2 + $0x80] sm:$0xff] %vm3864, %v4840
        %4883 = vst.msk [vmem:[#allocation2 + $0x98] sm:$0xff] %vm3864, %v4842
        %4884 = vst.msk [vmem:[#allocation2 + $0xb0] sm:$0xff] %vm3864, %v4844
        %4885 = vst.msk [vmem:[#allocation2 + $0xc8] sm:$0xff] %vm3864, %v4846
        %4886 = vst.msk [vmem:[#allocation2 + $0xe0] sm:$0xff] %vm3864, %v4848
        %4887 = vst.msk [vmem:[#allocation2 + $0xf8] sm:$0xff] %vm3864, %v4850
        %4888 = vst.msk [vmem:[#allocation2 + $0x110] sm:$0xff] %vm3864, %v4852
        %4889 = vst.msk [vmem:[#allocation2 + $0x128] sm:$0xff] %vm3864, %v4854
        %4890 = vst.msk [vmem:[#allocation2 + $0x140] sm:$0xff] %vm3864, %v4856
        %4891 = vst.msk [vmem:[#allocation2 + $0x158] sm:$0xff] %vm3864, %v4858
        %4892 = vst.msk [vmem:[#allocation2 + $0x170] sm:$0xff] %vm3864, %v4860
        %v4894 = vsel %vm2867, %v2762, 0
        %v4897 = vsel %vm2867, %v2771, 0
        %v4900 = vsel %vm2867, %v2780, 0
        %v4903 = vsel %vm2867, %v2789, 0
        %v4906 = vsel %vm2867, %v2798, 0
        %v4909 = vsel %vm2867, %v2807, 0
        %v4912 = vsel %vm2867, %v2816, 0
        %v4915 = vsel %vm2867, %v2825, 0
        %v4918 = vsel %vm2867, %v2765, 0
        %v4921 = vsel %vm2867, %v2774, 0
        %v4924 = vsel %vm2867, %v2783, 0
        %v4927 = vsel %vm2867, %v2792, 0
        %v4930 = vsel %vm2867, %v2801, 0
        %v4933 = vsel %vm2867, %v2810, 0
        %v4936 = vsel %vm2867, %v2819, 0
        %v4939 = vsel %vm2867, %v2828, 0
        %4941 = vmatprep.subr.bf16.mxu0 0
        %4942 = vmatpush1.bf16.xpose.msra.mxu0 %v4918
        %4943 = vmatprep.subr.bf16.mxu0 0
        %4944 = vmatpush1.bf16.xpose.msra.mxu0 %v4921
        %4945 = vmatprep.subr.bf16.mxu0 0
        %4946 = vmatpush1.bf16.xpose.msra.mxu0 %v4924
        %4947 = vmatprep.subr.bf16.mxu0 0
        %4948 = vmatpush1.bf16.xpose.msra.mxu0 %v4927
        %4949 = vmatprep.subr.bf16.mxu0 0
        %4950 = vmatpush1.bf16.xpose.msra.mxu0 %v4930
        %4951 = vmatprep.subr.bf16.mxu0 0
        %4952 = vmatpush1.bf16.xpose.msra.mxu0 %v4933
        %4953 = vmatprep.subr.bf16.mxu0 0
        %4954 = vmatpush1.bf16.xpose.msra.mxu0 %v4936
        %4955 = vmatprep.subr.bf16.mxu0 0
        %4956 = vmatpush1.bf16.xpose.msra.mxu0 %v4939
        %4957 = vmatprep.subr.bf16.mxu0 0
        %4958 = vmatpush1.bf16.xpose.msra.mxu0 0
        %4959 = vmatprep.subr.bf16.mxu0 0
        %4960 = vmatpush1.bf16.xpose.msra.mxu0 0
        %4961 = vmatprep.subr.bf16.mxu0 0
        %4962 = vmatpush1.bf16.xpose.msra.mxu0 0
        %4963 = vmatprep.subr.bf16.mxu0 0
        %4964 = vmatpush1.bf16.xpose.msra.mxu0 0
        %4965 = vmatprep.subr.bf16.mxu0 0
        %4966 = vmatpush1.bf16.xpose.msra.mxu0 0
        %4967 = vmatprep.subr.bf16.mxu0 0
        %4968 = vmatpush1.bf16.xpose.msra.mxu0 0
        %4969 = vmatprep.subr.bf16.mxu0 0
        %4970 = vmatpush1.bf16.xpose.msra.mxu0 0
        %4971 = vmatprep.subr.bf16.mxu0 0
        %4972 = vmatpush1.bf16.xpose.msra.mxu0 0
        %4973 = vmatprep.mubr.bf16.mxu0 0
        %4974 = vmatmul.mubr.bf16.gmra.mrb[0].mxu0 %v4894
        %v4975 = vpop.f32.mrb[0].mxu0
        %v4976 = vadd.f32 0.0, %v4975
        %v4977 = vpop.f32.mrb[0].mxu0
        %v4978 = vpop.f32.mrb[0].mxu0
        %v4979 = vadd.f32 0.0, %v4978
        %v4980 = vpop.f32.mrb[0].mxu0
        %4981 = vmatprep.mubr.bf16.mxu0 0
        %4982 = vmatmul.mubr.bf16.gmra.mrb[0].mxu0 %v4897
        %v4983 = vpop.f32.mrb[0].mxu0
        %v4984 = vadd.f32 0.0, %v4983
        %v4985 = vpop.f32.mrb[0].mxu0
        %v4986 = vpop.f32.mrb[0].mxu0
        %v4987 = vadd.f32 0.0, %v4986
        %v4988 = vpop.f32.mrb[0].mxu0
        %4989 = vmatprep.mubr.bf16.mxu0 0
        %4990 = vmatmul.mubr.bf16.gmra.mrb[0].mxu0 %v4900
        %v4991 = vpop.f32.mrb[0].mxu0
        %v4992 = vadd.f32 0.0, %v4991
        %v4993 = vpop.f32.mrb[0].mxu0
        %v4994 = vpop.f32.mrb[0].mxu0
        %v4995 = vadd.f32 0.0, %v4994
        %v4996 = vpop.f32.mrb[0].mxu0
        %4997 = vmatprep.mubr.bf16.mxu0 0
        %4998 = vmatmul.mubr.bf16.gmra.mrb[0].mxu0 %v4903
        %v4999 = vpop.f32.mrb[0].mxu0
        %v5000 = vadd.f32 0.0, %v4999
        %v5001 = vpop.f32.mrb[0].mxu0
        %v5002 = vpop.f32.mrb[0].mxu0
        %v5003 = vadd.f32 0.0, %v5002
        %v5004 = vpop.f32.mrb[0].mxu0
        %5005 = vmatprep.mubr.bf16.mxu0 0
        %5006 = vmatmul.mubr.bf16.gmra.mrb[0].mxu0 %v4906
        %v5007 = vpop.f32.mrb[0].mxu0
        %v5008 = vadd.f32 0.0, %v5007
        %v5009 = vpop.f32.mrb[0].mxu0
        %v5010 = vpop.f32.mrb[0].mxu0
        %v5011 = vadd.f32 0.0, %v5010
        %v5012 = vpop.f32.mrb[0].mxu0
        %5013 = vmatprep.mubr.bf16.mxu0 0
        %5014 = vmatmul.mubr.bf16.gmra.mrb[0].mxu0 %v4909
        %v5015 = vpop.f32.mrb[0].mxu0
        %v5016 = vadd.f32 0.0, %v5015
        %v5017 = vpop.f32.mrb[0].mxu0
        %v5018 = vpop.f32.mrb[0].mxu0
        %v5019 = vadd.f32 0.0, %v5018
        %v5020 = vpop.f32.mrb[0].mxu0
        %5021 = vmatprep.mubr.bf16.mxu0 0
        %5022 = vmatmul.mubr.bf16.gmra.mrb[0].mxu0 %v4912
        %v5023 = vpop.f32.mrb[0].mxu0
        %v5024 = vadd.f32 0.0, %v5023
        %v5025 = vpop.f32.mrb[0].mxu0
        %v5026 = vpop.f32.mrb[0].mxu0
        %v5027 = vadd.f32 0.0, %v5026
        %v5028 = vpop.f32.mrb[0].mxu0
        %5029 = vmatprep.mubr.bf16.mxu0 0
        %5030 = vmatmul.mubr.bf16.gmra.mrb[0].mxu0 %v4915
        %v5031 = vpop.f32.mrb[0].mxu0
        %v5032 = vadd.f32 0.0, %v5031
        %v5033 = vpop.f32.mrb[0].mxu0
        %v5034 = vpop.f32.mrb[0].mxu0
        %v5035 = vadd.f32 0.0, %v5034
        %v5036 = vpop.f32.mrb[0].mxu0
        %5037 = vdwg.mxu0
        %v5038 = vsel %vm2851, %v4976, -1e+30
        %v5039 = vsel %vm2852, %v4979, -1e+30
        %v5040 = vsel %vm2853, %v4984, -1e+30
        %v5041 = vsel %vm2854, %v4987, -1e+30
        %v5042 = vsel %vm2855, %v4992, -1e+30
        %v5043 = vsel %vm2856, %v4995, -1e+30
        %v5044 = vsel %vm2857, %v5000, -1e+30
        %v5045 = vsel %vm2858, %v5003, -1e+30
        %v5046 = vsel %vm2859, %v5008, -1e+30
        %v5047 = vsel %vm2860, %v5011, -1e+30
        %v5048 = vsel %vm2861, %v5016, -1e+30
        %v5049 = vsel %vm2862, %v5019, -1e+30
        %v5050 = vsel %vm2863, %v5024, -1e+30
        %v5051 = vsel %vm2864, %v5027, -1e+30
        %v5052 = vsel %vm2865, %v5032, -1e+30
        %v5053 = vsel %vm2866, %v5035, -1e+30
        %5054 = vmax.xlane.f32.xlu0 %v5038
        %v5055 = vpop.xlane.xlu0 %5054
        %5056 = vmax.xlane.f32.xlu0 %v5039
        %v5057 = vpop.xlane.xlu0 %5056
        %5058 = vmax.xlane.f32.xlu0 %v5040
        %v5059 = vpop.xlane.xlu0 %5058
        %5060 = vmax.xlane.f32.xlu0 %v5041
        %v5061 = vpop.xlane.xlu0 %5060
        %5062 = vmax.xlane.f32.xlu0 %v5042
        %v5063 = vpop.xlane.xlu0 %5062
        %5064 = vmax.xlane.f32.xlu0 %v5043
        %v5065 = vpop.xlane.xlu0 %5064
        %5066 = vmax.xlane.f32.xlu0 %v5044
        %v5067 = vpop.xlane.xlu0 %5066
        %5068 = vmax.xlane.f32.xlu0 %v5045
        %v5069 = vpop.xlane.xlu0 %5068
        %5070 = vmax.xlane.f32.xlu0 %v5046
        %v5071 = vpop.xlane.xlu0 %5070
        %5072 = vmax.xlane.f32.xlu0 %v5047
        %v5073 = vpop.xlane.xlu0 %5072
        %5074 = vmax.xlane.f32.xlu0 %v5048
        %v5075 = vpop.xlane.xlu0 %5074
        %5076 = vmax.xlane.f32.xlu0 %v5049
        %v5077 = vpop.xlane.xlu0 %5076
        %5078 = vmax.xlane.f32.xlu0 %v5050
        %v5079 = vpop.xlane.xlu0 %5078
        %5080 = vmax.xlane.f32.xlu0 %v5051
        %v5081 = vpop.xlane.xlu0 %5080
        %5082 = vmax.xlane.f32.xlu0 %v5052
        %v5083 = vpop.xlane.xlu0 %5082
        %5084 = vmax.xlane.f32.xlu0 %v5053
        %v5085 = vpop.xlane.xlu0 %5084
        %v5086 = vsub.f32 %v5038, %v5055
        %v5087 = vsub.f32 %v5039, %v5057
        %v5088 = vsub.f32 %v5040, %v5059
        %v5089 = vsub.f32 %v5041, %v5061
        %v5090 = vsub.f32 %v5042, %v5063
        %v5091 = vsub.f32 %v5043, %v5065
        %v5092 = vsub.f32 %v5044, %v5067
        %v5093 = vsub.f32 %v5045, %v5069
        %v5094 = vsub.f32 %v5046, %v5071
        %v5095 = vsub.f32 %v5047, %v5073
        %v5096 = vsub.f32 %v5048, %v5075
        %v5097 = vsub.f32 %v5049, %v5077
        %v5098 = vsub.f32 %v5050, %v5079
        %v5099 = vsub.f32 %v5051, %v5081
        %v5100 = vsub.f32 %v5052, %v5083
        %v5101 = vsub.f32 %v5053, %v5085
        %v5102 = vpack.c.bf16 %v5087, %v5086
        %v5103 = vpack.c.bf16 %v5089, %v5088
        %v5104 = vpack.c.bf16 %v5091, %v5090
        %v5105 = vpack.c.bf16 %v5093, %v5092
        %v5106 = vpack.c.bf16 %v5095, %v5094
        %v5107 = vpack.c.bf16 %v5097, %v5096
        %v5108 = vpack.c.bf16 %v5099, %v5098
        %v5109 = vpack.c.bf16 %v5101, %v5100
        %v5111 = vmul.bf16 %v5102, 1069105081
        %v5112 = vpow.bf16.pop %v5111
        %v5114 = vmul.bf16 %v5103, 1069105081
        %v5115 = vpow.bf16.pop %v5114
        %v5117 = vmul.bf16 %v5104, 1069105081
        %v5118 = vpow.bf16.pop %v5117
        %v5120 = vmul.bf16 %v5105, 1069105081
        %v5121 = vpow.bf16.pop %v5120
        %v5123 = vmul.bf16 %v5106, 1069105081
        %v5124 = vpow.bf16.pop %v5123
        %v5126 = vmul.bf16 %v5107, 1069105081
        %v5127 = vpow.bf16.pop %v5126
        %v5129 = vmul.bf16 %v5108, 1069105081
        %v5130 = vpow.bf16.pop %v5129
        %v5132 = vmul.bf16 %v5109, 1069105081
        %v5133 = vpow.bf16.pop %v5132
        %v5134 = vunpack.c.l.bf16 %v5112
        %v5135 = vunpack.c.h.bf16 %v5112
        %v5136 = vunpack.c.l.bf16 %v5115
        %v5137 = vunpack.c.h.bf16 %v5115
        %v5138 = vunpack.c.l.bf16 %v5118
        %v5139 = vunpack.c.h.bf16 %v5118
        %v5140 = vunpack.c.l.bf16 %v5121
        %v5141 = vunpack.c.h.bf16 %v5121
        %v5142 = vunpack.c.l.bf16 %v5124
        %v5143 = vunpack.c.h.bf16 %v5124
        %v5144 = vunpack.c.l.bf16 %v5127
        %v5145 = vunpack.c.h.bf16 %v5127
        %v5146 = vunpack.c.l.bf16 %v5130
        %v5147 = vunpack.c.h.bf16 %v5130
        %v5148 = vunpack.c.l.bf16 %v5133
        %v5149 = vunpack.c.h.bf16 %v5133
        %5150 = vadd.xlane.f32.xlu0 %v5134
        %v5151 = vpop.xlane.xlu0 %5150
        %5152 = vadd.xlane.f32.xlu0 %v5135
        %v5153 = vpop.xlane.xlu0 %5152
        %5154 = vadd.xlane.f32.xlu0 %v5136
        %v5155 = vpop.xlane.xlu0 %5154
        %5156 = vadd.xlane.f32.xlu0 %v5137
        %v5157 = vpop.xlane.xlu0 %5156
        %5158 = vadd.xlane.f32.xlu0 %v5138
        %v5159 = vpop.xlane.xlu0 %5158
        %5160 = vadd.xlane.f32.xlu0 %v5139
        %v5161 = vpop.xlane.xlu0 %5160
        %5162 = vadd.xlane.f32.xlu0 %v5140
        %v5163 = vpop.xlane.xlu0 %5162
        %5164 = vadd.xlane.f32.xlu0 %v5141
        %v5165 = vpop.xlane.xlu0 %5164
        %5166 = vadd.xlane.f32.xlu0 %v5142
        %v5167 = vpop.xlane.xlu0 %5166
        %5168 = vadd.xlane.f32.xlu0 %v5143
        %v5169 = vpop.xlane.xlu0 %5168
        %5170 = vadd.xlane.f32.xlu0 %v5144
        %v5171 = vpop.xlane.xlu0 %5170
        %5172 = vadd.xlane.f32.xlu0 %v5145
        %v5173 = vpop.xlane.xlu0 %5172
        %5174 = vadd.xlane.f32.xlu0 %v5146
        %v5175 = vpop.xlane.xlu0 %5174
        %5176 = vadd.xlane.f32.xlu0 %v5147
        %v5177 = vpop.xlane.xlu0 %5176
        %5178 = vadd.xlane.f32.xlu0 %v5148
        %v5179 = vpop.xlane.xlu0 %5178
        %5180 = vadd.xlane.f32.xlu0 %v5149
        %v5181 = vpop.xlane.xlu0 %5180
        %5182 = vmatprep.subr.bf16.mxu0 0
        %5183 = vmatpush1.bf16.msra.mxu0 %v2768
        %5184 = vmatprep.subr.bf16.mxu0 0
        %5185 = vmatpush1.bf16.msra.mxu0 %v2777
        %5186 = vmatprep.subr.bf16.mxu0 0
        %5187 = vmatpush1.bf16.msra.mxu0 %v2786
        %5188 = vmatprep.subr.bf16.mxu0 0
        %5189 = vmatpush1.bf16.msra.mxu0 %v2795
        %5190 = vmatprep.subr.bf16.mxu0 0
        %5191 = vmatpush1.bf16.msra.mxu0 %v2804
        %5192 = vmatprep.subr.bf16.mxu0 0
        %5193 = vmatpush1.bf16.msra.mxu0 %v2813
        %5194 = vmatprep.subr.bf16.mxu0 0
        %5195 = vmatpush1.bf16.msra.mxu0 %v2822
        %5196 = vmatprep.subr.bf16.mxu0 0
        %5197 = vmatpush1.bf16.msra.mxu0 %v2831
        %5198 = vmatprep.subr.bf16.mxu0 0
        %5199 = vmatpush1.bf16.msra.mxu0 0
        %5200 = vmatprep.subr.bf16.mxu0 0
        %5201 = vmatpush1.bf16.msra.mxu0 0
        %5202 = vmatprep.subr.bf16.mxu0 0
        %5203 = vmatpush1.bf16.msra.mxu0 0
        %5204 = vmatprep.subr.bf16.mxu0 0
        %5205 = vmatpush1.bf16.msra.mxu0 0
        %5206 = vmatprep.subr.bf16.mxu0 0
        %5207 = vmatpush1.bf16.msra.mxu0 0
        %5208 = vmatprep.subr.bf16.mxu0 0
        %5209 = vmatpush1.bf16.msra.mxu0 0
        %5210 = vmatprep.subr.bf16.mxu0 0
        %5211 = vmatpush1.bf16.msra.mxu0 0
        %5212 = vmatprep.subr.bf16.mxu0 0
        %5213 = vmatpush1.bf16.msra.mxu0 0
        %5214 = vmatprep.mubr.bf16.mxu0 0
        %5215 = vmatmul.mubr.bf16.gmra.mrb[0].mxu0 %v5112
        %v5216 = vpop.f32.mrb[0].mxu0
        %v5217 = vadd.f32 0.0, %v5216
        %v5218 = vpop.f32.mrb[0].mxu0
        %v5219 = vpop.f32.mrb[0].mxu0
        %v5220 = vadd.f32 0.0, %v5219
        %v5221 = vpop.f32.mrb[0].mxu0
        %5222 = vmatprep.mubr.bf16.mxu0 0
        %5223 = vmatmul.mubr.bf16.gmra.mrb[0].mxu0 %v5115
        %v5224 = vpop.f32.mrb[0].mxu0
        %v5225 = vadd.f32 0.0, %v5224
        %v5226 = vpop.f32.mrb[0].mxu0
        %v5227 = vpop.f32.mrb[0].mxu0
        %v5228 = vadd.f32 0.0, %v5227
        %v5229 = vpop.f32.mrb[0].mxu0
        %5230 = vmatprep.mubr.bf16.mxu0 0
        %5231 = vmatmul.mubr.bf16.gmra.mrb[0].mxu0 %v5118
        %v5232 = vpop.f32.mrb[0].mxu0
        %v5233 = vadd.f32 0.0, %v5232
        %v5234 = vpop.f32.mrb[0].mxu0
        %v5235 = vpop.f32.mrb[0].mxu0
        %v5236 = vadd.f32 0.0, %v5235
        %v5237 = vpop.f32.mrb[0].mxu0
        %5238 = vmatprep.mubr.bf16.mxu0 0
        %5239 = vmatmul.mubr.bf16.gmra.mrb[0].mxu0 %v5121
        %v5240 = vpop.f32.mrb[0].mxu0
        %v5241 = vadd.f32 0.0, %v5240
        %v5242 = vpop.f32.mrb[0].mxu0
        %v5243 = vpop.f32.mrb[0].mxu0
        %v5244 = vadd.f32 0.0, %v5243
        %v5245 = vpop.f32.mrb[0].mxu0
        %5246 = vmatprep.mubr.bf16.mxu0 0
        %5247 = vmatmul.mubr.bf16.gmra.mrb[0].mxu0 %v5124
        %v5248 = vpop.f32.mrb[0].mxu0
        %v5249 = vadd.f32 0.0, %v5248
        %v5250 = vpop.f32.mrb[0].mxu0
        %v5251 = vpop.f32.mrb[0].mxu0
        %v5252 = vadd.f32 0.0, %v5251
        %v5253 = vpop.f32.mrb[0].mxu0
        %5254 = vmatprep.mubr.bf16.mxu0 0
        %5255 = vmatmul.mubr.bf16.gmra.mrb[0].mxu0 %v5127
        %v5256 = vpop.f32.mrb[0].mxu0
        %v5257 = vadd.f32 0.0, %v5256
        %v5258 = vpop.f32.mrb[0].mxu0
        %v5259 = vpop.f32.mrb[0].mxu0
        %v5260 = vadd.f32 0.0, %v5259
        %v5261 = vpop.f32.mrb[0].mxu0
        %5262 = vmatprep.mubr.bf16.mxu0 0
        %5263 = vmatmul.mubr.bf16.gmra.mrb[0].mxu0 %v5130
        %v5264 = vpop.f32.mrb[0].mxu0
        %v5265 = vadd.f32 0.0, %v5264
        %v5266 = vpop.f32.mrb[0].mxu0
        %v5267 = vpop.f32.mrb[0].mxu0
        %v5268 = vadd.f32 0.0, %v5267
        %v5269 = vpop.f32.mrb[0].mxu0
        %5270 = vmatprep.mubr.bf16.mxu0 0
        %5271 = vmatmul.mubr.bf16.gmra.mrb[0].mxu0 %v5133
        %v5272 = vpop.f32.mrb[0].mxu0
        %v5273 = vadd.f32 0.0, %v5272
        %v5274 = vpop.f32.mrb[0].mxu0
        %v5275 = vpop.f32.mrb[0].mxu0
        %v5276 = vadd.f32 0.0, %v5275
        %v5277 = vpop.f32.mrb[0].mxu0
        %5278 = vdwg.mxu0
        %v5279 = vrcp.pop %v5151
        %v5280 = vrcp.pop %v5153
        %v5281 = vrcp.pop %v5155
        %v5282 = vrcp.pop %v5157
        %v5283 = vrcp.pop %v5159
        %v5284 = vrcp.pop %v5161
        %v5285 = vrcp.pop %v5163
        %v5286 = vrcp.pop %v5165
        %v5287 = vrcp.pop %v5167
        %v5288 = vrcp.pop %v5169
        %v5289 = vrcp.pop %v5171
        %v5290 = vrcp.pop %v5173
        %v5291 = vrcp.pop %v5175
        %v5292 = vrcp.pop %v5177
        %v5293 = vrcp.pop %v5179
        %v5294 = vrcp.pop %v5181
        %v5295 = vmul.f32 %v5217, %v5279
        %v5296 = vmul.f32 %v5220, %v5280
        %v5297 = vmul.f32 %v5225, %v5281
        %v5298 = vmul.f32 %v5228, %v5282
        %v5299 = vmul.f32 %v5233, %v5283
        %v5300 = vmul.f32 %v5236, %v5284
        %v5301 = vmul.f32 %v5241, %v5285
        %v5302 = vmul.f32 %v5244, %v5286
        %v5303 = vmul.f32 %v5249, %v5287
        %v5304 = vmul.f32 %v5252, %v5288
        %v5305 = vmul.f32 %v5257, %v5289
        %v5306 = vmul.f32 %v5260, %v5290
        %v5307 = vmul.f32 %v5265, %v5291
        %v5308 = vmul.f32 %v5268, %v5292
        %v5309 = vmul.f32 %v5273, %v5293
        %v5310 = vmul.f32 %v5276, %v5294
        %5311 = vst.msk [vmem:[#allocation2 + $0x10] sm:$0xff] %vm2867, %v5295
        %5312 = vst.msk [vmem:[#allocation2 + $0x28] sm:$0xff] %vm2867, %v5296
        %5313 = vst.msk [vmem:[#allocation2 + $0x40] sm:$0xff] %vm2867, %v5297
        %5314 = vst.msk [vmem:[#allocation2 + $0x58] sm:$0xff] %vm2867, %v5298
        %5315 = vst.msk [vmem:[#allocation2 + $0x70] sm:$0xff] %vm2867, %v5299
        %5316 = vst.msk [vmem:[#allocation2 + $0x88] sm:$0xff] %vm2867, %v5300
        %5317 = vst.msk [vmem:[#allocation2 + $0xa0] sm:$0xff] %vm2867, %v5301
        %5318 = vst.msk [vmem:[#allocation2 + $0xb8] sm:$0xff] %vm2867, %v5302
        %5319 = vst.msk [vmem:[#allocation2 + $0xd0] sm:$0xff] %vm2867, %v5303
        %5320 = vst.msk [vmem:[#allocation2 + $0xe8] sm:$0xff] %vm2867, %v5304
        %5321 = vst.msk [vmem:[#allocation2 + $0x100] sm:$0xff] %vm2867, %v5305
        %5322 = vst.msk [vmem:[#allocation2 + $0x118] sm:$0xff] %vm2867, %v5306
        %5323 = vst.msk [vmem:[#allocation2 + $0x130] sm:$0xff] %vm2867, %v5307
        %5324 = vst.msk [vmem:[#allocation2 + $0x148] sm:$0xff] %vm2867, %v5308
        %5325 = vst.msk [vmem:[#allocation2 + $0x160] sm:$0xff] %vm2867, %v5309
        %5326 = vst.msk [vmem:[#allocation2 + $0x178] sm:$0xff] %vm2867, %v5310
        %5335 = vrot.lane.b32.xlu0 %v2762, 64
        %v5336 = vpop.permute.xlu0 %5335
        %5337 = vrot.lane.b32.xlu0 %v2771, 64
        %v5338 = vpop.permute.xlu0 %5337
        %5339 = vrot.lane.b32.xlu0 %v2780, 64
        %v5340 = vpop.permute.xlu0 %5339
        %5341 = vrot.lane.b32.xlu0 %v2789, 64
        %v5342 = vpop.permute.xlu0 %5341
        %5343 = vrot.lane.b32.xlu0 %v2798, 64
        %v5344 = vpop.permute.xlu0 %5343
        %5345 = vrot.lane.b32.xlu0 %v2807, 64
        %v5346 = vpop.permute.xlu0 %5345
        %5347 = vrot.lane.b32.xlu0 %v2816, 64
        %v5348 = vpop.permute.xlu0 %5347
        %5349 = vrot.lane.b32.xlu0 %v2825, 64
        %v5350 = vpop.permute.xlu0 %5349
        %5359 = vrot.lane.b32.xlu0 %v2765, 64
        %v5360 = vpop.permute.xlu0 %5359
        %5361 = vrot.lane.b32.xlu0 %v2774, 64
        %v5362 = vpop.permute.xlu0 %5361
        %5363 = vrot.lane.b32.xlu0 %v2783, 64
        %v5364 = vpop.permute.xlu0 %5363
        %5365 = vrot.lane.b32.xlu0 %v2792, 64
        %v5366 = vpop.permute.xlu0 %5365
        %5367 = vrot.lane.b32.xlu0 %v2801, 64
        %v5368 = vpop.permute.xlu0 %5367
        %5369 = vrot.lane.b32.xlu0 %v2810, 64
        %v5370 = vpop.permute.xlu0 %5369
        %5371 = vrot.lane.b32.xlu0 %v2819, 64
        %v5372 = vpop.permute.xlu0 %5371
        %5373 = vrot.lane.b32.xlu0 %v2828, 64
        %v5374 = vpop.permute.xlu0 %5373
        %v5376 = vsel %vm2867, %v5336, 0
        %v5379 = vsel %vm2867, %v5338, 0
        %v5382 = vsel %vm2867, %v5340, 0
        %v5385 = vsel %vm2867, %v5342, 0
        %v5388 = vsel %vm2867, %v5344, 0
        %v5391 = vsel %vm2867, %v5346, 0
        %v5394 = vsel %vm2867, %v5348, 0
        %v5397 = vsel %vm2867, %v5350, 0
        %v5400 = vsel %vm2867, %v5360, 0
        %v5403 = vsel %vm2867, %v5362, 0
        %v5406 = vsel %vm2867, %v5364, 0
        %v5409 = vsel %vm2867, %v5366, 0
        %v5412 = vsel %vm2867, %v5368, 0
        %v5415 = vsel %vm2867, %v5370, 0
        %v5418 = vsel %vm2867, %v5372, 0
        %v5421 = vsel %vm2867, %v5374, 0
        %5423 = vmatprep.subr.bf16.mxu0 0
        %5424 = vmatpush1.bf16.xpose.msra.mxu0 %v5400
        %5425 = vmatprep.subr.bf16.mxu0 0
        %5426 = vmatpush1.bf16.xpose.msra.mxu0 %v5403
        %5427 = vmatprep.subr.bf16.mxu0 0
        %5428 = vmatpush1.bf16.xpose.msra.mxu0 %v5406
        %5429 = vmatprep.subr.bf16.mxu0 0
        %5430 = vmatpush1.bf16.xpose.msra.mxu0 %v5409
        %5431 = vmatprep.subr.bf16.mxu0 0
        %5432 = vmatpush1.bf16.xpose.msra.mxu0 %v5412
        %5433 = vmatprep.subr.bf16.mxu0 0
        %5434 = vmatpush1.bf16.xpose.msra.mxu0 %v5415
        %5435 = vmatprep.subr.bf16.mxu0 0
        %5436 = vmatpush1.bf16.xpose.msra.mxu0 %v5418
        %5437 = vmatprep.subr.bf16.mxu0 0
        %5438 = vmatpush1.bf16.xpose.msra.mxu0 %v5421
        %5439 = vmatprep.subr.bf16.mxu0 0
        %5440 = vmatpush1.bf16.xpose.msra.mxu0 0
        %5441 = vmatprep.subr.bf16.mxu0 0
        %5442 = vmatpush1.bf16.xpose.msra.mxu0 0
        %5443 = vmatprep.subr.bf16.mxu0 0
        %5444 = vmatpush1.bf16.xpose.msra.mxu0 0
        %5445 = vmatprep.subr.bf16.mxu0 0
        %5446 = vmatpush1.bf16.xpose.msra.mxu0 0
        %5447 = vmatprep.subr.bf16.mxu0 0
        %5448 = vmatpush1.bf16.xpose.msra.mxu0 0
        %5449 = vmatprep.subr.bf16.mxu0 0
        %5450 = vmatpush1.bf16.xpose.msra.mxu0 0
        %5451 = vmatprep.subr.bf16.mxu0 0
        %5452 = vmatpush1.bf16.xpose.msra.mxu0 0
        %5453 = vmatprep.subr.bf16.mxu0 0
        %5454 = vmatpush1.bf16.xpose.msra.mxu0 0
        %5455 = vmatprep.mubr.bf16.mxu0 0
        %5456 = vmatmul.mubr.bf16.gmra.mrb[0].mxu0 %v5376
        %v5457 = vpop.f32.mrb[0].mxu0
        %v5458 = vadd.f32 0.0, %v5457
        %v5459 = vpop.f32.mrb[0].mxu0
        %v5460 = vpop.f32.mrb[0].mxu0
        %v5461 = vadd.f32 0.0, %v5460
        %v5462 = vpop.f32.mrb[0].mxu0
        %5463 = vmatprep.mubr.bf16.mxu0 0
        %5464 = vmatmul.mubr.bf16.gmra.mrb[0].mxu0 %v5379
        %v5465 = vpop.f32.mrb[0].mxu0
        %v5466 = vadd.f32 0.0, %v5465
        %v5467 = vpop.f32.mrb[0].mxu0
        %v5468 = vpop.f32.mrb[0].mxu0
        %v5469 = vadd.f32 0.0, %v5468
        %v5470 = vpop.f32.mrb[0].mxu0
        %5471 = vmatprep.mubr.bf16.mxu0 0
        %5472 = vmatmul.mubr.bf16.gmra.mrb[0].mxu0 %v5382
        %v5473 = vpop.f32.mrb[0].mxu0
        %v5474 = vadd.f32 0.0, %v5473
        %v5475 = vpop.f32.mrb[0].mxu0
        %v5476 = vpop.f32.mrb[0].mxu0
        %v5477 = vadd.f32 0.0, %v5476
        %v5478 = vpop.f32.mrb[0].mxu0
        %5479 = vmatprep.mubr.bf16.mxu0 0
        %5480 = vmatmul.mubr.bf16.gmra.mrb[0].mxu0 %v5385
        %v5481 = vpop.f32.mrb[0].mxu0
        %v5482 = vadd.f32 0.0, %v5481
        %v5483 = vpop.f32.mrb[0].mxu0
        %v5484 = vpop.f32.mrb[0].mxu0
        %v5485 = vadd.f32 0.0, %v5484
        %v5486 = vpop.f32.mrb[0].mxu0
        %5487 = vmatprep.mubr.bf16.mxu0 0
        %5488 = vmatmul.mubr.bf16.gmra.mrb[0].mxu0 %v5388
        %v5489 = vpop.f32.mrb[0].mxu0
        %v5490 = vadd.f32 0.0, %v5489
        %v5491 = vpop.f32.mrb[0].mxu0
        %v5492 = vpop.f32.mrb[0].mxu0
        %v5493 = vadd.f32 0.0, %v5492
        %v5494 = vpop.f32.mrb[0].mxu0
        %5495 = vmatprep.mubr.bf16.mxu0 0
        %5496 = vmatmul.mubr.bf16.gmra.mrb[0].mxu0 %v5391
        %v5497 = vpop.f32.mrb[0].mxu0
        %v5498 = vadd.f32 0.0, %v5497
        %v5499 = vpop.f32.mrb[0].mxu0
        %v5500 = vpop.f32.mrb[0].mxu0
        %v5501 = vadd.f32 0.0, %v5500
        %v5502 = vpop.f32.mrb[0].mxu0
        %5503 = vmatprep.mubr.bf16.mxu0 0
        %5504 = vmatmul.mubr.bf16.gmra.mrb[0].mxu0 %v5394
        %v5505 = vpop.f32.mrb[0].mxu0
        %v5506 = vadd.f32 0.0, %v5505
        %v5507 = vpop.f32.mrb[0].mxu0
        %v5508 = vpop.f32.mrb[0].mxu0
        %v5509 = vadd.f32 0.0, %v5508
        %v5510 = vpop.f32.mrb[0].mxu0
        %5511 = vmatprep.mubr.bf16.mxu0 0
        %5512 = vmatmul.mubr.bf16.gmra.mrb[0].mxu0 %v5397
        %v5513 = vpop.f32.mrb[0].mxu0
        %v5514 = vadd.f32 0.0, %v5513
        %v5515 = vpop.f32.mrb[0].mxu0
        %v5516 = vpop.f32.mrb[0].mxu0
        %v5517 = vadd.f32 0.0, %v5516
        %v5518 = vpop.f32.mrb[0].mxu0
        %5519 = vdwg.mxu0
        %v5520 = vsel %vm2851, %v5458, -1e+30
        %v5521 = vsel %vm2852, %v5461, -1e+30
        %v5522 = vsel %vm2853, %v5466, -1e+30
        %v5523 = vsel %vm2854, %v5469, -1e+30
        %v5524 = vsel %vm2855, %v5474, -1e+30
        %v5525 = vsel %vm2856, %v5477, -1e+30
        %v5526 = vsel %vm2857, %v5482, -1e+30
        %v5527 = vsel %vm2858, %v5485, -1e+30
        %v5528 = vsel %vm2859, %v5490, -1e+30
        %v5529 = vsel %vm2860, %v5493, -1e+30
        %v5530 = vsel %vm2861, %v5498, -1e+30
        %v5531 = vsel %vm2862, %v5501, -1e+30
        %v5532 = vsel %vm2863, %v5506, -1e+30
        %v5533 = vsel %vm2864, %v5509, -1e+30
        %v5534 = vsel %vm2865, %v5514, -1e+30
        %v5535 = vsel %vm2866, %v5517, -1e+30
        %5536 = vmax.xlane.f32.xlu0 %v5520
        %v5537 = vpop.xlane.xlu0 %5536
        %5538 = vmax.xlane.f32.xlu0 %v5521
        %v5539 = vpop.xlane.xlu0 %5538
        %5540 = vmax.xlane.f32.xlu0 %v5522
        %v5541 = vpop.xlane.xlu0 %5540
        %5542 = vmax.xlane.f32.xlu0 %v5523
        %v5543 = vpop.xlane.xlu0 %5542
        %5544 = vmax.xlane.f32.xlu0 %v5524
        %v5545 = vpop.xlane.xlu0 %5544
        %5546 = vmax.xlane.f32.xlu0 %v5525
        %v5547 = vpop.xlane.xlu0 %5546
        %5548 = vmax.xlane.f32.xlu0 %v5526
        %v5549 = vpop.xlane.xlu0 %5548
        %5550 = vmax.xlane.f32.xlu0 %v5527
        %v5551 = vpop.xlane.xlu0 %5550
        %5552 = vmax.xlane.f32.xlu0 %v5528
        %v5553 = vpop.xlane.xlu0 %5552
        %5554 = vmax.xlane.f32.xlu0 %v5529
        %v5555 = vpop.xlane.xlu0 %5554
        %5556 = vmax.xlane.f32.xlu0 %v5530
        %v5557 = vpop.xlane.xlu0 %5556
        %5558 = vmax.xlane.f32.xlu0 %v5531
        %v5559 = vpop.xlane.xlu0 %5558
        %5560 = vmax.xlane.f32.xlu0 %v5532
        %v5561 = vpop.xlane.xlu0 %5560
        %5562 = vmax.xlane.f32.xlu0 %v5533
        %v5563 = vpop.xlane.xlu0 %5562
        %5564 = vmax.xlane.f32.xlu0 %v5534
        %v5565 = vpop.xlane.xlu0 %5564
        %5566 = vmax.xlane.f32.xlu0 %v5535
        %v5567 = vpop.xlane.xlu0 %5566
        %v5568 = vsub.f32 %v5520, %v5537
        %v5569 = vsub.f32 %v5521, %v5539
        %v5570 = vsub.f32 %v5522, %v5541
        %v5571 = vsub.f32 %v5523, %v5543
        %v5572 = vsub.f32 %v5524, %v5545
        %v5573 = vsub.f32 %v5525, %v5547
        %v5574 = vsub.f32 %v5526, %v5549
        %v5575 = vsub.f32 %v5527, %v5551
        %v5576 = vsub.f32 %v5528, %v5553
        %v5577 = vsub.f32 %v5529, %v5555
        %v5578 = vsub.f32 %v5530, %v5557
        %v5579 = vsub.f32 %v5531, %v5559
        %v5580 = vsub.f32 %v5532, %v5561
        %v5581 = vsub.f32 %v5533, %v5563
        %v5582 = vsub.f32 %v5534, %v5565
        %v5583 = vsub.f32 %v5535, %v5567
        %v5584 = vpack.c.bf16 %v5569, %v5568
        %v5585 = vpack.c.bf16 %v5571, %v5570
        %v5586 = vpack.c.bf16 %v5573, %v5572
        %v5587 = vpack.c.bf16 %v5575, %v5574
        %v5588 = vpack.c.bf16 %v5577, %v5576
        %v5589 = vpack.c.bf16 %v5579, %v5578
        %v5590 = vpack.c.bf16 %v5581, %v5580
        %v5591 = vpack.c.bf16 %v5583, %v5582
        %v5593 = vmul.bf16 %v5584, 1069105081
        %v5594 = vpow.bf16.pop %v5593
        %v5596 = vmul.bf16 %v5585, 1069105081
        %v5597 = vpow.bf16.pop %v5596
        %v5599 = vmul.bf16 %v5586, 1069105081
        %v5600 = vpow.bf16.pop %v5599
        %v5602 = vmul.bf16 %v5587, 1069105081
        %v5603 = vpow.bf16.pop %v5602
        %v5605 = vmul.bf16 %v5588, 1069105081
        %v5606 = vpow.bf16.pop %v5605
        %v5608 = vmul.bf16 %v5589, 1069105081
        %v5609 = vpow.bf16.pop %v5608
        %v5611 = vmul.bf16 %v5590, 1069105081
        %v5612 = vpow.bf16.pop %v5611
        %v5614 = vmul.bf16 %v5591, 1069105081
        %v5615 = vpow.bf16.pop %v5614
        %v5616 = vunpack.c.l.bf16 %v5594
        %v5617 = vunpack.c.h.bf16 %v5594
        %v5618 = vunpack.c.l.bf16 %v5597
        %v5619 = vunpack.c.h.bf16 %v5597
        %v5620 = vunpack.c.l.bf16 %v5600
        %v5621 = vunpack.c.h.bf16 %v5600
        %v5622 = vunpack.c.l.bf16 %v5603
        %v5623 = vunpack.c.h.bf16 %v5603
        %v5624 = vunpack.c.l.bf16 %v5606
        %v5625 = vunpack.c.h.bf16 %v5606
        %v5626 = vunpack.c.l.bf16 %v5609
        %v5627 = vunpack.c.h.bf16 %v5609
        %v5628 = vunpack.c.l.bf16 %v5612
        %v5629 = vunpack.c.h.bf16 %v5612
        %v5630 = vunpack.c.l.bf16 %v5615
        %v5631 = vunpack.c.h.bf16 %v5615
        %5632 = vadd.xlane.f32.xlu0 %v5616
        %v5633 = vpop.xlane.xlu0 %5632
        %5634 = vadd.xlane.f32.xlu0 %v5617
        %v5635 = vpop.xlane.xlu0 %5634
        %5636 = vadd.xlane.f32.xlu0 %v5618
        %v5637 = vpop.xlane.xlu0 %5636
        %5638 = vadd.xlane.f32.xlu0 %v5619
        %v5639 = vpop.xlane.xlu0 %5638
        %5640 = vadd.xlane.f32.xlu0 %v5620
        %v5641 = vpop.xlane.xlu0 %5640
        %5642 = vadd.xlane.f32.xlu0 %v5621
        %v5643 = vpop.xlane.xlu0 %5642
        %5644 = vadd.xlane.f32.xlu0 %v5622
        %v5645 = vpop.xlane.xlu0 %5644
        %5646 = vadd.xlane.f32.xlu0 %v5623
        %v5647 = vpop.xlane.xlu0 %5646
        %5648 = vadd.xlane.f32.xlu0 %v5624
        %v5649 = vpop.xlane.xlu0 %5648
        %5650 = vadd.xlane.f32.xlu0 %v5625
        %v5651 = vpop.xlane.xlu0 %5650
        %5652 = vadd.xlane.f32.xlu0 %v5626
        %v5653 = vpop.xlane.xlu0 %5652
        %5654 = vadd.xlane.f32.xlu0 %v5627
        %v5655 = vpop.xlane.xlu0 %5654
        %5656 = vadd.xlane.f32.xlu0 %v5628
        %v5657 = vpop.xlane.xlu0 %5656
        %5658 = vadd.xlane.f32.xlu0 %v5629
        %v5659 = vpop.xlane.xlu0 %5658
        %5660 = vadd.xlane.f32.xlu0 %v5630
        %v5661 = vpop.xlane.xlu0 %5660
        %5662 = vadd.xlane.f32.xlu0 %v5631
        %v5663 = vpop.xlane.xlu0 %5662
        %5672 = vrot.lane.b32.xlu0 %v2768, 64
        %v5673 = vpop.permute.xlu0 %5672
        %5674 = vrot.lane.b32.xlu0 %v2777, 64
        %v5675 = vpop.permute.xlu0 %5674
        %5676 = vrot.lane.b32.xlu0 %v2786, 64
        %v5677 = vpop.permute.xlu0 %5676
        %5678 = vrot.lane.b32.xlu0 %v2795, 64
        %v5679 = vpop.permute.xlu0 %5678
        %5680 = vrot.lane.b32.xlu0 %v2804, 64
        %v5681 = vpop.permute.xlu0 %5680
        %5682 = vrot.lane.b32.xlu0 %v2813, 64
        %v5683 = vpop.permute.xlu0 %5682
        %5684 = vrot.lane.b32.xlu0 %v2822, 64
        %v5685 = vpop.permute.xlu0 %5684
        %5686 = vrot.lane.b32.xlu0 %v2831, 64
        %v5687 = vpop.permute.xlu0 %5686
        %5696 = vmatprep.subr.bf16.mxu0 0
        %5697 = vmatpush1.bf16.msra.mxu0 %v5673
        %5698 = vmatprep.subr.bf16.mxu0 0
        %5699 = vmatpush1.bf16.msra.mxu0 %v5675
        %5700 = vmatprep.subr.bf16.mxu0 0
        %5701 = vmatpush1.bf16.msra.mxu0 %v5677
        %5702 = vmatprep.subr.bf16.mxu0 0
        %5703 = vmatpush1.bf16.msra.mxu0 %v5679
        %5704 = vmatprep.subr.bf16.mxu0 0
        %5705 = vmatpush1.bf16.msra.mxu0 %v5681
        %5706 = vmatprep.subr.bf16.mxu0 0
        %5707 = vmatpush1.bf16.msra.mxu0 %v5683
        %5708 = vmatprep.subr.bf16.mxu0 0
        %5709 = vmatpush1.bf16.msra.mxu0 %v5685
        %5710 = vmatprep.subr.bf16.mxu0 0
        %5711 = vmatpush1.bf16.msra.mxu0 %v5687
        %5712 = vmatprep.subr.bf16.mxu0 0
        %5713 = vmatpush1.bf16.msra.mxu0 0
        %5714 = vmatprep.subr.bf16.mxu0 0
        %5715 = vmatpush1.bf16.msra.mxu0 0
        %5716 = vmatprep.subr.bf16.mxu0 0
        %5717 = vmatpush1.bf16.msra.mxu0 0
        %5718 = vmatprep.subr.bf16.mxu0 0
        %5719 = vmatpush1.bf16.msra.mxu0 0
        %5720 = vmatprep.subr.bf16.mxu0 0
        %5721 = vmatpush1.bf16.msra.mxu0 0
        %5722 = vmatprep.subr.bf16.mxu0 0
        %5723 = vmatpush1.bf16.msra.mxu0 0
        %5724 = vmatprep.subr.bf16.mxu0 0
        %5725 = vmatpush1.bf16.msra.mxu0 0
        %5726 = vmatprep.subr.bf16.mxu0 0
        %5727 = vmatpush1.bf16.msra.mxu0 0
        %5728 = vmatprep.mubr.bf16.mxu0 0
        %5729 = vmatmul.mubr.bf16.gmra.mrb[0].mxu0 %v5594
        %v5730 = vpop.f32.mrb[0].mxu0
        %v5731 = vadd.f32 0.0, %v5730
        %v5732 = vpop.f32.mrb[0].mxu0
        %v5733 = vpop.f32.mrb[0].mxu0
        %v5734 = vadd.f32 0.0, %v5733
        %v5735 = vpop.f32.mrb[0].mxu0
        %5736 = vmatprep.mubr.bf16.mxu0 0
        %5737 = vmatmul.mubr.bf16.gmra.mrb[0].mxu0 %v5597
        %v5738 = vpop.f32.mrb[0].mxu0
        %v5739 = vadd.f32 0.0, %v5738
        %v5740 = vpop.f32.mrb[0].mxu0
        %v5741 = vpop.f32.mrb[0].mxu0
        %v5742 = vadd.f32 0.0, %v5741
        %v5743 = vpop.f32.mrb[0].mxu0
        %5744 = vmatprep.mubr.bf16.mxu0 0
        %5745 = vmatmul.mubr.bf16.gmra.mrb[0].mxu0 %v5600
        %v5746 = vpop.f32.mrb[0].mxu0
        %v5747 = vadd.f32 0.0, %v5746
        %v5748 = vpop.f32.mrb[0].mxu0
        %v5749 = vpop.f32.mrb[0].mxu0
        %v5750 = vadd.f32 0.0, %v5749
        %v5751 = vpop.f32.mrb[0].mxu0
        %5752 = vmatprep.mubr.bf16.mxu0 0
        %5753 = vmatmul.mubr.bf16.gmra.mrb[0].mxu0 %v5603
        %v5754 = vpop.f32.mrb[0].mxu0
        %v5755 = vadd.f32 0.0, %v5754
        %v5756 = vpop.f32.mrb[0].mxu0
        %v5757 = vpop.f32.mrb[0].mxu0
        %v5758 = vadd.f32 0.0, %v5757
        %v5759 = vpop.f32.mrb[0].mxu0
        %5760 = vmatprep.mubr.bf16.mxu0 0
        %5761 = vmatmul.mubr.bf16.gmra.mrb[0].mxu0 %v5606
        %v5762 = vpop.f32.mrb[0].mxu0
        %v5763 = vadd.f32 0.0, %v5762
        %v5764 = vpop.f32.mrb[0].mxu0
        %v5765 = vpop.f32.mrb[0].mxu0
        %v5766 = vadd.f32 0.0, %v5765
        %v5767 = vpop.f32.mrb[0].mxu0
        %5768 = vmatprep.mubr.bf16.mxu0 0
        %5769 = vmatmul.mubr.bf16.gmra.mrb[0].mxu0 %v5609
        %v5770 = vpop.f32.mrb[0].mxu0
        %v5771 = vadd.f32 0.0, %v5770
        %v5772 = vpop.f32.mrb[0].mxu0
        %v5773 = vpop.f32.mrb[0].mxu0
        %v5774 = vadd.f32 0.0, %v5773
        %v5775 = vpop.f32.mrb[0].mxu0
        %5776 = vmatprep.mubr.bf16.mxu0 0
        %5777 = vmatmul.mubr.bf16.gmra.mrb[0].mxu0 %v5612
        %v5778 = vpop.f32.mrb[0].mxu0
        %v5779 = vadd.f32 0.0, %v5778
        %v5780 = vpop.f32.mrb[0].mxu0
        %v5781 = vpop.f32.mrb[0].mxu0
        %v5782 = vadd.f32 0.0, %v5781
        %v5783 = vpop.f32.mrb[0].mxu0
        %5784 = vmatprep.mubr.bf16.mxu0 0
        %5785 = vmatmul.mubr.bf16.gmra.mrb[0].mxu0 %v5615
        %v5786 = vpop.f32.mrb[0].mxu0
        %v5787 = vadd.f32 0.0, %v5786
        %v5788 = vpop.f32.mrb[0].mxu0
        %v5789 = vpop.f32.mrb[0].mxu0
        %v5790 = vadd.f32 0.0, %v5789
        %v5791 = vpop.f32.mrb[0].mxu0
        %5792 = vdwg.mxu0
        %v5793 = vrcp.pop %v5633
        %v5794 = vrcp.pop %v5635
        %v5795 = vrcp.pop %v5637
        %v5796 = vrcp.pop %v5639
        %v5797 = vrcp.pop %v5641
        %v5798 = vrcp.pop %v5643
        %v5799 = vrcp.pop %v5645
        %v5800 = vrcp.pop %v5647
        %v5801 = vrcp.pop %v5649
        %v5802 = vrcp.pop %v5651
        %v5803 = vrcp.pop %v5653
        %v5804 = vrcp.pop %v5655
        %v5805 = vrcp.pop %v5657
        %v5806 = vrcp.pop %v5659
        %v5807 = vrcp.pop %v5661
        %v5808 = vrcp.pop %v5663
        %v5809 = vmul.f32 %v5731, %v5793
        %v5810 = vmul.f32 %v5734, %v5794
        %v5811 = vmul.f32 %v5739, %v5795
        %v5812 = vmul.f32 %v5742, %v5796
        %v5813 = vmul.f32 %v5747, %v5797
        %v5814 = vmul.f32 %v5750, %v5798
        %v5815 = vmul.f32 %v5755, %v5799
        %v5816 = vmul.f32 %v5758, %v5800
        %v5817 = vmul.f32 %v5763, %v5801
        %v5818 = vmul.f32 %v5766, %v5802
        %v5819 = vmul.f32 %v5771, %v5803
        %v5820 = vmul.f32 %v5774, %v5804
        %v5821 = vmul.f32 %v5779, %v5805
        %v5822 = vmul.f32 %v5782, %v5806
        %v5823 = vmul.f32 %v5787, %v5807
        %v5824 = vmul.f32 %v5790, %v5808
        %5841 = vrot.lane.b32.xlu0 %v5809, 64
        %v5842 = vpop.permute.xlu0 %5841
        %5843 = vrot.lane.b32.xlu0 %v5810, 64
        %v5844 = vpop.permute.xlu0 %5843
        %5845 = vrot.lane.b32.xlu0 %v5811, 64
        %v5846 = vpop.permute.xlu0 %5845
        %5847 = vrot.lane.b32.xlu0 %v5812, 64
        %v5848 = vpop.permute.xlu0 %5847
        %5849 = vrot.lane.b32.xlu0 %v5813, 64
        %v5850 = vpop.permute.xlu0 %5849
        %5851 = vrot.lane.b32.xlu0 %v5814, 64
        %v5852 = vpop.permute.xlu0 %5851
        %5853 = vrot.lane.b32.xlu0 %v5815, 64
        %v5854 = vpop.permute.xlu0 %5853
        %5855 = vrot.lane.b32.xlu0 %v5816, 64
        %v5856 = vpop.permute.xlu0 %5855
        %5857 = vrot.lane.b32.xlu0 %v5817, 64
        %v5858 = vpop.permute.xlu0 %5857
        %5859 = vrot.lane.b32.xlu0 %v5818, 64
        %v5860 = vpop.permute.xlu0 %5859
        %5861 = vrot.lane.b32.xlu0 %v5819, 64
        %v5862 = vpop.permute.xlu0 %5861
        %5863 = vrot.lane.b32.xlu0 %v5820, 64
        %v5864 = vpop.permute.xlu0 %5863
        %5865 = vrot.lane.b32.xlu0 %v5821, 64
        %v5866 = vpop.permute.xlu0 %5865
        %5867 = vrot.lane.b32.xlu0 %v5822, 64
        %v5868 = vpop.permute.xlu0 %5867
        %5869 = vrot.lane.b32.xlu0 %v5823, 64
        %v5870 = vpop.permute.xlu0 %5869
        %5871 = vrot.lane.b32.xlu0 %v5824, 64
        %v5872 = vpop.permute.xlu0 %5871
        %5889 = vst.msk [vmem:[#allocation2 + $0x10] sm:$0xff] %vm3864, %v5842
        %5890 = vst.msk [vmem:[#allocation2 + $0x28] sm:$0xff] %vm3864, %v5844
        %5891 = vst.msk [vmem:[#allocation2 + $0x40] sm:$0xff] %vm3864, %v5846
        %5892 = vst.msk [vmem:[#allocation2 + $0x58] sm:$0xff] %vm3864, %v5848
        %5893 = vst.msk [vmem:[#allocation2 + $0x70] sm:$0xff] %vm3864, %v5850
        %5894 = vst.msk [vmem:[#allocation2 + $0x88] sm:$0xff] %vm3864, %v5852
        %5895 = vst.msk [vmem:[#allocation2 + $0xa0] sm:$0xff] %vm3864, %v5854
        %5896 = vst.msk [vmem:[#allocation2 + $0xb8] sm:$0xff] %vm3864, %v5856
        %5897 = vst.msk [vmem:[#allocation2 + $0xd0] sm:$0xff] %vm3864, %v5858
        %5898 = vst.msk [vmem:[#allocation2 + $0xe8] sm:$0xff] %vm3864, %v5860
        %5899 = vst.msk [vmem:[#allocation2 + $0x100] sm:$0xff] %vm3864, %v5862
        %5900 = vst.msk [vmem:[#allocation2 + $0x118] sm:$0xff] %vm3864, %v5864
        %5901 = vst.msk [vmem:[#allocation2 + $0x130] sm:$0xff] %vm3864, %v5866
        %5902 = vst.msk [vmem:[#allocation2 + $0x148] sm:$0xff] %vm3864, %v5868
        %5903 = vst.msk [vmem:[#allocation2 + $0x160] sm:$0xff] %vm3864, %v5870
        %5904 = vst.msk [vmem:[#allocation2 + $0x178] sm:$0xff] %vm3864, %v5872
        %v5905 = vld [vmem:[#allocation2] sm:$0xff]
        %v5906 = vld [vmem:[#allocation2 + $0x8] sm:$0xff]
        %v5907 = vld [vmem:[#allocation2 + $0x10] sm:$0xff]
        %v5908 = vld [vmem:[#allocation2 + $0x18] sm:$0xff]
        %v5909 = vld [vmem:[#allocation2 + $0x20] sm:$0xff]
        %v5910 = vld [vmem:[#allocation2 + $0x28] sm:$0xff]
        %v5911 = vld [vmem:[#allocation2 + $0x30] sm:$0xff]
        %v5912 = vld [vmem:[#allocation2 + $0x38] sm:$0xff]
        %v5913 = vld [vmem:[#allocation2 + $0x40] sm:$0xff]
        %v5914 = vld [vmem:[#allocation2 + $0x48] sm:$0xff]
        %v5915 = vld [vmem:[#allocation2 + $0x50] sm:$0xff]
        %v5916 = vld [vmem:[#allocation2 + $0x58] sm:$0xff]
        %v5917 = vld [vmem:[#allocation2 + $0x60] sm:$0xff]
        %v5918 = vld [vmem:[#allocation2 + $0x68] sm:$0xff]
        %v5919 = vld [vmem:[#allocation2 + $0x70] sm:$0xff]
        %v5920 = vld [vmem:[#allocation2 + $0x78] sm:$0xff]
        %v5921 = vld [vmem:[#allocation2 + $0x80] sm:$0xff]
        %v5922 = vld [vmem:[#allocation2 + $0x88] sm:$0xff]
        %v5923 = vld [vmem:[#allocation2 + $0x90] sm:$0xff]
        %v5924 = vld [vmem:[#allocation2 + $0x98] sm:$0xff]
        %v5925 = vld [vmem:[#allocation2 + $0xa0] sm:$0xff]
        %v5926 = vld [vmem:[#allocation2 + $0xa8] sm:$0xff]
        %v5927 = vld [vmem:[#allocation2 + $0xb0] sm:$0xff]
        %v5928 = vld [vmem:[#allocation2 + $0xb8] sm:$0xff]
        %v5929 = vld [vmem:[#allocation2 + $0xc0] sm:$0xff]
        %v5930 = vld [vmem:[#allocation2 + $0xc8] sm:$0xff]
        %v5931 = vld [vmem:[#allocation2 + $0xd0] sm:$0xff]
        %v5932 = vld [vmem:[#allocation2 + $0xd8] sm:$0xff]
        %v5933 = vld [vmem:[#allocation2 + $0xe0] sm:$0xff]
        %v5934 = vld [vmem:[#allocation2 + $0xe8] sm:$0xff]
        %v5935 = vld [vmem:[#allocation2 + $0xf0] sm:$0xff]
        %v5936 = vld [vmem:[#allocation2 + $0xf8] sm:$0xff]
        %v5937 = vld [vmem:[#allocation2 + $0x100] sm:$0xff]
        %v5938 = vld [vmem:[#allocation2 + $0x108] sm:$0xff]
        %v5939 = vld [vmem:[#allocation2 + $0x110] sm:$0xff]
        %v5940 = vld [vmem:[#allocation2 + $0x118] sm:$0xff]
        %v5941 = vld [vmem:[#allocation2 + $0x120] sm:$0xff]
        %v5942 = vld [vmem:[#allocation2 + $0x128] sm:$0xff]
        %v5943 = vld [vmem:[#allocation2 + $0x130] sm:$0xff]
        %v5944 = vld [vmem:[#allocation2 + $0x138] sm:$0xff]
        %v5945 = vld [vmem:[#allocation2 + $0x140] sm:$0xff]
        %v5946 = vld [vmem:[#allocation2 + $0x148] sm:$0xff]
        %v5947 = vld [vmem:[#allocation2 + $0x150] sm:$0xff]
        %v5948 = vld [vmem:[#allocation2 + $0x158] sm:$0xff]
        %v5949 = vld [vmem:[#allocation2 + $0x160] sm:$0xff]
        %v5950 = vld [vmem:[#allocation2 + $0x168] sm:$0xff]
        %v5951 = vld [vmem:[#allocation2 + $0x170] sm:$0xff]
        %v5952 = vld [vmem:[#allocation2 + $0x178] sm:$0xff]
        %v5953 = vpack.c.bf16 %v5908, %v5905
        %v5954 = vpack.c.bf16 %v5909, %v5906
        %v5955 = vpack.c.bf16 %v5910, %v5907
        %v5956 = vpack.c.bf16 %v5914, %v5911
        %v5957 = vpack.c.bf16 %v5915, %v5912
        %v5958 = vpack.c.bf16 %v5916, %v5913
        %v5959 = vpack.c.bf16 %v5920, %v5917
        %v5960 = vpack.c.bf16 %v5921, %v5918
        %v5961 = vpack.c.bf16 %v5922, %v5919
        %v5962 = vpack.c.bf16 %v5926, %v5923
        %v5963 = vpack.c.bf16 %v5927, %v5924
        %v5964 = vpack.c.bf16 %v5928, %v5925
        %v5965 = vpack.c.bf16 %v5932, %v5929
        %v5966 = vpack.c.bf16 %v5933, %v5930
        %v5967 = vpack.c.bf16 %v5934, %v5931
        %v5968 = vpack.c.bf16 %v5938, %v5935
        %v5969 = vpack.c.bf16 %v5939, %v5936
        %v5970 = vpack.c.bf16 %v5940, %v5937
        %v5971 = vpack.c.bf16 %v5944, %v5941
        %v5972 = vpack.c.bf16 %v5945, %v5942
        %v5973 = vpack.c.bf16 %v5946, %v5943
        %v5974 = vpack.c.bf16 %v5950, %v5947
        %v5975 = vpack.c.bf16 %v5951, %v5948
        %v5976 = vpack.c.bf16 %v5952, %v5949
        %v5977 = vld [vmem:[#allocation8] sm:$0xff]
        %v5978 = vld [vmem:[#allocation8 + $0x8] sm:$0xf]
        %v5979 = vld [vmem:[#allocation8 + $0xc] sm:$0xff]
        %v5980 = vld [vmem:[#allocation8 + $0x14] sm:$0xf]
        %v5981 = vld [vmem:[#allocation8 + $0x18] sm:$0xff]
        %v5982 = vld [vmem:[#allocation8 + $0x20] sm:$0xf]
        %v5983 = vld [vmem:[#allocation8 + $0x24] sm:$0xff]
        %v5984 = vld [vmem:[#allocation8 + $0x2c] sm:$0xf]
        %v5985 = vld [vmem:[#allocation8 + $0x30] sm:$0xff]
        %v5986 = vld [vmem:[#allocation8 + $0x38] sm:$0xf]
        %v5987 = vld [vmem:[#allocation8 + $0x3c] sm:$0xff]
        %v5988 = vld [vmem:[#allocation8 + $0x44] sm:$0xf]
        %v5989 = vld [vmem:[#allocation8 + $0x48] sm:$0xff]
        %v5990 = vld [vmem:[#allocation8 + $0x50] sm:$0xf]
        %v5991 = vld [vmem:[#allocation8 + $0x54] sm:$0xff]
        %v5992 = vld [vmem:[#allocation8 + $0x5c] sm:$0xf]
        %v5993 = vld [vmem:[#allocation8 + $0x60] sm:$0xff]
        %v5994 = vld [vmem:[#allocation8 + $0x68] sm:$0xf]
        %v5995 = vld [vmem:[#allocation8 + $0x6c] sm:$0xff]
        %v5996 = vld [vmem:[#allocation8 + $0x74] sm:$0xf]
        %v5997 = vld [vmem:[#allocation8 + $0x78] sm:$0xff]
        %v5998 = vld [vmem:[#allocation8 + $0x80] sm:$0xf]
        %v5999 = vld [vmem:[#allocation8 + $0x84] sm:$0xff]
        %v6000 = vld [vmem:[#allocation8 + $0x8c] sm:$0xf]
        %v6001 = vld [vmem:[#allocation8 + $0x90] sm:$0xff]
        %v6002 = vld [vmem:[#allocation8 + $0x98] sm:$0xf]
        %v6003 = vld [vmem:[#allocation8 + $0x9c] sm:$0xff]
        %v6004 = vld [vmem:[#allocation8 + $0xa4] sm:$0xf]
        %v6005 = vld [vmem:[#allocation8 + $0xa8] sm:$0xff]
        %v6006 = vld [vmem:[#allocation8 + $0xb0] sm:$0xf]
        %v6007 = vld [vmem:[#allocation8 + $0xb4] sm:$0xff]
        %v6008 = vld [vmem:[#allocation8 + $0xbc] sm:$0xf]
        %v6009 = vld [vmem:[#allocation8 + $0xc0] sm:$0xff]
        %v6010 = vld [vmem:[#allocation8 + $0xc8] sm:$0xf]
        %v6011 = vld [vmem:[#allocation8 + $0xcc] sm:$0xff]
        %v6012 = vld [vmem:[#allocation8 + $0xd4] sm:$0xf]
        %v6013 = vld [vmem:[#allocation8 + $0xd8] sm:$0xff]
        %v6014 = vld [vmem:[#allocation8 + $0xe0] sm:$0xf]
        %v6015 = vld [vmem:[#allocation8 + $0xe4] sm:$0xff]
        %v6016 = vld [vmem:[#allocation8 + $0xec] sm:$0xf]
        %v6017 = vld [vmem:[#allocation8 + $0xf0] sm:$0xff]
        %v6018 = vld [vmem:[#allocation8 + $0xf8] sm:$0xf]
        %v6019 = vld [vmem:[#allocation8 + $0xfc] sm:$0xff]
        %v6020 = vld [vmem:[#allocation8 + $0x104] sm:$0xf]
        %v6021 = vld [vmem:[#allocation8 + $0x108] sm:$0xff]
        %v6022 = vld [vmem:[#allocation8 + $0x110] sm:$0xf]
        %v6023 = vld [vmem:[#allocation8 + $0x114] sm:$0xff]
        %v6024 = vld [vmem:[#allocation8 + $0x11c] sm:$0xf]
        %v6025 = vld [vmem:[#allocation8 + $0x120] sm:$0xff]
        %v6026 = vld [vmem:[#allocation8 + $0x128] sm:$0xf]
        %v6027 = vld [vmem:[#allocation8 + $0x12c] sm:$0xff]
        %v6028 = vld [vmem:[#allocation8 + $0x134] sm:$0xf]
        %v6029 = vld [vmem:[#allocation8 + $0x138] sm:$0xff]
        %v6030 = vld [vmem:[#allocation8 + $0x140] sm:$0xf]
        %v6031 = vld [vmem:[#allocation8 + $0x144] sm:$0xff]
        %v6032 = vld [vmem:[#allocation8 + $0x14c] sm:$0xf]
        %v6033 = vld [vmem:[#allocation8 + $0x150] sm:$0xff]
        %v6034 = vld [vmem:[#allocation8 + $0x158] sm:$0xf]
        %v6035 = vld [vmem:[#allocation8 + $0x15c] sm:$0xff]
        %v6036 = vld [vmem:[#allocation8 + $0x164] sm:$0xf]
        %v6037 = vld [vmem:[#allocation8 + $0x168] sm:$0xff]
        %v6038 = vld [vmem:[#allocation8 + $0x170] sm:$0xf]
        %v6039 = vld [vmem:[#allocation8 + $0x174] sm:$0xff]
        %v6040 = vld [vmem:[#allocation8 + $0x17c] sm:$0xf]
        %v6041 = vld [vmem:[#allocation8 + $0x180] sm:$0xff]
        %v6042 = vld [vmem:[#allocation8 + $0x188] sm:$0xf]
        %v6043 = vld [vmem:[#allocation8 + $0x18c] sm:$0xff]
        %v6044 = vld [vmem:[#allocation8 + $0x194] sm:$0xf]
        %v6045 = vld [vmem:[#allocation8 + $0x198] sm:$0xff]
        %v6046 = vld [vmem:[#allocation8 + $0x1a0] sm:$0xf]
        %v6047 = vld [vmem:[#allocation8 + $0x1a4] sm:$0xff]
        %v6048 = vld [vmem:[#allocation8 + $0x1ac] sm:$0xf]
        %v6049 = vld [vmem:[#allocation8 + $0x1b0] sm:$0xff]
        %v6050 = vld [vmem:[#allocation8 + $0x1b8] sm:$0xf]
        %v6051 = vld [vmem:[#allocation8 + $0x1bc] sm:$0xff]
        %v6052 = vld [vmem:[#allocation8 + $0x1c4] sm:$0xf]
        %v6053 = vld [vmem:[#allocation8 + $0x1c8] sm:$0xff]
        %v6054 = vld [vmem:[#allocation8 + $0x1d0] sm:$0xf]
        %v6055 = vld [vmem:[#allocation8 + $0x1d4] sm:$0xff]
        %v6056 = vld [vmem:[#allocation8 + $0x1dc] sm:$0xf]
        %v6057 = vld [vmem:[#allocation8 + $0x1e0] sm:$0xff]
        %v6058 = vld [vmem:[#allocation8 + $0x1e8] sm:$0xf]
        %v6059 = vld [vmem:[#allocation8 + $0x1ec] sm:$0xff]
        %v6060 = vld [vmem:[#allocation8 + $0x1f4] sm:$0xf]
        %v6061 = vld [vmem:[#allocation8 + $0x1f8] sm:$0xff]
        %v6062 = vld [vmem:[#allocation8 + $0x200] sm:$0xf]
        %v6063 = vld [vmem:[#allocation8 + $0x204] sm:$0xff]
        %v6064 = vld [vmem:[#allocation8 + $0x20c] sm:$0xf]
        %v6065 = vld [vmem:[#allocation8 + $0x210] sm:$0xff]
        %v6066 = vld [vmem:[#allocation8 + $0x218] sm:$0xf]
        %v6067 = vld [vmem:[#allocation8 + $0x21c] sm:$0xff]
        %v6068 = vld [vmem:[#allocation8 + $0x224] sm:$0xf]
        %v6069 = vld [vmem:[#allocation8 + $0x228] sm:$0xff]
        %v6070 = vld [vmem:[#allocation8 + $0x230] sm:$0xf]
        %v6071 = vld [vmem:[#allocation8 + $0x234] sm:$0xff]
        %v6072 = vld [vmem:[#allocation8 + $0x23c] sm:$0xf]
        %v6073 = vld [vmem:[%s3] sm:$0x7]
        %v6075 = vlaneseq
        %v6076 = vshrl.u32 %v6075, 7
        %v6077 = vsub.s32 0, %v6076
        %v6078 = vrot.slane %v6073, %v6077
        %v6079 = vlaneseq
        %v6080 = vshrl.u32 %v6079, 7
        %v6081 = vsub.s32 1, %v6080
        %v6082 = vrot.slane %v6073, %v6081
        %v6083 = vlaneseq
        %v6084 = vshrl.u32 %v6083, 7
        %v6085 = vsub.s32 2, %v6084
        %v6086 = vrot.slane %v6073, %v6085
        %v6186 = vunpack.c.l.b16 %v5977
        %v6187 = vunpack.c.h.b16 %v5977
        %v6188 = vunpack.c.l.b16 %v5978
        %v6189 = vunpack.c.l.b16 %v5979
        %v6190 = vunpack.c.h.b16 %v5979
        %v6191 = vunpack.c.l.b16 %v5980
        %v6192 = vunpack.c.l.b16 %v5981
        %v6193 = vunpack.c.h.b16 %v5981
        %v6194 = vunpack.c.l.b16 %v5982
        %v6195 = vunpack.c.l.b16 %v5983
        %v6196 = vunpack.c.h.b16 %v5983
        %v6197 = vunpack.c.l.b16 %v5984
        %v6198 = vunpack.c.l.b16 %v5985
        %v6199 = vunpack.c.h.b16 %v5985
        %v6200 = vunpack.c.l.b16 %v5986
        %v6201 = vunpack.c.l.b16 %v5987
        %v6202 = vunpack.c.h.b16 %v5987
        %v6203 = vunpack.c.l.b16 %v5988
        %v6204 = vunpack.c.l.b16 %v5989
        %v6205 = vunpack.c.h.b16 %v5989
        %v6206 = vunpack.c.l.b16 %v5990
        %v6207 = vunpack.c.l.b16 %v5991
        %v6208 = vunpack.c.h.b16 %v5991
        %v6209 = vunpack.c.l.b16 %v5992
        %v6210 = vunpack.c.l.b16 %v5993
        %v6211 = vunpack.c.h.b16 %v5993
        %v6212 = vunpack.c.l.b16 %v5994
        %v6213 = vunpack.c.l.b16 %v5995
        %v6214 = vunpack.c.h.b16 %v5995
        %v6215 = vunpack.c.l.b16 %v5996
        %v6216 = vunpack.c.l.b16 %v5997
        %v6217 = vunpack.c.h.b16 %v5997
        %v6218 = vunpack.c.l.b16 %v5998
        %v6219 = vunpack.c.l.b16 %v5999
        %v6220 = vunpack.c.h.b16 %v5999
        %v6221 = vunpack.c.l.b16 %v6000
        %v6222 = vunpack.c.l.b16 %v6001
        %v6223 = vunpack.c.h.b16 %v6001
        %v6224 = vunpack.c.l.b16 %v6002
        %v6225 = vunpack.c.l.b16 %v6003
        %v6226 = vunpack.c.h.b16 %v6003
        %v6227 = vunpack.c.l.b16 %v6004
        %v6228 = vunpack.c.l.b16 %v6005
        %v6229 = vunpack.c.h.b16 %v6005
        %v6230 = vunpack.c.l.b16 %v6006
        %v6231 = vunpack.c.l.b16 %v6007
        %v6232 = vunpack.c.h.b16 %v6007
        %v6233 = vunpack.c.l.b16 %v6008
        %v6234 = vunpack.c.l.b16 %v6009
        %v6235 = vunpack.c.h.b16 %v6009
        %v6236 = vunpack.c.l.b16 %v6010
        %v6237 = vunpack.c.l.b16 %v6011
        %v6238 = vunpack.c.h.b16 %v6011
        %v6239 = vunpack.c.l.b16 %v6012
        %v6240 = vunpack.c.l.b16 %v6013
        %v6241 = vunpack.c.h.b16 %v6013
        %v6242 = vunpack.c.l.b16 %v6014
        %v6243 = vunpack.c.l.b16 %v6015
        %v6244 = vunpack.c.h.b16 %v6015
        %v6245 = vunpack.c.l.b16 %v6016
        %v6246 = vunpack.c.l.b16 %v6017
        %v6247 = vunpack.c.h.b16 %v6017
        %v6248 = vunpack.c.l.b16 %v6018
        %v6249 = vunpack.c.l.b16 %v6019
        %v6250 = vunpack.c.h.b16 %v6019
        %v6251 = vunpack.c.l.b16 %v6020
        %v6252 = vunpack.c.l.b16 %v6021
        %v6253 = vunpack.c.h.b16 %v6021
        %v6254 = vunpack.c.l.b16 %v6022
        %v6255 = vunpack.c.l.b16 %v6023
        %v6256 = vunpack.c.h.b16 %v6023
        %v6257 = vunpack.c.l.b16 %v6024
        %v6258 = vunpack.c.l.b16 %v6025
        %v6259 = vunpack.c.h.b16 %v6025
        %v6260 = vunpack.c.l.b16 %v6026
        %v6261 = vunpack.c.l.b16 %v6027
        %v6262 = vunpack.c.h.b16 %v6027
        %v6263 = vunpack.c.l.b16 %v6028
        %v6264 = vunpack.c.l.b16 %v6029
        %v6265 = vunpack.c.h.b16 %v6029
        %v6266 = vunpack.c.l.b16 %v6030
        %v6267 = vunpack.c.l.b16 %v6031
        %v6268 = vunpack.c.h.b16 %v6031
        %v6269 = vunpack.c.l.b16 %v6032
        %v6270 = vunpack.c.l.b16 %v6033
        %v6271 = vunpack.c.h.b16 %v6033
        %v6272 = vunpack.c.l.b16 %v6034
        %v6273 = vunpack.c.l.b16 %v6035
        %v6274 = vunpack.c.h.b16 %v6035
        %v6275 = vunpack.c.l.b16 %v6036
        %v6276 = vunpack.c.l.b16 %v6037
        %v6277 = vunpack.c.h.b16 %v6037
        %v6278 = vunpack.c.l.b16 %v6038
        %v6279 = vunpack.c.l.b16 %v6039
        %v6280 = vunpack.c.h.b16 %v6039
        %v6281 = vunpack.c.l.b16 %v6040
        %v6282 = vunpack.c.l.b16 %v6041
        %v6283 = vunpack.c.h.b16 %v6041
        %v6284 = vunpack.c.l.b16 %v6042
        %v6285 = vunpack.c.l.b16 %v6043
        %v6286 = vunpack.c.h.b16 %v6043
        %v6287 = vunpack.c.l.b16 %v6044
        %v6288 = vunpack.c.l.b16 %v6045
        %v6289 = vunpack.c.h.b16 %v6045
        %v6290 = vunpack.c.l.b16 %v6046
        %v6291 = vunpack.c.l.b16 %v6047
        %v6292 = vunpack.c.h.b16 %v6047
        %v6293 = vunpack.c.l.b16 %v6048
        %v6294 = vunpack.c.l.b16 %v6049
        %v6295 = vunpack.c.h.b16 %v6049
        %v6296 = vunpack.c.l.b16 %v6050
        %v6297 = vunpack.c.l.b16 %v6051
        %v6298 = vunpack.c.h.b16 %v6051
        %v6299 = vunpack.c.l.b16 %v6052
        %v6300 = vunpack.c.l.b16 %v6053
        %v6301 = vunpack.c.h.b16 %v6053
        %v6302 = vunpack.c.l.b16 %v6054
        %v6303 = vunpack.c.l.b16 %v6055
        %v6304 = vunpack.c.h.b16 %v6055
        %v6305 = vunpack.c.l.b16 %v6056
        %v6306 = vunpack.c.l.b16 %v6057
        %v6307 = vunpack.c.h.b16 %v6057
        %v6308 = vunpack.c.l.b16 %v6058
        %v6309 = vunpack.c.l.b16 %v6059
        %v6310 = vunpack.c.h.b16 %v6059
        %v6311 = vunpack.c.l.b16 %v6060
        %v6312 = vunpack.c.l.b16 %v6061
        %v6313 = vunpack.c.h.b16 %v6061
        %v6314 = vunpack.c.l.b16 %v6062
        %v6315 = vunpack.c.l.b16 %v6063
        %v6316 = vunpack.c.h.b16 %v6063
        %v6317 = vunpack.c.l.b16 %v6064
        %v6318 = vunpack.c.l.b16 %v6065
        %v6319 = vunpack.c.h.b16 %v6065
        %v6320 = vunpack.c.l.b16 %v6066
        %v6321 = vunpack.c.l.b16 %v6067
        %v6322 = vunpack.c.h.b16 %v6067
        %v6323 = vunpack.c.l.b16 %v6068
        %v6324 = vunpack.c.l.b16 %v6069
        %v6325 = vunpack.c.h.b16 %v6069
        %v6326 = vunpack.c.l.b16 %v6070
        %v6327 = vunpack.c.l.b16 %v6071
        %v6328 = vunpack.c.h.b16 %v6071
        %v6329 = vunpack.c.l.b16 %v6072
        %v6330 = vpack.c.b16 %v6189, %v6186
        %v6331 = vpack.c.b16 %v6190, %v6187
        %v6332 = vpack.c.b16 %v6191, %v6188
        %v6333 = vpack.c.b16 %v6195, %v6192
        %v6334 = vpack.c.b16 %v6196, %v6193
        %v6335 = vpack.c.b16 %v6197, %v6194
        %v6336 = vpack.c.b16 %v6201, %v6198
        %v6337 = vpack.c.b16 %v6202, %v6199
        %v6338 = vpack.c.b16 %v6203, %v6200
        %v6339 = vpack.c.b16 %v6207, %v6204
        %v6340 = vpack.c.b16 %v6208, %v6205
        %v6341 = vpack.c.b16 %v6209, %v6206
        %v6342 = vpack.c.b16 %v6213, %v6210
        %v6343 = vpack.c.b16 %v6214, %v6211
        %v6344 = vpack.c.b16 %v6215, %v6212
        %v6345 = vpack.c.b16 %v6219, %v6216
        %v6346 = vpack.c.b16 %v6220, %v6217
        %v6347 = vpack.c.b16 %v6221, %v6218
        %v6348 = vpack.c.b16 %v6225, %v6222
        %v6349 = vpack.c.b16 %v6226, %v6223
        %v6350 = vpack.c.b16 %v6227, %v6224
        %v6351 = vpack.c.b16 %v6231, %v6228
        %v6352 = vpack.c.b16 %v6232, %v6229
        %v6353 = vpack.c.b16 %v6233, %v6230
        %v6354 = vpack.c.b16 %v6237, %v6234
        %v6355 = vpack.c.b16 %v6238, %v6235
        %v6356 = vpack.c.b16 %v6239, %v6236
        %v6357 = vpack.c.b16 %v6243, %v6240
        %v6358 = vpack.c.b16 %v6244, %v6241
        %v6359 = vpack.c.b16 %v6245, %v6242
        %v6360 = vpack.c.b16 %v6249, %v6246
        %v6361 = vpack.c.b16 %v6250, %v6247
        %v6362 = vpack.c.b16 %v6251, %v6248
        %v6363 = vpack.c.b16 %v6255, %v6252
        %v6364 = vpack.c.b16 %v6256, %v6253
        %v6365 = vpack.c.b16 %v6257, %v6254
        %v6366 = vpack.c.b16 %v6261, %v6258
        %v6367 = vpack.c.b16 %v6262, %v6259
        %v6368 = vpack.c.b16 %v6263, %v6260
        %v6369 = vpack.c.b16 %v6267, %v6264
        %v6370 = vpack.c.b16 %v6268, %v6265
        %v6371 = vpack.c.b16 %v6269, %v6266
        %v6372 = vpack.c.b16 %v6273, %v6270
        %v6373 = vpack.c.b16 %v6274, %v6271
        %v6374 = vpack.c.b16 %v6275, %v6272
        %v6375 = vpack.c.b16 %v6279, %v6276
        %v6376 = vpack.c.b16 %v6280, %v6277
        %v6377 = vpack.c.b16 %v6281, %v6278
        %v6378 = vpack.c.b16 %v6285, %v6282
        %v6379 = vpack.c.b16 %v6286, %v6283
        %v6380 = vpack.c.b16 %v6287, %v6284
        %v6381 = vpack.c.b16 %v6291, %v6288
        %v6382 = vpack.c.b16 %v6292, %v6289
        %v6383 = vpack.c.b16 %v6293, %v6290
        %v6384 = vpack.c.b16 %v6297, %v6294
        %v6385 = vpack.c.b16 %v6298, %v6295
        %v6386 = vpack.c.b16 %v6299, %v6296
        %v6387 = vpack.c.b16 %v6303, %v6300
        %v6388 = vpack.c.b16 %v6304, %v6301
        %v6389 = vpack.c.b16 %v6305, %v6302
        %v6390 = vpack.c.b16 %v6309, %v6306
        %v6391 = vpack.c.b16 %v6310, %v6307
        %v6392 = vpack.c.b16 %v6311, %v6308
        %v6393 = vpack.c.b16 %v6315, %v6312
        %v6394 = vpack.c.b16 %v6316, %v6313
        %v6395 = vpack.c.b16 %v6317, %v6314
        %v6396 = vpack.c.b16 %v6321, %v6318
        %v6397 = vpack.c.b16 %v6322, %v6319
        %v6398 = vpack.c.b16 %v6323, %v6320
        %v6399 = vpack.c.b16 %v6327, %v6324
        %v6400 = vpack.c.b16 %v6328, %v6325
        %v6401 = vpack.c.b16 %v6329, %v6326
        %6474 = vmatprep.subr.bf16.mxu0 %v6331
        %6475 = vmatpush1.bf16.msra.mxu0 %v6330
        %6476 = vmatprep.subr.bf16.mxu0 %v6334
        %6477 = vmatpush1.bf16.msra.mxu0 %v6333
        %6478 = vmatprep.subr.bf16.mxu0 %v6337
        %6479 = vmatpush1.bf16.msra.mxu0 %v6336
        %6480 = vmatprep.subr.bf16.mxu0 %v6340
        %6481 = vmatpush1.bf16.msra.mxu0 %v6339
        %6482 = vmatprep.subr.bf16.mxu0 %v6343
        %6483 = vmatpush1.bf16.msra.mxu0 %v6342
        %6484 = vmatprep.subr.bf16.mxu0 %v6346
        %6485 = vmatpush1.bf16.msra.mxu0 %v6345
        %6486 = vmatprep.subr.bf16.mxu0 %v6349
        %6487 = vmatpush1.bf16.msra.mxu0 %v6348
        %6488 = vmatprep.subr.bf16.mxu0 %v6352
        %6489 = vmatpush1.bf16.msra.mxu0 %v6351
        %6490 = vmatprep.subr.bf16.mxu0 %v6355
        %6491 = vmatpush1.bf16.msra.mxu0 %v6354
        %6492 = vmatprep.subr.bf16.mxu0 %v6358
        %6493 = vmatpush1.bf16.msra.mxu0 %v6357
        %6494 = vmatprep.subr.bf16.mxu0 %v6361
        %6495 = vmatpush1.bf16.msra.mxu0 %v6360
        %6496 = vmatprep.subr.bf16.mxu0 %v6364
        %6497 = vmatpush1.bf16.msra.mxu0 %v6363
        %6498 = vmatprep.subr.bf16.mxu0 %v6367
        %6499 = vmatpush1.bf16.msra.mxu0 %v6366
        %6500 = vmatprep.subr.bf16.mxu0 %v6370
        %6501 = vmatpush1.bf16.msra.mxu0 %v6369
        %6502 = vmatprep.subr.bf16.mxu0 %v6373
        %6503 = vmatpush1.bf16.msra.mxu0 %v6372
        %6504 = vmatprep.subr.bf16.mxu0 %v6376
        %6505 = vmatpush1.bf16.msra.mxu0 %v6375
        %6506 = vmatprep.mubr.bf16.mxu0 %v5954
        %6507 = vmatmul.mubr.bf16.gmra.mrb[0].mxu0 %v5953
        %v6508 = vpop.f32.mrb[0].mxu0
        %v6509 = vadd.f32 %v6078, %v6508
        %v6510 = vpop.f32.mrb[0].mxu0
        %v6511 = vadd.f32 %v6082, %v6510
        %v6512 = vpop.f32.mrb[0].mxu0
        %v6513 = vadd.f32 %v6078, %v6512
        %v6514 = vpop.f32.mrb[0].mxu0
        %v6515 = vadd.f32 %v6082, %v6514
        %6516 = vmatprep.mubr.bf16.mxu0 %v5957
        %6517 = vmatmul.mubr.bf16.gmra.mrb[0].mxu0 %v5956
        %v6518 = vpop.f32.mrb[0].mxu0
        %v6519 = vadd.f32 %v6078, %v6518
        %v6520 = vpop.f32.mrb[0].mxu0
        %v6521 = vadd.f32 %v6082, %v6520
        %v6522 = vpop.f32.mrb[0].mxu0
        %v6523 = vadd.f32 %v6078, %v6522
        %v6524 = vpop.f32.mrb[0].mxu0
        %v6525 = vadd.f32 %v6082, %v6524
        %6526 = vmatprep.mubr.bf16.mxu0 %v5960
        %6527 = vmatmul.mubr.bf16.gmra.mrb[0].mxu0 %v5959
        %v6528 = vpop.f32.mrb[0].mxu0
        %v6529 = vadd.f32 %v6078, %v6528
        %v6530 = vpop.f32.mrb[0].mxu0
        %v6531 = vadd.f32 %v6082, %v6530
        %v6532 = vpop.f32.mrb[0].mxu0
        %v6533 = vadd.f32 %v6078, %v6532
        %v6534 = vpop.f32.mrb[0].mxu0
        %v6535 = vadd.f32 %v6082, %v6534
        %6536 = vmatprep.mubr.bf16.mxu0 %v5963
        %6537 = vmatmul.mubr.bf16.gmra.mrb[0].mxu0 %v5962
        %v6538 = vpop.f32.mrb[0].mxu0
        %v6539 = vadd.f32 %v6078, %v6538
        %v6540 = vpop.f32.mrb[0].mxu0
        %v6541 = vadd.f32 %v6082, %v6540
        %v6542 = vpop.f32.mrb[0].mxu0
        %v6543 = vadd.f32 %v6078, %v6542
        %v6544 = vpop.f32.mrb[0].mxu0
        %v6545 = vadd.f32 %v6082, %v6544
        %6546 = vmatprep.mubr.bf16.mxu0 %v5966
        %6547 = vmatmul.mubr.bf16.gmra.mrb[0].mxu0 %v5965
        %v6548 = vpop.f32.mrb[0].mxu0
        %v6549 = vadd.f32 %v6078, %v6548
        %v6550 = vpop.f32.mrb[0].mxu0
        %v6551 = vadd.f32 %v6082, %v6550
        %v6552 = vpop.f32.mrb[0].mxu0
        %v6553 = vadd.f32 %v6078, %v6552
        %v6554 = vpop.f32.mrb[0].mxu0
        %v6555 = vadd.f32 %v6082, %v6554
        %6556 = vmatprep.mubr.bf16.mxu0 %v5969
        %6557 = vmatmul.mubr.bf16.gmra.mrb[0].mxu0 %v5968
        %v6558 = vpop.f32.mrb[0].mxu0
        %v6559 = vadd.f32 %v6078, %v6558
        %v6560 = vpop.f32.mrb[0].mxu0
        %v6561 = vadd.f32 %v6082, %v6560
        %v6562 = vpop.f32.mrb[0].mxu0
        %v6563 = vadd.f32 %v6078, %v6562
        %v6564 = vpop.f32.mrb[0].mxu0
        %v6565 = vadd.f32 %v6082, %v6564
        %6566 = vmatprep.mubr.bf16.mxu0 %v5972
        %6567 = vmatmul.mubr.bf16.gmra.mrb[0].mxu0 %v5971
        %v6568 = vpop.f32.mrb[0].mxu0
        %v6569 = vadd.f32 %v6078, %v6568
        %v6570 = vpop.f32.mrb[0].mxu0
        %v6571 = vadd.f32 %v6082, %v6570
        %v6572 = vpop.f32.mrb[0].mxu0
        %v6573 = vadd.f32 %v6078, %v6572
        %v6574 = vpop.f32.mrb[0].mxu0
        %v6575 = vadd.f32 %v6082, %v6574
        %6576 = vmatprep.mubr.bf16.mxu0 %v5975
        %6577 = vmatmul.mubr.bf16.gmra.mrb[0].mxu0 %v5974
        %v6578 = vpop.f32.mrb[0].mxu0
        %v6579 = vadd.f32 %v6078, %v6578
        %v6580 = vpop.f32.mrb[0].mxu0
        %v6581 = vadd.f32 %v6082, %v6580
        %v6582 = vpop.f32.mrb[0].mxu0
        %v6583 = vadd.f32 %v6078, %v6582
        %v6584 = vpop.f32.mrb[0].mxu0
        %v6585 = vadd.f32 %v6082, %v6584
        %6586 = vdwg.mxu0
        %6587 = vmatprep.subr.bf16.mxu0 %v6379
        %6588 = vmatpush1.bf16.msra.mxu0 %v6378
        %6589 = vmatprep.subr.bf16.mxu0 %v6382
        %6590 = vmatpush1.bf16.msra.mxu0 %v6381
        %6591 = vmatprep.subr.bf16.mxu0 %v6385
        %6592 = vmatpush1.bf16.msra.mxu0 %v6384
        %6593 = vmatprep.subr.bf16.mxu0 %v6388
        %6594 = vmatpush1.bf16.msra.mxu0 %v6387
        %6595 = vmatprep.subr.bf16.mxu0 %v6391
        %6596 = vmatpush1.bf16.msra.mxu0 %v6390
        %6597 = vmatprep.subr.bf16.mxu0 %v6394
        %6598 = vmatpush1.bf16.msra.mxu0 %v6393
        %6599 = vmatprep.subr.bf16.mxu0 %v6397
        %6600 = vmatpush1.bf16.msra.mxu0 %v6396
        %6601 = vmatprep.subr.bf16.mxu0 %v6400
        %6602 = vmatpush1.bf16.msra.mxu0 %v6399
        %6603 = vmatprep.subr.bf16.mxu0 0
        %6604 = vmatpush1.bf16.msra.mxu0 0
        %6605 = vmatprep.subr.bf16.mxu0 0
        %6606 = vmatpush1.bf16.msra.mxu0 0
        %6607 = vmatprep.subr.bf16.mxu0 0
        %6608 = vmatpush1.bf16.msra.mxu0 0
        %6609 = vmatprep.subr.bf16.mxu0 0
        %6610 = vmatpush1.bf16.msra.mxu0 0
        %6611 = vmatprep.subr.bf16.mxu0 0
        %6612 = vmatpush1.bf16.msra.mxu0 0
        %6613 = vmatprep.subr.bf16.mxu0 0
        %6614 = vmatpush1.bf16.msra.mxu0 0
        %6615 = vmatprep.subr.bf16.mxu0 0
        %6616 = vmatpush1.bf16.msra.mxu0 0
        %6617 = vmatprep.subr.bf16.mxu0 0
        %6618 = vmatpush1.bf16.msra.mxu0 0
        %6619 = vmatprep.mubr.bf16.mxu0 0
        %6620 = vmatmul.mubr.bf16.gmra.mrb[0].mxu0 %v5955
        %v6621 = vpop.f32.mrb[0].mxu0
        %v6622 = vadd.f32 %v6509, %v6621
        %v6623 = vpop.f32.mrb[0].mxu0
        %v6624 = vadd.f32 %v6511, %v6623
        %v6625 = vpop.f32.mrb[0].mxu0
        %v6626 = vadd.f32 %v6513, %v6625
        %v6627 = vpop.f32.mrb[0].mxu0
        %v6628 = vadd.f32 %v6515, %v6627
        %6629 = vmatprep.mubr.bf16.mxu0 0
        %6630 = vmatmul.mubr.bf16.gmra.mrb[0].mxu0 %v5958
        %v6631 = vpop.f32.mrb[0].mxu0
        %v6632 = vadd.f32 %v6519, %v6631
        %v6633 = vpop.f32.mrb[0].mxu0
        %v6634 = vadd.f32 %v6521, %v6633
        %v6635 = vpop.f32.mrb[0].mxu0
        %v6636 = vadd.f32 %v6523, %v6635
        %v6637 = vpop.f32.mrb[0].mxu0
        %v6638 = vadd.f32 %v6525, %v6637
        %6639 = vmatprep.mubr.bf16.mxu0 0
        %6640 = vmatmul.mubr.bf16.gmra.mrb[0].mxu0 %v5961
        %v6641 = vpop.f32.mrb[0].mxu0
        %v6642 = vadd.f32 %v6529, %v6641
        %v6643 = vpop.f32.mrb[0].mxu0
        %v6644 = vadd.f32 %v6531, %v6643
        %v6645 = vpop.f32.mrb[0].mxu0
        %v6646 = vadd.f32 %v6533, %v6645
        %v6647 = vpop.f32.mrb[0].mxu0
        %v6648 = vadd.f32 %v6535, %v6647
        %6649 = vmatprep.mubr.bf16.mxu0 0
        %6650 = vmatmul.mubr.bf16.gmra.mrb[0].mxu0 %v5964
        %v6651 = vpop.f32.mrb[0].mxu0
        %v6652 = vadd.f32 %v6539, %v6651
        %v6653 = vpop.f32.mrb[0].mxu0
        %v6654 = vadd.f32 %v6541, %v6653
        %v6655 = vpop.f32.mrb[0].mxu0
        %v6656 = vadd.f32 %v6543, %v6655
        %v6657 = vpop.f32.mrb[0].mxu0
        %v6658 = vadd.f32 %v6545, %v6657
        %6659 = vmatprep.mubr.bf16.mxu0 0
        %6660 = vmatmul.mubr.bf16.gmra.mrb[0].mxu0 %v5967
        %v6661 = vpop.f32.mrb[0].mxu0
        %v6662 = vadd.f32 %v6549, %v6661
        %v6663 = vpop.f32.mrb[0].mxu0
        %v6664 = vadd.f32 %v6551, %v6663
        %v6665 = vpop.f32.mrb[0].mxu0
        %v6666 = vadd.f32 %v6553, %v6665
        %v6667 = vpop.f32.mrb[0].mxu0
        %v6668 = vadd.f32 %v6555, %v6667
        %6669 = vmatprep.mubr.bf16.mxu0 0
        %6670 = vmatmul.mubr.bf16.gmra.mrb[0].mxu0 %v5970
        %v6671 = vpop.f32.mrb[0].mxu0
        %v6672 = vadd.f32 %v6559, %v6671
        %v6673 = vpop.f32.mrb[0].mxu0
        %v6674 = vadd.f32 %v6561, %v6673
        %v6675 = vpop.f32.mrb[0].mxu0
        %v6676 = vadd.f32 %v6563, %v6675
        %v6677 = vpop.f32.mrb[0].mxu0
        %v6678 = vadd.f32 %v6565, %v6677
        %6679 = vmatprep.mubr.bf16.mxu0 0
        %6680 = vmatmul.mubr.bf16.gmra.mrb[0].mxu0 %v5973
        %v6681 = vpop.f32.mrb[0].mxu0
        %v6682 = vadd.f32 %v6569, %v6681
        %v6683 = vpop.f32.mrb[0].mxu0
        %v6684 = vadd.f32 %v6571, %v6683
        %v6685 = vpop.f32.mrb[0].mxu0
        %v6686 = vadd.f32 %v6573, %v6685
        %v6687 = vpop.f32.mrb[0].mxu0
        %v6688 = vadd.f32 %v6575, %v6687
        %6689 = vmatprep.mubr.bf16.mxu0 0
        %6690 = vmatmul.mubr.bf16.gmra.mrb[0].mxu0 %v5976
        %v6691 = vpop.f32.mrb[0].mxu0
        %v6692 = vadd.f32 %v6579, %v6691
        %v6693 = vpop.f32.mrb[0].mxu0
        %v6694 = vadd.f32 %v6581, %v6693
        %v6695 = vpop.f32.mrb[0].mxu0
        %v6696 = vadd.f32 %v6583, %v6695
        %v6697 = vpop.f32.mrb[0].mxu0
        %v6698 = vadd.f32 %v6585, %v6697
        %6699 = vdwg.mxu0
        %6700 = vmatprep.subr.bf16.mxu0 0
        %6701 = vmatpush1.bf16.msra.mxu0 %v6332
        %6702 = vmatprep.subr.bf16.mxu0 0
        %6703 = vmatpush1.bf16.msra.mxu0 %v6335
        %6704 = vmatprep.subr.bf16.mxu0 0
        %6705 = vmatpush1.bf16.msra.mxu0 %v6338
        %6706 = vmatprep.subr.bf16.mxu0 0
        %6707 = vmatpush1.bf16.msra.mxu0 %v6341
        %6708 = vmatprep.subr.bf16.mxu0 0
        %6709 = vmatpush1.bf16.msra.mxu0 %v6344
        %6710 = vmatprep.subr.bf16.mxu0 0
        %6711 = vmatpush1.bf16.msra.mxu0 %v6347
        %6712 = vmatprep.subr.bf16.mxu0 0
        %6713 = vmatpush1.bf16.msra.mxu0 %v6350
        %6714 = vmatprep.subr.bf16.mxu0 0
        %6715 = vmatpush1.bf16.msra.mxu0 %v6353
        %6716 = vmatprep.subr.bf16.mxu0 0
        %6717 = vmatpush1.bf16.msra.mxu0 %v6356
        %6718 = vmatprep.subr.bf16.mxu0 0
        %6719 = vmatpush1.bf16.msra.mxu0 %v6359
        %6720 = vmatprep.subr.bf16.mxu0 0
        %6721 = vmatpush1.bf16.msra.mxu0 %v6362
        %6722 = vmatprep.subr.bf16.mxu0 0
        %6723 = vmatpush1.bf16.msra.mxu0 %v6365
        %6724 = vmatprep.subr.bf16.mxu0 0
        %6725 = vmatpush1.bf16.msra.mxu0 %v6368
        %6726 = vmatprep.subr.bf16.mxu0 0
        %6727 = vmatpush1.bf16.msra.mxu0 %v6371
        %6728 = vmatprep.subr.bf16.mxu0 0
        %6729 = vmatpush1.bf16.msra.mxu0 %v6374
        %6730 = vmatprep.subr.bf16.mxu0 0
        %6731 = vmatpush1.bf16.msra.mxu0 %v6377
        %6732 = vmatprep.mubr.bf16.mxu0 %v5954
        %6733 = vmatmul.mubr.bf16.gmra.mrb[0].mxu0 %v5953
        %v6734 = vpop.f32.mrb[0].mxu0
        %v6735 = vadd.f32 %v6086, %v6734
        %v6736 = vpop.f32.mrb[0].mxu0
        %v6737 = vpop.f32.mrb[0].mxu0
        %v6738 = vadd.f32 %v6086, %v6737
        %v6739 = vpop.f32.mrb[0].mxu0
        %6740 = vmatprep.mubr.bf16.mxu0 %v5957
        %6741 = vmatmul.mubr.bf16.gmra.mrb[0].mxu0 %v5956
        %v6742 = vpop.f32.mrb[0].mxu0
        %v6743 = vadd.f32 %v6086, %v6742
        %v6744 = vpop.f32.mrb[0].mxu0
        %v6745 = vpop.f32.mrb[0].mxu0
        %v6746 = vadd.f32 %v6086, %v6745
        %v6747 = vpop.f32.mrb[0].mxu0
        %6748 = vmatprep.mubr.bf16.mxu0 %v5960
        %6749 = vmatmul.mubr.bf16.gmra.mrb[0].mxu0 %v5959
        %v6750 = vpop.f32.mrb[0].mxu0
        %v6751 = vadd.f32 %v6086, %v6750
        %v6752 = vpop.f32.mrb[0].mxu0
        %v6753 = vpop.f32.mrb[0].mxu0
        %v6754 = vadd.f32 %v6086, %v6753
        %v6755 = vpop.f32.mrb[0].mxu0
        %6756 = vmatprep.mubr.bf16.mxu0 %v5963
        %6757 = vmatmul.mubr.bf16.gmra.mrb[0].mxu0 %v5962
        %v6758 = vpop.f32.mrb[0].mxu0
        %v6759 = vadd.f32 %v6086, %v6758
        %v6760 = vpop.f32.mrb[0].mxu0
        %v6761 = vpop.f32.mrb[0].mxu0
        %v6762 = vadd.f32 %v6086, %v6761
        %v6763 = vpop.f32.mrb[0].mxu0
        %6764 = vmatprep.mubr.bf16.mxu0 %v5966
        %6765 = vmatmul.mubr.bf16.gmra.mrb[0].mxu0 %v5965
        %v6766 = vpop.f32.mrb[0].mxu0
        %v6767 = vadd.f32 %v6086, %v6766
        %v6768 = vpop.f32.mrb[0].mxu0
        %v6769 = vpop.f32.mrb[0].mxu0
        %v6770 = vadd.f32 %v6086, %v6769
        %v6771 = vpop.f32.mrb[0].mxu0
        %6772 = vmatprep.mubr.bf16.mxu0 %v5969
        %6773 = vmatmul.mubr.bf16.gmra.mrb[0].mxu0 %v5968
        %v6774 = vpop.f32.mrb[0].mxu0
        %v6775 = vadd.f32 %v6086, %v6774
        %v6776 = vpop.f32.mrb[0].mxu0
        %v6777 = vpop.f32.mrb[0].mxu0
        %v6778 = vadd.f32 %v6086, %v6777
        %v6779 = vpop.f32.mrb[0].mxu0
        %6780 = vmatprep.mubr.bf16.mxu0 %v5972
        %6781 = vmatmul.mubr.bf16.gmra.mrb[0].mxu0 %v5971
        %v6782 = vpop.f32.mrb[0].mxu0
        %v6783 = vadd.f32 %v6086, %v6782
        %v6784 = vpop.f32.mrb[0].mxu0
        %v6785 = vpop.f32.mrb[0].mxu0
        %v6786 = vadd.f32 %v6086, %v6785
        %v6787 = vpop.f32.mrb[0].mxu0
        %6788 = vmatprep.mubr.bf16.mxu0 %v5975
        %6789 = vmatmul.mubr.bf16.gmra.mrb[0].mxu0 %v5974
        %v6790 = vpop.f32.mrb[0].mxu0
        %v6791 = vadd.f32 %v6086, %v6790
        %v6792 = vpop.f32.mrb[0].mxu0
        %v6793 = vpop.f32.mrb[0].mxu0
        %v6794 = vadd.f32 %v6086, %v6793
        %v6795 = vpop.f32.mrb[0].mxu0
        %6796 = vdwg.mxu0
        %6797 = vmatprep.subr.bf16.mxu0 0
        %6798 = vmatpush1.bf16.msra.mxu0 %v6380
        %6799 = vmatprep.subr.bf16.mxu0 0
        %6800 = vmatpush1.bf16.msra.mxu0 %v6383
        %6801 = vmatprep.subr.bf16.mxu0 0
        %6802 = vmatpush1.bf16.msra.mxu0 %v6386
        %6803 = vmatprep.subr.bf16.mxu0 0
        %6804 = vmatpush1.bf16.msra.mxu0 %v6389
        %6805 = vmatprep.subr.bf16.mxu0 0
        %6806 = vmatpush1.bf16.msra.mxu0 %v6392
        %6807 = vmatprep.subr.bf16.mxu0 0
        %6808 = vmatpush1.bf16.msra.mxu0 %v6395
        %6809 = vmatprep.subr.bf16.mxu0 0
        %6810 = vmatpush1.bf16.msra.mxu0 %v6398
        %6811 = vmatprep.subr.bf16.mxu0 0
        %6812 = vmatpush1.bf16.msra.mxu0 %v6401
        %6813 = vmatprep.subr.bf16.mxu0 0
        %6814 = vmatpush1.bf16.msra.mxu0 0
        %6815 = vmatprep.subr.bf16.mxu0 0
        %6816 = vmatpush1.bf16.msra.mxu0 0
        %6817 = vmatprep.subr.bf16.mxu0 0
        %6818 = vmatpush1.bf16.msra.mxu0 0
        %6819 = vmatprep.subr.bf16.mxu0 0
        %6820 = vmatpush1.bf16.msra.mxu0 0
        %6821 = vmatprep.subr.bf16.mxu0 0
        %6822 = vmatpush1.bf16.msra.mxu0 0
        %6823 = vmatprep.subr.bf16.mxu0 0
        %6824 = vmatpush1.bf16.msra.mxu0 0
        %6825 = vmatprep.subr.bf16.mxu0 0
        %6826 = vmatpush1.bf16.msra.mxu0 0
        %6827 = vmatprep.subr.bf16.mxu0 0
        %6828 = vmatpush1.bf16.msra.mxu0 0
        %6829 = vmatprep.mubr.bf16.mxu0 0
        %6830 = vmatmul.mubr.bf16.gmra.mrb[0].mxu0 %v5955
        %v6831 = vpop.f32.mrb[0].mxu0
        %v6832 = vadd.f32 %v6735, %v6831
        %v6833 = vpop.f32.mrb[0].mxu0
        %v6834 = vpop.f32.mrb[0].mxu0
        %v6835 = vadd.f32 %v6738, %v6834
        %v6836 = vpop.f32.mrb[0].mxu0
        %6837 = vmatprep.mubr.bf16.mxu0 0
        %6838 = vmatmul.mubr.bf16.gmra.mrb[0].mxu0 %v5958
        %v6839 = vpop.f32.mrb[0].mxu0
        %v6840 = vadd.f32 %v6743, %v6839
        %v6841 = vpop.f32.mrb[0].mxu0
        %v6842 = vpop.f32.mrb[0].mxu0
        %v6843 = vadd.f32 %v6746, %v6842
        %v6844 = vpop.f32.mrb[0].mxu0
        %6845 = vmatprep.mubr.bf16.mxu0 0
        %6846 = vmatmul.mubr.bf16.gmra.mrb[0].mxu0 %v5961
        %v6847 = vpop.f32.mrb[0].mxu0
        %v6848 = vadd.f32 %v6751, %v6847
        %v6849 = vpop.f32.mrb[0].mxu0
        %v6850 = vpop.f32.mrb[0].mxu0
        %v6851 = vadd.f32 %v6754, %v6850
        %v6852 = vpop.f32.mrb[0].mxu0
        %6853 = vmatprep.mubr.bf16.mxu0 0
        %6854 = vmatmul.mubr.bf16.gmra.mrb[0].mxu0 %v5964
        %v6855 = vpop.f32.mrb[0].mxu0
        %v6856 = vadd.f32 %v6759, %v6855
        %v6857 = vpop.f32.mrb[0].mxu0
        %v6858 = vpop.f32.mrb[0].mxu0
        %v6859 = vadd.f32 %v6762, %v6858
        %v6860 = vpop.f32.mrb[0].mxu0
        %6861 = vmatprep.mubr.bf16.mxu0 0
        %6862 = vmatmul.mubr.bf16.gmra.mrb[0].mxu0 %v5967
        %v6863 = vpop.f32.mrb[0].mxu0
        %v6864 = vadd.f32 %v6767, %v6863
        %v6865 = vpop.f32.mrb[0].mxu0
        %v6866 = vpop.f32.mrb[0].mxu0
        %v6867 = vadd.f32 %v6770, %v6866
        %v6868 = vpop.f32.mrb[0].mxu0
        %6869 = vmatprep.mubr.bf16.mxu0 0
        %6870 = vmatmul.mubr.bf16.gmra.mrb[0].mxu0 %v5970
        %v6871 = vpop.f32.mrb[0].mxu0
        %v6872 = vadd.f32 %v6775, %v6871
        %v6873 = vpop.f32.mrb[0].mxu0
        %v6874 = vpop.f32.mrb[0].mxu0
        %v6875 = vadd.f32 %v6778, %v6874
        %v6876 = vpop.f32.mrb[0].mxu0
        %6877 = vmatprep.mubr.bf16.mxu0 0
        %6878 = vmatmul.mubr.bf16.gmra.mrb[0].mxu0 %v5973
        %v6879 = vpop.f32.mrb[0].mxu0
        %v6880 = vadd.f32 %v6783, %v6879
        %v6881 = vpop.f32.mrb[0].mxu0
        %v6882 = vpop.f32.mrb[0].mxu0
        %v6883 = vadd.f32 %v6786, %v6882
        %v6884 = vpop.f32.mrb[0].mxu0
        %6885 = vmatprep.mubr.bf16.mxu0 0
        %6886 = vmatmul.mubr.bf16.gmra.mrb[0].mxu0 %v5976
        %v6887 = vpop.f32.mrb[0].mxu0
        %v6888 = vadd.f32 %v6791, %v6887
        %v6889 = vpop.f32.mrb[0].mxu0
        %v6890 = vpop.f32.mrb[0].mxu0
        %v6891 = vadd.f32 %v6794, %v6890
        %v6892 = vpop.f32.mrb[0].mxu0
        %6893 = vdwg.mxu0
        %v6894 = vpack.c.bf16 %v6626, %v6622
        %v6895 = vpack.c.bf16 %v6628, %v6624
        %v6896 = vpack.c.bf16 %v6835, %v6832
        %v6897 = vpack.c.bf16 %v6636, %v6632
        %v6898 = vpack.c.bf16 %v6638, %v6634
        %v6899 = vpack.c.bf16 %v6843, %v6840
        %v6900 = vpack.c.bf16 %v6646, %v6642
        %v6901 = vpack.c.bf16 %v6648, %v6644
        %v6902 = vpack.c.bf16 %v6851, %v6848
        %v6903 = vpack.c.bf16 %v6656, %v6652
        %v6904 = vpack.c.bf16 %v6658, %v6654
        %v6905 = vpack.c.bf16 %v6859, %v6856
        %v6906 = vpack.c.bf16 %v6666, %v6662
        %v6907 = vpack.c.bf16 %v6668, %v6664
        %v6908 = vpack.c.bf16 %v6867, %v6864
        %v6909 = vpack.c.bf16 %v6676, %v6672
        %v6910 = vpack.c.bf16 %v6678, %v6674
        %v6911 = vpack.c.bf16 %v6875, %v6872
        %v6912 = vpack.c.bf16 %v6686, %v6682
        %v6913 = vpack.c.bf16 %v6688, %v6684
        %v6914 = vpack.c.bf16 %v6883, %v6880
        %v6915 = vpack.c.bf16 %v6696, %v6692
        %v6916 = vpack.c.bf16 %v6698, %v6694
        %v6917 = vpack.c.bf16 %v6891, %v6888
        %v6942 = vunpack.c.l.b16 %v6894
        %v6943 = vunpack.c.l.b16 %v6895
        %v6944 = vunpack.c.l.b16 %v6896
        %v6945 = vunpack.c.h.b16 %v6894
        %v6946 = vunpack.c.h.b16 %v6895
        %v6947 = vunpack.c.h.b16 %v6896
        %v6948 = vunpack.c.l.b16 %v6897
        %v6949 = vunpack.c.l.b16 %v6898
        %v6950 = vunpack.c.l.b16 %v6899
        %v6951 = vunpack.c.h.b16 %v6897
        %v6952 = vunpack.c.h.b16 %v6898
        %v6953 = vunpack.c.h.b16 %v6899
        %v6954 = vunpack.c.l.b16 %v6900
        %v6955 = vunpack.c.l.b16 %v6901
        %v6956 = vunpack.c.l.b16 %v6902
        %v6957 = vunpack.c.h.b16 %v6900
        %v6958 = vunpack.c.h.b16 %v6901
        %v6959 = vunpack.c.h.b16 %v6902
        %v6960 = vunpack.c.l.b16 %v6903
        %v6961 = vunpack.c.l.b16 %v6904
        %v6962 = vunpack.c.l.b16 %v6905
        %v6963 = vunpack.c.h.b16 %v6903
        %v6964 = vunpack.c.h.b16 %v6904
        %v6965 = vunpack.c.h.b16 %v6905
        %v6966 = vunpack.c.l.b16 %v6906
        %v6967 = vunpack.c.l.b16 %v6907
        %v6968 = vunpack.c.l.b16 %v6908
        %v6969 = vunpack.c.h.b16 %v6906
        %v6970 = vunpack.c.h.b16 %v6907
        %v6971 = vunpack.c.h.b16 %v6908
        %v6972 = vunpack.c.l.b16 %v6909
        %v6973 = vunpack.c.l.b16 %v6910
        %v6974 = vunpack.c.l.b16 %v6911
        %v6975 = vunpack.c.h.b16 %v6909
        %v6976 = vunpack.c.h.b16 %v6910
        %v6977 = vunpack.c.h.b16 %v6911
        %v6978 = vunpack.c.l.b16 %v6912
        %v6979 = vunpack.c.l.b16 %v6913
        %v6980 = vunpack.c.l.b16 %v6914
        %v6981 = vunpack.c.h.b16 %v6912
        %v6982 = vunpack.c.h.b16 %v6913
        %v6983 = vunpack.c.h.b16 %v6914
        %v6984 = vunpack.c.l.b16 %v6915
        %v6985 = vunpack.c.l.b16 %v6916
        %v6986 = vunpack.c.l.b16 %v6917
        %v6987 = vunpack.c.h.b16 %v6915
        %v6988 = vunpack.c.h.b16 %v6916
        %v6989 = vunpack.c.h.b16 %v6917
        %v6990 = vpack.c.b16 %v6943, %v6942
        %v6991 = vpack.c.b16 %v6944, %v6944
        %v6992 = vpack.c.b16 %v6946, %v6945
        %v6993 = vpack.c.b16 %v6947, %v6947
        %v6994 = vpack.c.b16 %v6949, %v6948
        %v6995 = vpack.c.b16 %v6950, %v6950
        %v6996 = vpack.c.b16 %v6952, %v6951
        %v6997 = vpack.c.b16 %v6953, %v6953
        %v6998 = vpack.c.b16 %v6955, %v6954
        %v6999 = vpack.c.b16 %v6956, %v6956
        %v7000 = vpack.c.b16 %v6958, %v6957
        %v7001 = vpack.c.b16 %v6959, %v6959
        %v7002 = vpack.c.b16 %v6961, %v6960
        %v7003 = vpack.c.b16 %v6962, %v6962
        %v7004 = vpack.c.b16 %v6964, %v6963
        %v7005 = vpack.c.b16 %v6965, %v6965
        %v7006 = vpack.c.b16 %v6967, %v6966
        %v7007 = vpack.c.b16 %v6968, %v6968
        %v7008 = vpack.c.b16 %v6970, %v6969
        %v7009 = vpack.c.b16 %v6971, %v6971
        %v7010 = vpack.c.b16 %v6973, %v6972
        %v7011 = vpack.c.b16 %v6974, %v6974
        %v7012 = vpack.c.b16 %v6976, %v6975
        %v7013 = vpack.c.b16 %v6977, %v6977
        %v7014 = vpack.c.b16 %v6979, %v6978
        %v7015 = vpack.c.b16 %v6980, %v6980
        %v7016 = vpack.c.b16 %v6982, %v6981
        %v7017 = vpack.c.b16 %v6983, %v6983
        %v7018 = vpack.c.b16 %v6985, %v6984
        %v7019 = vpack.c.b16 %v6986, %v6986
        %v7020 = vpack.c.b16 %v6988, %v6987
        %v7021 = vpack.c.b16 %v6989, %v6989
        %7054 = vst [vmem:[%s244] sm:$0xff] %v6990
        %7055 = vst [vmem:[%s244 + $0x8] sm:$0xf] %v6991
        %7056 = vst [vmem:[%s244 + $0xc] sm:$0xff] %v6992
        %7057 = vst [vmem:[%s244 + $0x14] sm:$0xf] %v6993
        %7058 = vst [vmem:[%s244 + $0x18] sm:$0xff] %v6994
        %7059 = vst [vmem:[%s244 + $0x20] sm:$0xf] %v6995
        %7060 = vst [vmem:[%s244 + $0x24] sm:$0xff] %v6996
        %7061 = vst [vmem:[%s244 + $0x2c] sm:$0xf] %v6997
        %7062 = vst [vmem:[%s244 + $0x30] sm:$0xff] %v6998
        %7063 = vst [vmem:[%s244 + $0x38] sm:$0xf] %v6999
        %7064 = vst [vmem:[%s244 + $0x3c] sm:$0xff] %v7000
        %7065 = vst [vmem:[%s244 + $0x44] sm:$0xf] %v7001
        %7066 = vst [vmem:[%s244 + $0x48] sm:$0xff] %v7002
        %7067 = vst [vmem:[%s244 + $0x50] sm:$0xf] %v7003
        %7068 = vst [vmem:[%s244 + $0x54] sm:$0xff] %v7004
        %7069 = vst [vmem:[%s244 + $0x5c] sm:$0xf] %v7005
        %7070 = vst [vmem:[%s244 + $0x60] sm:$0xff] %v7006
        %7071 = vst [vmem:[%s244 + $0x68] sm:$0xf] %v7007
        %7072 = vst [vmem:[%s244 + $0x6c] sm:$0xff] %v7008
        %7073 = vst [vmem:[%s244 + $0x74] sm:$0xf] %v7009
        %7074 = vst [vmem:[%s244 + $0x78] sm:$0xff] %v7010
        %7075 = vst [vmem:[%s244 + $0x80] sm:$0xf] %v7011
        %7076 = vst [vmem:[%s244 + $0x84] sm:$0xff] %v7012
        %7077 = vst [vmem:[%s244 + $0x8c] sm:$0xf] %v7013
        %7078 = vst [vmem:[%s244 + $0x90] sm:$0xff] %v7014
        %7079 = vst [vmem:[%s244 + $0x98] sm:$0xf] %v7015
        %7080 = vst [vmem:[%s244 + $0x9c] sm:$0xff] %v7016
        %7081 = vst [vmem:[%s244 + $0xa4] sm:$0xf] %v7017
        %7082 = vst [vmem:[%s244 + $0xa8] sm:$0xff] %v7018
        %7083 = vst [vmem:[%s244 + $0xb0] sm:$0xf] %v7019
        %7084 = vst [vmem:[%s244 + $0xb4] sm:$0xff] %v7020
        %7085 = vst [vmem:[%s244 + $0xbc] sm:$0xf] %v7021
        %s7086 = sand.u32 %s119, 1
        %s7087 = scalar_lea.sflag [#allocation5], %s7086
        %s7088 = sand.u32 %s119, 1
        %s7089 = smul.addr %s7088, 192
        %s7090 = scalar_lea.vmem [#allocation9], %s7089
        // Predicated region
        $region49: #{tpu_custom_call.1} parent=35 // pred_check
          %p7091 = pneg %p129
        $region50: #{tpu_custom_call.1} parent=35 // pred_check_branch
          %7093 = sbr.rel (%p7091) target = $region52
        $region51: #{tpu_custom_call.1} parent=35 // pred_region
          %s7095 = ssub.s32 3072, 3072
          %7096 = vsyncadd %s7087, %s7095
          %s7097 = smul.addr %s22, 48
          %s7098 = smul.addr %s7097, 64
          %s7099 = scalar_lea.hbm %s4, %s7098
          %s7100 = sshll.u32 %s7090, 4
          %s7101 = int_to_ptr.vmem [resolvable:$true] %s7100
          %7106 = dma.vmem_to_hbm [thread:$0]  %s7101, 3072, %s7099, %s7087, 192, 192, 12
        $region52: #{tpu_custom_call.1} parent=35 // pred_fallthru
          _
      $region36: #{tpu_custom_call.1} parent=5 // pred_fallthru
        _
      %p7107 = scmp.le.s32.totalorder 2, %s17
      // Predicated region
      $region53: #{tpu_custom_call.1} parent=5 // pred_check
        %p7108 = pneg %p7107
      $region54: #{tpu_custom_call.1} parent=5 // pred_check_branch
        %7110 = sbr.rel (%p7108) target = $region56
      $region55: #{tpu_custom_call.1} parent=5 // pred_region
        %s7111 = ssub.s32 %s17, 2
        // Predicated region
        $region57: #{tpu_custom_call.1} parent=55 // pred_check
          %p7112 = pneg %p135
        $region58: #{tpu_custom_call.1} parent=55 // pred_check_branch
          %7114 = sbr.rel (%p7112) target = $region60
        $region59: #{tpu_custom_call.1} parent=55 // pred_region
          %s7115 = sand.u32 %s120, 1
          %s7116 = scalar_lea.sflag [#allocation5], %s7115
          %s7117 = sand.u32 %s120, 1
          %s7118 = smul.addr %s7117, 192
          %s7119 = scalar_lea.vmem [#allocation9], %s7118
          %7120 = dma.done %s7116, 3072
        $region60: #{tpu_custom_call.1} parent=55 // pred_fallthru
          _
      $region56: #{tpu_custom_call.1} parent=5 // pred_fallthru
        _
    $region6: #{tpu_custom_call.1} parent=1 // loop_footer
      %s21 = sadd.s32 1, %s17
    $region7: #{tpu_custom_call.1} parent=1 // loop_footer_branch
      %16 = sbr.rel target = $region3
    $region8: #{tpu_custom_call.1} parent=1 // loop_exit
      _
    %7121 = vsyncpa [#allocation4], 1
    %s7122 = scalar_lea.sflag [#allocation4], 1
    %7123 = vsyncpa %s7122, 1
    %7124 = vsyncpa [#allocation7], 1
    %7125 = vsyncpa [#allocation5], 1
    %s7126 = scalar_lea.sflag [#allocation5], 1
    %7127 = vsyncpa %s7126, 1

</llo_original>
